<compile_context>
chip_gen: v5e
topology: v5e:2x2
jax: 0.10.0
libtpu: 0.0.40
codegen_flags: <defaults>
</compile_context>

<pallas_src>
import functools

import jax
import jax.numpy as jnp
import numpy as np
from jax import lax
from jax.experimental import pallas as pl
from jax.experimental.pallas import tpu as pltpu


_PAD = 16  # guard rows around the flattened conv tile (bf16 packs 16 rows/vreg)


@functools.lru_cache(maxsize=1)
def _vmem_limit_bytes():
    """Explicit scoped-VMEM limit: ~3/4 of physical (96 MiB v5e/v6e, 48 MiB v7x)."""
    mib = 1024 * 1024
    try:
        cap = int(pltpu.get_tpu_info().vmem_capacity_bytes)
    except Exception:
        cap = 64 * mib                       # conservative default (v7x physical)
    cap = max(32 * mib, min(cap, 128 * mib))
    return (cap * 3) // 4


def _pick_tile(total, *, budget_bytes, bytes_per_unit, parallel_factor=1,
               min_steps=4):
    """Largest divisor t of `total` whose block fits `budget_bytes` and leaves
    >= `min_steps` grid steps overall (>= 2 per TensorCore on v7x megacore)."""
    cap = max(1, min(total, budget_bytes // max(1, bytes_per_unit)))
    need = -(-min_steps // max(1, parallel_factor))       # ceil division
    if need > 1 and total >= need:
        cap = min(cap, total // need)
    cap = max(1, cap)
    for t in range(cap, 0, -1):
        if total % t == 0:
            return t
    return 1


# ----------------------------- Pallas kernels ------------------------------

def _upsample2x2_kernel(x_ref, w_ref, b_ref, o_ref):
    # x: (TR, W, Cin) bf16; w: (Cin, 4*Cout) bf16, columns ordered (a, b, co);
    # b: (1, 4*Cout) f32; o: (TR, 2, W, 2*Cout) bf16 where o[t, a, j, b*Cout+co]
    # is the ConvTranspose2d output at spatial position (2*row+a, 2*j+b).
    tr, wx, cin = x_ref.shape
    half = w_ref.shape[1] // 2                 # = 2*Cout (the a = 0 column block)
    xm = x_ref[...].reshape(tr * wx, cin)
    # one MXU matmul covers all four output positions of the 2x2 upsample cell
    y = jnp.dot(xm, w_ref[...], preferred_element_type=jnp.float32) + b_ref[...]
    y = y.astype(o_ref.dtype)
    o_ref[:, 0, :, :] = y[:, :half].reshape(tr, wx, half)
    o_ref[:, 1, :, :] = y[:, half:].reshape(tr, wx, half)


def _make_conv3x3_relu_kernel(n_streams, th, width, cins, cout, fuse_dx):
    """3x3 conv + bias + ReLU over the channel-concat of `n_streams` inputs."""
    L = (th + 2) * width                       # rows of the flattened halo'd tile

    def kernel(*refs):
        k = 0
        halo = []
        for _ in range(n_streams):
            halo.append((refs[k], refs[k + 1], refs[k + 2]))   # top, body, bot
            k += 3
        wt_refs = refs[k:k + n_streams]
        k += n_streams
        b_ref = refs[k]
        o_ref = refs[k + 1]
        k += 2
        xs_refs = refs[k:k + n_streams]

        h = pl.program_id(1)
        last_h = pl.num_programs(1) - 1

        # W-boundary masks for the +-1 column shifts, generated in-kernel
        # (replaces the old (L, 1) f32 mask inputs and their DMA streams).
        col = lax.broadcasted_iota(jnp.int32, (L, 1), 0) % width
        not_left = col != 0                    # column j-1 exists
        not_right = col != (width - 1)         # column j+1 exists

        acc = None                             # chained f32 sum: no VMEM acc RMW
        for s in range(n_streams):
            cin = cins[s]
            top_ref, body_ref, bot_ref = halo[s]
            xs = xs_refs[s]
            dt = body_ref.dtype
            top_scale = (h > 0).astype(dt)         # zero top halo at h == 0
            bot_scale = (h < last_h).astype(dt)    # zero bottom halo at the end

            # Assemble the H-halo'd tile, flattened to ((TH+2)*W, Cin), with
            # _PAD zero guard rows on both sides (per-step: scratch is
            # per-TensorCore, so this must NOT be hoisted behind pl.when).
            zpad = jnp.zeros((_PAD, cin), dt)
            xs[0:_PAD, :] = zpad
            xs[_PAD + L:_PAD + L + _PAD, :] = zpad
            xs[_PAD:_PAD + width, :] = top_ref[0, 0] * top_scale
            xs[_PAD + width:_PAD + (th + 1) * width, :] = (
                body_ref[0].reshape(th * width, cin))
            xs[_PAD + (th + 1) * width:_PAD + L, :] = bot_ref[0, 0] * bot_scale

            # One shifted view per dx (not per tap); W-wrap columns select 0.
            x0 = xs[_PAD:_PAD + L, :]
            xm1 = jnp.where(not_left, xs[_PAD - 1:_PAD - 1 + L, :], 0.0)
            xp1 = jnp.where(not_right, xs[_PAD + 1:_PAD + 1 + L, :], 0.0)

            if fuse_dx:
                # K = 3*cin: one MXU matmul per dy (3 per stream instead of 9).
                slab = jnp.concatenate([xm1, x0, xp1], axis=-1)     # (L, 3*cin)
                for dy in range(3):
                    w_dy = wt_refs[s][dy].reshape(3 * cin, cout)
                    part = jnp.dot(slab[dy * width:(dy + th) * width, :], w_dy,
                                   preferred_element_type=jnp.float32)
                    acc = part if acc is None else acc + part
            else:
                shifted = (xm1, x0, xp1)
                for dy in range(3):                 # statically unrolled taps,
                    for dx in range(3):             # aligned slices only
                        patch = shifted[dx][dy * width:(dy + th) * width, :]
                        part = jnp.dot(patch, wt_refs[s][dy, dx],
                                       preferred_element_type=jnp.float32)
                        acc = part if acc is None else acc + part

        y = jnp.maximum(acc + b_ref[...], 0.0)
        o_ref[...] = y.astype(o_ref.dtype).reshape(1, th, width, cout)

    return kernel


# ------------------------------ wrappers ------------------------------------

def conv_transpose2x2_stride2(x_nhwc, w_torch, b):
    """ConvTranspose2d(kernel=2, stride=2). w_torch: (Cin, Cout, 2, 2)."""
    N, H, W, Cin = x_nhwc.shape
    Cout = int(w_torch.shape[1])
    # single (Cin, 4*Cout) bf16 weight, columns ordered (a, b, co)
    w_mat = jnp.transpose(w_torch, (0, 2, 3, 1)).reshape(Cin, 4 * Cout)
    w_mat = w_mat.astype(jnp.bfloat16)
    b_tiled = jnp.tile(b.astype(jnp.float32), 4).reshape(1, 4 * Cout)

    nr = N * H
    x3 = x_nhwc.astype(jnp.bfloat16).reshape(nr, W, Cin)

    limit = _vmem_limit_bytes()
    fixed = 2 * (Cin * 4 * Cout * 2 + 4 * Cout * 4)          # resident weights/bias
    per_row = 2 * (W * Cin * 2 + 4 * W * Cout * 2)           # dbl-buffered in + out
    budget = max(0, limit - fixed) * 3 // 4
    tr = _pick_tile(nr, budget_bytes=budget, bytes_per_unit=per_row,
                    parallel_factor=1, min_steps=4)

    out = pl.pallas_call(
        _upsample2x2_kernel,
        out_shape=jax.ShapeDtypeStruct((nr, 2, W, 2 * Cout), jnp.bfloat16),
        grid=(nr // tr,),
        in_specs=[
            pl.BlockSpec((tr, W, Cin), lambda r: (r, 0, 0)),
            pl.BlockSpec((Cin, 4 * Cout), lambda r: (0, 0)),
            pl.BlockSpec((1, 4 * Cout), lambda r: (0, 0)),
        ],
        out_specs=pl.BlockSpec((tr, 2, W, 2 * Cout), lambda r: (r, 0, 0, 0)),
        compiler_params=pltpu.CompilerParams(
            dimension_semantics=("parallel",),
            vmem_limit_bytes=limit),
    )(x3, w_mat, b_tiled)

    # (N*H, 2, W, 2*Cout) -> (N, 2H, 2W, Cout): pure row-major reshape.
    return out.reshape(N, 2 * H, 2 * W, Cout)


def _halo_top_map(th):
    def index_map(n, hh):
        return (n, jnp.maximum(hh * th - 1, 0), 0, 0)
    return index_map


def _halo_bot_map(th, H):
    def index_map(n, hh):
        return (n, jnp.minimum(hh * th + th, H - 1), 0, 0)
    return index_map


def conv3x3_relu(inputs_nhwc, weights_hwio, b, *, out_dtype=jnp.float32):
    """Conv2d(k=3, padding=1) + bias + ReLU over the channel-concat of inputs.

    The torch.cat along channels is fused by giving each stream its own
    (3, 3, cin_s, Cout) weight slab, so the concatenated activation never hits
    HBM.  Operands run on the MXU in bf16 with f32 accumulation.
    """
    N, H, W, _ = inputs_nhwc[0].shape
    cout = int(weights_hwio[0].shape[3])
    cins = tuple(int(x.shape[3]) for x in inputs_nhwc)
    n_streams = len(inputs_nhwc)

    xs_bf16 = [x.astype(jnp.bfloat16) for x in inputs_nhwc]
    ws_bf16 = [w.astype(jnp.bfloat16) for w in weights_hwio]

    # Byte-budgeted row tile (channel-count aware), >= 4 grid steps when possible.
    limit = _vmem_limit_bytes()
    out_b = jnp.dtype(out_dtype).itemsize
    fixed = sum(2 * 9 * cin * cout * 2 for cin in cins) + 2 * cout * 4
    per_row = (sum(W * cin * 2 * (2 + 1 + 3) for cin in cins)   # blocks+scratch+views
               + W * cout * (4 + 2 * out_b))                    # f32 acc + out blocks
    budget = max(0, limit - fixed) * 3 // 4
    th = _pick_tile(H, budget_bytes=budget, bytes_per_unit=per_row,
                    parallel_factor=N, min_steps=4)
    L = (th + 2) * W

    # Fuse the 3 dx taps into one K=3*cin matmul per dy when the lane concat is
    # 128-aligned (adjacent lane groups, cheap); otherwise 9 chained dots.
    # TODO(synk): relax the gate once unaligned minor-dim concat is confirmed
    # on the deployed Mosaic version.
    fuse_dx = all(cin % 128 == 0 for cin in cins)

    operands = []
    in_specs = []
    for x, cin in zip(xs_bf16, cins):
        in_specs += [
            pl.BlockSpec((1, 1, W, cin), _halo_top_map(th)),
            pl.BlockSpec((1, th, W, cin), lambda n, hh: (n, hh, 0, 0)),
            pl.BlockSpec((1, 1, W, cin), _halo_bot_map(th, H)),
        ]
        operands += [x, x, x]
    for wt, cin in zip(ws_bf16, cins):
        # TODO(synk): single-buffer (pl.Buffered(1)) these constant-index-map
        # specs once validated on the deployed Pallas to reclaim weight VMEM.
        in_specs.append(pl.BlockSpec((3, 3, cin, cout),
                                     lambda n, hh: (0, 0, 0, 0)))
        operands.append(wt)
    in_specs.append(pl.BlockSpec((1, cout), lambda n, hh: (0, 0)))
    operands.append(b.reshape(1, cout).astype(jnp.float32))

    scratch = [pltpu.VMEM((2 * _PAD + L, cin), jnp.bfloat16) for cin in cins]

    # TODO(synk): for deployments with cout < 128, pad cout to 128 with zero
    # weight columns (lane-dense stores) and slice after the second conv.
    return pl.pallas_call(
        _make_conv3x3_relu_kernel(n_streams, th, W, cins, cout, fuse_dx),
        out_shape=jax.ShapeDtypeStruct((N, H, W, cout), out_dtype),
        grid=(N, H // th),
        in_specs=in_specs,
        out_specs=pl.BlockSpec((1, th, W, cout), lambda n, hh: (n, hh, 0, 0)),
        scratch_shapes=scratch,
        compiler_params=pltpu.CompilerParams(
            dimension_semantics=("parallel", "parallel"),
            vmem_limit_bytes=limit),
    )(*operands)


def up_conv_forward(skip_nchw, x_nchw, params):
    """Forward of up_conv(in_channels, bn=False, drop_rate=0)."""
    # NCHW -> NHWC glue.  TODO(synk): keep the surrounding model in NHWC so the
    # two entry transposes and the exit transpose (3 HBM passes) disappear.
    skip = jnp.transpose(skip_nchw, (0, 2, 3, 1))
    x = jnp.transpose(x_nchw, (0, 2, 3, 1))

    up = conv_transpose2x2_stride2(x, params["wt"], params["bt"])   # bf16 NHWC

    # double_conv, with torch.cat([skip, up], dim=1) fused into conv #1 by
    # splitting w1 along its input-channel dim (cat order is [skip, up]).
    cs = skip.shape[3]
    w1 = jnp.transpose(params["w1"], (2, 3, 1, 0))       # (3, 3, Cin, Cout)
    y = conv3x3_relu((skip, up), (w1[:, :, :cs, :], w1[:, :, cs:, :]),
                     params["b1"], out_dtype=jnp.bfloat16)
    w2 = jnp.transpose(params["w2"], (2, 3, 1, 0))
    y = conv3x3_relu((y,), (w2,), params["b2"], out_dtype=jnp.float32)
    return jnp.transpose(y, (0, 3, 1, 2))                # back to NCHW
    # TODO(synk): bn=True (BatchNorm2d) / drop_rate>0 (Dropout2d) branches of
    # double_conv are not exercised; this implements bn=False, drop_rate=0.


# ------------------------------ reference -----------------------------------

def _reference(skip_nchw, x_nchw, params):
    # XLA reference with the SAME bf16 quantization points as the kernels
    # (bf16 MXU operands, f32 accumulation), so only reduction order differs.
    bf16 = jnp.bfloat16
    skip = jnp.transpose(skip_nchw, (0, 2, 3, 1))
    x = jnp.transpose(x_nchw, (0, 2, 3, 1))
    N, H, W, _ = x.shape
    Cout = params["wt"].shape[1]
    up = jnp.einsum("nijc,cdab->niajbd", x.astype(bf16),
                    params["wt"].astype(bf16),
                    preferred_element_type=jnp.float32)
    up = up.reshape(N, 2 * H, 2 * W, Cout) + params["bt"]
    up = up.astype(bf16)

    def conv(xx, w, bb):
        w_hwio = jnp.transpose(w, (2, 3, 1, 0)).astype(bf16)
        y = lax.conv_general_dilated(
            xx, w_hwio, window_strides=(1, 1), padding="SAME",
            dimension_numbers=("NHWC", "HWIO", "NHWC"),
            preferred_element_type=jnp.float32)
        return jnp.maximum(y + bb, 0.0)

    cat = jnp.concatenate([skip.astype(bf16), up], axis=-1)
    y = conv(cat, params["w1"], params["b1"]).astype(bf16)
    y = conv(y, params["w2"], params["b2"])
    return jnp.transpose(y, (0, 3, 1, 2))


# -------------------------------- main ---------------------------------------

if __name__ == "__main__":
    N = 2
    C = 8                     # in_channels
    Ch = C // 2               # in_channels // 2
    Hx = Wx = 8               # spatial size of `x`; `skip` is 2x that

    key = jax.random.PRNGKey(0)
    ks = jax.random.split(key, 8)

    skip = jax.random.normal(ks[0], (N, Ch, 2 * Hx, 2 * Wx), jnp.float32)
    x = jax.random.normal(ks[1], (N, C, Hx, Wx), jnp.float32)

    params = {
        # ConvTranspose2d(C, C//2, 2, stride=2): weight (C, C//2, 2, 2)
        "wt": 0.1 * jax.random.normal(ks[2], (C, Ch, 2, 2), jnp.float32),
        "bt": 0.1 * jax.random.normal(ks[3], (Ch,), jnp.float32),
        # Conv2d(C, C//2, 3, padding=1)
        "w1": 0.1 * jax.random.normal(ks[4], (Ch, C, 3, 3), jnp.float32),
        "b1": 0.1 * jax.random.normal(ks[5], (Ch,), jnp.float32),
        # Conv2d(C//2, C//2, 3, padding=1)
        "w2": 0.1 * jax.random.normal(ks[6], (Ch, Ch, 3, 3), jnp.float32),
        "b2": 0.1 * jax.random.normal(ks[7], (Ch,), jnp.float32),
    }

    out = jax.block_until_ready(jax.jit(up_conv_forward)(skip, x, params))
    ref = jax.block_until_ready(_reference(skip, x, params))

    assert out.shape == (N, Ch, 2 * Hx, 2 * Wx), out.shape
    np.testing.assert_allclose(np.asarray(out), np.asarray(ref),
                               rtol=2e-2, atol=2e-2)
    print("KERNEL_OK")
</pallas_src>

<mosaic_0001>
module attributes {stable_mosaic.version = 11 : i64} {
  func.func @_upsample2x2_kernel(%arg0: i32, %arg1: memref<4x8x8xbf16, #tpu.memory_space<vmem>>, %arg2: memref<8x16xbf16, #tpu.memory_space<vmem>>, %arg3: memref<1x16xf32, #tpu.memory_space<vmem>>, %arg4: memref<4x2x8x8xbf16, #tpu.memory_space<vmem>>) attributes {dimension_semantics = [#tpu.dimension_semantics<parallel>], iteration_bounds = array<i64: 4>, scalar_prefetch = 0 : i64, scratch_operands = 0 : i64, tpu.core_type = #tpu.core_type<tc>, window_params = [{transform_indices = @transform_0, window_bounds = array<i64: 4, 8, 8>}, {pipeline_mode = #tpu.pipeline_mode<synchronous>, transform_indices = @transform_1, window_bounds = array<i64: 8, 16>}, {pipeline_mode = #tpu.pipeline_mode<synchronous>, transform_indices = @transform_2, window_bounds = array<i64: 1, 16>}, {transform_indices = @transform_3, window_bounds = array<i64: 4, 2, 8, 8>}]} {
    %c0 = arith.constant 0 : index
    %c0_0 = arith.constant 0 : index
    %c0_1 = arith.constant 0 : index
    %0 = vector.load %arg1[%c0, %c0_0, %c0_1] : memref<4x8x8xbf16, #tpu.memory_space<vmem>>, vector<4x8x8xbf16>
    %1 = vector.shape_cast %0 : vector<4x8x8xbf16> to vector<32x8xbf16>
    %c0_2 = arith.constant 0 : index
    %c0_3 = arith.constant 0 : index
    %2 = vector.load %arg2[%c0_2, %c0_3] : memref<8x16xbf16, #tpu.memory_space<vmem>>, vector<8x16xbf16>
    %cst = arith.constant dense<0.000000e+00> : vector<32x16xf32>
    %3 = tpu.matmul %1, %2, %cst {dimension_numbers = #tpu.dot_dimension_numbers<[1], [0], [0], [1], [0, 0, 1, 1], [], []>} : vector<32x8xbf16>, vector<8x16xbf16>, vector<32x16xf32> -> vector<32x16xf32>
    %c0_4 = arith.constant 0 : index
    %c0_5 = arith.constant 0 : index
    %4 = vector.load %arg3[%c0_4, %c0_5] : memref<1x16xf32, #tpu.memory_space<vmem>>, vector<1x16xf32>
    %5 = vector.broadcast %4 : vector<1x16xf32> to vector<32x16xf32>
    %6 = arith.addf %3, %5 : vector<32x16xf32>
    %7 = arith.truncf %6 : vector<32x16xf32> to vector<32x16xbf16>
    %8 = vector.extract_strided_slice %7 {offsets = [0, 0], sizes = [32, 8], strides = [1, 1]} : vector<32x16xbf16> to vector<32x8xbf16>
    %9 = vector.shape_cast %8 : vector<32x8xbf16> to vector<4x8x8xbf16>
    %c0_6 = arith.constant 0 : index
    %c0_7 = arith.constant 0 : index
    %c0_8 = arith.constant 0 : index
    %c0_9 = arith.constant 0 : index
    %10 = vector.load %arg4[%c0_6, %c0_7, %c0_8, %c0_9] : memref<4x2x8x8xbf16, #tpu.memory_space<vmem>>, vector<4x1x8x8xbf16>
    %11 = vector.shape_cast %10 : vector<4x1x8x8xbf16> to vector<4x8x8xbf16>
    %12 = vector.shape_cast %9 : vector<4x8x8xbf16> to vector<4x1x8x8xbf16>
    tpu.vector_store %arg4[%c0_6, %c0_7, %c0_8, %c0_9], %12 {strides = array<i32>} : memref<4x2x8x8xbf16, #tpu.memory_space<vmem>>, vector<4x1x8x8xbf16>,
    %13 = vector.extract_strided_slice %7 {offsets = [0, 8], sizes = [32, 8], strides = [1, 1]} : vector<32x16xbf16> to vector<32x8xbf16>
    %14 = vector.shape_cast %13 : vector<32x8xbf16> to vector<4x8x8xbf16>
    %c0_10 = arith.constant 0 : index
    %c1 = arith.constant 1 : index
    %c0_11 = arith.constant 0 : index
    %c0_12 = arith.constant 0 : index
    %15 = vector.load %arg4[%c0_10, %c1, %c0_11, %c0_12] : memref<4x2x8x8xbf16, #tpu.memory_space<vmem>>, vector<4x1x8x8xbf16>
    %16 = vector.shape_cast %15 : vector<4x1x8x8xbf16> to vector<4x8x8xbf16>
    %17 = vector.shape_cast %14 : vector<4x8x8xbf16> to vector<4x1x8x8xbf16>
    tpu.vector_store %arg4[%c0_10, %c1, %c0_11, %c0_12], %17 {strides = array<i32>} : memref<4x2x8x8xbf16, #tpu.memory_space<vmem>>, vector<4x1x8x8xbf16>,
    return
  }
  func.func @transform_0(%arg0: i32) -> (i32, i32, i32) {
    %c0_i32 = arith.constant 0 : i32
    %c0_i32_0 = arith.constant 0 : i32
    %c0_i32_1 = arith.constant 0 : i32
    return %arg0, %c0_i32, %c0_i32_0 : i32, i32, i32
  }
  func.func @transform_1(%arg0: i32) -> (i32, i32) {
    %c0_i32 = arith.constant 0 : i32
    %c0_i32_0 = arith.constant 0 : i32
    %c0_i32_1 = arith.constant 0 : i32
    return %c0_i32, %c0_i32_0 : i32, i32
  }
  func.func @transform_2(%arg0: i32) -> (i32, i32) {
    %c0_i32 = arith.constant 0 : i32
    %c0_i32_0 = arith.constant 0 : i32
    %c0_i32_1 = arith.constant 0 : i32
    return %c0_i32, %c0_i32_0 : i32, i32
  }
  func.func @transform_3(%arg0: i32) -> (i32, i32, i32, i32) {
    %c0_i32 = arith.constant 0 : i32
    %c0_i32_0 = arith.constant 0 : i32
    %c0_i32_1 = arith.constant 0 : i32
    %c0_i32_2 = arith.constant 0 : i32
    return %arg0, %c0_i32, %c0_i32_0, %c0_i32_1 : i32, i32, i32, i32
  }
}

module attributes {stable_mosaic.version = 11 : i64} {
  func.func @kernel(%arg0: i32, %arg1: i32, %arg2: memref<1x1x16x4xbf16, #tpu.memory_space<vmem>>, %arg3: memref<1x8x16x4xbf16, #tpu.memory_space<vmem>>, %arg4: memref<1x1x16x4xbf16, #tpu.memory_space<vmem>>, %arg5: memref<1x1x16x4xbf16, #tpu.memory_space<vmem>>, %arg6: memref<1x8x16x4xbf16, #tpu.memory_space<vmem>>, %arg7: memref<1x1x16x4xbf16, #tpu.memory_space<vmem>>, %arg8: memref<3x3x4x4xbf16, #tpu.memory_space<vmem>>, %arg9: memref<3x3x4x4xbf16, #tpu.memory_space<vmem>>, %arg10: memref<1x4xf32, #tpu.memory_space<vmem>>, %arg11: memref<1x8x16x4xbf16, #tpu.memory_space<vmem>>, %arg12: memref<192x4xbf16, #tpu.memory_space<vmem>>, %arg13: memref<192x4xbf16, #tpu.memory_space<vmem>>) attributes {dimension_semantics = [#tpu.dimension_semantics<parallel>, #tpu.dimension_semantics<parallel>], iteration_bounds = array<i64: 2, 2>, scalar_prefetch = 0 : i64, scratch_operands = 2 : i64, tpu.core_type = #tpu.core_type<tc>, window_params = [{transform_indices = @transform_0, window_bounds = array<i64: 1, 1, 16, 4>}, {transform_indices = @transform_1, window_bounds = array<i64: 1, 8, 16, 4>}, {transform_indices = @transform_2, window_bounds = array<i64: 1, 1, 16, 4>}, {transform_indices = @transform_3, window_bounds = array<i64: 1, 1, 16, 4>}, {transform_indices = @transform_4, window_bounds = array<i64: 1, 8, 16, 4>}, {transform_indices = @transform_5, window_bounds = array<i64: 1, 1, 16, 4>}, {pipeline_mode = #tpu.pipeline_mode<synchronous>, transform_indices = @transform_6, window_bounds = array<i64: 3, 3, 4, 4>}, {pipeline_mode = #tpu.pipeline_mode<synchronous>, transform_indices = @transform_7, window_bounds = array<i64: 3, 3, 4, 4>}, {pipeline_mode = #tpu.pipeline_mode<synchronous>, transform_indices = @transform_8, window_bounds = array<i64: 1, 4>}, {transform_indices = @transform_9, window_bounds = array<i64: 1, 8, 16, 4>}]} {
    %0 = tpu.iota {dimensions = array<i32: 0>} : vector<160x1xi32>
    %c16_i32 = arith.constant 16 : i32
    %c0_i32 = arith.constant 0 : i32
    %1 = arith.cmpi eq, %c16_i32, %c0_i32 : i32
    %c1_i32 = arith.constant 1 : i32
    %2 = arith.select %1, %c1_i32, %c16_i32 : i32
    %3 = vector.broadcast %2 : i32 to vector<160x1xi32>
    %4 = arith.remsi %0, %3 : vector<160x1xi32>
    %c0_i32_0 = arith.constant 0 : i32
    %5 = vector.broadcast %c0_i32_0 : i32 to vector<160x1xi32>
    %6 = arith.cmpi ne, %4, %5 : vector<160x1xi32>
    %c0_i32_1 = arith.constant 0 : i32
    %7 = vector.broadcast %c0_i32_1 : i32 to vector<160x1xi32>
    %8 = arith.cmpi slt, %4, %7 : vector<160x1xi32>
    %c0_i32_2 = arith.constant 0 : i32
    %9 = arith.cmpi slt, %2, %c0_i32_2 : i32
    %10 = vector.broadcast %9 : i1 to vector<160x1xi1>
    %11 = vector.broadcast %10 : vector<160x1xi1> to vector<160x1xi1>
    %12 = arith.xori %8, %11 : vector<160x1xi1>
    %13 = arith.andi %12, %6 : vector<160x1xi1>
    %14 = vector.broadcast %2 : i32 to vector<160x1xi32>
    %15 = arith.addi %4, %14 : vector<160x1xi32>
    %16 = arith.select %13, %15, %4 : vector<160x1xi1>, vector<160x1xi32>
    %c0_i32_3 = arith.constant 0 : i32
    %17 = vector.broadcast %c0_i32_3 : i32 to vector<160x1xi32>
    %18 = arith.cmpi ne, %16, %17 : vector<160x1xi32>
    %c15_i32 = arith.constant 15 : i32
    %19 = vector.broadcast %c15_i32 : i32 to vector<160x1xi32>
    %20 = arith.cmpi ne, %16, %19 : vector<160x1xi32>
    %c0_i32_4 = arith.constant 0 : i32
    %21 = arith.cmpi sgt, %arg1, %c0_i32_4 : i32
    %22 = arith.extui %21 : i1 to i32
    %23 = arith.sitofp %22 : i32 to f32
    %24 = arith.truncf %23 : f32 to bf16
    %c1_i32_5 = arith.constant 1 : i32
    %25 = arith.cmpi slt, %arg1, %c1_i32_5 : i32
    %26 = arith.extui %25 : i1 to i32
    %27 = arith.sitofp %26 : i32 to f32
    %28 = arith.truncf %27 : f32 to bf16
    %cst = arith.constant 0.000000e+00 : bf16
    %29 = vector.broadcast %cst : bf16 to vector<16x4xbf16>
    %c0 = arith.constant 0 : index
    %c0_6 = arith.constant 0 : index
    %30 = vector.load %arg12[%c0, %c0_6] : memref<192x4xbf16, #tpu.memory_space<vmem>>, vector<16x4xbf16>
    tpu.vector_store %arg12[%c0, %c0_6], %29 {strides = array<i32>} : memref<192x4xbf16, #tpu.memory_space<vmem>>, vector<16x4xbf16>,
    %c176 = arith.constant 176 : index
    %c0_7 = arith.constant 0 : index
    %31 = vector.load %arg12[%c176, %c0_7] : memref<192x4xbf16, #tpu.memory_space<vmem>>, vector<16x4xbf16>
    tpu.vector_store %arg12[%c176, %c0_7], %29 {strides = array<i32>} : memref<192x4xbf16, #tpu.memory_space<vmem>>, vector<16x4xbf16>,
    %c0_8 = arith.constant 0 : index
    %c0_9 = arith.constant 0 : index
    %c0_10 = arith.constant 0 : index
    %c0_11 = arith.constant 0 : index
    %32 = vector.load %arg2[%c0_8, %c0_9, %c0_10, %c0_11] : memref<1x1x16x4xbf16, #tpu.memory_space<vmem>>, vector<1x1x16x4xbf16>
    %33 = vector.shape_cast %32 : vector<1x1x16x4xbf16> to vector<16x4xbf16>
    %34 = vector.broadcast %24 : bf16 to vector<16x4xbf16>
    %35 = arith.mulf %33, %34 : vector<16x4xbf16>
    %c16 = arith.constant 16 : index
    %c0_12 = arith.constant 0 : index
    %36 = vector.load %arg12[%c16, %c0_12] : memref<192x4xbf16, #tpu.memory_space<vmem>>, vector<16x4xbf16>
    tpu.vector_store %arg12[%c16, %c0_12], %35 {strides = array<i32>} : memref<192x4xbf16, #tpu.memory_space<vmem>>, vector<16x4xbf16>,
    %c0_13 = arith.constant 0 : index
    %c0_14 = arith.constant 0 : index
    %c0_15 = arith.constant 0 : index
    %c0_16 = arith.constant 0 : index
    %37 = vector.load %arg3[%c0_13, %c0_14, %c0_15, %c0_16] : memref<1x8x16x4xbf16, #tpu.memory_space<vmem>>, vector<1x8x16x4xbf16>
    %38 = vector.shape_cast %37 : vector<1x8x16x4xbf16> to vector<8x16x4xbf16>
    %39 = vector.shape_cast %38 : vector<8x16x4xbf16> to vector<128x4xbf16>
    %c32 = arith.constant 32 : index
    %c0_17 = arith.constant 0 : index
    %40 = vector.load %arg12[%c32, %c0_17] : memref<192x4xbf16, #tpu.memory_space<vmem>>, vector<128x4xbf16>
    tpu.vector_store %arg12[%c32, %c0_17], %39 {strides = array<i32>} : memref<192x4xbf16, #tpu.memory_space<vmem>>, vector<128x4xbf16>,
    %c0_18 = arith.constant 0 : index
    %c0_19 = arith.constant 0 : index
    %c0_20 = arith.constant 0 : index
    %c0_21 = arith.constant 0 : index
    %41 = vector.load %arg4[%c0_18, %c0_19, %c0_20, %c0_21] : memref<1x1x16x4xbf16, #tpu.memory_space<vmem>>, vector<1x1x16x4xbf16>
    %42 = vector.shape_cast %41 : vector<1x1x16x4xbf16> to vector<16x4xbf16>
    %43 = vector.broadcast %28 : bf16 to vector<16x4xbf16>
    %44 = arith.mulf %42, %43 : vector<16x4xbf16>
    %c160 = arith.constant 160 : index
    %c0_22 = arith.constant 0 : index
    %45 = vector.load %arg12[%c160, %c0_22] : memref<192x4xbf16, #tpu.memory_space<vmem>>, vector<16x4xbf16>
    tpu.vector_store %arg12[%c160, %c0_22], %44 {strides = array<i32>} : memref<192x4xbf16, #tpu.memory_space<vmem>>, vector<16x4xbf16>,
    %c16_23 = arith.constant 16 : index
    %c0_24 = arith.constant 0 : index
    %46 = vector.load %arg12[%c16_23, %c0_24] : memref<192x4xbf16, #tpu.memory_space<vmem>>, vector<160x4xbf16>
    %c15 = arith.constant 15 : index
    %c0_25 = arith.constant 0 : index
    %47 = vector.load %arg12[%c15, %c0_25] : memref<192x4xbf16, #tpu.memory_space<vmem>>, vector<160x4xbf16>
    %cst_26 = arith.constant 0.000000e+00 : f32
    %48 = arith.truncf %cst_26 : f32 to bf16
    %49 = vector.shape_cast %18 : vector<160x1xi1> to vector<160x1xi1>
    %50 = vector.broadcast %49 : vector<160x1xi1> to vector<160x4xi1>
    %51 = vector.broadcast %48 : bf16 to vector<160x4xbf16>
    %52 = arith.select %50, %47, %51 : vector<160x4xi1>, vector<160x4xbf16>
    %c17 = arith.constant 17 : index
    %c0_27 = arith.constant 0 : index
    %53 = vector.load %arg12[%c17, %c0_27] : memref<192x4xbf16, #tpu.memory_space<vmem>>, vector<160x4xbf16>
    %cst_28 = arith.constant 0.000000e+00 : f32
    %54 = arith.truncf %cst_28 : f32 to bf16
    %55 = vector.shape_cast %20 : vector<160x1xi1> to vector<160x1xi1>
    %56 = vector.broadcast %55 : vector<160x1xi1> to vector<160x4xi1>
    %57 = vector.broadcast %54 : bf16 to vector<160x4xbf16>
    %58 = arith.select %56, %53, %57 : vector<160x4xi1>, vector<160x4xbf16>
    %59 = vector.extract_strided_slice %52 {offsets = [0, 0], sizes = [128, 4], strides = [1, 1]} : vector<160x4xbf16> to vector<128x4xbf16>
    %c0_29 = arith.constant 0 : index
    %c0_30 = arith.constant 0 : index
    %c0_31 = arith.constant 0 : index
    %c0_32 = arith.constant 0 : index
    %60 = vector.load %arg8[%c0_29, %c0_30, %c0_31, %c0_32] : memref<3x3x4x4xbf16, #tpu.memory_space<vmem>>, vector<1x1x4x4xbf16>
    %61 = vector.shape_cast %60 : vector<1x1x4x4xbf16> to vector<4x4xbf16>
    %cst_33 = arith.constant dense<0.000000e+00> : vector<128x4xf32>
    %62 = tpu.matmul %59, %61, %cst_33 {dimension_numbers = #tpu.dot_dimension_numbers<[1], [0], [0], [1], [0, 0, 1, 1], [], []>} : vector<128x4xbf16>, vector<4x4xbf16>, vector<128x4xf32> -> vector<128x4xf32>
    %63 = vector.extract_strided_slice %46 {offsets = [0, 0], sizes = [128, 4], strides = [1, 1]} : vector<160x4xbf16> to vector<128x4xbf16>
    %c0_34 = arith.constant 0 : index
    %c1 = arith.constant 1 : index
    %c0_35 = arith.constant 0 : index
    %c0_36 = arith.constant 0 : index
    %64 = vector.load %arg8[%c0_34, %c1, %c0_35, %c0_36] : memref<3x3x4x4xbf16, #tpu.memory_space<vmem>>, vector<1x1x4x4xbf16>
    %65 = vector.shape_cast %64 : vector<1x1x4x4xbf16> to vector<4x4xbf16>
    %cst_37 = arith.constant dense<0.000000e+00> : vector<128x4xf32>
    %66 = tpu.matmul %63, %65, %cst_37 {dimension_numbers = #tpu.dot_dimension_numbers<[1], [0], [0], [1], [0, 0, 1, 1], [], []>} : vector<128x4xbf16>, vector<4x4xbf16>, vector<128x4xf32> -> vector<128x4xf32>
    %67 = arith.addf %62, %66 : vector<128x4xf32>
    %68 = vector.extract_strided_slice %58 {offsets = [0, 0], sizes = [128, 4], strides = [1, 1]} : vector<160x4xbf16> to vector<128x4xbf16>
    %c0_38 = arith.constant 0 : index
    %c2 = arith.constant 2 : index
    %c0_39 = arith.constant 0 : index
    %c0_40 = arith.constant 0 : index
    %69 = vector.load %arg8[%c0_38, %c2, %c0_39, %c0_40] : memref<3x3x4x4xbf16, #tpu.memory_space<vmem>>, vector<1x1x4x4xbf16>
    %70 = vector.shape_cast %69 : vector<1x1x4x4xbf16> to vector<4x4xbf16>
    %cst_41 = arith.constant dense<0.000000e+00> : vector<128x4xf32>
    %71 = tpu.matmul %68, %70, %cst_41 {dimension_numbers = #tpu.dot_dimension_numbers<[1], [0], [0], [1], [0, 0, 1, 1], [], []>} : vector<128x4xbf16>, vector<4x4xbf16>, vector<128x4xf32> -> vector<128x4xf32>
    %72 = arith.addf %67, %71 : vector<128x4xf32>
    %73 = vector.extract_strided_slice %52 {offsets = [16, 0], sizes = [128, 4], strides = [1, 1]} : vector<160x4xbf16> to vector<128x4xbf16>
    %c1_42 = arith.constant 1 : index
    %c0_43 = arith.constant 0 : index
    %c0_44 = arith.constant 0 : index
    %c0_45 = arith.constant 0 : index
    %74 = vector.load %arg8[%c1_42, %c0_43, %c0_44, %c0_45] : memref<3x3x4x4xbf16, #tpu.memory_space<vmem>>, vector<1x1x4x4xbf16>
    %75 = vector.shape_cast %74 : vector<1x1x4x4xbf16> to vector<4x4xbf16>
    %cst_46 = arith.constant dense<0.000000e+00> : vector<128x4xf32>
    %76 = tpu.matmul %73, %75, %cst_46 {dimension_numbers = #tpu.dot_dimension_numbers<[1], [0], [0], [1], [0, 0, 1, 1], [], []>} : vector<128x4xbf16>, vector<4x4xbf16>, vector<128x4xf32> -> vector<128x4xf32>
    %77 = arith.addf %72, %76 : vector<128x4xf32>
    %78 = vector.extract_strided_slice %46 {offsets = [16, 0], sizes = [128, 4], strides = [1, 1]} : vector<160x4xbf16> to vector<128x4xbf16>
    %c1_47 = arith.constant 1 : index
    %c1_48 = arith.constant 1 : index
    %c0_49 = arith.constant 0 : index
    %c0_50 = arith.constant 0 : index
    %79 = vector.load %arg8[%c1_47, %c1_48, %c0_49, %c0_50] : memref<3x3x4x4xbf16, #tpu.memory_space<vmem>>, vector<1x1x4x4xbf16>
    %80 = vector.shape_cast %79 : vector<1x1x4x4xbf16> to vector<4x4xbf16>
    %cst_51 = arith.constant dense<0.000000e+00> : vector<128x4xf32>
    %81 = tpu.matmul %78, %80, %cst_51 {dimension_numbers = #tpu.dot_dimension_numbers<[1], [0], [0], [1], [0, 0, 1, 1], [], []>} : vector<128x4xbf16>, vector<4x4xbf16>, vector<128x4xf32> -> vector<128x4xf32>
    %82 = arith.addf %77, %81 : vector<128x4xf32>
    %83 = vector.extract_strided_slice %58 {offsets = [16, 0], sizes = [128, 4], strides = [1, 1]} : vector<160x4xbf16> to vector<128x4xbf16>
    %c1_52 = arith.constant 1 : index
    %c2_53 = arith.constant 2 : index
    %c0_54 = arith.constant 0 : index
    %c0_55 = arith.constant 0 : index
    %84 = vector.load %arg8[%c1_52, %c2_53, %c0_54, %c0_55] : memref<3x3x4x4xbf16, #tpu.memory_space<vmem>>, vector<1x1x4x4xbf16>
    %85 = vector.shape_cast %84 : vector<1x1x4x4xbf16> to vector<4x4xbf16>
    %cst_56 = arith.constant dense<0.000000e+00> : vector<128x4xf32>
    %86 = tpu.matmul %83, %85, %cst_56 {dimension_numbers = #tpu.dot_dimension_numbers<[1], [0], [0], [1], [0, 0, 1, 1], [], []>} : vector<128x4xbf16>, vector<4x4xbf16>, vector<128x4xf32> -> vector<128x4xf32>
    %87 = arith.addf %82, %86 : vector<128x4xf32>
    %88 = vector.extract_strided_slice %52 {offsets = [32, 0], sizes = [128, 4], strides = [1, 1]} : vector<160x4xbf16> to vector<128x4xbf16>
    %c2_57 = arith.constant 2 : index
    %c0_58 = arith.constant 0 : index
    %c0_59 = arith.constant 0 : index
    %c0_60 = arith.constant 0 : index
    %89 = vector.load %arg8[%c2_57, %c0_58, %c0_59, %c0_60] : memref<3x3x4x4xbf16, #tpu.memory_space<vmem>>, vector<1x1x4x4xbf16>
    %90 = vector.shape_cast %89 : vector<1x1x4x4xbf16> to vector<4x4xbf16>
    %cst_61 = arith.constant dense<0.000000e+00> : vector<128x4xf32>
    %91 = tpu.matmul %88, %90, %cst_61 {dimension_numbers = #tpu.dot_dimension_numbers<[1], [0], [0], [1], [0, 0, 1, 1], [], []>} : vector<128x4xbf16>, vector<4x4xbf16>, vector<128x4xf32> -> vector<128x4xf32>
    %92 = arith.addf %87, %91 : vector<128x4xf32>
    %93 = vector.extract_strided_slice %46 {offsets = [32, 0], sizes = [128, 4], strides = [1, 1]} : vector<160x4xbf16> to vector<128x4xbf16>
    %c2_62 = arith.constant 2 : index
    %c1_63 = arith.constant 1 : index
    %c0_64 = arith.constant 0 : index
    %c0_65 = arith.constant 0 : index
    %94 = vector.load %arg8[%c2_62, %c1_63, %c0_64, %c0_65] : memref<3x3x4x4xbf16, #tpu.memory_space<vmem>>, vector<1x1x4x4xbf16>
    %95 = vector.shape_cast %94 : vector<1x1x4x4xbf16> to vector<4x4xbf16>
    %cst_66 = arith.constant dense<0.000000e+00> : vector<128x4xf32>
    %96 = tpu.matmul %93, %95, %cst_66 {dimension_numbers = #tpu.dot_dimension_numbers<[1], [0], [0], [1], [0, 0, 1, 1], [], []>} : vector<128x4xbf16>, vector<4x4xbf16>, vector<128x4xf32> -> vector<128x4xf32>
    %97 = arith.addf %92, %96 : vector<128x4xf32>
    %98 = vector.extract_strided_slice %58 {offsets = [32, 0], sizes = [128, 4], strides = [1, 1]} : vector<160x4xbf16> to vector<128x4xbf16>
    %c2_67 = arith.constant 2 : index
    %c2_68 = arith.constant 2 : index
    %c0_69 = arith.constant 0 : index
    %c0_70 = arith.constant 0 : index
    %99 = vector.load %arg8[%c2_67, %c2_68, %c0_69, %c0_70] : memref<3x3x4x4xbf16, #tpu.memory_space<vmem>>, vector<1x1x4x4xbf16>
    %100 = vector.shape_cast %99 : vector<1x1x4x4xbf16> to vector<4x4xbf16>
    %cst_71 = arith.constant dense<0.000000e+00> : vector<128x4xf32>
    %101 = tpu.matmul %98, %100, %cst_71 {dimension_numbers = #tpu.dot_dimension_numbers<[1], [0], [0], [1], [0, 0, 1, 1], [], []>} : vector<128x4xbf16>, vector<4x4xbf16>, vector<128x4xf32> -> vector<128x4xf32>
    %102 = arith.addf %97, %101 : vector<128x4xf32>
    %c0_i32_72 = arith.constant 0 : i32
    %103 = arith.cmpi sgt, %arg1, %c0_i32_72 : i32
    %104 = arith.extui %103 : i1 to i32
    %105 = arith.sitofp %104 : i32 to f32
    %106 = arith.truncf %105 : f32 to bf16
    %c1_i32_73 = arith.constant 1 : i32
    %107 = arith.cmpi slt, %arg1, %c1_i32_73 : i32
    %108 = arith.extui %107 : i1 to i32
    %109 = arith.sitofp %108 : i32 to f32
    %110 = arith.truncf %109 : f32 to bf16
    %cst_74 = arith.constant 0.000000e+00 : bf16
    %111 = vector.broadcast %cst_74 : bf16 to vector<16x4xbf16>
    %c0_75 = arith.constant 0 : index
    %c0_76 = arith.constant 0 : index
    %112 = vector.load %arg13[%c0_75, %c0_76] : memref<192x4xbf16, #tpu.memory_space<vmem>>, vector<16x4xbf16>
    tpu.vector_store %arg13[%c0_75, %c0_76], %111 {strides = array<i32>} : memref<192x4xbf16, #tpu.memory_space<vmem>>, vector<16x4xbf16>,
    %c176_77 = arith.constant 176 : index
    %c0_78 = arith.constant 0 : index
    %113 = vector.load %arg13[%c176_77, %c0_78] : memref<192x4xbf16, #tpu.memory_space<vmem>>, vector<16x4xbf16>
    tpu.vector_store %arg13[%c176_77, %c0_78], %111 {strides = array<i32>} : memref<192x4xbf16, #tpu.memory_space<vmem>>, vector<16x4xbf16>,
    %c0_79 = arith.constant 0 : index
    %c0_80 = arith.constant 0 : index
    %c0_81 = arith.constant 0 : index
    %c0_82 = arith.constant 0 : index
    %114 = vector.load %arg5[%c0_79, %c0_80, %c0_81, %c0_82] : memref<1x1x16x4xbf16, #tpu.memory_space<vmem>>, vector<1x1x16x4xbf16>
    %115 = vector.shape_cast %114 : vector<1x1x16x4xbf16> to vector<16x4xbf16>
    %116 = vector.broadcast %106 : bf16 to vector<16x4xbf16>
    %117 = arith.mulf %115, %116 : vector<16x4xbf16>
    %c16_83 = arith.constant 16 : index
    %c0_84 = arith.constant 0 : index
    %118 = vector.load %arg13[%c16_83, %c0_84] : memref<192x4xbf16, #tpu.memory_space<vmem>>, vector<16x4xbf16>
    tpu.vector_store %arg13[%c16_83, %c0_84], %117 {strides = array<i32>} : memref<192x4xbf16, #tpu.memory_space<vmem>>, vector<16x4xbf16>,
    %c0_85 = arith.constant 0 : index
    %c0_86 = arith.constant 0 : index
    %c0_87 = arith.constant 0 : index
    %c0_88 = arith.constant 0 : index
    %119 = vector.load %arg6[%c0_85, %c0_86, %c0_87, %c0_88] : memref<1x8x16x4xbf16, #tpu.memory_space<vmem>>, vector<1x8x16x4xbf16>
    %120 = vector.shape_cast %119 : vector<1x8x16x4xbf16> to vector<8x16x4xbf16>
    %121 = vector.shape_cast %120 : vector<8x16x4xbf16> to vector<128x4xbf16>
    %c32_89 = arith.constant 32 : index
    %c0_90 = arith.constant 0 : index
    %122 = vector.load %arg13[%c32_89, %c0_90] : memref<192x4xbf16, #tpu.memory_space<vmem>>, vector<128x4xbf16>
    tpu.vector_store %arg13[%c32_89, %c0_90], %121 {strides = array<i32>} : memref<192x4xbf16, #tpu.memory_space<vmem>>, vector<128x4xbf16>,
    %c0_91 = arith.constant 0 : index
    %c0_92 = arith.constant 0 : index
    %c0_93 = arith.constant 0 : index
    %c0_94 = arith.constant 0 : index
    %123 = vector.load %arg7[%c0_91, %c0_92, %c0_93, %c0_94] : memref<1x1x16x4xbf16, #tpu.memory_space<vmem>>, vector<1x1x16x4xbf16>
    %124 = vector.shape_cast %123 : vector<1x1x16x4xbf16> to vector<16x4xbf16>
    %125 = vector.broadcast %110 : bf16 to vector<16x4xbf16>
    %126 = arith.mulf %124, %125 : vector<16x4xbf16>
    %c160_95 = arith.constant 160 : index
    %c0_96 = arith.constant 0 : index
    %127 = vector.load %arg13[%c160_95, %c0_96] : memref<192x4xbf16, #tpu.memory_space<vmem>>, vector<16x4xbf16>
    tpu.vector_store %arg13[%c160_95, %c0_96], %126 {strides = array<i32>} : memref<192x4xbf16, #tpu.memory_space<vmem>>, vector<16x4xbf16>,
    %c16_97 = arith.constant 16 : index
    %c0_98 = arith.constant 0 : index
    %128 = vector.load %arg13[%c16_97, %c0_98] : memref<192x4xbf16, #tpu.memory_space<vmem>>, vector<160x4xbf16>
    %c15_99 = arith.constant 15 : index
    %c0_100 = arith.constant 0 : index
    %129 = vector.load %arg13[%c15_99, %c0_100] : memref<192x4xbf16, #tpu.memory_space<vmem>>, vector<160x4xbf16>
    %cst_101 = arith.constant 0.000000e+00 : f32
    %130 = arith.truncf %cst_101 : f32 to bf16
    %131 = vector.shape_cast %18 : vector<160x1xi1> to vector<160x1xi1>
    %132 = vector.broadcast %131 : vector<160x1xi1> to vector<160x4xi1>
    %133 = vector.broadcast %130 : bf16 to vector<160x4xbf16>
    %134 = arith.select %132, %129, %133 : vector<160x4xi1>, vector<160x4xbf16>
    %c17_102 = arith.constant 17 : index
    %c0_103 = arith.constant 0 : index
    %135 = vector.load %arg13[%c17_102, %c0_103] : memref<192x4xbf16, #tpu.memory_space<vmem>>, vector<160x4xbf16>
    %cst_104 = arith.constant 0.000000e+00 : f32
    %136 = arith.truncf %cst_104 : f32 to bf16
    %137 = vector.shape_cast %20 : vector<160x1xi1> to vector<160x1xi1>
    %138 = vector.broadcast %137 : vector<160x1xi1> to vector<160x4xi1>
    %139 = vector.broadcast %136 : bf16 to vector<160x4xbf16>
    %140 = arith.select %138, %135, %139 : vector<160x4xi1>, vector<160x4xbf16>
    %141 = vector.extract_strided_slice %134 {offsets = [0, 0], sizes = [128, 4], strides = [1, 1]} : vector<160x4xbf16> to vector<128x4xbf16>
    %c0_105 = arith.constant 0 : index
    %c0_106 = arith.constant 0 : index
    %c0_107 = arith.constant 0 : index
    %c0_108 = arith.constant 0 : index
    %142 = vector.load %arg9[%c0_105, %c0_106, %c0_107, %c0_108] : memref<3x3x4x4xbf16, #tpu.memory_space<vmem>>, vector<1x1x4x4xbf16>
    %143 = vector.shape_cast %142 : vector<1x1x4x4xbf16> to vector<4x4xbf16>
    %cst_109 = arith.constant dense<0.000000e+00> : vector<128x4xf32>
    %144 = tpu.matmul %141, %143, %cst_109 {dimension_numbers = #tpu.dot_dimension_numbers<[1], [0], [0], [1], [0, 0, 1, 1], [], []>} : vector<128x4xbf16>, vector<4x4xbf16>, vector<128x4xf32> -> vector<128x4xf32>
    %145 = arith.addf %102, %144 : vector<128x4xf32>
    %146 = vector.extract_strided_slice %128 {offsets = [0, 0], sizes = [128, 4], strides = [1, 1]} : vector<160x4xbf16> to vector<128x4xbf16>
    %c0_110 = arith.constant 0 : index
    %c1_111 = arith.constant 1 : index
    %c0_112 = arith.constant 0 : index
    %c0_113 = arith.constant 0 : index
    %147 = vector.load %arg9[%c0_110, %c1_111, %c0_112, %c0_113] : memref<3x3x4x4xbf16, #tpu.memory_space<vmem>>, vector<1x1x4x4xbf16>
    %148 = vector.shape_cast %147 : vector<1x1x4x4xbf16> to vector<4x4xbf16>
    %cst_114 = arith.constant dense<0.000000e+00> : vector<128x4xf32>
    %149 = tpu.matmul %146, %148, %cst_114 {dimension_numbers = #tpu.dot_dimension_numbers<[1], [0], [0], [1], [0, 0, 1, 1], [], []>} : vector<128x4xbf16>, vector<4x4xbf16>, vector<128x4xf32> -> vector<128x4xf32>
    %150 = arith.addf %145, %149 : vector<128x4xf32>
    %151 = vector.extract_strided_slice %140 {offsets = [0, 0], sizes = [128, 4], strides = [1, 1]} : vector<160x4xbf16> to vector<128x4xbf16>
    %c0_115 = arith.constant 0 : index
    %c2_116 = arith.constant 2 : index
    %c0_117 = arith.constant 0 : index
    %c0_118 = arith.constant 0 : index
    %152 = vector.load %arg9[%c0_115, %c2_116, %c0_117, %c0_118] : memref<3x3x4x4xbf16, #tpu.memory_space<vmem>>, vector<1x1x4x4xbf16>
    %153 = vector.shape_cast %152 : vector<1x1x4x4xbf16> to vector<4x4xbf16>
    %cst_119 = arith.constant dense<0.000000e+00> : vector<128x4xf32>
    %154 = tpu.matmul %151, %153, %cst_119 {dimension_numbers = #tpu.dot_dimension_numbers<[1], [0], [0], [1], [0, 0, 1, 1], [], []>} : vector<128x4xbf16>, vector<4x4xbf16>, vector<128x4xf32> -> vector<128x4xf32>
    %155 = arith.addf %150, %154 : vector<128x4xf32>
    %156 = vector.extract_strided_slice %134 {offsets = [16, 0], sizes = [128, 4], strides = [1, 1]} : vector<160x4xbf16> to vector<128x4xbf16>
    %c1_120 = arith.constant 1 : index
    %c0_121 = arith.constant 0 : index
    %c0_122 = arith.constant 0 : index
    %c0_123 = arith.constant 0 : index
    %157 = vector.load %arg9[%c1_120, %c0_121, %c0_122, %c0_123] : memref<3x3x4x4xbf16, #tpu.memory_space<vmem>>, vector<1x1x4x4xbf16>
    %158 = vector.shape_cast %157 : vector<1x1x4x4xbf16> to vector<4x4xbf16>
    %cst_124 = arith.constant dense<0.000000e+00> : vector<128x4xf32>
    %159 = tpu.matmul %156, %158, %cst_124 {dimension_numbers = #tpu.dot_dimension_numbers<[1], [0], [0], [1], [0, 0, 1, 1], [], []>} : vector<128x4xbf16>, vector<4x4xbf16>, vector<128x4xf32> -> vector<128x4xf32>
    %160 = arith.addf %155, %159 : vector<128x4xf32>
    %161 = vector.extract_strided_slice %128 {offsets = [16, 0], sizes = [128, 4], strides = [1, 1]} : vector<160x4xbf16> to vector<128x4xbf16>
    %c1_125 = arith.constant 1 : index
    %c1_126 = arith.constant 1 : index
    %c0_127 = arith.constant 0 : index
    %c0_128 = arith.constant 0 : index
    %162 = vector.load %arg9[%c1_125, %c1_126, %c0_127, %c0_128] : memref<3x3x4x4xbf16, #tpu.memory_space<vmem>>, vector<1x1x4x4xbf16>
    %163 = vector.shape_cast %162 : vector<1x1x4x4xbf16> to vector<4x4xbf16>
    %cst_129 = arith.constant dense<0.000000e+00> : vector<128x4xf32>
    %164 = tpu.matmul %161, %163, %cst_129 {dimension_numbers = #tpu.dot_dimension_numbers<[1], [0], [0], [1], [0, 0, 1, 1], [], []>} : vector<128x4xbf16>, vector<4x4xbf16>, vector<128x4xf32> -> vector<128x4xf32>
    %165 = arith.addf %160, %164 : vector<128x4xf32>
    %166 = vector.extract_strided_slice %140 {offsets = [16, 0], sizes = [128, 4], strides = [1, 1]} : vector<160x4xbf16> to vector<128x4xbf16>
    %c1_130 = arith.constant 1 : index
    %c2_131 = arith.constant 2 : index
    %c0_132 = arith.constant 0 : index
    %c0_133 = arith.constant 0 : index
    %167 = vector.load %arg9[%c1_130, %c2_131, %c0_132, %c0_133] : memref<3x3x4x4xbf16, #tpu.memory_space<vmem>>, vector<1x1x4x4xbf16>
    %168 = vector.shape_cast %167 : vector<1x1x4x4xbf16> to vector<4x4xbf16>
    %cst_134 = arith.constant dense<0.000000e+00> : vector<128x4xf32>
    %169 = tpu.matmul %166, %168, %cst_134 {dimension_numbers = #tpu.dot_dimension_numbers<[1], [0], [0], [1], [0, 0, 1, 1], [], []>} : vector<128x4xbf16>, vector<4x4xbf16>, vector<128x4xf32> -> vector<128x4xf32>
    %170 = arith.addf %165, %169 : vector<128x4xf32>
    %171 = vector.extract_strided_slice %134 {offsets = [32, 0], sizes = [128, 4], strides = [1, 1]} : vector<160x4xbf16> to vector<128x4xbf16>
    %c2_135 = arith.constant 2 : index
    %c0_136 = arith.constant 0 : index
    %c0_137 = arith.constant 0 : index
    %c0_138 = arith.constant 0 : index
    %172 = vector.load %arg9[%c2_135, %c0_136, %c0_137, %c0_138] : memref<3x3x4x4xbf16, #tpu.memory_space<vmem>>, vector<1x1x4x4xbf16>
    %173 = vector.shape_cast %172 : vector<1x1x4x4xbf16> to vector<4x4xbf16>
    %cst_139 = arith.constant dense<0.000000e+00> : vector<128x4xf32>
    %174 = tpu.matmul %171, %173, %cst_139 {dimension_numbers = #tpu.dot_dimension_numbers<[1], [0], [0], [1], [0, 0, 1, 1], [], []>} : vector<128x4xbf16>, vector<4x4xbf16>, vector<128x4xf32> -> vector<128x4xf32>
    %175 = arith.addf %170, %174 : vector<128x4xf32>
    %176 = vector.extract_strided_slice %128 {offsets = [32, 0], sizes = [128, 4], strides = [1, 1]} : vector<160x4xbf16> to vector<128x4xbf16>
    %c2_140 = arith.constant 2 : index
    %c1_141 = arith.constant 1 : index
    %c0_142 = arith.constant 0 : index
    %c0_143 = arith.constant 0 : index
    %177 = vector.load %arg9[%c2_140, %c1_141, %c0_142, %c0_143] : memref<3x3x4x4xbf16, #tpu.memory_space<vmem>>, vector<1x1x4x4xbf16>
    %178 = vector.shape_cast %177 : vector<1x1x4x4xbf16> to vector<4x4xbf16>
    %cst_144 = arith.constant dense<0.000000e+00> : vector<128x4xf32>
    %179 = tpu.matmul %176, %178, %cst_144 {dimension_numbers = #tpu.dot_dimension_numbers<[1], [0], [0], [1], [0, 0, 1, 1], [], []>} : vector<128x4xbf16>, vector<4x4xbf16>, vector<128x4xf32> -> vector<128x4xf32>
    %180 = arith.addf %175, %179 : vector<128x4xf32>
    %181 = vector.extract_strided_slice %140 {offsets = [32, 0], sizes = [128, 4], strides = [1, 1]} : vector<160x4xbf16> to vector<128x4xbf16>
    %c2_145 = arith.constant 2 : index
    %c2_146 = arith.constant 2 : index
    %c0_147 = arith.constant 0 : index
    %c0_148 = arith.constant 0 : index
    %182 = vector.load %arg9[%c2_145, %c2_146, %c0_147, %c0_148] : memref<3x3x4x4xbf16, #tpu.memory_space<vmem>>, vector<1x1x4x4xbf16>
    %183 = vector.shape_cast %182 : vector<1x1x4x4xbf16> to vector<4x4xbf16>
    %cst_149 = arith.constant dense<0.000000e+00> : vector<128x4xf32>
    %184 = tpu.matmul %181, %183, %cst_149 {dimension_numbers = #tpu.dot_dimension_numbers<[1], [0], [0], [1], [0, 0, 1, 1], [], []>} : vector<128x4xbf16>, vector<4x4xbf16>, vector<128x4xf32> -> vector<128x4xf32>
    %185 = arith.addf %180, %184 : vector<128x4xf32>
    %c0_150 = arith.constant 0 : index
    %c0_151 = arith.constant 0 : index
    %186 = vector.load %arg10[%c0_150, %c0_151] : memref<1x4xf32, #tpu.memory_space<vmem>>, vector<1x4xf32>
    %187 = vector.broadcast %186 : vector<1x4xf32> to vector<128x4xf32>
    %188 = arith.addf %185, %187 : vector<128x4xf32>
    %cst_152 = arith.constant 0.000000e+00 : f32
    %189 = vector.broadcast %cst_152 : f32 to vector<128x4xf32>
    %190 = arith.maximumf %188, %189 : vector<128x4xf32>
    %191 = arith.truncf %190 : vector<128x4xf32> to vector<128x4xbf16>
    %192 = vector.shape_cast %191 : vector<128x4xbf16> to vector<1x8x16x4xbf16>
    %c0_153 = arith.constant 0 : index
    %c0_154 = arith.constant 0 : index
    %c0_155 = arith.constant 0 : index
    %c0_156 = arith.constant 0 : index
    %193 = vector.load %arg11[%c0_153, %c0_154, %c0_155, %c0_156] : memref<1x8x16x4xbf16, #tpu.memory_space<vmem>>, vector<1x8x16x4xbf16>
    tpu.vector_store %arg11[%c0_153, %c0_154, %c0_155, %c0_156], %192 {strides = array<i32>} : memref<1x8x16x4xbf16, #tpu.memory_space<vmem>>, vector<1x8x16x4xbf16>,
    return
  }
  func.func @transform_0(%arg0: i32, %arg1: i32) -> (i32, i32, i32, i32) {
    %c8_i32 = arith.constant 8 : i32
    %0 = arith.muli %arg1, %c8_i32 : i32
    %c1_i32 = arith.constant 1 : i32
    %1 = arith.subi %0, %c1_i32 : i32
    %c0_i32 = arith.constant 0 : i32
    %2 = arith.maxsi %1, %c0_i32 : i32
    %c0_i32_0 = arith.constant 0 : i32
    %c0_i32_1 = arith.constant 0 : i32
    %c0_i32_2 = arith.constant 0 : i32
    return %arg0, %2, %c0_i32_0, %c0_i32_1 : i32, i32, i32, i32
  }
  func.func @transform_1(%arg0: i32, %arg1: i32) -> (i32, i32, i32, i32) {
    %c0_i32 = arith.constant 0 : i32
    %c0_i32_0 = arith.constant 0 : i32
    %c0_i32_1 = arith.constant 0 : i32
    return %arg0, %arg1, %c0_i32, %c0_i32_0 : i32, i32, i32, i32
  }
  func.func @transform_2(%arg0: i32, %arg1: i32) -> (i32, i32, i32, i32) {
    %c8_i32 = arith.constant 8 : i32
    %0 = arith.muli %arg1, %c8_i32 : i32
    %c8_i32_0 = arith.constant 8 : i32
    %1 = arith.addi %0, %c8_i32_0 : i32
    %c15_i32 = arith.constant 15 : i32
    %2 = arith.minsi %1, %c15_i32 : i32
    %c0_i32 = arith.constant 0 : i32
    %c0_i32_1 = arith.constant 0 : i32
    %c0_i32_2 = arith.constant 0 : i32
    return %arg0, %2, %c0_i32, %c0_i32_1 : i32, i32, i32, i32
  }
  func.func @transform_3(%arg0: i32, %arg1: i32) -> (i32, i32, i32, i32) {
    %c8_i32 = arith.constant 8 : i32
    %0 = arith.muli %arg1, %c8_i32 : i32
    %c1_i32 = arith.constant 1 : i32
    %1 = arith.subi %0, %c1_i32 : i32
    %c0_i32 = arith.constant 0 : i32
    %2 = arith.maxsi %1, %c0_i32 : i32
    %c0_i32_0 = arith.constant 0 : i32
    %c0_i32_1 = arith.constant 0 : i32
    %c0_i32_2 = arith.constant 0 : i32
    return %arg0, %2, %c0_i32_0, %c0_i32_1 : i32, i32, i32, i32
  }
  func.func @transform_4(%arg0: i32, %arg1: i32) -> (i32, i32, i32, i32) {
    %c0_i32 = arith.constant 0 : i32
    %c0_i32_0 = arith.constant 0 : i32
    %c0_i32_1 = arith.constant 0 : i32
    return %arg0, %arg1, %c0_i32, %c0_i32_0 : i32, i32, i32, i32
  }
  func.func @transform_5(%arg0: i32, %arg1: i32) -> (i32, i32, i32, i32) {
    %c8_i32 = arith.constant 8 : i32
    %0 = arith.muli %arg1, %c8_i32 : i32
    %c8_i32_0 = arith.constant 8 : i32
    %1 = arith.addi %0, %c8_i32_0 : i32
    %c15_i32 = arith.constant 15 : i32
    %2 = arith.minsi %1, %c15_i32 : i32
    %c0_i32 = arith.constant 0 : i32
    %c0_i32_1 = arith.constant 0 : i32
    %c0_i32_2 = arith.constant 0 : i32
    return %arg0, %2, %c0_i32, %c0_i32_1 : i32, i32, i32, i32
  }
  func.func @transform_6(%arg0: i32, %arg1: i32) -> (i32, i32, i32, i32) {
    %c0_i32 = arith.constant 0 : i32
    %c0_i32_0 = arith.constant 0 : i32
    %c0_i32_1 = arith.constant 0 : i32
    %c0_i32_2 = arith.constant 0 : i32
    %c0_i32_3 = arith.constant 0 : i32
    return %c0_i32, %c0_i32_0, %c0_i32_1, %c0_i32_2 : i32, i32, i32, i32
  }
  func.func @transform_7(%arg0: i32, %arg1: i32) -> (i32, i32, i32, i32) {
    %c0_i32 = arith.constant 0 : i32
    %c0_i32_0 = arith.constant 0 : i32
    %c0_i32_1 = arith.constant 0 : i32
    %c0_i32_2 = arith.constant 0 : i32
    %c0_i32_3 = arith.constant 0 : i32
    return %c0_i32, %c0_i32_0, %c0_i32_1, %c0_i32_2 : i32, i32, i32, i32
  }
  func.func @transform_8(%arg0: i32, %arg1: i32) -> (i32, i32) {
    %c0_i32 = arith.constant 0 : i32
    %c0_i32_0 = arith.constant 0 : i32
    %c0_i32_1 = arith.constant 0 : i32
    return %c0_i32, %c0_i32_0 : i32, i32
  }
  func.func @transform_9(%arg0: i32, %arg1: i32) -> (i32, i32, i32, i32) {
    %c0_i32 = arith.constant 0 : i32
    %c0_i32_0 = arith.constant 0 : i32
    %c0_i32_1 = arith.constant 0 : i32
    return %arg0, %arg1, %c0_i32, %c0_i32_0 : i32, i32, i32, i32
  }
}

module attributes {stable_mosaic.version = 11 : i64} {
  func.func @kernel(%arg0: i32, %arg1: i32, %arg2: memref<1x1x16x4xbf16, #tpu.memory_space<vmem>>, %arg3: memref<1x8x16x4xbf16, #tpu.memory_space<vmem>>, %arg4: memref<1x1x16x4xbf16, #tpu.memory_space<vmem>>, %arg5: memref<3x3x4x4xbf16, #tpu.memory_space<vmem>>, %arg6: memref<1x4xf32, #tpu.memory_space<vmem>>, %arg7: memref<1x8x16x4xf32, #tpu.memory_space<vmem>>, %arg8: memref<192x4xbf16, #tpu.memory_space<vmem>>) attributes {dimension_semantics = [#tpu.dimension_semantics<parallel>, #tpu.dimension_semantics<parallel>], iteration_bounds = array<i64: 2, 2>, scalar_prefetch = 0 : i64, scratch_operands = 1 : i64, tpu.core_type = #tpu.core_type<tc>, window_params = [{transform_indices = @transform_0, window_bounds = array<i64: 1, 1, 16, 4>}, {transform_indices = @transform_1, window_bounds = array<i64: 1, 8, 16, 4>}, {transform_indices = @transform_2, window_bounds = array<i64: 1, 1, 16, 4>}, {pipeline_mode = #tpu.pipeline_mode<synchronous>, transform_indices = @transform_3, window_bounds = array<i64: 3, 3, 4, 4>}, {pipeline_mode = #tpu.pipeline_mode<synchronous>, transform_indices = @transform_4, window_bounds = array<i64: 1, 4>}, {transform_indices = @transform_5, window_bounds = array<i64: 1, 8, 16, 4>}]} {
    %0 = tpu.iota {dimensions = array<i32: 0>} : vector<160x1xi32>
    %c16_i32 = arith.constant 16 : i32
    %c0_i32 = arith.constant 0 : i32
    %1 = arith.cmpi eq, %c16_i32, %c0_i32 : i32
    %c1_i32 = arith.constant 1 : i32
    %2 = arith.select %1, %c1_i32, %c16_i32 : i32
    %3 = vector.broadcast %2 : i32 to vector<160x1xi32>
    %4 = arith.remsi %0, %3 : vector<160x1xi32>
    %c0_i32_0 = arith.constant 0 : i32
    %5 = vector.broadcast %c0_i32_0 : i32 to vector<160x1xi32>
    %6 = arith.cmpi ne, %4, %5 : vector<160x1xi32>
    %c0_i32_1 = arith.constant 0 : i32
    %7 = vector.broadcast %c0_i32_1 : i32 to vector<160x1xi32>
    %8 = arith.cmpi slt, %4, %7 : vector<160x1xi32>
    %c0_i32_2 = arith.constant 0 : i32
    %9 = arith.cmpi slt, %2, %c0_i32_2 : i32
    %10 = vector.broadcast %9 : i1 to vector<160x1xi1>
    %11 = vector.broadcast %10 : vector<160x1xi1> to vector<160x1xi1>
    %12 = arith.xori %8, %11 : vector<160x1xi1>
    %13 = arith.andi %12, %6 : vector<160x1xi1>
    %14 = vector.broadcast %2 : i32 to vector<160x1xi32>
    %15 = arith.addi %4, %14 : vector<160x1xi32>
    %16 = arith.select %13, %15, %4 : vector<160x1xi1>, vector<160x1xi32>
    %c0_i32_3 = arith.constant 0 : i32
    %17 = vector.broadcast %c0_i32_3 : i32 to vector<160x1xi32>
    %18 = arith.cmpi ne, %16, %17 : vector<160x1xi32>
    %c15_i32 = arith.constant 15 : i32
    %19 = vector.broadcast %c15_i32 : i32 to vector<160x1xi32>
    %20 = arith.cmpi ne, %16, %19 : vector<160x1xi32>
    %c0_i32_4 = arith.constant 0 : i32
    %21 = arith.cmpi sgt, %arg1, %c0_i32_4 : i32
    %22 = arith.extui %21 : i1 to i32
    %23 = arith.sitofp %22 : i32 to f32
    %24 = arith.truncf %23 : f32 to bf16
    %c1_i32_5 = arith.constant 1 : i32
    %25 = arith.cmpi slt, %arg1, %c1_i32_5 : i32
    %26 = arith.extui %25 : i1 to i32
    %27 = arith.sitofp %26 : i32 to f32
    %28 = arith.truncf %27 : f32 to bf16
    %cst = arith.constant 0.000000e+00 : bf16
    %29 = vector.broadcast %cst : bf16 to vector<16x4xbf16>
    %c0 = arith.constant 0 : index
    %c0_6 = arith.constant 0 : index
    %30 = vector.load %arg8[%c0, %c0_6] : memref<192x4xbf16, #tpu.memory_space<vmem>>, vector<16x4xbf16>
    tpu.vector_store %arg8[%c0, %c0_6], %29 {strides = array<i32>} : memref<192x4xbf16, #tpu.memory_space<vmem>>, vector<16x4xbf16>,
    %c176 = arith.constant 176 : index
    %c0_7 = arith.constant 0 : index
    %31 = vector.load %arg8[%c176, %c0_7] : memref<192x4xbf16, #tpu.memory_space<vmem>>, vector<16x4xbf16>
    tpu.vector_store %arg8[%c176, %c0_7], %29 {strides = array<i32>} : memref<192x4xbf16, #tpu.memory_space<vmem>>, vector<16x4xbf16>,
    %c0_8 = arith.constant 0 : index
    %c0_9 = arith.constant 0 : index
    %c0_10 = arith.constant 0 : index
    %c0_11 = arith.constant 0 : index
    %32 = vector.load %arg2[%c0_8, %c0_9, %c0_10, %c0_11] : memref<1x1x16x4xbf16, #tpu.memory_space<vmem>>, vector<1x1x16x4xbf16>
    %33 = vector.shape_cast %32 : vector<1x1x16x4xbf16> to vector<16x4xbf16>
    %34 = vector.broadcast %24 : bf16 to vector<16x4xbf16>
    %35 = arith.mulf %33, %34 : vector<16x4xbf16>
    %c16 = arith.constant 16 : index
    %c0_12 = arith.constant 0 : index
    %36 = vector.load %arg8[%c16, %c0_12] : memref<192x4xbf16, #tpu.memory_space<vmem>>, vector<16x4xbf16>
    tpu.vector_store %arg8[%c16, %c0_12], %35 {strides = array<i32>} : memref<192x4xbf16, #tpu.memory_space<vmem>>, vector<16x4xbf16>,
    %c0_13 = arith.constant 0 : index
    %c0_14 = arith.constant 0 : index
    %c0_15 = arith.constant 0 : index
    %c0_16 = arith.constant 0 : index
    %37 = vector.load %arg3[%c0_13, %c0_14, %c0_15, %c0_16] : memref<1x8x16x4xbf16, #tpu.memory_space<vmem>>, vector<1x8x16x4xbf16>
    %38 = vector.shape_cast %37 : vector<1x8x16x4xbf16> to vector<8x16x4xbf16>
    %39 = vector.shape_cast %38 : vector<8x16x4xbf16> to vector<128x4xbf16>
    %c32 = arith.constant 32 : index
    %c0_17 = arith.constant 0 : index
    %40 = vector.load %arg8[%c32, %c0_17] : memref<192x4xbf16, #tpu.memory_space<vmem>>, vector<128x4xbf16>
    tpu.vector_store %arg8[%c32, %c0_17], %39 {strides = array<i32>} : memref<192x4xbf16, #tpu.memory_space<vmem>>, vector<128x4xbf16>,
    %c0_18 = arith.constant 0 : index
    %c0_19 = arith.constant 0 : index
    %c0_20 = arith.constant 0 : index
    %c0_21 = arith.constant 0 : index
    %41 = vector.load %arg4[%c0_18, %c0_19, %c0_20, %c0_21] : memref<1x1x16x4xbf16, #tpu.memory_space<vmem>>, vector<1x1x16x4xbf16>
    %42 = vector.shape_cast %41 : vector<1x1x16x4xbf16> to vector<16x4xbf16>
    %43 = vector.broadcast %28 : bf16 to vector<16x4xbf16>
    %44 = arith.mulf %42, %43 : vector<16x4xbf16>
    %c160 = arith.constant 160 : index
    %c0_22 = arith.constant 0 : index
    %45 = vector.load %arg8[%c160, %c0_22] : memref<192x4xbf16, #tpu.memory_space<vmem>>, vector<16x4xbf16>
    tpu.vector_store %arg8[%c160, %c0_22], %44 {strides = array<i32>} : memref<192x4xbf16, #tpu.memory_space<vmem>>, vector<16x4xbf16>,
    %c16_23 = arith.constant 16 : index
    %c0_24 = arith.constant 0 : index
    %46 = vector.load %arg8[%c16_23, %c0_24] : memref<192x4xbf16, #tpu.memory_space<vmem>>, vector<160x4xbf16>
    %c15 = arith.constant 15 : index
    %c0_25 = arith.constant 0 : index
    %47 = vector.load %arg8[%c15, %c0_25] : memref<192x4xbf16, #tpu.memory_space<vmem>>, vector<160x4xbf16>
    %cst_26 = arith.constant 0.000000e+00 : f32
    %48 = arith.truncf %cst_26 : f32 to bf16
    %49 = vector.shape_cast %18 : vector<160x1xi1> to vector<160x1xi1>
    %50 = vector.broadcast %49 : vector<160x1xi1> to vector<160x4xi1>
    %51 = vector.broadcast %48 : bf16 to vector<160x4xbf16>
    %52 = arith.select %50, %47, %51 : vector<160x4xi1>, vector<160x4xbf16>
    %c17 = arith.constant 17 : index
    %c0_27 = arith.constant 0 : index
    %53 = vector.load %arg8[%c17, %c0_27] : memref<192x4xbf16, #tpu.memory_space<vmem>>, vector<160x4xbf16>
    %cst_28 = arith.constant 0.000000e+00 : f32
    %54 = arith.truncf %cst_28 : f32 to bf16
    %55 = vector.shape_cast %20 : vector<160x1xi1> to vector<160x1xi1>
    %56 = vector.broadcast %55 : vector<160x1xi1> to vector<160x4xi1>
    %57 = vector.broadcast %54 : bf16 to vector<160x4xbf16>
    %58 = arith.select %56, %53, %57 : vector<160x4xi1>, vector<160x4xbf16>
    %59 = vector.extract_strided_slice %52 {offsets = [0, 0], sizes = [128, 4], strides = [1, 1]} : vector<160x4xbf16> to vector<128x4xbf16>
    %c0_29 = arith.constant 0 : index
    %c0_30 = arith.constant 0 : index
    %c0_31 = arith.constant 0 : index
    %c0_32 = arith.constant 0 : index
    %60 = vector.load %arg5[%c0_29, %c0_30, %c0_31, %c0_32] : memref<3x3x4x4xbf16, #tpu.memory_space<vmem>>, vector<1x1x4x4xbf16>
    %61 = vector.shape_cast %60 : vector<1x1x4x4xbf16> to vector<4x4xbf16>
    %cst_33 = arith.constant dense<0.000000e+00> : vector<128x4xf32>
    %62 = tpu.matmul %59, %61, %cst_33 {dimension_numbers = #tpu.dot_dimension_numbers<[1], [0], [0], [1], [0, 0, 1, 1], [], []>} : vector<128x4xbf16>, vector<4x4xbf16>, vector<128x4xf32> -> vector<128x4xf32>
    %63 = vector.extract_strided_slice %46 {offsets = [0, 0], sizes = [128, 4], strides = [1, 1]} : vector<160x4xbf16> to vector<128x4xbf16>
    %c0_34 = arith.constant 0 : index
    %c1 = arith.constant 1 : index
    %c0_35 = arith.constant 0 : index
    %c0_36 = arith.constant 0 : index
    %64 = vector.load %arg5[%c0_34, %c1, %c0_35, %c0_36] : memref<3x3x4x4xbf16, #tpu.memory_space<vmem>>, vector<1x1x4x4xbf16>
    %65 = vector.shape_cast %64 : vector<1x1x4x4xbf16> to vector<4x4xbf16>
    %cst_37 = arith.constant dense<0.000000e+00> : vector<128x4xf32>
    %66 = tpu.matmul %63, %65, %cst_37 {dimension_numbers = #tpu.dot_dimension_numbers<[1], [0], [0], [1], [0, 0, 1, 1], [], []>} : vector<128x4xbf16>, vector<4x4xbf16>, vector<128x4xf32> -> vector<128x4xf32>
    %67 = arith.addf %62, %66 : vector<128x4xf32>
    %68 = vector.extract_strided_slice %58 {offsets = [0, 0], sizes = [128, 4], strides = [1, 1]} : vector<160x4xbf16> to vector<128x4xbf16>
    %c0_38 = arith.constant 0 : index
    %c2 = arith.constant 2 : index
    %c0_39 = arith.constant 0 : index
    %c0_40 = arith.constant 0 : index
    %69 = vector.load %arg5[%c0_38, %c2, %c0_39, %c0_40] : memref<3x3x4x4xbf16, #tpu.memory_space<vmem>>, vector<1x1x4x4xbf16>
    %70 = vector.shape_cast %69 : vector<1x1x4x4xbf16> to vector<4x4xbf16>
    %cst_41 = arith.constant dense<0.000000e+00> : vector<128x4xf32>
    %71 = tpu.matmul %68, %70, %cst_41 {dimension_numbers = #tpu.dot_dimension_numbers<[1], [0], [0], [1], [0, 0, 1, 1], [], []>} : vector<128x4xbf16>, vector<4x4xbf16>, vector<128x4xf32> -> vector<128x4xf32>
    %72 = arith.addf %67, %71 : vector<128x4xf32>
    %73 = vector.extract_strided_slice %52 {offsets = [16, 0], sizes = [128, 4], strides = [1, 1]} : vector<160x4xbf16> to vector<128x4xbf16>
    %c1_42 = arith.constant 1 : index
    %c0_43 = arith.constant 0 : index
    %c0_44 = arith.constant 0 : index
    %c0_45 = arith.constant 0 : index
    %74 = vector.load %arg5[%c1_42, %c0_43, %c0_44, %c0_45] : memref<3x3x4x4xbf16, #tpu.memory_space<vmem>>, vector<1x1x4x4xbf16>
    %75 = vector.shape_cast %74 : vector<1x1x4x4xbf16> to vector<4x4xbf16>
    %cst_46 = arith.constant dense<0.000000e+00> : vector<128x4xf32>
    %76 = tpu.matmul %73, %75, %cst_46 {dimension_numbers = #tpu.dot_dimension_numbers<[1], [0], [0], [1], [0, 0, 1, 1], [], []>} : vector<128x4xbf16>, vector<4x4xbf16>, vector<128x4xf32> -> vector<128x4xf32>
    %77 = arith.addf %72, %76 : vector<128x4xf32>
    %78 = vector.extract_strided_slice %46 {offsets = [16, 0], sizes = [128, 4], strides = [1, 1]} : vector<160x4xbf16> to vector<128x4xbf16>
    %c1_47 = arith.constant 1 : index
    %c1_48 = arith.constant 1 : index
    %c0_49 = arith.constant 0 : index
    %c0_50 = arith.constant 0 : index
    %79 = vector.load %arg5[%c1_47, %c1_48, %c0_49, %c0_50] : memref<3x3x4x4xbf16, #tpu.memory_space<vmem>>, vector<1x1x4x4xbf16>
    %80 = vector.shape_cast %79 : vector<1x1x4x4xbf16> to vector<4x4xbf16>
    %cst_51 = arith.constant dense<0.000000e+00> : vector<128x4xf32>
    %81 = tpu.matmul %78, %80, %cst_51 {dimension_numbers = #tpu.dot_dimension_numbers<[1], [0], [0], [1], [0, 0, 1, 1], [], []>} : vector<128x4xbf16>, vector<4x4xbf16>, vector<128x4xf32> -> vector<128x4xf32>
    %82 = arith.addf %77, %81 : vector<128x4xf32>
    %83 = vector.extract_strided_slice %58 {offsets = [16, 0], sizes = [128, 4], strides = [1, 1]} : vector<160x4xbf16> to vector<128x4xbf16>
    %c1_52 = arith.constant 1 : index
    %c2_53 = arith.constant 2 : index
    %c0_54 = arith.constant 0 : index
    %c0_55 = arith.constant 0 : index
    %84 = vector.load %arg5[%c1_52, %c2_53, %c0_54, %c0_55] : memref<3x3x4x4xbf16, #tpu.memory_space<vmem>>, vector<1x1x4x4xbf16>
    %85 = vector.shape_cast %84 : vector<1x1x4x4xbf16> to vector<4x4xbf16>
    %cst_56 = arith.constant dense<0.000000e+00> : vector<128x4xf32>
    %86 = tpu.matmul %83, %85, %cst_56 {dimension_numbers = #tpu.dot_dimension_numbers<[1], [0], [0], [1], [0, 0, 1, 1], [], []>} : vector<128x4xbf16>, vector<4x4xbf16>, vector<128x4xf32> -> vector<128x4xf32>
    %87 = arith.addf %82, %86 : vector<128x4xf32>
    %88 = vector.extract_strided_slice %52 {offsets = [32, 0], sizes = [128, 4], strides = [1, 1]} : vector<160x4xbf16> to vector<128x4xbf16>
    %c2_57 = arith.constant 2 : index
    %c0_58 = arith.constant 0 : index
    %c0_59 = arith.constant 0 : index
    %c0_60 = arith.constant 0 : index
    %89 = vector.load %arg5[%c2_57, %c0_58, %c0_59, %c0_60] : memref<3x3x4x4xbf16, #tpu.memory_space<vmem>>, vector<1x1x4x4xbf16>
    %90 = vector.shape_cast %89 : vector<1x1x4x4xbf16> to vector<4x4xbf16>
    %cst_61 = arith.constant dense<0.000000e+00> : vector<128x4xf32>
    %91 = tpu.matmul %88, %90, %cst_61 {dimension_numbers = #tpu.dot_dimension_numbers<[1], [0], [0], [1], [0, 0, 1, 1], [], []>} : vector<128x4xbf16>, vector<4x4xbf16>, vector<128x4xf32> -> vector<128x4xf32>
    %92 = arith.addf %87, %91 : vector<128x4xf32>
    %93 = vector.extract_strided_slice %46 {offsets = [32, 0], sizes = [128, 4], strides = [1, 1]} : vector<160x4xbf16> to vector<128x4xbf16>
    %c2_62 = arith.constant 2 : index
    %c1_63 = arith.constant 1 : index
    %c0_64 = arith.constant 0 : index
    %c0_65 = arith.constant 0 : index
    %94 = vector.load %arg5[%c2_62, %c1_63, %c0_64, %c0_65] : memref<3x3x4x4xbf16, #tpu.memory_space<vmem>>, vector<1x1x4x4xbf16>
    %95 = vector.shape_cast %94 : vector<1x1x4x4xbf16> to vector<4x4xbf16>
    %cst_66 = arith.constant dense<0.000000e+00> : vector<128x4xf32>
    %96 = tpu.matmul %93, %95, %cst_66 {dimension_numbers = #tpu.dot_dimension_numbers<[1], [0], [0], [1], [0, 0, 1, 1], [], []>} : vector<128x4xbf16>, vector<4x4xbf16>, vector<128x4xf32> -> vector<128x4xf32>
    %97 = arith.addf %92, %96 : vector<128x4xf32>
    %98 = vector.extract_strided_slice %58 {offsets = [32, 0], sizes = [128, 4], strides = [1, 1]} : vector<160x4xbf16> to vector<128x4xbf16>
    %c2_67 = arith.constant 2 : index
    %c2_68 = arith.constant 2 : index
    %c0_69 = arith.constant 0 : index
    %c0_70 = arith.constant 0 : index
    %99 = vector.load %arg5[%c2_67, %c2_68, %c0_69, %c0_70] : memref<3x3x4x4xbf16, #tpu.memory_space<vmem>>, vector<1x1x4x4xbf16>
    %100 = vector.shape_cast %99 : vector<1x1x4x4xbf16> to vector<4x4xbf16>
    %cst_71 = arith.constant dense<0.000000e+00> : vector<128x4xf32>
    %101 = tpu.matmul %98, %100, %cst_71 {dimension_numbers = #tpu.dot_dimension_numbers<[1], [0], [0], [1], [0, 0, 1, 1], [], []>} : vector<128x4xbf16>, vector<4x4xbf16>, vector<128x4xf32> -> vector<128x4xf32>
    %102 = arith.addf %97, %101 : vector<128x4xf32>
    %c0_72 = arith.constant 0 : index
    %c0_73 = arith.constant 0 : index
    %103 = vector.load %arg6[%c0_72, %c0_73] : memref<1x4xf32, #tpu.memory_space<vmem>>, vector<1x4xf32>
    %104 = vector.broadcast %103 : vector<1x4xf32> to vector<128x4xf32>
    %105 = arith.addf %102, %104 : vector<128x4xf32>
    %cst_74 = arith.constant 0.000000e+00 : f32
    %106 = vector.broadcast %cst_74 : f32 to vector<128x4xf32>
    %107 = arith.maximumf %105, %106 : vector<128x4xf32>
    %108 = vector.shape_cast %107 : vector<128x4xf32> to vector<1x8x16x4xf32>
    %c0_75 = arith.constant 0 : index
    %c0_76 = arith.constant 0 : index
    %c0_77 = arith.constant 0 : index
    %c0_78 = arith.constant 0 : index
    %109 = vector.load %arg7[%c0_75, %c0_76, %c0_77, %c0_78] : memref<1x8x16x4xf32, #tpu.memory_space<vmem>>, vector<1x8x16x4xf32>
    tpu.vector_store %arg7[%c0_75, %c0_76, %c0_77, %c0_78], %108 {strides = array<i32>} : memref<1x8x16x4xf32, #tpu.memory_space<vmem>>, vector<1x8x16x4xf32>,
    return
  }
  func.func @transform_0(%arg0: i32, %arg1: i32) -> (i32, i32, i32, i32) {
    %c8_i32 = arith.constant 8 : i32
    %0 = arith.muli %arg1, %c8_i32 : i32
    %c1_i32 = arith.constant 1 : i32
    %1 = arith.subi %0, %c1_i32 : i32
    %c0_i32 = arith.constant 0 : i32
    %2 = arith.maxsi %1, %c0_i32 : i32
    %c0_i32_0 = arith.constant 0 : i32
    %c0_i32_1 = arith.constant 0 : i32
    %c0_i32_2 = arith.constant 0 : i32
    return %arg0, %2, %c0_i32_0, %c0_i32_1 : i32, i32, i32, i32
  }
  func.func @transform_1(%arg0: i32, %arg1: i32) -> (i32, i32, i32, i32) {
    %c0_i32 = arith.constant 0 : i32
    %c0_i32_0 = arith.constant 0 : i32
    %c0_i32_1 = arith.constant 0 : i32
    return %arg0, %arg1, %c0_i32, %c0_i32_0 : i32, i32, i32, i32
  }
  func.func @transform_2(%arg0: i32, %arg1: i32) -> (i32, i32, i32, i32) {
    %c8_i32 = arith.constant 8 : i32
    %0 = arith.muli %arg1, %c8_i32 : i32
    %c8_i32_0 = arith.constant 8 : i32
    %1 = arith.addi %0, %c8_i32_0 : i32
    %c15_i32 = arith.constant 15 : i32
    %2 = arith.minsi %1, %c15_i32 : i32
    %c0_i32 = arith.constant 0 : i32
    %c0_i32_1 = arith.constant 0 : i32
    %c0_i32_2 = arith.constant 0 : i32
    return %arg0, %2, %c0_i32, %c0_i32_1 : i32, i32, i32, i32
  }
  func.func @transform_3(%arg0: i32, %arg1: i32) -> (i32, i32, i32, i32) {
    %c0_i32 = arith.constant 0 : i32
    %c0_i32_0 = arith.constant 0 : i32
    %c0_i32_1 = arith.constant 0 : i32
    %c0_i32_2 = arith.constant 0 : i32
    %c0_i32_3 = arith.constant 0 : i32
    return %c0_i32, %c0_i32_0, %c0_i32_1, %c0_i32_2 : i32, i32, i32, i32
  }
  func.func @transform_4(%arg0: i32, %arg1: i32) -> (i32, i32) {
    %c0_i32 = arith.constant 0 : i32
    %c0_i32_0 = arith.constant 0 : i32
    %c0_i32_1 = arith.constant 0 : i32
    return %c0_i32, %c0_i32_0 : i32, i32
  }
  func.func @transform_5(%arg0: i32, %arg1: i32) -> (i32, i32, i32, i32) {
    %c0_i32 = arith.constant 0 : i32
    %c0_i32_0 = arith.constant 0 : i32
    %c0_i32_1 = arith.constant 0 : i32
    return %arg0, %arg1, %c0_i32, %c0_i32_0 : i32, i32, i32, i32
  }
}

</mosaic_0001>

<llo_original>
// kernel: tile.8
$region0: #{tile.8}
  #allocation0 [shape = 's32[1]{0}', space=sflag, size = 0x4, scoped, tag = 'scoped memory for tile.8']
  %s0 = inlined_call_operand.vmem [shape: f32[4], index: 0, kind: input, shape index: {}]
  %s1 = inlined_call_operand.vmem [shape: f32[4,4], index: 1, kind: output, shape index: {}]
  // Predicated region
  $region2: #{tile.8} parent=0 // pred_check
    _
  $region3: #{tile.8} parent=0 // pred_check_branch
    %3 = sbr.rel (0) target = $region5
  $region4: #{tile.8} parent=0 // pred_region
    _
  $region5: #{tile.8} parent=0 // pred_fallthru
    _
  %v4 = vld [vmem:[%s0] ss:$0 sm:$0xff]
  %5 = vst [vmem:[%s1] sm:$0xf] %v4

// kernel: tile.9
$region0: #{tile.9}
  %s0 = inlined_call_operand.vmem [shape: f32[4,4], index: 0, kind: input, shape index: {}]
  %s1 = inlined_call_operand.vmem [shape: f32[1,16], index: 1, kind: output, shape index: {}]
  $region1: #{tile.9} parent=0
    #allocation0 [shape = 'u8[4096]{0}', space=vmem, size = 0x1000, scoped, tag = 'scoped mem for output reshape']
    #allocation1 [shape = 'u8[4096]{0}', space=vmem, size = 0x1000, scoped, tag = 'scoped mem for input reshape']
    %s3 = ssub.s32 16, 1
    %v4 = vld [vmem:[%s0] sm:%s3]
    %5 = vst [vmem:[#allocation1] sm:%s3] %v4
    %v6 = vld [vmem:[#allocation1] sm:$0x1]
    %vm7 = vcmask 31744
    %8 = vst.msk [vmem:[#allocation0] sm:$0x1] %vm7, %v6
    %s9 = scalar_lea.vmem [#allocation1], 3
    %v10 = vld [vmem:[%s9] sm:$0x1]
    %11 = vrot.lane.b32.xlu0 %v10, 12
    %v12 = vpop.permute.xlu0 %11
    %vm13 = vcmask 130144
    %14 = vst.msk [vmem:[#allocation0] sm:$0x1] %vm13, %v12
    %s15 = scalar_lea.vmem [#allocation1], 2
    %v16 = vld [vmem:[%s15] sm:$0x1]
    %17 = vrot.lane.b32.xlu0 %v16, 8
    %v18 = vpop.permute.xlu0 %17
    %vm19 = vcmask 97344
    %20 = vst.msk [vmem:[#allocation0] sm:$0x1] %vm19, %v18
    %s21 = scalar_lea.vmem [#allocation1], 1
    %v22 = vld [vmem:[%s21] sm:$0x1]
    %23 = vrot.lane.b32.xlu0 %v22, 4
    %v24 = vpop.permute.xlu0 %23
    %vm25 = vcmask 64544
    %26 = vst.msk [vmem:[#allocation0] sm:$0x1] %vm25, %v24
    %s28 = ssub.s32 2, 1
    %v29 = vld [vmem:[#allocation0] sm:%s28]
    %s31 = ssub.s32 2, 1
    %32 = vst [vmem:[%s1] sm:%s31] %v29

// kernel: up_conv_forward.3
$region0: #{up_conv_forward.3}
  #allocation0 [shape = 'u32[]', space=smem, size = 0x4, offset = 0x4, fixed_abs, tag = 'smem constant byte address 0x4 - core index']
  #allocation1 [shape = 'u32[72,128]{1,0:T(1,128)}', space=vmem, size = 0x9000, scoped, tag = 'internal scratch']
  %s0 = inlined_call_operand.vmem [shape: bf16[16,8,8], index: 0, kind: input, shape index: {}]
  %s1 = inlined_call_operand.vmem [shape: bf16[8,16], index: 1, kind: input, shape index: {}]
  %s2 = inlined_call_operand.vmem [shape: f32[1,16], index: 2, kind: input, shape index: {}]
  %s3 = inlined_call_operand.vmem [shape: bf16[16,2,8,8], index: 3, kind: output, shape index: {}]
  %s4 = sld [smem:[#allocation0]]
  $region45: #{up_conv_forward.3} parent=0
    _
  %s6 = ssub.s32 1, %s4
  %s7 = scalar_select 0, %s6, %s4
  loop: start=0, step=1, limit=6
  $region2: #{up_conv_forward.3} parent=0 // loop_pre_header
    _
  $region3: #{up_conv_forward.3} parent=0 // loop_header
    %s9 = sphi 0, %s13
    %p10 = scmp.ge.s32.totalorder %s9, 6
    %s19 = sphi 0, %s21
    %s22 = sphi 0, %s19
    %s23 = sphi 0, %s22
    %s39 = sphi 0, %s23
    %s43 = sphi 0, %s43
    %s45 = sphi 0, %s43
    %s46 = sphi 0, %s45
    %s60 = sphi 0, %s46
    %s64 = sphi 0, %s64
    %s66 = sphi 0, %s64
    %s67 = sphi 0, %s66
    %s81 = sphi 0, %s67
    %s87 = sphi 0, %s89
    %s90 = sphi 0, %s87
    %s91 = sphi 0, %s90
    %s107 = sphi 0, %s91
  $region4: #{up_conv_forward.3} parent=0 // loop_header_branch
    %12 = sbr.rel (%p10) target = $region8
  $region5: #{up_conv_forward.3} parent=0 // loop_body
    %s14 = ssub.s32 %s9, 1
    %s15 = ssub.s32 %s9, 2
    %s16 = sadd.s32 %s9, 1
    %s17 = ssub.s32 %s9, %s16
    %p18 = scmp.eq.s32.totalorder %s17, 0
    %s20 = sadd.s32 %s19, 1
    %s21 = scalar_select %p18, %s19, %s20
    %p24 = pneg %p18
    %p25 = scmp.eq.s32.totalorder %s9, 3
    %p26 = por %p24, %p25
    %p27 = scmp.ne.s32.totalorder %s19, %s22
    %p28 = scmp.eq.s32.totalorder %s9, 0
    %p29 = por %p27, %p28
    %p30 = scmp.ne.s32.totalorder %s19, %s22
    %p31 = scmp.eq.s32.totalorder %s14, 3
    %p32 = por %p30, %p31
    %p33 = scmp.ne.s32.totalorder %s22, %s23
    %p34 = scmp.eq.s32.totalorder %s14, 0
    %p35 = por %p33, %p34
    %p36 = scmp.ne.s32.totalorder %s22, %s23
    %p37 = scmp.eq.s32.totalorder %s15, 3
    %p38 = por %p36, %p37
    %p40 = scmp.ne.s32.totalorder %s23, %s39
    %p41 = scmp.eq.s32.totalorder %s15, 0
    %p42 = por %p40, %p41
    %s44 = sadd.s32 %s43, 1
    %p47 = scmp.eq.s32.totalorder %s9, 3
    %p48 = scmp.ne.s32.totalorder %s43, %s45
    %p49 = scmp.eq.s32.totalorder %s9, 0
    %p50 = por %p48, %p49
    %p51 = scmp.ne.s32.totalorder %s43, %s45
    %p52 = scmp.eq.s32.totalorder %s14, 3
    %p53 = por %p51, %p52
    %p54 = scmp.ne.s32.totalorder %s45, %s46
    %p55 = scmp.eq.s32.totalorder %s14, 0
    %p56 = por %p54, %p55
    %p57 = scmp.ne.s32.totalorder %s45, %s46
    %p58 = scmp.eq.s32.totalorder %s15, 3
    %p59 = por %p57, %p58
    %p61 = scmp.ne.s32.totalorder %s46, %s60
    %p62 = scmp.eq.s32.totalorder %s15, 0
    %p63 = por %p61, %p62
    %s65 = sadd.s32 %s64, 1
    %p68 = scmp.eq.s32.totalorder %s9, 3
    %p69 = scmp.ne.s32.totalorder %s64, %s66
    %p70 = scmp.eq.s32.totalorder %s9, 0
    %p71 = por %p69, %p70
    %p72 = scmp.ne.s32.totalorder %s64, %s66
    %p73 = scmp.eq.s32.totalorder %s14, 3
    %p74 = por %p72, %p73
    %p75 = scmp.ne.s32.totalorder %s66, %s67
    %p76 = scmp.eq.s32.totalorder %s14, 0
    %p77 = por %p75, %p76
    %p78 = scmp.ne.s32.totalorder %s66, %s67
    %p79 = scmp.eq.s32.totalorder %s15, 3
    %p80 = por %p78, %p79
    %p82 = scmp.ne.s32.totalorder %s67, %s81
    %p83 = scmp.eq.s32.totalorder %s15, 0
    %p84 = por %p82, %p83
    %s85 = ssub.s32 %s9, %s16
    %p86 = scmp.eq.s32.totalorder %s85, 0
    %s88 = sadd.s32 %s87, 1
    %s89 = scalar_select %p86, %s87, %s88
    %p92 = pneg %p86
    %p93 = scmp.eq.s32.totalorder %s9, 3
    %p94 = por %p92, %p93
    %p95 = scmp.ne.s32.totalorder %s87, %s90
    %p96 = scmp.eq.s32.totalorder %s9, 0
    %p97 = por %p95, %p96
    %p98 = scmp.ne.s32.totalorder %s87, %s90
    %p99 = scmp.eq.s32.totalorder %s14, 3
    %p100 = por %p98, %p99
    %p101 = scmp.ne.s32.totalorder %s90, %s91
    %p102 = scmp.eq.s32.totalorder %s14, 0
    %p103 = por %p101, %p102
    %p104 = scmp.ne.s32.totalorder %s90, %s91
    %p105 = scmp.eq.s32.totalorder %s15, 3
    %p106 = por %p104, %p105
    %p108 = scmp.ne.s32.totalorder %s91, %s107
    %p109 = scmp.eq.s32.totalorder %s15, 0
    %p110 = por %p108, %p109
    %p111 = scmp.le.s32.totalorder 1, %s9
    %p112 = scmp.lt.s32.totalorder %s9, 5
    %p113 = pnand %p111, %p112
    %p114 = pneg %p113
    // Predicated region
    $region9: #{up_conv_forward.3} parent=5 // pred_check
      _
    $region10: #{up_conv_forward.3} parent=5 // pred_check_branch
      %116 = sbr.rel (%p113) target = $region12
    $region11: #{up_conv_forward.3} parent=5 // pred_region
      %s117 = ssub.s32 %s9, 1
      // Predicated region
      $region13: #{up_conv_forward.3} parent=11 // pred_check
        %p118 = pneg %p56
      $region14: #{up_conv_forward.3} parent=11 // pred_check_branch
        %120 = sbr.rel (%p118) target = $region16
      $region15: #{up_conv_forward.3} parent=11 // pred_region
        _
      $region16: #{up_conv_forward.3} parent=11 // pred_fallthru
        _
      // Predicated region
      $region17: #{up_conv_forward.3} parent=11 // pred_check
        %p121 = pneg %p77
      $region18: #{up_conv_forward.3} parent=11 // pred_check_branch
        %123 = sbr.rel (%p121) target = $region20
      $region19: #{up_conv_forward.3} parent=11 // pred_region
        _
      $region20: #{up_conv_forward.3} parent=11 // pred_fallthru
        _
    $region12: #{up_conv_forward.3} parent=5 // pred_fallthru
      _
    %p124 = scmp.lt.s32.totalorder %s9, 4
    // Predicated region
    $region21: #{up_conv_forward.3} parent=5 // pred_check
      %p125 = pneg %p124
    $region22: #{up_conv_forward.3} parent=5 // pred_check_branch
      %127 = sbr.rel (%p125) target = $region24
    $region23: #{up_conv_forward.3} parent=5 // pred_region
      // Predicated region
      $region25: #{up_conv_forward.3} parent=23 // pred_check
        %p128 = pneg %p29
      $region26: #{up_conv_forward.3} parent=23 // pred_check_branch
        %130 = sbr.rel (%p128) target = $region28
      $region27: #{up_conv_forward.3} parent=23 // pred_region
        %s131 = smul.u32 4, %s9
        %p132 = scmp.lt.s32.totalorder %s131, 15
        %s133 = scalar_select %p132, %s131, 15
        %s134 = smul.addr %s133, 4
        %s135 = scalar_lea.vmem %s0, %s134
        %s136 = smul.u32 4, %s9
      $region28: #{up_conv_forward.3} parent=23 // pred_fallthru
        _
    $region24: #{up_conv_forward.3} parent=5 // pred_fallthru
      _
    %p137 = scmp.le.s32.totalorder 1, %s9
    %p138 = scmp.lt.s32.totalorder %s9, 5
    %p139 = pnand %p137, %p138
    %p140 = pneg %p139
    // Predicated region
    $region29: #{up_conv_forward.3} parent=5 // pred_check
      _
    $region30: #{up_conv_forward.3} parent=5 // pred_check_branch
      %142 = sbr.rel (%p139) target = $region32
    $region31: #{up_conv_forward.3} parent=5 // pred_region
      %s143 = ssub.s32 %s9, 1
      %s144 = smul.u32 4, %s14
      %p145 = scmp.lt.s32.totalorder %s144, 15
      %s146 = scalar_select %p145, %s144, 15
      %s147 = smul.addr %s146, 4
      %s148 = scalar_lea.vmem %s0, %s147
      %p149 = pneg %p35
      %p150 = pneg %p32
      %p151 = pneg %p56
      %p152 = pneg %p53
      %p153 = pneg %p77
      %p154 = pneg %p74
      %p155 = pneg %p103
      %p156 = pneg %p100
      %s157 = smul.u32 4, %s14
      %p158 = scmp.lt.s32.totalorder %s157, 15
      %s159 = scalar_select %p158, %s157, 15
      %s160 = smul.addr %s159, 2
      %s161 = smul.addr %s160, 4
      %s162 = scalar_lea.vmem %s3, %s161
      %s163 = smul.u32 4, %s14
      %p164 = scmp.lt.s32.totalorder %s163, 15
      %s165 = scalar_select %p164, %s163, 15
      %s166 = smul.addr %s165, 4
      %s167 = scalar_lea.vmem %s0, %s166
      %s168 = smul.u32 4, %s14
      %s169 = smul.u32 4, %s14
      %p170 = scmp.lt.s32.totalorder %s169, 15
      %s171 = scalar_select %p170, %s169, 15
      %s172 = smul.addr %s171, 2
      %s173 = smul.addr %s172, 4
      %s174 = scalar_lea.vmem %s3, %s173
      %s175 = smul.u32 4, %s14
      %v177 = vld [vmem:[%s167] sm:$0xf]
      %v178 = vld [vmem:[%s167 + $0x4] sm:$0xf]
      %v179 = vld [vmem:[%s167 + $0x8] sm:$0xf]
      %v180 = vld [vmem:[%s167 + $0xc] sm:$0xf]
      %v181 = vld [vmem:[%s1] sm:$0xf]
      %v182 = vld [vmem:[%s2] sm:$0x1]
      %v184 = vperm.slane %v182, 0
      %v190 = vunpack.c.l.b16 %v177
      %v191 = vunpack.c.l.b16 %v178
      %v192 = vunpack.c.l.b16 %v179
      %v193 = vunpack.c.l.b16 %v180
      %v194 = vpack.c.b16 %v191, %v190
      %v195 = vpack.c.b16 %v193, %v192
      %vm196 = vcmask 64512
      %v198 = vsel %vm196, %v194, 0
      %v201 = vsel %vm196, %v195, 0
      %vm203 = vcmask 1043456
      %v205 = vsel %vm203, %v181, 0
      %207 = vmatpush.bf16.msra.mxu0 0
      %208 = vmatpush.bf16.msra.mxu0 0
      %209 = vmatpush.bf16.msra.mxu0 0
      %210 = vmatpush.bf16.msra.mxu0 0
      %211 = vmatpush.bf16.msra.mxu0 0
      %212 = vmatpush.bf16.msra.mxu0 0
      %213 = vmatpush.bf16.msra.mxu0 0
      %214 = vmatpush.bf16.msra.mxu0 %v205
      %215 = vmatmul.bf16.gmra.mxu0 %v198
      %v216 = vpop.f32.mrf.mxu0
      %v217 = vadd.f32 %v184, %v216
      %v218 = vpop.f32.mrf.mxu0
      %v219 = vadd.f32 %v184, %v218
      %220 = vmatmul.bf16.gmra.mxu0 %v201
      %v221 = vpop.f32.mrf.mxu0
      %v222 = vadd.f32 %v184, %v221
      %v223 = vpop.f32.mrf.mxu0
      %v224 = vadd.f32 %v184, %v223
      %225 = vdwg.mxu0
      %v226 = vpack.c.bf16 %v217, %v217
      %v227 = vpack.c.bf16 %v219, %v219
      %v228 = vpack.c.bf16 %v222, %v222
      %v229 = vpack.c.bf16 %v224, %v224
      %vm230 = vcmask 60416
      %231 = vst.msk [vmem:[%s174] sm:$0xf] %vm230, %v226
      %232 = vst.msk [vmem:[%s174 + $0x8] sm:$0xf] %vm230, %v227
      %233 = vst.msk [vmem:[%s174 + $0x10] sm:$0xf] %vm230, %v228
      %234 = vst.msk [vmem:[%s174 + $0x18] sm:$0xf] %vm230, %v229
      %239 = vrot.lane.b32.xlu0 %v226, 120
      %v240 = vpop.permute.xlu0 %239
      %241 = vrot.lane.b32.xlu0 %v227, 120
      %v242 = vpop.permute.xlu0 %241
      %243 = vrot.lane.b32.xlu0 %v228, 120
      %v244 = vpop.permute.xlu0 %243
      %245 = vrot.lane.b32.xlu0 %v229, 120
      %v246 = vpop.permute.xlu0 %245
      %s251 = scalar_lea.vmem %s174, 4
      %252 = vst.msk [vmem:[%s251] sm:$0xf] %vm230, %v240
      %253 = vst.msk [vmem:[%s251 + $0x8] sm:$0xf] %vm230, %v242
      %254 = vst.msk [vmem:[%s251 + $0x10] sm:$0xf] %vm230, %v244
      %255 = vst.msk [vmem:[%s251 + $0x18] sm:$0xf] %vm230, %v246
      %s256 = smul.u32 4, %s14
      %p257 = scmp.lt.s32.totalorder %s256, 15
      %s258 = scalar_select %p257, %s256, 15
      %s259 = smul.addr %s258, 2
      %s260 = smul.addr %s259, 4
      %s261 = scalar_lea.vmem %s3, %s260
      // Predicated region
      $region33: #{up_conv_forward.3} parent=31 // pred_check
        %p262 = pneg %p100
      $region34: #{up_conv_forward.3} parent=31 // pred_check_branch
        %264 = sbr.rel (%p262) target = $region36
      $region35: #{up_conv_forward.3} parent=31 // pred_region
        %s265 = smul.u32 4, %s14
      $region36: #{up_conv_forward.3} parent=31 // pred_fallthru
        _
    $region32: #{up_conv_forward.3} parent=5 // pred_fallthru
      _
    %p266 = scmp.le.s32.totalorder 2, %s9
    // Predicated region
    $region37: #{up_conv_forward.3} parent=5 // pred_check
      %p267 = pneg %p266
    $region38: #{up_conv_forward.3} parent=5 // pred_check_branch
      %269 = sbr.rel (%p267) target = $region40
    $region39: #{up_conv_forward.3} parent=5 // pred_region
      %s270 = ssub.s32 %s9, 2
      // Predicated region
      $region41: #{up_conv_forward.3} parent=39 // pred_check
        %p271 = pneg %p106
      $region42: #{up_conv_forward.3} parent=39 // pred_check_branch
        %273 = sbr.rel (%p271) target = $region44
      $region43: #{up_conv_forward.3} parent=39 // pred_region
        %s274 = smul.u32 4, %s15
        %p275 = scmp.lt.s32.totalorder %s274, 15
        %s276 = scalar_select %p275, %s274, 15
        %s277 = smul.addr %s276, 2
        %s278 = smul.addr %s277, 4
        %s279 = scalar_lea.vmem %s3, %s278
      $region44: #{up_conv_forward.3} parent=39 // pred_fallthru
        _
    $region40: #{up_conv_forward.3} parent=5 // pred_fallthru
      _
  $region6: #{up_conv_forward.3} parent=0 // loop_footer
    %s13 = sadd.s32 1, %s9
  $region7: #{up_conv_forward.3} parent=0 // loop_footer_branch
    %8 = sbr.rel target = $region3
  $region8: #{up_conv_forward.3} parent=0 // loop_exit
    _

// kernel: up_conv_forward.5
$region0: #{up_conv_forward.5}
  #allocation0 [shape = 'u32[]', space=smem, size = 0x4, offset = 0x4, fixed_abs, tag = 'smem constant byte address 0x4 - core index']
  #allocation1 [shape = 'u32[72,128]{1,0:T(1,128)}', space=vmem, size = 0x9000, scoped, tag = 'internal scratch']
  #allocation2 [shape = 'bf16[192,4]{1,0:T(8,128)(2,1)}', space=vmem, size = 0xc000, scoped, tag = 'scratch operand']
  %s0 = inlined_call_operand.vmem [shape: bf16[2,16,16,4], index: 0, kind: input, shape index: {}, may-alias: {0,1,2}]
  %s1 = inlined_call_operand.vmem [shape: bf16[2,16,16,4], index: 1, kind: input, shape index: {}, may-alias: {0,1,2}]
  %s2 = inlined_call_operand.vmem [shape: bf16[2,16,16,4], index: 2, kind: input, shape index: {}, may-alias: {0,1,2}]
  %s3 = inlined_call_operand.vmem [shape: bf16[3,3,4,4], index: 3, kind: input, shape index: {}]
  %s4 = inlined_call_operand.vmem [shape: f32[1,4], index: 4, kind: input, shape index: {}]
  %s5 = inlined_call_operand.vmem [shape: f32[2,16,16,4], index: 5, kind: output, shape index: {}]
  %s6 = sld [smem:[#allocation0]]
  $region53: #{up_conv_forward.5} parent=0
    _
  %s8 = ssub.s32 1, %s6
  %s9 = scalar_select 0, %s8, %s6
  loop: start=0, step=1, limit=6
  $region2: #{up_conv_forward.5} parent=0 // loop_pre_header
    _
  $region3: #{up_conv_forward.5} parent=0 // loop_header
    %s11 = sphi 0, %s15
    %p12 = scmp.ge.s32.totalorder %s11, 6
    %s18 = sphi 0, %s30
    %s19 = sphi 0, %s26
    %s20 = sphi 0, %s18
    %s21 = sphi 0, %s19
    %s22 = sphi 0, %s20
    %s23 = sphi 0, %s21
    %s43 = sphi 0, %s45
    %s46 = sphi 0, %s43
    %s47 = sphi 0, %s46
    %s63 = sphi 0, %s47
    %s71 = sphi 0, %s73
    %s74 = sphi 0, %s71
    %s75 = sphi 0, %s74
    %s91 = sphi 0, %s75
    %s107 = sphi 0, %s109
    %s110 = sphi 0, %s107
    %s111 = sphi 0, %s110
    %s127 = sphi 0, %s111
    %s131 = sphi 0, %s131
    %s133 = sphi 0, %s131
    %s134 = sphi 0, %s133
    %s148 = sphi 0, %s134
    %s152 = sphi 0, %s152
    %s154 = sphi 0, %s152
    %s155 = sphi 0, %s154
    %s169 = sphi 0, %s155
    %s177 = sphi 0, %s179
    %s180 = sphi 0, %s177
    %s181 = sphi 0, %s180
    %s197 = sphi 0, %s181
  $region4: #{up_conv_forward.5} parent=0 // loop_header_branch
    %14 = sbr.rel (%p12) target = $region8
  $region5: #{up_conv_forward.5} parent=0 // loop_body
    %s16 = ssub.s32 %s11, 1
    %s17 = ssub.s32 %s11, 2
    %s24 = sadd.s32 1, %s19
    %p25 = scmp.ge.s32.totalorder %s24, 2
    %s26 = scalar_select %p25, 0, %s24
    %s27 = sadd.s32 1, %s18
    %s28 = scalar_select %p25, %s27, %s18
    %p29 = scmp.ge.s32.totalorder %s28, 2
    %s30 = scalar_select %p29, 0, %s28
    %s31 = smul.u32 %s19, 8
    %s32 = ssub.s32 %s31, 1
    %p33 = scmp.gt.s32.totalorder %s32, 0
    %s34 = scalar_select %p33, %s32, 0
    %s35 = smul.u32 %s26, 8
    %s36 = ssub.s32 %s35, 1
    %p37 = scmp.gt.s32.totalorder %s36, 0
    %s38 = scalar_select %p37, %s36, 0
    %s39 = ssub.s32 %s18, %s30
    %s40 = ssub.s32 %s34, %s38
    %s41 = sor.u32 %s39, %s40
    %p42 = scmp.eq.s32.totalorder %s41, 0
    %s44 = sadd.s32 %s43, 1
    %s45 = scalar_select %p42, %s43, %s44
    %p48 = pneg %p42
    %p49 = scmp.eq.s32.totalorder %s11, 3
    %p50 = por %p48, %p49
    %p51 = scmp.ne.s32.totalorder %s43, %s46
    %p52 = scmp.eq.s32.totalorder %s11, 0
    %p53 = por %p51, %p52
    %p54 = scmp.ne.s32.totalorder %s43, %s46
    %p55 = scmp.eq.s32.totalorder %s16, 3
    %p56 = por %p54, %p55
    %p57 = scmp.ne.s32.totalorder %s46, %s47
    %p58 = scmp.eq.s32.totalorder %s16, 0
    %p59 = por %p57, %p58
    %p60 = scmp.ne.s32.totalorder %s46, %s47
    %p61 = scmp.eq.s32.totalorder %s17, 3
    %p62 = por %p60, %p61
    %p64 = scmp.ne.s32.totalorder %s47, %s63
    %p65 = scmp.eq.s32.totalorder %s17, 0
    %p66 = por %p64, %p65
    %s67 = ssub.s32 %s18, %s30
    %s68 = ssub.s32 %s19, %s26
    %s69 = sor.u32 %s67, %s68
    %p70 = scmp.eq.s32.totalorder %s69, 0
    %s72 = sadd.s32 %s71, 1
    %s73 = scalar_select %p70, %s71, %s72
    %p76 = pneg %p70
    %p77 = scmp.eq.s32.totalorder %s11, 3
    %p78 = por %p76, %p77
    %p79 = scmp.ne.s32.totalorder %s71, %s74
    %p80 = scmp.eq.s32.totalorder %s11, 0
    %p81 = por %p79, %p80
    %p82 = scmp.ne.s32.totalorder %s71, %s74
    %p83 = scmp.eq.s32.totalorder %s16, 3
    %p84 = por %p82, %p83
    %p85 = scmp.ne.s32.totalorder %s74, %s75
    %p86 = scmp.eq.s32.totalorder %s16, 0
    %p87 = por %p85, %p86
    %p88 = scmp.ne.s32.totalorder %s74, %s75
    %p89 = scmp.eq.s32.totalorder %s17, 3
    %p90 = por %p88, %p89
    %p92 = scmp.ne.s32.totalorder %s75, %s91
    %p93 = scmp.eq.s32.totalorder %s17, 0
    %p94 = por %p92, %p93
    %s95 = smul.u32 %s19, 8
    %s96 = sadd.s32 %s95, 8
    %p97 = scmp.lt.s32.totalorder %s96, 15
    %s98 = scalar_select %p97, %s96, 15
    %s99 = smul.u32 %s26, 8
    %s100 = sadd.s32 %s99, 8
    %p101 = scmp.lt.s32.totalorder %s100, 15
    %s102 = scalar_select %p101, %s100, 15
    %s103 = ssub.s32 %s18, %s30
    %s104 = ssub.s32 %s98, %s102
    %s105 = sor.u32 %s103, %s104
    %p106 = scmp.eq.s32.totalorder %s105, 0
    %s108 = sadd.s32 %s107, 1
    %s109 = scalar_select %p106, %s107, %s108
    %p112 = pneg %p106
    %p113 = scmp.eq.s32.totalorder %s11, 3
    %p114 = por %p112, %p113
    %p115 = scmp.ne.s32.totalorder %s107, %s110
    %p116 = scmp.eq.s32.totalorder %s11, 0
    %p117 = por %p115, %p116
    %p118 = scmp.ne.s32.totalorder %s107, %s110
    %p119 = scmp.eq.s32.totalorder %s16, 3
    %p120 = por %p118, %p119
    %p121 = scmp.ne.s32.totalorder %s110, %s111
    %p122 = scmp.eq.s32.totalorder %s16, 0
    %p123 = por %p121, %p122
    %p124 = scmp.ne.s32.totalorder %s110, %s111
    %p125 = scmp.eq.s32.totalorder %s17, 3
    %p126 = por %p124, %p125
    %p128 = scmp.ne.s32.totalorder %s111, %s127
    %p129 = scmp.eq.s32.totalorder %s17, 0
    %p130 = por %p128, %p129
    %s132 = sadd.s32 %s131, 1
    %p135 = scmp.eq.s32.totalorder %s11, 3
    %p136 = scmp.ne.s32.totalorder %s131, %s133
    %p137 = scmp.eq.s32.totalorder %s11, 0
    %p138 = por %p136, %p137
    %p139 = scmp.ne.s32.totalorder %s131, %s133
    %p140 = scmp.eq.s32.totalorder %s16, 3
    %p141 = por %p139, %p140
    %p142 = scmp.ne.s32.totalorder %s133, %s134
    %p143 = scmp.eq.s32.totalorder %s16, 0
    %p144 = por %p142, %p143
    %p145 = scmp.ne.s32.totalorder %s133, %s134
    %p146 = scmp.eq.s32.totalorder %s17, 3
    %p147 = por %p145, %p146
    %p149 = scmp.ne.s32.totalorder %s134, %s148
    %p150 = scmp.eq.s32.totalorder %s17, 0
    %p151 = por %p149, %p150
    %s153 = sadd.s32 %s152, 1
    %p156 = scmp.eq.s32.totalorder %s11, 3
    %p157 = scmp.ne.s32.totalorder %s152, %s154
    %p158 = scmp.eq.s32.totalorder %s11, 0
    %p159 = por %p157, %p158
    %p160 = scmp.ne.s32.totalorder %s152, %s154
    %p161 = scmp.eq.s32.totalorder %s16, 3
    %p162 = por %p160, %p161
    %p163 = scmp.ne.s32.totalorder %s154, %s155
    %p164 = scmp.eq.s32.totalorder %s16, 0
    %p165 = por %p163, %p164
    %p166 = scmp.ne.s32.totalorder %s154, %s155
    %p167 = scmp.eq.s32.totalorder %s17, 3
    %p168 = por %p166, %p167
    %p170 = scmp.ne.s32.totalorder %s155, %s169
    %p171 = scmp.eq.s32.totalorder %s17, 0
    %p172 = por %p170, %p171
    %s173 = ssub.s32 %s18, %s30
    %s174 = ssub.s32 %s19, %s26
    %s175 = sor.u32 %s173, %s174
    %p176 = scmp.eq.s32.totalorder %s175, 0
    %s178 = sadd.s32 %s177, 1
    %s179 = scalar_select %p176, %s177, %s178
    %p182 = pneg %p176
    %p183 = scmp.eq.s32.totalorder %s11, 3
    %p184 = por %p182, %p183
    %p185 = scmp.ne.s32.totalorder %s177, %s180
    %p186 = scmp.eq.s32.totalorder %s11, 0
    %p187 = por %p185, %p186
    %p188 = scmp.ne.s32.totalorder %s177, %s180
    %p189 = scmp.eq.s32.totalorder %s16, 3
    %p190 = por %p188, %p189
    %p191 = scmp.ne.s32.totalorder %s180, %s181
    %p192 = scmp.eq.s32.totalorder %s16, 0
    %p193 = por %p191, %p192
    %p194 = scmp.ne.s32.totalorder %s180, %s181
    %p195 = scmp.eq.s32.totalorder %s17, 3
    %p196 = por %p194, %p195
    %p198 = scmp.ne.s32.totalorder %s181, %s197
    %p199 = scmp.eq.s32.totalorder %s17, 0
    %p200 = por %p198, %p199
    %p201 = scmp.le.s32.totalorder 1, %s11
    %p202 = scmp.lt.s32.totalorder %s11, 5
    %p203 = pnand %p201, %p202
    %p204 = pneg %p203
    // Predicated region
    $region9: #{up_conv_forward.5} parent=5 // pred_check
      _
    $region10: #{up_conv_forward.5} parent=5 // pred_check_branch
      %206 = sbr.rel (%p203) target = $region12
    $region11: #{up_conv_forward.5} parent=5 // pred_region
      %s207 = ssub.s32 %s11, 1
      // Predicated region
      $region13: #{up_conv_forward.5} parent=11 // pred_check
        %p208 = pneg %p144
      $region14: #{up_conv_forward.5} parent=11 // pred_check_branch
        %210 = sbr.rel (%p208) target = $region16
      $region15: #{up_conv_forward.5} parent=11 // pred_region
        _
      $region16: #{up_conv_forward.5} parent=11 // pred_fallthru
        _
      // Predicated region
      $region17: #{up_conv_forward.5} parent=11 // pred_check
        %p211 = pneg %p165
      $region18: #{up_conv_forward.5} parent=11 // pred_check_branch
        %213 = sbr.rel (%p211) target = $region20
      $region19: #{up_conv_forward.5} parent=11 // pred_region
        _
      $region20: #{up_conv_forward.5} parent=11 // pred_fallthru
        _
    $region12: #{up_conv_forward.5} parent=5 // pred_fallthru
      _
    %p214 = scmp.lt.s32.totalorder %s11, 4
    // Predicated region
    $region21: #{up_conv_forward.5} parent=5 // pred_check
      %p215 = pneg %p214
    $region22: #{up_conv_forward.5} parent=5 // pred_check_branch
      %217 = sbr.rel (%p215) target = $region24
    $region23: #{up_conv_forward.5} parent=5 // pred_region
      // Predicated region
      $region25: #{up_conv_forward.5} parent=23 // pred_check
        %p218 = pneg %p53
      $region26: #{up_conv_forward.5} parent=23 // pred_check_branch
        %220 = sbr.rel (%p218) target = $region28
      $region27: #{up_conv_forward.5} parent=23 // pred_region
        %s221 = smul.u32 %s19, 8
        %s222 = ssub.s32 %s221, 1
        %p223 = scmp.gt.s32.totalorder %s222, 0
        %s224 = scalar_select %p223, %s222, 0
        %p225 = scmp.lt.s32.totalorder %s18, 1
        %s226 = scalar_select %p225, %s18, 1
        %p227 = scmp.lt.s32.totalorder %s224, 15
        %s228 = scalar_select %p227, %s224, 15
        %s229 = smul.addr %s228, 2
        %s230 = smul.addr %s226, 32
        %s231 = sadd.s32 %s229, %s230
        %s232 = smul.addr %s231, 4
        %s233 = scalar_lea.vmem %s0, %s232
        %s234 = smul.u32 %s19, 8
        %s235 = ssub.s32 %s234, 1
        %p236 = scmp.gt.s32.totalorder %s235, 0
        %s237 = scalar_select %p236, %s235, 0
      $region28: #{up_conv_forward.5} parent=23 // pred_fallthru
        _
      // Predicated region
      $region29: #{up_conv_forward.5} parent=23 // pred_check
        %p238 = pneg %p81
      $region30: #{up_conv_forward.5} parent=23 // pred_check_branch
        %240 = sbr.rel (%p238) target = $region32
      $region31: #{up_conv_forward.5} parent=23 // pred_region
        %s241 = smul.u32 8, %s19
        %p242 = scmp.lt.s32.totalorder %s18, 1
        %s243 = scalar_select %p242, %s18, 1
        %p244 = scmp.lt.s32.totalorder %s241, 15
        %s245 = scalar_select %p244, %s241, 15
        %s246 = smul.addr %s245, 2
        %s247 = smul.addr %s243, 32
        %s248 = sadd.s32 %s246, %s247
        %s249 = smul.addr %s248, 4
        %s250 = scalar_lea.vmem %s1, %s249
        %s251 = smul.u32 8, %s19
      $region32: #{up_conv_forward.5} parent=23 // pred_fallthru
        _
      // Predicated region
      $region33: #{up_conv_forward.5} parent=23 // pred_check
        %p252 = pneg %p117
      $region34: #{up_conv_forward.5} parent=23 // pred_check_branch
        %254 = sbr.rel (%p252) target = $region36
      $region35: #{up_conv_forward.5} parent=23 // pred_region
        %s255 = smul.u32 %s19, 8
        %s256 = sadd.s32 %s255, 8
        %p257 = scmp.lt.s32.totalorder %s256, 15
        %s258 = scalar_select %p257, %s256, 15
        %p259 = scmp.lt.s32.totalorder %s18, 1
        %s260 = scalar_select %p259, %s18, 1
        %p261 = scmp.lt.s32.totalorder %s258, 15
        %s262 = scalar_select %p261, %s258, 15
        %s263 = smul.addr %s262, 2
        %s264 = smul.addr %s260, 32
        %s265 = sadd.s32 %s263, %s264
        %s266 = smul.addr %s265, 4
        %s267 = scalar_lea.vmem %s2, %s266
        %s268 = smul.u32 %s19, 8
        %s269 = sadd.s32 %s268, 8
        %p270 = scmp.lt.s32.totalorder %s269, 15
        %s271 = scalar_select %p270, %s269, 15
      $region36: #{up_conv_forward.5} parent=23 // pred_fallthru
        _
    $region24: #{up_conv_forward.5} parent=5 // pred_fallthru
      _
    %p272 = scmp.le.s32.totalorder 1, %s11
    %p273 = scmp.lt.s32.totalorder %s11, 5
    %p274 = pnand %p272, %p273
    %p275 = pneg %p274
    // Predicated region
    $region37: #{up_conv_forward.5} parent=5 // pred_check
      _
    $region38: #{up_conv_forward.5} parent=5 // pred_check_branch
      %277 = sbr.rel (%p274) target = $region40
    $region39: #{up_conv_forward.5} parent=5 // pred_region
      %s278 = ssub.s32 %s11, 1
      %s279 = smul.u32 %s21, 8
      %s280 = ssub.s32 %s279, 1
      %p281 = scmp.gt.s32.totalorder %s280, 0
      %s282 = scalar_select %p281, %s280, 0
      %p283 = scmp.lt.s32.totalorder %s20, 1
      %s284 = scalar_select %p283, %s20, 1
      %p285 = scmp.lt.s32.totalorder %s282, 15
      %s286 = scalar_select %p285, %s282, 15
      %s287 = smul.addr %s286, 2
      %s288 = smul.addr %s284, 32
      %s289 = sadd.s32 %s287, %s288
      %s290 = smul.addr %s289, 4
      %s291 = scalar_lea.vmem %s0, %s290
      %p292 = pneg %p59
      %p293 = pneg %p56
      %s294 = smul.u32 8, %s21
      %p295 = scmp.lt.s32.totalorder %s20, 1
      %s296 = scalar_select %p295, %s20, 1
      %p297 = scmp.lt.s32.totalorder %s294, 15
      %s298 = scalar_select %p297, %s294, 15
      %s299 = smul.addr %s298, 2
      %s300 = smul.addr %s296, 32
      %s301 = sadd.s32 %s299, %s300
      %s302 = smul.addr %s301, 4
      %s303 = scalar_lea.vmem %s1, %s302
      %p304 = pneg %p87
      %p305 = pneg %p84
      %s306 = smul.u32 %s21, 8
      %s307 = sadd.s32 %s306, 8
      %p308 = scmp.lt.s32.totalorder %s307, 15
      %s309 = scalar_select %p308, %s307, 15
      %p310 = scmp.lt.s32.totalorder %s20, 1
      %s311 = scalar_select %p310, %s20, 1
      %p312 = scmp.lt.s32.totalorder %s309, 15
      %s313 = scalar_select %p312, %s309, 15
      %s314 = smul.addr %s313, 2
      %s315 = smul.addr %s311, 32
      %s316 = sadd.s32 %s314, %s315
      %s317 = smul.addr %s316, 4
      %s318 = scalar_lea.vmem %s2, %s317
      %p319 = pneg %p123
      %p320 = pneg %p120
      %p321 = pneg %p144
      %p322 = pneg %p141
      %p323 = pneg %p165
      %p324 = pneg %p162
      %p325 = pneg %p193
      %p326 = pneg %p190
      %s327 = smul.u32 8, %s21
      %p328 = scmp.lt.s32.totalorder %s20, 1
      %s329 = scalar_select %p328, %s20, 1
      %p330 = scmp.lt.s32.totalorder %s327, 15
      %s331 = scalar_select %p330, %s327, 15
      %s332 = smul.addr %s331, 2
      %s333 = smul.addr %s329, 32
      %s334 = sadd.s32 %s332, %s333
      %s335 = smul.addr %s334, 8
      %s336 = scalar_lea.vmem %s5, %s335
      %s337 = smul.u32 %s21, 8
      %s338 = ssub.s32 %s337, 1
      %p339 = scmp.gt.s32.totalorder %s338, 0
      %s340 = scalar_select %p339, %s338, 0
      %p341 = scmp.lt.s32.totalorder %s20, 1
      %s342 = scalar_select %p341, %s20, 1
      %p343 = scmp.lt.s32.totalorder %s340, 15
      %s344 = scalar_select %p343, %s340, 15
      %s345 = smul.addr %s344, 2
      %s346 = smul.addr %s342, 32
      %s347 = sadd.s32 %s345, %s346
      %s348 = smul.addr %s347, 4
      %s349 = scalar_lea.vmem %s0, %s348
      %s350 = smul.u32 %s21, 8
      %s351 = ssub.s32 %s350, 1
      %p352 = scmp.gt.s32.totalorder %s351, 0
      %s353 = scalar_select %p352, %s351, 0
      %s354 = smul.u32 8, %s21
      %p355 = scmp.lt.s32.totalorder %s20, 1
      %s356 = scalar_select %p355, %s20, 1
      %p357 = scmp.lt.s32.totalorder %s354, 15
      %s358 = scalar_select %p357, %s354, 15
      %s359 = smul.addr %s358, 2
      %s360 = smul.addr %s356, 32
      %s361 = sadd.s32 %s359, %s360
      %s362 = smul.addr %s361, 4
      %s363 = scalar_lea.vmem %s1, %s362
      %s364 = smul.u32 8, %s21
      %s365 = smul.u32 %s21, 8
      %s366 = sadd.s32 %s365, 8
      %p367 = scmp.lt.s32.totalorder %s366, 15
      %s368 = scalar_select %p367, %s366, 15
      %p369 = scmp.lt.s32.totalorder %s20, 1
      %s370 = scalar_select %p369, %s20, 1
      %p371 = scmp.lt.s32.totalorder %s368, 15
      %s372 = scalar_select %p371, %s368, 15
      %s373 = smul.addr %s372, 2
      %s374 = smul.addr %s370, 32
      %s375 = sadd.s32 %s373, %s374
      %s376 = smul.addr %s375, 4
      %s377 = scalar_lea.vmem %s2, %s376
      %s378 = smul.u32 %s21, 8
      %s379 = sadd.s32 %s378, 8
      %p380 = scmp.lt.s32.totalorder %s379, 15
      %s381 = scalar_select %p380, %s379, 15
      %s382 = smul.u32 8, %s21
      %p383 = scmp.lt.s32.totalorder %s20, 1
      %s384 = scalar_select %p383, %s20, 1
      %p385 = scmp.lt.s32.totalorder %s382, 15
      %s386 = scalar_select %p385, %s382, 15
      %s387 = smul.addr %s386, 2
      %s388 = smul.addr %s384, 32
      %s389 = sadd.s32 %s387, %s388
      %s390 = smul.addr %s389, 8
      %s391 = scalar_lea.vmem %s5, %s390
      %s392 = smul.u32 8, %s21
      %v396 = vlaneseq
      %v397 = vshrl.u32 %v396, 7
      %v398 = vadd.s32 %v397, 8
      %v399 = vadd.s32 %v397, 16
      %v400 = vadd.s32 %v397, 24
      %v401 = vadd.s32 %v397, 32
      %v402 = vadd.s32 %v397, 40
      %v403 = vadd.s32 %v397, 48
      %v404 = vadd.s32 %v397, 56
      %v405 = vadd.s32 %v397, 64
      %v406 = vadd.s32 %v397, 72
      %v407 = vadd.s32 %v397, 80
      %v408 = vadd.s32 %v397, 88
      %v409 = vadd.s32 %v397, 96
      %v410 = vadd.s32 %v397, 104
      %v411 = vadd.s32 %v397, 112
      %v412 = vadd.s32 %v397, 120
      %v413 = vadd.s32 %v397, 128
      %v414 = vadd.s32 %v397, 136
      %v415 = vadd.s32 %v397, 144
      %v416 = vadd.s32 %v397, 152
      %vm417 = vcmp.lt.s32.totalorder %v397, 0
      %v418 = vsub.s32 0, %v397
      %v419 = vsel %vm417, %v418, %v397
      %v420 = vshrl.u32 %v419, 4
      %v421 = vand.u32 %v419, 15
      %v422 = vsub.s32 0, %v421
      %v423 = vsel %vm417, %v422, %v421
      %vm424 = vcmp.lt.s32.totalorder %v398, 0
      %v425 = vsub.s32 0, %v398
      %v426 = vsel %vm424, %v425, %v398
      %v427 = vshrl.u32 %v426, 4
      %v428 = vand.u32 %v426, 15
      %v429 = vsub.s32 0, %v428
      %v430 = vsel %vm424, %v429, %v428
      %vm431 = vcmp.lt.s32.totalorder %v399, 0
      %v432 = vsub.s32 0, %v399
      %v433 = vsel %vm431, %v432, %v399
      %v434 = vshrl.u32 %v433, 4
      %v435 = vand.u32 %v433, 15
      %v436 = vsub.s32 0, %v435
      %v437 = vsel %vm431, %v436, %v435
      %vm438 = vcmp.lt.s32.totalorder %v400, 0
      %v439 = vsub.s32 0, %v400
      %v440 = vsel %vm438, %v439, %v400
      %v441 = vshrl.u32 %v440, 4
      %v442 = vand.u32 %v440, 15
      %v443 = vsub.s32 0, %v442
      %v444 = vsel %vm438, %v443, %v442
      %vm445 = vcmp.lt.s32.totalorder %v401, 0
      %v446 = vsub.s32 0, %v401
      %v447 = vsel %vm445, %v446, %v401
      %v448 = vshrl.u32 %v447, 4
      %v449 = vand.u32 %v447, 15
      %v450 = vsub.s32 0, %v449
      %v451 = vsel %vm445, %v450, %v449
      %vm452 = vcmp.lt.s32.totalorder %v402, 0
      %v453 = vsub.s32 0, %v402
      %v454 = vsel %vm452, %v453, %v402
      %v455 = vshrl.u32 %v454, 4
      %v456 = vand.u32 %v454, 15
      %v457 = vsub.s32 0, %v456
      %v458 = vsel %vm452, %v457, %v456
      %vm459 = vcmp.lt.s32.totalorder %v403, 0
      %v460 = vsub.s32 0, %v403
      %v461 = vsel %vm459, %v460, %v403
      %v462 = vshrl.u32 %v461, 4
      %v463 = vand.u32 %v461, 15
      %v464 = vsub.s32 0, %v463
      %v465 = vsel %vm459, %v464, %v463
      %vm466 = vcmp.lt.s32.totalorder %v404, 0
      %v467 = vsub.s32 0, %v404
      %v468 = vsel %vm466, %v467, %v404
      %v469 = vshrl.u32 %v468, 4
      %v470 = vand.u32 %v468, 15
      %v471 = vsub.s32 0, %v470
      %v472 = vsel %vm466, %v471, %v470
      %vm473 = vcmp.lt.s32.totalorder %v405, 0
      %v474 = vsub.s32 0, %v405
      %v475 = vsel %vm473, %v474, %v405
      %v476 = vshrl.u32 %v475, 4
      %v477 = vand.u32 %v475, 15
      %v478 = vsub.s32 0, %v477
      %v479 = vsel %vm473, %v478, %v477
      %vm480 = vcmp.lt.s32.totalorder %v406, 0
      %v481 = vsub.s32 0, %v406
      %v482 = vsel %vm480, %v481, %v406
      %v483 = vshrl.u32 %v482, 4
      %v484 = vand.u32 %v482, 15
      %v485 = vsub.s32 0, %v484
      %v486 = vsel %vm480, %v485, %v484
      %vm487 = vcmp.lt.s32.totalorder %v407, 0
      %v488 = vsub.s32 0, %v407
      %v489 = vsel %vm487, %v488, %v407
      %v490 = vshrl.u32 %v489, 4
      %v491 = vand.u32 %v489, 15
      %v492 = vsub.s32 0, %v491
      %v493 = vsel %vm487, %v492, %v491
      %vm494 = vcmp.lt.s32.totalorder %v408, 0
      %v495 = vsub.s32 0, %v408
      %v496 = vsel %vm494, %v495, %v408
      %v497 = vshrl.u32 %v496, 4
      %v498 = vand.u32 %v496, 15
      %v499 = vsub.s32 0, %v498
      %v500 = vsel %vm494, %v499, %v498
      %vm501 = vcmp.lt.s32.totalorder %v409, 0
      %v502 = vsub.s32 0, %v409
      %v503 = vsel %vm501, %v502, %v409
      %v504 = vshrl.u32 %v503, 4
      %v505 = vand.u32 %v503, 15
      %v506 = vsub.s32 0, %v505
      %v507 = vsel %vm501, %v506, %v505
      %vm508 = vcmp.lt.s32.totalorder %v410, 0
      %v509 = vsub.s32 0, %v410
      %v510 = vsel %vm508, %v509, %v410
      %v511 = vshrl.u32 %v510, 4
      %v512 = vand.u32 %v510, 15
      %v513 = vsub.s32 0, %v512
      %v514 = vsel %vm508, %v513, %v512
      %vm515 = vcmp.lt.s32.totalorder %v411, 0
      %v516 = vsub.s32 0, %v411
      %v517 = vsel %vm515, %v516, %v411
      %v518 = vshrl.u32 %v517, 4
      %v519 = vand.u32 %v517, 15
      %v520 = vsub.s32 0, %v519
      %v521 = vsel %vm515, %v520, %v519
      %vm522 = vcmp.lt.s32.totalorder %v412, 0
      %v523 = vsub.s32 0, %v412
      %v524 = vsel %vm522, %v523, %v412
      %v525 = vshrl.u32 %v524, 4
      %v526 = vand.u32 %v524, 15
      %v527 = vsub.s32 0, %v526
      %v528 = vsel %vm522, %v527, %v526
      %vm529 = vcmp.lt.s32.totalorder %v413, 0
      %v530 = vsub.s32 0, %v413
      %v531 = vsel %vm529, %v530, %v413
      %v532 = vshrl.u32 %v531, 4
      %v533 = vand.u32 %v531, 15
      %v534 = vsub.s32 0, %v533
      %v535 = vsel %vm529, %v534, %v533
      %vm536 = vcmp.lt.s32.totalorder %v414, 0
      %v537 = vsub.s32 0, %v414
      %v538 = vsel %vm536, %v537, %v414
      %v539 = vshrl.u32 %v538, 4
      %v540 = vand.u32 %v538, 15
      %v541 = vsub.s32 0, %v540
      %v542 = vsel %vm536, %v541, %v540
      %vm543 = vcmp.lt.s32.totalorder %v415, 0
      %v544 = vsub.s32 0, %v415
      %v545 = vsel %vm543, %v544, %v415
      %v546 = vshrl.u32 %v545, 4
      %v547 = vand.u32 %v545, 15
      %v548 = vsub.s32 0, %v547
      %v549 = vsel %vm543, %v548, %v547
      %vm550 = vcmp.lt.s32.totalorder %v416, 0
      %v551 = vsub.s32 0, %v416
      %v552 = vsel %vm550, %v551, %v416
      %v553 = vshrl.u32 %v552, 4
      %v554 = vand.u32 %v552, 15
      %v555 = vsub.s32 0, %v554
      %v556 = vsel %vm550, %v555, %v554
      %vm557 = vcmp.ne.s32.totalorder %v423, 0
      %vm558 = vcmp.ne.s32.totalorder %v430, 0
      %vm559 = vcmp.ne.s32.totalorder %v437, 0
      %vm560 = vcmp.ne.s32.totalorder %v444, 0
      %vm561 = vcmp.ne.s32.totalorder %v451, 0
      %vm562 = vcmp.ne.s32.totalorder %v458, 0
      %vm563 = vcmp.ne.s32.totalorder %v465, 0
      %vm564 = vcmp.ne.s32.totalorder %v472, 0
      %vm565 = vcmp.ne.s32.totalorder %v479, 0
      %vm566 = vcmp.ne.s32.totalorder %v486, 0
      %vm567 = vcmp.ne.s32.totalorder %v493, 0
      %vm568 = vcmp.ne.s32.totalorder %v500, 0
      %vm569 = vcmp.ne.s32.totalorder %v507, 0
      %vm570 = vcmp.ne.s32.totalorder %v514, 0
      %vm571 = vcmp.ne.s32.totalorder %v521, 0
      %vm572 = vcmp.ne.s32.totalorder %v528, 0
      %vm573 = vcmp.ne.s32.totalorder %v535, 0
      %vm574 = vcmp.ne.s32.totalorder %v542, 0
      %vm575 = vcmp.ne.s32.totalorder %v549, 0
      %vm576 = vcmp.ne.s32.totalorder %v556, 0
      %vm577 = vcmp.lt.s32.totalorder %v423, 0
      %vm578 = vcmp.lt.s32.totalorder %v430, 0
      %vm579 = vcmp.lt.s32.totalorder %v437, 0
      %vm580 = vcmp.lt.s32.totalorder %v444, 0
      %vm581 = vcmp.lt.s32.totalorder %v451, 0
      %vm582 = vcmp.lt.s32.totalorder %v458, 0
      %vm583 = vcmp.lt.s32.totalorder %v465, 0
      %vm584 = vcmp.lt.s32.totalorder %v472, 0
      %vm585 = vcmp.lt.s32.totalorder %v479, 0
      %vm586 = vcmp.lt.s32.totalorder %v486, 0
      %vm587 = vcmp.lt.s32.totalorder %v493, 0
      %vm588 = vcmp.lt.s32.totalorder %v500, 0
      %vm589 = vcmp.lt.s32.totalorder %v507, 0
      %vm590 = vcmp.lt.s32.totalorder %v514, 0
      %vm591 = vcmp.lt.s32.totalorder %v521, 0
      %vm592 = vcmp.lt.s32.totalorder %v528, 0
      %vm593 = vcmp.lt.s32.totalorder %v535, 0
      %vm594 = vcmp.lt.s32.totalorder %v542, 0
      %vm595 = vcmp.lt.s32.totalorder %v549, 0
      %vm596 = vcmp.lt.s32.totalorder %v556, 0
      %vm597 = vmand %vm577, %vm557
      %vm598 = vmand %vm578, %vm558
      %vm599 = vmand %vm579, %vm559
      %vm600 = vmand %vm580, %vm560
      %vm601 = vmand %vm581, %vm561
      %vm602 = vmand %vm582, %vm562
      %vm603 = vmand %vm583, %vm563
      %vm604 = vmand %vm584, %vm564
      %vm605 = vmand %vm585, %vm565
      %vm606 = vmand %vm586, %vm566
      %vm607 = vmand %vm587, %vm567
      %vm608 = vmand %vm588, %vm568
      %vm609 = vmand %vm589, %vm569
      %vm610 = vmand %vm590, %vm570
      %vm611 = vmand %vm591, %vm571
      %vm612 = vmand %vm592, %vm572
      %vm613 = vmand %vm593, %vm573
      %vm614 = vmand %vm594, %vm574
      %vm615 = vmand %vm595, %vm575
      %vm616 = vmand %vm596, %vm576
      %v617 = vadd.s32 %v423, 16
      %v618 = vadd.s32 %v430, 16
      %v619 = vadd.s32 %v437, 16
      %v620 = vadd.s32 %v444, 16
      %v621 = vadd.s32 %v451, 16
      %v622 = vadd.s32 %v458, 16
      %v623 = vadd.s32 %v465, 16
      %v624 = vadd.s32 %v472, 16
      %v625 = vadd.s32 %v479, 16
      %v626 = vadd.s32 %v486, 16
      %v627 = vadd.s32 %v493, 16
      %v628 = vadd.s32 %v500, 16
      %v629 = vadd.s32 %v507, 16
      %v630 = vadd.s32 %v514, 16
      %v631 = vadd.s32 %v521, 16
      %v632 = vadd.s32 %v528, 16
      %v633 = vadd.s32 %v535, 16
      %v634 = vadd.s32 %v542, 16
      %v635 = vadd.s32 %v549, 16
      %v636 = vadd.s32 %v556, 16
      %v637 = vsel %vm597, %v617, %v423
      %v638 = vsel %vm598, %v618, %v430
      %v639 = vsel %vm599, %v619, %v437
      %v640 = vsel %vm600, %v620, %v444
      %v641 = vsel %vm601, %v621, %v451
      %v642 = vsel %vm602, %v622, %v458
      %v643 = vsel %vm603, %v623, %v465
      %v644 = vsel %vm604, %v624, %v472
      %v645 = vsel %vm605, %v625, %v479
      %v646 = vsel %vm606, %v626, %v486
      %v647 = vsel %vm607, %v627, %v493
      %v648 = vsel %vm608, %v628, %v500
      %v649 = vsel %vm609, %v629, %v507
      %v650 = vsel %vm610, %v630, %v514
      %v651 = vsel %vm611, %v631, %v521
      %v652 = vsel %vm612, %v632, %v528
      %v653 = vsel %vm613, %v633, %v535
      %v654 = vsel %vm614, %v634, %v542
      %v655 = vsel %vm615, %v635, %v549
      %v656 = vsel %vm616, %v636, %v556
      %vm657 = vcmp.ne.s32.totalorder %v637, 0
      %vm658 = vcmp.ne.s32.totalorder %v638, 0
      %vm659 = vcmp.ne.s32.totalorder %v639, 0
      %vm660 = vcmp.ne.s32.totalorder %v640, 0
      %vm661 = vcmp.ne.s32.totalorder %v641, 0
      %vm662 = vcmp.ne.s32.totalorder %v642, 0
      %vm663 = vcmp.ne.s32.totalorder %v643, 0
      %vm664 = vcmp.ne.s32.totalorder %v644, 0
      %vm665 = vcmp.ne.s32.totalorder %v645, 0
      %vm666 = vcmp.ne.s32.totalorder %v646, 0
      %vm667 = vcmp.ne.s32.totalorder %v647, 0
      %vm668 = vcmp.ne.s32.totalorder %v648, 0
      %vm669 = vcmp.ne.s32.totalorder %v649, 0
      %vm670 = vcmp.ne.s32.totalorder %v650, 0
      %vm671 = vcmp.ne.s32.totalorder %v651, 0
      %vm672 = vcmp.ne.s32.totalorder %v652, 0
      %vm673 = vcmp.ne.s32.totalorder %v653, 0
      %vm674 = vcmp.ne.s32.totalorder %v654, 0
      %vm675 = vcmp.ne.s32.totalorder %v655, 0
      %vm676 = vcmp.ne.s32.totalorder %v656, 0
      %vm677 = vcmp.ne.s32.totalorder %v637, 15
      %vm678 = vcmp.ne.s32.totalorder %v638, 15
      %vm679 = vcmp.ne.s32.totalorder %v639, 15
      %vm680 = vcmp.ne.s32.totalorder %v640, 15
      %vm681 = vcmp.ne.s32.totalorder %v641, 15
      %vm682 = vcmp.ne.s32.totalorder %v642, 15
      %vm683 = vcmp.ne.s32.totalorder %v643, 15
      %vm684 = vcmp.ne.s32.totalorder %v644, 15
      %vm685 = vcmp.ne.s32.totalorder %v645, 15
      %vm686 = vcmp.ne.s32.totalorder %v646, 15
      %vm687 = vcmp.ne.s32.totalorder %v647, 15
      %vm688 = vcmp.ne.s32.totalorder %v648, 15
      %vm689 = vcmp.ne.s32.totalorder %v649, 15
      %vm690 = vcmp.ne.s32.totalorder %v650, 15
      %vm691 = vcmp.ne.s32.totalorder %v651, 15
      %vm692 = vcmp.ne.s32.totalorder %v652, 15
      %vm693 = vcmp.ne.s32.totalorder %v653, 15
      %vm694 = vcmp.ne.s32.totalorder %v654, 15
      %vm695 = vcmp.ne.s32.totalorder %v655, 15
      %vm696 = vcmp.ne.s32.totalorder %v656, 15
      %p697 = scmp.gt.s32.totalorder %s21, 0
      %s698 = scalar_select %p697, 1, 0
      %s699 = scvt.s32.f32 %s698
      %p701 = scmp.ne.f32.partialorder %s699, %s699
      %s702 = sshrl.u32 %s699, 16
      %s703 = sand.u32 %s702, 1
      %s704 = sadd.s32 32767, %s703
      %s705 = sadd.s32 %s699, %s704
      %s706 = sand.u32 %s705, 4294901760
      %s707 = scalar_select %p701, 2143289344, %s706
      %s709 = sshrl.u32 %s707, 16
      %p710 = scmp.lt.s32.totalorder %s21, 1
      %s711 = scalar_select %p710, 1, 0
      %s712 = scvt.s32.f32 %s711
      %p714 = scmp.ne.f32.partialorder %s712, %s712
      %s715 = sshrl.u32 %s712, 16
      %s716 = sand.u32 %s715, 1
      %s717 = sadd.s32 32767, %s716
      %s718 = sadd.s32 %s712, %s717
      %s719 = sand.u32 %s718, 4294901760
      %s720 = scalar_select %p714, 2143289344, %s719
      %s722 = sshrl.u32 %s720, 16
      %vm723 = vcmask 27648
      %724 = vst.msk [vmem:[#allocation2] sm:$0xf] %vm723, 0
      %725 = vst.msk [vmem:[#allocation2 + $0x4] sm:$0xf] %vm723, 0
      %726 = vst.msk [vmem:[#allocation2 + $0x58] sm:$0xf] %vm723, 0
      %727 = vst.msk [vmem:[#allocation2 + $0x5c] sm:$0xf] %vm723, 0
      %v728 = vld [vmem:[%s349] sm:$0xf]
      %v729 = vld [vmem:[%s349 + $0x4] sm:$0xf]
      %s730 = sshll.u32 %s709, 16
      %s731 = sor.u32 %s709, %s730
      %v732 = vstv %s731
      %v734 = vunpack.c.l.bf16 %v728
      %v735 = vunpack.c.l.bf16 %v729
      %v736 = vunpack.c.l.bf16 %v732
      %v737 = vmul.f32 %v734, %v736
      %v738 = vmul.f32 %v735, %v736
      %v739 = vpack.c.bf16 %v737, %v737
      %v740 = vpack.c.bf16 %v738, %v738
      %741 = vst.msk [vmem:[#allocation2 + $0x8] sm:$0xf] %vm723, %v739
      %742 = vst.msk [vmem:[#allocation2 + $0xc] sm:$0xf] %vm723, %v740
      %v743 = vld [vmem:[%s363] sm:$0xf]
      %v744 = vld [vmem:[%s363 + $0x4] sm:$0xf]
      %v745 = vld [vmem:[%s363 + $0x8] sm:$0xf]
      %v746 = vld [vmem:[%s363 + $0xc] sm:$0xf]
      %v747 = vld [vmem:[%s363 + $0x10] sm:$0xf]
      %v748 = vld [vmem:[%s363 + $0x14] sm:$0xf]
      %v749 = vld [vmem:[%s363 + $0x18] sm:$0xf]
      %v750 = vld [vmem:[%s363 + $0x1c] sm:$0xf]
      %v751 = vld [vmem:[%s363 + $0x20] sm:$0xf]
      %v752 = vld [vmem:[%s363 + $0x24] sm:$0xf]
      %v753 = vld [vmem:[%s363 + $0x28] sm:$0xf]
      %v754 = vld [vmem:[%s363 + $0x2c] sm:$0xf]
      %v755 = vld [vmem:[%s363 + $0x30] sm:$0xf]
      %v756 = vld [vmem:[%s363 + $0x34] sm:$0xf]
      %v757 = vld [vmem:[%s363 + $0x38] sm:$0xf]
      %v758 = vld [vmem:[%s363 + $0x3c] sm:$0xf]
      %759 = vst.msk [vmem:[#allocation2 + $0x10] sm:$0xf] %vm723, %v743
      %760 = vst.msk [vmem:[#allocation2 + $0x14] sm:$0xf] %vm723, %v744
      %761 = vst.msk [vmem:[#allocation2 + $0x18] sm:$0xf] %vm723, %v745
      %762 = vst.msk [vmem:[#allocation2 + $0x1c] sm:$0xf] %vm723, %v746
      %763 = vst.msk [vmem:[#allocation2 + $0x20] sm:$0xf] %vm723, %v747
      %764 = vst.msk [vmem:[#allocation2 + $0x24] sm:$0xf] %vm723, %v748
      %765 = vst.msk [vmem:[#allocation2 + $0x28] sm:$0xf] %vm723, %v749
      %766 = vst.msk [vmem:[#allocation2 + $0x2c] sm:$0xf] %vm723, %v750
      %767 = vst.msk [vmem:[#allocation2 + $0x30] sm:$0xf] %vm723, %v751
      %768 = vst.msk [vmem:[#allocation2 + $0x34] sm:$0xf] %vm723, %v752
      %769 = vst.msk [vmem:[#allocation2 + $0x38] sm:$0xf] %vm723, %v753
      %770 = vst.msk [vmem:[#allocation2 + $0x3c] sm:$0xf] %vm723, %v754
      %771 = vst.msk [vmem:[#allocation2 + $0x40] sm:$0xf] %vm723, %v755
      %772 = vst.msk [vmem:[#allocation2 + $0x44] sm:$0xf] %vm723, %v756
      %773 = vst.msk [vmem:[#allocation2 + $0x48] sm:$0xf] %vm723, %v757
      %774 = vst.msk [vmem:[#allocation2 + $0x4c] sm:$0xf] %vm723, %v758
      %v775 = vld [vmem:[%s377] sm:$0xf]
      %v776 = vld [vmem:[%s377 + $0x4] sm:$0xf]
      %s777 = sshll.u32 %s722, 16
      %s778 = sor.u32 %s722, %s777
      %v779 = vstv %s778
      %v781 = vunpack.c.l.bf16 %v775
      %v782 = vunpack.c.l.bf16 %v776
      %v783 = vunpack.c.l.bf16 %v779
      %v784 = vmul.f32 %v781, %v783
      %v785 = vmul.f32 %v782, %v783
      %v786 = vpack.c.bf16 %v784, %v784
      %v787 = vpack.c.bf16 %v785, %v785
      %788 = vst.msk [vmem:[#allocation2 + $0x50] sm:$0xf] %vm723, %v786
      %789 = vst.msk [vmem:[#allocation2 + $0x54] sm:$0xf] %vm723, %v787
      %v790 = vld [vmem:[#allocation2 + $0x8] sm:$0xf]
      %v791 = vld [vmem:[#allocation2 + $0xc] sm:$0xf]
      %v792 = vld [vmem:[#allocation2 + $0x10] sm:$0xf]
      %v793 = vld [vmem:[#allocation2 + $0x14] sm:$0xf]
      %v794 = vld [vmem:[#allocation2 + $0x18] sm:$0xf]
      %v795 = vld [vmem:[#allocation2 + $0x1c] sm:$0xf]
      %v796 = vld [vmem:[#allocation2 + $0x20] sm:$0xf]
      %v797 = vld [vmem:[#allocation2 + $0x24] sm:$0xf]
      %v798 = vld [vmem:[#allocation2 + $0x28] sm:$0xf]
      %v799 = vld [vmem:[#allocation2 + $0x2c] sm:$0xf]
      %v800 = vld [vmem:[#allocation2 + $0x30] sm:$0xf]
      %v801 = vld [vmem:[#allocation2 + $0x34] sm:$0xf]
      %v802 = vld [vmem:[#allocation2 + $0x38] sm:$0xf]
      %v803 = vld [vmem:[#allocation2 + $0x3c] sm:$0xf]
      %v804 = vld [vmem:[#allocation2 + $0x40] sm:$0xf]
      %v805 = vld [vmem:[#allocation2 + $0x44] sm:$0xf]
      %v806 = vld [vmem:[#allocation2 + $0x48] sm:$0xf]
      %v807 = vld [vmem:[#allocation2 + $0x4c] sm:$0xf]
      %v808 = vld [vmem:[#allocation2 + $0x50] sm:$0xf]
      %v809 = vld [vmem:[#allocation2 + $0x54] sm:$0xf]
      %v810 = vld [vmem:[#allocation2 + $0x4] sm:$0x8]
      %v811 = vsel %vm657, 1, 0
      %v812 = vsel %vm658, 1, 0
      %v813 = vsel %vm659, 1, 0
      %v814 = vsel %vm660, 1, 0
      %v815 = vsel %vm661, 1, 0
      %v816 = vsel %vm662, 1, 0
      %v817 = vsel %vm663, 1, 0
      %v818 = vsel %vm664, 1, 0
      %v819 = vsel %vm665, 1, 0
      %v820 = vsel %vm666, 1, 0
      %v821 = vsel %vm667, 1, 0
      %v822 = vsel %vm668, 1, 0
      %v823 = vsel %vm669, 1, 0
      %v824 = vsel %vm670, 1, 0
      %v825 = vsel %vm671, 1, 0
      %v826 = vsel %vm672, 1, 0
      %v827 = vsel %vm673, 1, 0
      %v828 = vsel %vm674, 1, 0
      %v829 = vsel %vm675, 1, 0
      %v830 = vsel %vm676, 1, 0
      %vm831 = vcmp.eq.s32.totalorder %v811, 1
      %vm832 = vcmp.eq.s32.totalorder %v812, 1
      %vm833 = vcmp.eq.s32.totalorder %v813, 1
      %vm834 = vcmp.eq.s32.totalorder %v814, 1
      %vm835 = vcmp.eq.s32.totalorder %v815, 1
      %vm836 = vcmp.eq.s32.totalorder %v816, 1
      %vm837 = vcmp.eq.s32.totalorder %v817, 1
      %vm838 = vcmp.eq.s32.totalorder %v818, 1
      %vm839 = vcmp.eq.s32.totalorder %v819, 1
      %vm840 = vcmp.eq.s32.totalorder %v820, 1
      %vm841 = vcmp.eq.s32.totalorder %v821, 1
      %vm842 = vcmp.eq.s32.totalorder %v822, 1
      %vm843 = vcmp.eq.s32.totalorder %v823, 1
      %vm844 = vcmp.eq.s32.totalorder %v824, 1
      %vm845 = vcmp.eq.s32.totalorder %v825, 1
      %vm846 = vcmp.eq.s32.totalorder %v826, 1
      %vm847 = vcmp.eq.s32.totalorder %v827, 1
      %vm848 = vcmp.eq.s32.totalorder %v828, 1
      %vm849 = vcmp.eq.s32.totalorder %v829, 1
      %vm850 = vcmp.eq.s32.totalorder %v830, 1
      %vm851 = vmpackc.low %vm831, %vm831
      %vm852 = vmpackc.low %vm832, %vm832
      %vm853 = vmpackc.low %vm833, %vm833
      %vm854 = vmpackc.low %vm834, %vm834
      %vm855 = vmpackc.low %vm835, %vm835
      %vm856 = vmpackc.low %vm836, %vm836
      %vm857 = vmpackc.low %vm837, %vm837
      %vm858 = vmpackc.low %vm838, %vm838
      %vm859 = vmpackc.low %vm839, %vm839
      %vm860 = vmpackc.low %vm840, %vm840
      %vm861 = vmpackc.low %vm841, %vm841
      %vm862 = vmpackc.low %vm842, %vm842
      %vm863 = vmpackc.low %vm843, %vm843
      %vm864 = vmpackc.low %vm844, %vm844
      %vm865 = vmpackc.low %vm845, %vm845
      %vm866 = vmpackc.low %vm846, %vm846
      %vm867 = vmpackc.low %vm847, %vm847
      %vm868 = vmpackc.low %vm848, %vm848
      %vm869 = vmpackc.low %vm849, %vm849
      %vm870 = vmpackc.low %vm850, %vm850
      %v871 = vsel %vm851, 65537, 0
      %v872 = vsel %vm852, 65537, 0
      %v873 = vsel %vm853, 65537, 0
      %v874 = vsel %vm854, 65537, 0
      %v875 = vsel %vm855, 65537, 0
      %v876 = vsel %vm856, 65537, 0
      %v877 = vsel %vm857, 65537, 0
      %v878 = vsel %vm858, 65537, 0
      %v879 = vsel %vm859, 65537, 0
      %v880 = vsel %vm860, 65537, 0
      %v881 = vsel %vm861, 65537, 0
      %v882 = vsel %vm862, 65537, 0
      %v883 = vsel %vm863, 65537, 0
      %v884 = vsel %vm864, 65537, 0
      %v885 = vsel %vm865, 65537, 0
      %v886 = vsel %vm866, 65537, 0
      %v887 = vsel %vm867, 65537, 0
      %v888 = vsel %vm868, 65537, 0
      %v889 = vsel %vm869, 65537, 0
      %v890 = vsel %vm870, 65537, 0
      %vm891 = vsmask.f32 3328
      %vm892 = vsmask.f32 7440
      %vm893 = vmor %vm891, %vm892
      %v895 = vshll.u32 %v871, 16
      %v897 = vrot.slane %v895, 5
      %v898 = vshrl.u32 %v871, 16
      %v900 = vrot.slane %v898, 4
      %v901 = vor.u32 %v900, %v897
      %v902 = vrot.slane %v901, 4
      %v904 = vshll.u32 %v872, 16
      %v906 = vrot.slane %v904, 5
      %v907 = vsel %vm893, %v902, %v906
      %v908 = vshrl.u32 %v872, 16
      %v910 = vrot.slane %v908, 4
      %v911 = vor.u32 %v910, %v906
      %v912 = vrot.slane %v911, 4
      %v914 = vshll.u32 %v873, 16
      %v916 = vrot.slane %v914, 5
      %v917 = vsel %vm893, %v912, %v916
      %v918 = vshrl.u32 %v873, 16
      %v920 = vrot.slane %v918, 4
      %v921 = vor.u32 %v920, %v916
      %v922 = vrot.slane %v921, 4
      %v924 = vshll.u32 %v874, 16
      %v926 = vrot.slane %v924, 5
      %v927 = vsel %vm893, %v922, %v926
      %v928 = vshrl.u32 %v874, 16
      %v930 = vrot.slane %v928, 4
      %v931 = vor.u32 %v930, %v926
      %v932 = vrot.slane %v931, 4
      %v934 = vshll.u32 %v875, 16
      %v936 = vrot.slane %v934, 5
      %v937 = vsel %vm893, %v932, %v936
      %v938 = vshrl.u32 %v875, 16
      %v940 = vrot.slane %v938, 4
      %v941 = vor.u32 %v940, %v936
      %v942 = vrot.slane %v941, 4
      %v944 = vshll.u32 %v876, 16
      %v946 = vrot.slane %v944, 5
      %v947 = vsel %vm893, %v942, %v946
      %v948 = vshrl.u32 %v876, 16
      %v950 = vrot.slane %v948, 4
      %v951 = vor.u32 %v950, %v946
      %v952 = vrot.slane %v951, 4
      %v954 = vshll.u32 %v877, 16
      %v956 = vrot.slane %v954, 5
      %v957 = vsel %vm893, %v952, %v956
      %v958 = vshrl.u32 %v877, 16
      %v960 = vrot.slane %v958, 4
      %v961 = vor.u32 %v960, %v956
      %v962 = vrot.slane %v961, 4
      %v964 = vshll.u32 %v878, 16
      %v966 = vrot.slane %v964, 5
      %v967 = vsel %vm893, %v962, %v966
      %v968 = vshrl.u32 %v878, 16
      %v970 = vrot.slane %v968, 4
      %v971 = vor.u32 %v970, %v966
      %v972 = vrot.slane %v971, 4
      %v974 = vshll.u32 %v879, 16
      %v976 = vrot.slane %v974, 5
      %v977 = vsel %vm893, %v972, %v976
      %v978 = vshrl.u32 %v879, 16
      %v980 = vrot.slane %v978, 4
      %v981 = vor.u32 %v980, %v976
      %v982 = vrot.slane %v981, 4
      %v984 = vshll.u32 %v880, 16
      %v986 = vrot.slane %v984, 5
      %v987 = vsel %vm893, %v982, %v986
      %v988 = vshrl.u32 %v880, 16
      %v990 = vrot.slane %v988, 4
      %v991 = vor.u32 %v990, %v986
      %v992 = vrot.slane %v991, 4
      %v994 = vshll.u32 %v881, 16
      %v996 = vrot.slane %v994, 5
      %v997 = vsel %vm893, %v992, %v996
      %v998 = vshrl.u32 %v881, 16
      %v1000 = vrot.slane %v998, 4
      %v1001 = vor.u32 %v1000, %v996
      %v1002 = vrot.slane %v1001, 4
      %v1004 = vshll.u32 %v882, 16
      %v1006 = vrot.slane %v1004, 5
      %v1007 = vsel %vm893, %v1002, %v1006
      %v1008 = vshrl.u32 %v882, 16
      %v1010 = vrot.slane %v1008, 4
      %v1011 = vor.u32 %v1010, %v1006
      %v1012 = vrot.slane %v1011, 4
      %v1014 = vshll.u32 %v883, 16
      %v1016 = vrot.slane %v1014, 5
      %v1017 = vsel %vm893, %v1012, %v1016
      %v1018 = vshrl.u32 %v883, 16
      %v1020 = vrot.slane %v1018, 4
      %v1021 = vor.u32 %v1020, %v1016
      %v1022 = vrot.slane %v1021, 4
      %v1024 = vshll.u32 %v884, 16
      %v1026 = vrot.slane %v1024, 5
      %v1027 = vsel %vm893, %v1022, %v1026
      %v1028 = vshrl.u32 %v884, 16
      %v1030 = vrot.slane %v1028, 4
      %v1031 = vor.u32 %v1030, %v1026
      %v1032 = vrot.slane %v1031, 4
      %v1034 = vshll.u32 %v885, 16
      %v1036 = vrot.slane %v1034, 5
      %v1037 = vsel %vm893, %v1032, %v1036
      %v1038 = vshrl.u32 %v885, 16
      %v1040 = vrot.slane %v1038, 4
      %v1041 = vor.u32 %v1040, %v1036
      %v1042 = vrot.slane %v1041, 4
      %v1044 = vshll.u32 %v886, 16
      %v1046 = vrot.slane %v1044, 5
      %v1047 = vsel %vm893, %v1042, %v1046
      %v1048 = vshrl.u32 %v886, 16
      %v1050 = vrot.slane %v1048, 4
      %v1051 = vor.u32 %v1050, %v1046
      %v1052 = vrot.slane %v1051, 4
      %v1054 = vshll.u32 %v887, 16
      %v1056 = vrot.slane %v1054, 5
      %v1057 = vsel %vm893, %v1052, %v1056
      %v1058 = vshrl.u32 %v887, 16
      %v1060 = vrot.slane %v1058, 4
      %v1061 = vor.u32 %v1060, %v1056
      %v1062 = vrot.slane %v1061, 4
      %v1064 = vshll.u32 %v888, 16
      %v1066 = vrot.slane %v1064, 5
      %v1067 = vsel %vm893, %v1062, %v1066
      %v1068 = vshrl.u32 %v888, 16
      %v1070 = vrot.slane %v1068, 4
      %v1071 = vor.u32 %v1070, %v1066
      %v1072 = vrot.slane %v1071, 4
      %v1074 = vshll.u32 %v889, 16
      %v1076 = vrot.slane %v1074, 5
      %v1077 = vsel %vm893, %v1072, %v1076
      %v1078 = vshrl.u32 %v889, 16
      %v1080 = vrot.slane %v1078, 4
      %v1081 = vor.u32 %v1080, %v1076
      %v1082 = vrot.slane %v1081, 4
      %v1084 = vshll.u32 %v890, 16
      %v1086 = vrot.slane %v1084, 5
      %v1087 = vsel %vm893, %v1082, %v1086
      %v1088 = vshrl.u32 %v890, 16
      %v1090 = vrot.slane %v1088, 4
      %v1091 = vor.u32 %v1090, %v1086
      %v1092 = vrot.slane %v1091, 4
      %v1093 = vunpack.c.l.b16 %v897
      %v1094 = vunpack.c.h.b16 %v897
      %v1095 = vunpack.c.l.b16 0
      %v1096 = vunpack.c.h.b16 0
      %vm1097 = vcmp.ne.s32.totalorder %v1093, %v1095
      %vm1098 = vcmp.ne.s32.totalorder %v1094, %v1096
      %vm1099 = vmpackc.low %vm1098, %vm1097
      %v1100 = vunpack.c.l.b16 %v907
      %v1101 = vunpack.c.h.b16 %v907
      %v1102 = vunpack.c.l.b16 0
      %v1103 = vunpack.c.h.b16 0
      %vm1104 = vcmp.ne.s32.totalorder %v1100, %v1102
      %vm1105 = vcmp.ne.s32.totalorder %v1101, %v1103
      %vm1106 = vmpackc.low %vm1105, %vm1104
      %v1107 = vunpack.c.l.b16 %v917
      %v1108 = vunpack.c.h.b16 %v917
      %v1109 = vunpack.c.l.b16 0
      %v1110 = vunpack.c.h.b16 0
      %vm1111 = vcmp.ne.s32.totalorder %v1107, %v1109
      %vm1112 = vcmp.ne.s32.totalorder %v1108, %v1110
      %vm1113 = vmpackc.low %vm1112, %vm1111
      %v1114 = vunpack.c.l.b16 %v927
      %v1115 = vunpack.c.h.b16 %v927
      %v1116 = vunpack.c.l.b16 0
      %v1117 = vunpack.c.h.b16 0
      %vm1118 = vcmp.ne.s32.totalorder %v1114, %v1116
      %vm1119 = vcmp.ne.s32.totalorder %v1115, %v1117
      %vm1120 = vmpackc.low %vm1119, %vm1118
      %v1121 = vunpack.c.l.b16 %v937
      %v1122 = vunpack.c.h.b16 %v937
      %v1123 = vunpack.c.l.b16 0
      %v1124 = vunpack.c.h.b16 0
      %vm1125 = vcmp.ne.s32.totalorder %v1121, %v1123
      %vm1126 = vcmp.ne.s32.totalorder %v1122, %v1124
      %vm1127 = vmpackc.low %vm1126, %vm1125
      %v1128 = vunpack.c.l.b16 %v947
      %v1129 = vunpack.c.h.b16 %v947
      %v1130 = vunpack.c.l.b16 0
      %v1131 = vunpack.c.h.b16 0
      %vm1132 = vcmp.ne.s32.totalorder %v1128, %v1130
      %vm1133 = vcmp.ne.s32.totalorder %v1129, %v1131
      %vm1134 = vmpackc.low %vm1133, %vm1132
      %v1135 = vunpack.c.l.b16 %v957
      %v1136 = vunpack.c.h.b16 %v957
      %v1137 = vunpack.c.l.b16 0
      %v1138 = vunpack.c.h.b16 0
      %vm1139 = vcmp.ne.s32.totalorder %v1135, %v1137
      %vm1140 = vcmp.ne.s32.totalorder %v1136, %v1138
      %vm1141 = vmpackc.low %vm1140, %vm1139
      %v1142 = vunpack.c.l.b16 %v967
      %v1143 = vunpack.c.h.b16 %v967
      %v1144 = vunpack.c.l.b16 0
      %v1145 = vunpack.c.h.b16 0
      %vm1146 = vcmp.ne.s32.totalorder %v1142, %v1144
      %vm1147 = vcmp.ne.s32.totalorder %v1143, %v1145
      %vm1148 = vmpackc.low %vm1147, %vm1146
      %v1149 = vunpack.c.l.b16 %v977
      %v1150 = vunpack.c.h.b16 %v977
      %v1151 = vunpack.c.l.b16 0
      %v1152 = vunpack.c.h.b16 0
      %vm1153 = vcmp.ne.s32.totalorder %v1149, %v1151
      %vm1154 = vcmp.ne.s32.totalorder %v1150, %v1152
      %vm1155 = vmpackc.low %vm1154, %vm1153
      %v1156 = vunpack.c.l.b16 %v987
      %v1157 = vunpack.c.h.b16 %v987
      %v1158 = vunpack.c.l.b16 0
      %v1159 = vunpack.c.h.b16 0
      %vm1160 = vcmp.ne.s32.totalorder %v1156, %v1158
      %vm1161 = vcmp.ne.s32.totalorder %v1157, %v1159
      %vm1162 = vmpackc.low %vm1161, %vm1160
      %v1163 = vunpack.c.l.b16 %v997
      %v1164 = vunpack.c.h.b16 %v997
      %v1165 = vunpack.c.l.b16 0
      %v1166 = vunpack.c.h.b16 0
      %vm1167 = vcmp.ne.s32.totalorder %v1163, %v1165
      %vm1168 = vcmp.ne.s32.totalorder %v1164, %v1166
      %vm1169 = vmpackc.low %vm1168, %vm1167
      %v1170 = vunpack.c.l.b16 %v1007
      %v1171 = vunpack.c.h.b16 %v1007
      %v1172 = vunpack.c.l.b16 0
      %v1173 = vunpack.c.h.b16 0
      %vm1174 = vcmp.ne.s32.totalorder %v1170, %v1172
      %vm1175 = vcmp.ne.s32.totalorder %v1171, %v1173
      %vm1176 = vmpackc.low %vm1175, %vm1174
      %v1177 = vunpack.c.l.b16 %v1017
      %v1178 = vunpack.c.h.b16 %v1017
      %v1179 = vunpack.c.l.b16 0
      %v1180 = vunpack.c.h.b16 0
      %vm1181 = vcmp.ne.s32.totalorder %v1177, %v1179
      %vm1182 = vcmp.ne.s32.totalorder %v1178, %v1180
      %vm1183 = vmpackc.low %vm1182, %vm1181
      %v1184 = vunpack.c.l.b16 %v1027
      %v1185 = vunpack.c.h.b16 %v1027
      %v1186 = vunpack.c.l.b16 0
      %v1187 = vunpack.c.h.b16 0
      %vm1188 = vcmp.ne.s32.totalorder %v1184, %v1186
      %vm1189 = vcmp.ne.s32.totalorder %v1185, %v1187
      %vm1190 = vmpackc.low %vm1189, %vm1188
      %v1191 = vunpack.c.l.b16 %v1037
      %v1192 = vunpack.c.h.b16 %v1037
      %v1193 = vunpack.c.l.b16 0
      %v1194 = vunpack.c.h.b16 0
      %vm1195 = vcmp.ne.s32.totalorder %v1191, %v1193
      %vm1196 = vcmp.ne.s32.totalorder %v1192, %v1194
      %vm1197 = vmpackc.low %vm1196, %vm1195
      %v1198 = vunpack.c.l.b16 %v1047
      %v1199 = vunpack.c.h.b16 %v1047
      %v1200 = vunpack.c.l.b16 0
      %v1201 = vunpack.c.h.b16 0
      %vm1202 = vcmp.ne.s32.totalorder %v1198, %v1200
      %vm1203 = vcmp.ne.s32.totalorder %v1199, %v1201
      %vm1204 = vmpackc.low %vm1203, %vm1202
      %v1205 = vunpack.c.l.b16 %v1057
      %v1206 = vunpack.c.h.b16 %v1057
      %v1207 = vunpack.c.l.b16 0
      %v1208 = vunpack.c.h.b16 0
      %vm1209 = vcmp.ne.s32.totalorder %v1205, %v1207
      %vm1210 = vcmp.ne.s32.totalorder %v1206, %v1208
      %vm1211 = vmpackc.low %vm1210, %vm1209
      %v1212 = vunpack.c.l.b16 %v1067
      %v1213 = vunpack.c.h.b16 %v1067
      %v1214 = vunpack.c.l.b16 0
      %v1215 = vunpack.c.h.b16 0
      %vm1216 = vcmp.ne.s32.totalorder %v1212, %v1214
      %vm1217 = vcmp.ne.s32.totalorder %v1213, %v1215
      %vm1218 = vmpackc.low %vm1217, %vm1216
      %v1219 = vunpack.c.l.b16 %v1077
      %v1220 = vunpack.c.h.b16 %v1077
      %v1221 = vunpack.c.l.b16 0
      %v1222 = vunpack.c.h.b16 0
      %vm1223 = vcmp.ne.s32.totalorder %v1219, %v1221
      %vm1224 = vcmp.ne.s32.totalorder %v1220, %v1222
      %vm1225 = vmpackc.low %vm1224, %vm1223
      %v1226 = vunpack.c.l.b16 %v1087
      %v1227 = vunpack.c.h.b16 %v1087
      %v1228 = vunpack.c.l.b16 0
      %v1229 = vunpack.c.h.b16 0
      %vm1230 = vcmp.ne.s32.totalorder %v1226, %v1228
      %vm1231 = vcmp.ne.s32.totalorder %v1227, %v1229
      %vm1232 = vmpackc.low %vm1231, %vm1230
      %v1233 = vunpack.c.l.b16 %v1092
      %v1234 = vunpack.c.h.b16 %v1092
      %v1235 = vunpack.c.l.b16 0
      %v1236 = vunpack.c.h.b16 0
      %vm1237 = vcmp.ne.s32.totalorder %v1233, %v1235
      %vm1238 = vcmp.ne.s32.totalorder %v1234, %v1236
      %vm1239 = vmpackc.low %vm1238, %vm1237
      %v1240 = vsel %vm1099, %v810, 0
      %v1241 = vsel %vm1106, %v790, 0
      %v1242 = vsel %vm1113, %v791, 0
      %v1243 = vsel %vm1120, %v792, 0
      %v1244 = vsel %vm1127, %v793, 0
      %v1245 = vsel %vm1134, %v794, 0
      %v1246 = vsel %vm1141, %v795, 0
      %v1247 = vsel %vm1148, %v796, 0
      %v1248 = vsel %vm1155, %v797, 0
      %v1249 = vsel %vm1162, %v798, 0
      %v1250 = vsel %vm1169, %v799, 0
      %v1251 = vsel %vm1176, %v800, 0
      %v1252 = vsel %vm1183, %v801, 0
      %v1253 = vsel %vm1190, %v802, 0
      %v1254 = vsel %vm1197, %v803, 0
      %v1255 = vsel %vm1204, %v804, 0
      %v1256 = vsel %vm1211, %v805, 0
      %v1257 = vsel %vm1218, %v806, 0
      %v1258 = vsel %vm1225, %v807, 0
      %v1259 = vsel %vm1232, %v808, 0
      %v1260 = vsel %vm1239, %v809, 0
      %v1261 = vld [vmem:[#allocation2 + $0x58] sm:$0x1]
      %v1262 = vsel %vm677, 1, 0
      %v1263 = vsel %vm678, 1, 0
      %v1264 = vsel %vm679, 1, 0
      %v1265 = vsel %vm680, 1, 0
      %v1266 = vsel %vm681, 1, 0
      %v1267 = vsel %vm682, 1, 0
      %v1268 = vsel %vm683, 1, 0
      %v1269 = vsel %vm684, 1, 0
      %v1270 = vsel %vm685, 1, 0
      %v1271 = vsel %vm686, 1, 0
      %v1272 = vsel %vm687, 1, 0
      %v1273 = vsel %vm688, 1, 0
      %v1274 = vsel %vm689, 1, 0
      %v1275 = vsel %vm690, 1, 0
      %v1276 = vsel %vm691, 1, 0
      %v1277 = vsel %vm692, 1, 0
      %v1278 = vsel %vm693, 1, 0
      %v1279 = vsel %vm694, 1, 0
      %v1280 = vsel %vm695, 1, 0
      %v1281 = vsel %vm696, 1, 0
      %vm1282 = vcmp.eq.s32.totalorder %v1262, 1
      %vm1283 = vcmp.eq.s32.totalorder %v1263, 1
      %vm1284 = vcmp.eq.s32.totalorder %v1264, 1
      %vm1285 = vcmp.eq.s32.totalorder %v1265, 1
      %vm1286 = vcmp.eq.s32.totalorder %v1266, 1
      %vm1287 = vcmp.eq.s32.totalorder %v1267, 1
      %vm1288 = vcmp.eq.s32.totalorder %v1268, 1
      %vm1289 = vcmp.eq.s32.totalorder %v1269, 1
      %vm1290 = vcmp.eq.s32.totalorder %v1270, 1
      %vm1291 = vcmp.eq.s32.totalorder %v1271, 1
      %vm1292 = vcmp.eq.s32.totalorder %v1272, 1
      %vm1293 = vcmp.eq.s32.totalorder %v1273, 1
      %vm1294 = vcmp.eq.s32.totalorder %v1274, 1
      %vm1295 = vcmp.eq.s32.totalorder %v1275, 1
      %vm1296 = vcmp.eq.s32.totalorder %v1276, 1
      %vm1297 = vcmp.eq.s32.totalorder %v1277, 1
      %vm1298 = vcmp.eq.s32.totalorder %v1278, 1
      %vm1299 = vcmp.eq.s32.totalorder %v1279, 1
      %vm1300 = vcmp.eq.s32.totalorder %v1280, 1
      %vm1301 = vcmp.eq.s32.totalorder %v1281, 1
      %vm1302 = vmpackc.low %vm1282, %vm1282
      %vm1303 = vmpackc.low %vm1283, %vm1283
      %vm1304 = vmpackc.low %vm1284, %vm1284
      %vm1305 = vmpackc.low %vm1285, %vm1285
      %vm1306 = vmpackc.low %vm1286, %vm1286
      %vm1307 = vmpackc.low %vm1287, %vm1287
      %vm1308 = vmpackc.low %vm1288, %vm1288
      %vm1309 = vmpackc.low %vm1289, %vm1289
      %vm1310 = vmpackc.low %vm1290, %vm1290
      %vm1311 = vmpackc.low %vm1291, %vm1291
      %vm1312 = vmpackc.low %vm1292, %vm1292
      %vm1313 = vmpackc.low %vm1293, %vm1293
      %vm1314 = vmpackc.low %vm1294, %vm1294
      %vm1315 = vmpackc.low %vm1295, %vm1295
      %vm1316 = vmpackc.low %vm1296, %vm1296
      %vm1317 = vmpackc.low %vm1297, %vm1297
      %vm1318 = vmpackc.low %vm1298, %vm1298
      %vm1319 = vmpackc.low %vm1299, %vm1299
      %vm1320 = vmpackc.low %vm1300, %vm1300
      %vm1321 = vmpackc.low %vm1301, %vm1301
      %v1322 = vsel %vm1302, 65537, 0
      %v1323 = vsel %vm1303, 65537, 0
      %v1324 = vsel %vm1304, 65537, 0
      %v1325 = vsel %vm1305, 65537, 0
      %v1326 = vsel %vm1306, 65537, 0
      %v1327 = vsel %vm1307, 65537, 0
      %v1328 = vsel %vm1308, 65537, 0
      %v1329 = vsel %vm1309, 65537, 0
      %v1330 = vsel %vm1310, 65537, 0
      %v1331 = vsel %vm1311, 65537, 0
      %v1332 = vsel %vm1312, 65537, 0
      %v1333 = vsel %vm1313, 65537, 0
      %v1334 = vsel %vm1314, 65537, 0
      %v1335 = vsel %vm1315, 65537, 0
      %v1336 = vsel %vm1316, 65537, 0
      %v1337 = vsel %vm1317, 65537, 0
      %v1338 = vsel %vm1318, 65537, 0
      %v1339 = vsel %vm1319, 65537, 0
      %v1340 = vsel %vm1320, 65537, 0
      %v1341 = vsel %vm1321, 65537, 0
      %vm1342 = vsmask.f32 256
      %vm1343 = vsmask.f32 4368
      %vm1344 = vmor %vm1342, %vm1343
      %v1346 = vshrl.u32 %v1322, 16
      %v1348 = vrot.slane %v1346, 7
      %v1349 = vshll.u32 %v1322, 16
      %v1351 = vor.u32 %v1348, %v1349
      %v1352 = vrot.slane %v1348, 4
      %v1354 = vshrl.u32 %v1323, 16
      %v1356 = vrot.slane %v1354, 7
      %v1357 = vshll.u32 %v1323, 16
      %v1359 = vor.u32 %v1356, %v1357
      %v1360 = vsel %vm1344, %v1352, %v1359
      %v1361 = vrot.slane %v1356, 4
      %v1363 = vshrl.u32 %v1324, 16
      %v1365 = vrot.slane %v1363, 7
      %v1366 = vshll.u32 %v1324, 16
      %v1368 = vor.u32 %v1365, %v1366
      %v1369 = vsel %vm1344, %v1361, %v1368
      %v1370 = vrot.slane %v1365, 4
      %v1372 = vshrl.u32 %v1325, 16
      %v1374 = vrot.slane %v1372, 7
      %v1375 = vshll.u32 %v1325, 16
      %v1377 = vor.u32 %v1374, %v1375
      %v1378 = vsel %vm1344, %v1370, %v1377
      %v1379 = vrot.slane %v1374, 4
      %v1381 = vshrl.u32 %v1326, 16
      %v1383 = vrot.slane %v1381, 7
      %v1384 = vshll.u32 %v1326, 16
      %v1386 = vor.u32 %v1383, %v1384
      %v1387 = vsel %vm1344, %v1379, %v1386
      %v1388 = vrot.slane %v1383, 4
      %v1390 = vshrl.u32 %v1327, 16
      %v1392 = vrot.slane %v1390, 7
      %v1393 = vshll.u32 %v1327, 16
      %v1395 = vor.u32 %v1392, %v1393
      %v1396 = vsel %vm1344, %v1388, %v1395
      %v1397 = vrot.slane %v1392, 4
      %v1399 = vshrl.u32 %v1328, 16
      %v1401 = vrot.slane %v1399, 7
      %v1402 = vshll.u32 %v1328, 16
      %v1404 = vor.u32 %v1401, %v1402
      %v1405 = vsel %vm1344, %v1397, %v1404
      %v1406 = vrot.slane %v1401, 4
      %v1408 = vshrl.u32 %v1329, 16
      %v1410 = vrot.slane %v1408, 7
      %v1411 = vshll.u32 %v1329, 16
      %v1413 = vor.u32 %v1410, %v1411
      %v1414 = vsel %vm1344, %v1406, %v1413
      %v1415 = vrot.slane %v1410, 4
      %v1417 = vshrl.u32 %v1330, 16
      %v1419 = vrot.slane %v1417, 7
      %v1420 = vshll.u32 %v1330, 16
      %v1422 = vor.u32 %v1419, %v1420
      %v1423 = vsel %vm1344, %v1415, %v1422
      %v1424 = vrot.slane %v1419, 4
      %v1426 = vshrl.u32 %v1331, 16
      %v1428 = vrot.slane %v1426, 7
      %v1429 = vshll.u32 %v1331, 16
      %v1431 = vor.u32 %v1428, %v1429
      %v1432 = vsel %vm1344, %v1424, %v1431
      %v1433 = vrot.slane %v1428, 4
      %v1435 = vshrl.u32 %v1332, 16
      %v1437 = vrot.slane %v1435, 7
      %v1438 = vshll.u32 %v1332, 16
      %v1440 = vor.u32 %v1437, %v1438
      %v1441 = vsel %vm1344, %v1433, %v1440
      %v1442 = vrot.slane %v1437, 4
      %v1444 = vshrl.u32 %v1333, 16
      %v1446 = vrot.slane %v1444, 7
      %v1447 = vshll.u32 %v1333, 16
      %v1449 = vor.u32 %v1446, %v1447
      %v1450 = vsel %vm1344, %v1442, %v1449
      %v1451 = vrot.slane %v1446, 4
      %v1453 = vshrl.u32 %v1334, 16
      %v1455 = vrot.slane %v1453, 7
      %v1456 = vshll.u32 %v1334, 16
      %v1458 = vor.u32 %v1455, %v1456
      %v1459 = vsel %vm1344, %v1451, %v1458
      %v1460 = vrot.slane %v1455, 4
      %v1462 = vshrl.u32 %v1335, 16
      %v1464 = vrot.slane %v1462, 7
      %v1465 = vshll.u32 %v1335, 16
      %v1467 = vor.u32 %v1464, %v1465
      %v1468 = vsel %vm1344, %v1460, %v1467
      %v1469 = vrot.slane %v1464, 4
      %v1471 = vshrl.u32 %v1336, 16
      %v1473 = vrot.slane %v1471, 7
      %v1474 = vshll.u32 %v1336, 16
      %v1476 = vor.u32 %v1473, %v1474
      %v1477 = vsel %vm1344, %v1469, %v1476
      %v1478 = vrot.slane %v1473, 4
      %v1480 = vshrl.u32 %v1337, 16
      %v1482 = vrot.slane %v1480, 7
      %v1483 = vshll.u32 %v1337, 16
      %v1485 = vor.u32 %v1482, %v1483
      %v1486 = vsel %vm1344, %v1478, %v1485
      %v1487 = vrot.slane %v1482, 4
      %v1489 = vshrl.u32 %v1338, 16
      %v1491 = vrot.slane %v1489, 7
      %v1492 = vshll.u32 %v1338, 16
      %v1494 = vor.u32 %v1491, %v1492
      %v1495 = vsel %vm1344, %v1487, %v1494
      %v1496 = vrot.slane %v1491, 4
      %v1498 = vshrl.u32 %v1339, 16
      %v1500 = vrot.slane %v1498, 7
      %v1501 = vshll.u32 %v1339, 16
      %v1503 = vor.u32 %v1500, %v1501
      %v1504 = vsel %vm1344, %v1496, %v1503
      %v1505 = vrot.slane %v1500, 4
      %v1507 = vshrl.u32 %v1340, 16
      %v1509 = vrot.slane %v1507, 7
      %v1510 = vshll.u32 %v1340, 16
      %v1512 = vor.u32 %v1509, %v1510
      %v1513 = vsel %vm1344, %v1505, %v1512
      %v1514 = vrot.slane %v1509, 4
      %v1516 = vshrl.u32 %v1341, 16
      %v1518 = vrot.slane %v1516, 7
      %v1519 = vshll.u32 %v1341, 16
      %v1521 = vor.u32 %v1518, %v1519
      %v1522 = vsel %vm1344, %v1514, %v1521
      %v1523 = vrot.slane %v1518, 4
      %v1524 = vunpack.c.l.b16 %v1351
      %v1525 = vunpack.c.h.b16 %v1351
      %v1526 = vunpack.c.l.b16 0
      %v1527 = vunpack.c.h.b16 0
      %vm1528 = vcmp.ne.s32.totalorder %v1524, %v1526
      %vm1529 = vcmp.ne.s32.totalorder %v1525, %v1527
      %vm1530 = vmpackc.low %vm1529, %vm1528
      %v1531 = vunpack.c.l.b16 %v1360
      %v1532 = vunpack.c.h.b16 %v1360
      %v1533 = vunpack.c.l.b16 0
      %v1534 = vunpack.c.h.b16 0
      %vm1535 = vcmp.ne.s32.totalorder %v1531, %v1533
      %vm1536 = vcmp.ne.s32.totalorder %v1532, %v1534
      %vm1537 = vmpackc.low %vm1536, %vm1535
      %v1538 = vunpack.c.l.b16 %v1369
      %v1539 = vunpack.c.h.b16 %v1369
      %v1540 = vunpack.c.l.b16 0
      %v1541 = vunpack.c.h.b16 0
      %vm1542 = vcmp.ne.s32.totalorder %v1538, %v1540
      %vm1543 = vcmp.ne.s32.totalorder %v1539, %v1541
      %vm1544 = vmpackc.low %vm1543, %vm1542
      %v1545 = vunpack.c.l.b16 %v1378
      %v1546 = vunpack.c.h.b16 %v1378
      %v1547 = vunpack.c.l.b16 0
      %v1548 = vunpack.c.h.b16 0
      %vm1549 = vcmp.ne.s32.totalorder %v1545, %v1547
      %vm1550 = vcmp.ne.s32.totalorder %v1546, %v1548
      %vm1551 = vmpackc.low %vm1550, %vm1549
      %v1552 = vunpack.c.l.b16 %v1387
      %v1553 = vunpack.c.h.b16 %v1387
      %v1554 = vunpack.c.l.b16 0
      %v1555 = vunpack.c.h.b16 0
      %vm1556 = vcmp.ne.s32.totalorder %v1552, %v1554
      %vm1557 = vcmp.ne.s32.totalorder %v1553, %v1555
      %vm1558 = vmpackc.low %vm1557, %vm1556
      %v1559 = vunpack.c.l.b16 %v1396
      %v1560 = vunpack.c.h.b16 %v1396
      %v1561 = vunpack.c.l.b16 0
      %v1562 = vunpack.c.h.b16 0
      %vm1563 = vcmp.ne.s32.totalorder %v1559, %v1561
      %vm1564 = vcmp.ne.s32.totalorder %v1560, %v1562
      %vm1565 = vmpackc.low %vm1564, %vm1563
      %v1566 = vunpack.c.l.b16 %v1405
      %v1567 = vunpack.c.h.b16 %v1405
      %v1568 = vunpack.c.l.b16 0
      %v1569 = vunpack.c.h.b16 0
      %vm1570 = vcmp.ne.s32.totalorder %v1566, %v1568
      %vm1571 = vcmp.ne.s32.totalorder %v1567, %v1569
      %vm1572 = vmpackc.low %vm1571, %vm1570
      %v1573 = vunpack.c.l.b16 %v1414
      %v1574 = vunpack.c.h.b16 %v1414
      %v1575 = vunpack.c.l.b16 0
      %v1576 = vunpack.c.h.b16 0
      %vm1577 = vcmp.ne.s32.totalorder %v1573, %v1575
      %vm1578 = vcmp.ne.s32.totalorder %v1574, %v1576
      %vm1579 = vmpackc.low %vm1578, %vm1577
      %v1580 = vunpack.c.l.b16 %v1423
      %v1581 = vunpack.c.h.b16 %v1423
      %v1582 = vunpack.c.l.b16 0
      %v1583 = vunpack.c.h.b16 0
      %vm1584 = vcmp.ne.s32.totalorder %v1580, %v1582
      %vm1585 = vcmp.ne.s32.totalorder %v1581, %v1583
      %vm1586 = vmpackc.low %vm1585, %vm1584
      %v1587 = vunpack.c.l.b16 %v1432
      %v1588 = vunpack.c.h.b16 %v1432
      %v1589 = vunpack.c.l.b16 0
      %v1590 = vunpack.c.h.b16 0
      %vm1591 = vcmp.ne.s32.totalorder %v1587, %v1589
      %vm1592 = vcmp.ne.s32.totalorder %v1588, %v1590
      %vm1593 = vmpackc.low %vm1592, %vm1591
      %v1594 = vunpack.c.l.b16 %v1441
      %v1595 = vunpack.c.h.b16 %v1441
      %v1596 = vunpack.c.l.b16 0
      %v1597 = vunpack.c.h.b16 0
      %vm1598 = vcmp.ne.s32.totalorder %v1594, %v1596
      %vm1599 = vcmp.ne.s32.totalorder %v1595, %v1597
      %vm1600 = vmpackc.low %vm1599, %vm1598
      %v1601 = vunpack.c.l.b16 %v1450
      %v1602 = vunpack.c.h.b16 %v1450
      %v1603 = vunpack.c.l.b16 0
      %v1604 = vunpack.c.h.b16 0
      %vm1605 = vcmp.ne.s32.totalorder %v1601, %v1603
      %vm1606 = vcmp.ne.s32.totalorder %v1602, %v1604
      %vm1607 = vmpackc.low %vm1606, %vm1605
      %v1608 = vunpack.c.l.b16 %v1459
      %v1609 = vunpack.c.h.b16 %v1459
      %v1610 = vunpack.c.l.b16 0
      %v1611 = vunpack.c.h.b16 0
      %vm1612 = vcmp.ne.s32.totalorder %v1608, %v1610
      %vm1613 = vcmp.ne.s32.totalorder %v1609, %v1611
      %vm1614 = vmpackc.low %vm1613, %vm1612
      %v1615 = vunpack.c.l.b16 %v1468
      %v1616 = vunpack.c.h.b16 %v1468
      %v1617 = vunpack.c.l.b16 0
      %v1618 = vunpack.c.h.b16 0
      %vm1619 = vcmp.ne.s32.totalorder %v1615, %v1617
      %vm1620 = vcmp.ne.s32.totalorder %v1616, %v1618
      %vm1621 = vmpackc.low %vm1620, %vm1619
      %v1622 = vunpack.c.l.b16 %v1477
      %v1623 = vunpack.c.h.b16 %v1477
      %v1624 = vunpack.c.l.b16 0
      %v1625 = vunpack.c.h.b16 0
      %vm1626 = vcmp.ne.s32.totalorder %v1622, %v1624
      %vm1627 = vcmp.ne.s32.totalorder %v1623, %v1625
      %vm1628 = vmpackc.low %vm1627, %vm1626
      %v1629 = vunpack.c.l.b16 %v1486
      %v1630 = vunpack.c.h.b16 %v1486
      %v1631 = vunpack.c.l.b16 0
      %v1632 = vunpack.c.h.b16 0
      %vm1633 = vcmp.ne.s32.totalorder %v1629, %v1631
      %vm1634 = vcmp.ne.s32.totalorder %v1630, %v1632
      %vm1635 = vmpackc.low %vm1634, %vm1633
      %v1636 = vunpack.c.l.b16 %v1495
      %v1637 = vunpack.c.h.b16 %v1495
      %v1638 = vunpack.c.l.b16 0
      %v1639 = vunpack.c.h.b16 0
      %vm1640 = vcmp.ne.s32.totalorder %v1636, %v1638
      %vm1641 = vcmp.ne.s32.totalorder %v1637, %v1639
      %vm1642 = vmpackc.low %vm1641, %vm1640
      %v1643 = vunpack.c.l.b16 %v1504
      %v1644 = vunpack.c.h.b16 %v1504
      %v1645 = vunpack.c.l.b16 0
      %v1646 = vunpack.c.h.b16 0
      %vm1647 = vcmp.ne.s32.totalorder %v1643, %v1645
      %vm1648 = vcmp.ne.s32.totalorder %v1644, %v1646
      %vm1649 = vmpackc.low %vm1648, %vm1647
      %v1650 = vunpack.c.l.b16 %v1513
      %v1651 = vunpack.c.h.b16 %v1513
      %v1652 = vunpack.c.l.b16 0
      %v1653 = vunpack.c.h.b16 0
      %vm1654 = vcmp.ne.s32.totalorder %v1650, %v1652
      %vm1655 = vcmp.ne.s32.totalorder %v1651, %v1653
      %vm1656 = vmpackc.low %vm1655, %vm1654
      %v1657 = vunpack.c.l.b16 %v1522
      %v1658 = vunpack.c.h.b16 %v1522
      %v1659 = vunpack.c.l.b16 0
      %v1660 = vunpack.c.h.b16 0
      %vm1661 = vcmp.ne.s32.totalorder %v1657, %v1659
      %vm1662 = vcmp.ne.s32.totalorder %v1658, %v1660
      %vm1663 = vmpackc.low %vm1662, %vm1661
      %v1664 = vunpack.c.l.b16 %v1523
      %v1665 = vunpack.c.h.b16 %v1523
      %v1666 = vunpack.c.l.b16 0
      %v1667 = vunpack.c.h.b16 0
      %vm1668 = vcmp.ne.s32.totalorder %v1664, %v1666
      %vm1669 = vcmp.ne.s32.totalorder %v1665, %v1667
      %vm1670 = vmpackc.low %vm1669, %vm1668
      %v1671 = vsel %vm1530, %v790, 0
      %v1672 = vsel %vm1537, %v791, 0
      %v1673 = vsel %vm1544, %v792, 0
      %v1674 = vsel %vm1551, %v793, 0
      %v1675 = vsel %vm1558, %v794, 0
      %v1676 = vsel %vm1565, %v795, 0
      %v1677 = vsel %vm1572, %v796, 0
      %v1678 = vsel %vm1579, %v797, 0
      %v1679 = vsel %vm1586, %v798, 0
      %v1680 = vsel %vm1593, %v799, 0
      %v1681 = vsel %vm1600, %v800, 0
      %v1682 = vsel %vm1607, %v801, 0
      %v1683 = vsel %vm1614, %v802, 0
      %v1684 = vsel %vm1621, %v803, 0
      %v1685 = vsel %vm1628, %v804, 0
      %v1686 = vsel %vm1635, %v805, 0
      %v1687 = vsel %vm1642, %v806, 0
      %v1688 = vsel %vm1649, %v807, 0
      %v1689 = vsel %vm1656, %v808, 0
      %v1690 = vsel %vm1663, %v809, 0
      %v1691 = vsel %vm1670, %v1261, 0
      %v1692 = vld [vmem:[%s3] sm:$0x3]
      %s1693 = scalar_lea.vmem %s3, 2
      %v1694 = vld [vmem:[%s1693] sm:$0x3]
      %v1711 = vunpack.c.l.b16 %v790
      %v1712 = vunpack.c.l.b16 %v791
      %v1713 = vunpack.c.l.b16 %v792
      %v1714 = vunpack.c.l.b16 %v793
      %v1715 = vunpack.c.l.b16 %v794
      %v1716 = vunpack.c.l.b16 %v795
      %v1717 = vunpack.c.l.b16 %v796
      %v1718 = vunpack.c.l.b16 %v797
      %v1719 = vunpack.c.l.b16 %v798
      %v1720 = vunpack.c.l.b16 %v799
      %v1721 = vunpack.c.l.b16 %v800
      %v1722 = vunpack.c.l.b16 %v801
      %v1723 = vunpack.c.l.b16 %v802
      %v1724 = vunpack.c.l.b16 %v803
      %v1725 = vunpack.c.l.b16 %v804
      %v1726 = vunpack.c.l.b16 %v805
      %v1727 = vpack.c.b16 %v1712, %v1711
      %v1728 = vpack.c.b16 %v1714, %v1713
      %v1729 = vpack.c.b16 %v1716, %v1715
      %v1730 = vpack.c.b16 %v1718, %v1717
      %v1731 = vpack.c.b16 %v1720, %v1719
      %v1732 = vpack.c.b16 %v1722, %v1721
      %v1733 = vpack.c.b16 %v1724, %v1723
      %v1734 = vpack.c.b16 %v1726, %v1725
      %vm1735 = vcmask 31744
      %v1737 = vsel %vm1735, %v1727, 0
      %v1740 = vsel %vm1735, %v1728, 0
      %v1743 = vsel %vm1735, %v1729, 0
      %v1746 = vsel %vm1735, %v1730, 0
      %v1749 = vsel %vm1735, %v1731, 0
      %v1752 = vsel %vm1735, %v1732, 0
      %v1755 = vsel %vm1735, %v1733, 0
      %v1758 = vsel %vm1735, %v1734, 0
      %vm1760 = vcmask 1041408
      %v1762 = vsel %vm1760, %v1694, 0
      %1764 = vmatpush.bf16.msra.mxu0 0
      %1765 = vmatpush.bf16.msra.mxu0 0
      %1766 = vmatpush.bf16.msra.mxu0 0
      %1767 = vmatpush.bf16.msra.mxu0 0
      %1768 = vmatpush.bf16.msra.mxu0 0
      %1769 = vmatpush.bf16.msra.mxu0 0
      %1770 = vmatpush.bf16.msra.mxu0 0
      %1771 = vmatpush.bf16.msra.mxu0 %v1762
      %1772 = vmatmul.bf16.gmra.mxu0 %v1737
      %v1773 = vpop.f32.mrf.mxu0
      %v1774 = vadd.f32 0.0, %v1773
      %v1775 = vpop.f32.mrf.mxu0
      %v1776 = vadd.f32 0.0, %v1775
      %1777 = vmatmul.bf16.gmra.mxu0 %v1740
      %v1778 = vpop.f32.mrf.mxu0
      %v1779 = vadd.f32 0.0, %v1778
      %v1780 = vpop.f32.mrf.mxu0
      %v1781 = vadd.f32 0.0, %v1780
      %1782 = vmatmul.bf16.gmra.mxu0 %v1743
      %v1783 = vpop.f32.mrf.mxu0
      %v1784 = vadd.f32 0.0, %v1783
      %v1785 = vpop.f32.mrf.mxu0
      %v1786 = vadd.f32 0.0, %v1785
      %1787 = vmatmul.bf16.gmra.mxu0 %v1746
      %v1788 = vpop.f32.mrf.mxu0
      %v1789 = vadd.f32 0.0, %v1788
      %v1790 = vpop.f32.mrf.mxu0
      %v1791 = vadd.f32 0.0, %v1790
      %1792 = vmatmul.bf16.gmra.mxu0 %v1749
      %v1793 = vpop.f32.mrf.mxu0
      %v1794 = vadd.f32 0.0, %v1793
      %v1795 = vpop.f32.mrf.mxu0
      %v1796 = vadd.f32 0.0, %v1795
      %1797 = vmatmul.bf16.gmra.mxu0 %v1752
      %v1798 = vpop.f32.mrf.mxu0
      %v1799 = vadd.f32 0.0, %v1798
      %v1800 = vpop.f32.mrf.mxu0
      %v1801 = vadd.f32 0.0, %v1800
      %1802 = vmatmul.bf16.gmra.mxu0 %v1755
      %v1803 = vpop.f32.mrf.mxu0
      %v1804 = vadd.f32 0.0, %v1803
      %v1805 = vpop.f32.mrf.mxu0
      %v1806 = vadd.f32 0.0, %v1805
      %1807 = vmatmul.bf16.gmra.mxu0 %v1758
      %v1808 = vpop.f32.mrf.mxu0
      %v1809 = vadd.f32 0.0, %v1808
      %v1810 = vpop.f32.mrf.mxu0
      %v1811 = vadd.f32 0.0, %v1810
      %1812 = vdwg.mxu0
      %v1830 = vunpack.c.l.b16 %v1240
      %v1831 = vunpack.c.l.b16 %v1241
      %v1832 = vunpack.c.l.b16 %v1242
      %v1833 = vunpack.c.l.b16 %v1243
      %v1834 = vunpack.c.l.b16 %v1244
      %v1835 = vunpack.c.l.b16 %v1245
      %v1836 = vunpack.c.l.b16 %v1246
      %v1837 = vunpack.c.l.b16 %v1247
      %v1838 = vunpack.c.l.b16 %v1248
      %v1839 = vunpack.c.l.b16 %v1249
      %v1840 = vunpack.c.l.b16 %v1250
      %v1841 = vunpack.c.l.b16 %v1251
      %v1842 = vunpack.c.l.b16 %v1252
      %v1843 = vunpack.c.l.b16 %v1253
      %v1844 = vunpack.c.l.b16 %v1254
      %v1845 = vunpack.c.l.b16 %v1255
      %v1846 = vunpack.c.l.b16 %v1256
      %v1847 = vpack.c.b16 %v1831, %v1830
      %v1848 = vpack.c.b16 %v1833, %v1832
      %v1849 = vpack.c.b16 %v1835, %v1834
      %v1850 = vpack.c.b16 %v1837, %v1836
      %v1851 = vpack.c.b16 %v1839, %v1838
      %v1852 = vpack.c.b16 %v1841, %v1840
      %v1853 = vpack.c.b16 %v1843, %v1842
      %v1854 = vpack.c.b16 %v1845, %v1844
      %v1855 = vpack.c.b16 %v1846, %v1846
      %vm1856 = vsmask.f32 4352
      %v1858 = vshrl.u32 %v1847, 16
      %v1860 = vrot.slane %v1858, 3
      %v1861 = vshll.u32 %v1847, 16
      %v1863 = vrot.slane %v1861, 4
      %v1864 = vor.u32 %v1860, %v1863
      %v1866 = vshrl.u32 %v1848, 16
      %v1868 = vrot.slane %v1866, 3
      %v1869 = vshll.u32 %v1848, 16
      %v1871 = vrot.slane %v1869, 4
      %v1872 = vor.u32 %v1868, %v1871
      %v1873 = vsel %vm1856, %v1864, %v1872
      %v1875 = vshrl.u32 %v1849, 16
      %v1877 = vrot.slane %v1875, 3
      %v1878 = vshll.u32 %v1849, 16
      %v1880 = vrot.slane %v1878, 4
      %v1881 = vor.u32 %v1877, %v1880
      %v1882 = vsel %vm1856, %v1872, %v1881
      %v1884 = vshrl.u32 %v1850, 16
      %v1886 = vrot.slane %v1884, 3
      %v1887 = vshll.u32 %v1850, 16
      %v1889 = vrot.slane %v1887, 4
      %v1890 = vor.u32 %v1886, %v1889
      %v1891 = vsel %vm1856, %v1881, %v1890
      %v1893 = vshrl.u32 %v1851, 16
      %v1895 = vrot.slane %v1893, 3
      %v1896 = vshll.u32 %v1851, 16
      %v1898 = vrot.slane %v1896, 4
      %v1899 = vor.u32 %v1895, %v1898
      %v1900 = vsel %vm1856, %v1890, %v1899
      %v1902 = vshrl.u32 %v1852, 16
      %v1904 = vrot.slane %v1902, 3
      %v1905 = vshll.u32 %v1852, 16
      %v1907 = vrot.slane %v1905, 4
      %v1908 = vor.u32 %v1904, %v1907
      %v1909 = vsel %vm1856, %v1899, %v1908
      %v1911 = vshrl.u32 %v1853, 16
      %v1913 = vrot.slane %v1911, 3
      %v1914 = vshll.u32 %v1853, 16
      %v1916 = vrot.slane %v1914, 4
      %v1917 = vor.u32 %v1913, %v1916
      %v1918 = vsel %vm1856, %v1908, %v1917
      %v1920 = vshrl.u32 %v1854, 16
      %v1922 = vrot.slane %v1920, 3
      %v1923 = vshll.u32 %v1854, 16
      %v1925 = vrot.slane %v1923, 4
      %v1926 = vor.u32 %v1922, %v1925
      %v1927 = vsel %vm1856, %v1917, %v1926
      %v1929 = vshrl.u32 %v1855, 16
      %v1931 = vrot.slane %v1929, 3
      %v1932 = vshll.u32 %v1855, 16
      %v1934 = vrot.slane %v1932, 4
      %v1935 = vor.u32 %v1931, %v1934
      %v1936 = vsel %vm1856, %v1926, %v1935
      %v1938 = vsel %vm1735, %v1873, 0
      %v1941 = vsel %vm1735, %v1882, 0
      %v1944 = vsel %vm1735, %v1891, 0
      %v1947 = vsel %vm1735, %v1900, 0
      %v1950 = vsel %vm1735, %v1909, 0
      %v1953 = vsel %vm1735, %v1918, 0
      %v1956 = vsel %vm1735, %v1927, 0
      %v1959 = vsel %vm1735, %v1936, 0
      %v1962 = vsel %vm1760, %v1692, 0
      %1964 = vmatpush.bf16.msra.mxu0 0
      %1965 = vmatpush.bf16.msra.mxu0 0
      %1966 = vmatpush.bf16.msra.mxu0 0
      %1967 = vmatpush.bf16.msra.mxu0 0
      %1968 = vmatpush.bf16.msra.mxu0 0
      %1969 = vmatpush.bf16.msra.mxu0 0
      %1970 = vmatpush.bf16.msra.mxu0 0
      %1971 = vmatpush.bf16.msra.mxu0 %v1962
      %1972 = vmatmul.bf16.gmra.mxu0 %v1938
      %v1973 = vpop.f32.mrf.mxu0
      %v1974 = vadd.f32 %v1774, %v1973
      %v1975 = vpop.f32.mrf.mxu0
      %v1976 = vadd.f32 %v1776, %v1975
      %1977 = vmatmul.bf16.gmra.mxu0 %v1941
      %v1978 = vpop.f32.mrf.mxu0
      %v1979 = vadd.f32 %v1779, %v1978
      %v1980 = vpop.f32.mrf.mxu0
      %v1981 = vadd.f32 %v1781, %v1980
      %1982 = vmatmul.bf16.gmra.mxu0 %v1944
      %v1983 = vpop.f32.mrf.mxu0
      %v1984 = vadd.f32 %v1784, %v1983
      %v1985 = vpop.f32.mrf.mxu0
      %v1986 = vadd.f32 %v1786, %v1985
      %1987 = vmatmul.bf16.gmra.mxu0 %v1947
      %v1988 = vpop.f32.mrf.mxu0
      %v1989 = vadd.f32 %v1789, %v1988
      %v1990 = vpop.f32.mrf.mxu0
      %v1991 = vadd.f32 %v1791, %v1990
      %1992 = vmatmul.bf16.gmra.mxu0 %v1950
      %v1993 = vpop.f32.mrf.mxu0
      %v1994 = vadd.f32 %v1794, %v1993
      %v1995 = vpop.f32.mrf.mxu0
      %v1996 = vadd.f32 %v1796, %v1995
      %1997 = vmatmul.bf16.gmra.mxu0 %v1953
      %v1998 = vpop.f32.mrf.mxu0
      %v1999 = vadd.f32 %v1799, %v1998
      %v2000 = vpop.f32.mrf.mxu0
      %v2001 = vadd.f32 %v1801, %v2000
      %2002 = vmatmul.bf16.gmra.mxu0 %v1956
      %v2003 = vpop.f32.mrf.mxu0
      %v2004 = vadd.f32 %v1804, %v2003
      %v2005 = vpop.f32.mrf.mxu0
      %v2006 = vadd.f32 %v1806, %v2005
      %2007 = vmatmul.bf16.gmra.mxu0 %v1959
      %v2008 = vpop.f32.mrf.mxu0
      %v2009 = vadd.f32 %v1809, %v2008
      %v2010 = vpop.f32.mrf.mxu0
      %v2011 = vadd.f32 %v1811, %v2010
      %2012 = vdwg.mxu0
      %s2013 = scalar_lea.vmem %s3, 4
      %v2014 = vld [vmem:[%s2013] sm:$0x3]
      %v2032 = vunpack.c.l.b16 %v1671
      %v2033 = vunpack.c.l.b16 %v1672
      %v2034 = vunpack.c.l.b16 %v1673
      %v2035 = vunpack.c.l.b16 %v1674
      %v2036 = vunpack.c.l.b16 %v1675
      %v2037 = vunpack.c.l.b16 %v1676
      %v2038 = vunpack.c.l.b16 %v1677
      %v2039 = vunpack.c.l.b16 %v1678
      %v2040 = vunpack.c.l.b16 %v1679
      %v2041 = vunpack.c.l.b16 %v1680
      %v2042 = vunpack.c.l.b16 %v1681
      %v2043 = vunpack.c.l.b16 %v1682
      %v2044 = vunpack.c.l.b16 %v1683
      %v2045 = vunpack.c.l.b16 %v1684
      %v2046 = vunpack.c.l.b16 %v1685
      %v2047 = vunpack.c.l.b16 %v1686
      %v2048 = vunpack.c.l.b16 %v1687
      %v2049 = vpack.c.b16 %v2033, %v2032
      %v2050 = vpack.c.b16 %v2035, %v2034
      %v2051 = vpack.c.b16 %v2037, %v2036
      %v2052 = vpack.c.b16 %v2039, %v2038
      %v2053 = vpack.c.b16 %v2041, %v2040
      %v2054 = vpack.c.b16 %v2043, %v2042
      %v2055 = vpack.c.b16 %v2045, %v2044
      %v2056 = vpack.c.b16 %v2047, %v2046
      %v2057 = vpack.c.b16 %v2048, %v2048
      %vm2058 = vsmask.f32 7424
      %v2060 = vshrl.u32 %v2049, 16
      %v2062 = vshll.u32 %v2049, 16
      %v2064 = vrot.slane %v2062, 1
      %v2065 = vor.u32 %v2060, %v2064
      %v2067 = vshll.u32 %v2050, 16
      %v2069 = vrot.slane %v2067, 1
      %v2070 = vsel %vm2058, %v2065, %v2069
      %v2071 = vshrl.u32 %v2050, 16
      %v2073 = vor.u32 %v2071, %v2069
      %v2075 = vshll.u32 %v2051, 16
      %v2077 = vrot.slane %v2075, 1
      %v2078 = vsel %vm2058, %v2073, %v2077
      %v2079 = vshrl.u32 %v2051, 16
      %v2081 = vor.u32 %v2079, %v2077
      %v2083 = vshll.u32 %v2052, 16
      %v2085 = vrot.slane %v2083, 1
      %v2086 = vsel %vm2058, %v2081, %v2085
      %v2087 = vshrl.u32 %v2052, 16
      %v2089 = vor.u32 %v2087, %v2085
      %v2091 = vshll.u32 %v2053, 16
      %v2093 = vrot.slane %v2091, 1
      %v2094 = vsel %vm2058, %v2089, %v2093
      %v2095 = vshrl.u32 %v2053, 16
      %v2097 = vor.u32 %v2095, %v2093
      %v2099 = vshll.u32 %v2054, 16
      %v2101 = vrot.slane %v2099, 1
      %v2102 = vsel %vm2058, %v2097, %v2101
      %v2103 = vshrl.u32 %v2054, 16
      %v2105 = vor.u32 %v2103, %v2101
      %v2107 = vshll.u32 %v2055, 16
      %v2109 = vrot.slane %v2107, 1
      %v2110 = vsel %vm2058, %v2105, %v2109
      %v2111 = vshrl.u32 %v2055, 16
      %v2113 = vor.u32 %v2111, %v2109
      %v2115 = vshll.u32 %v2056, 16
      %v2117 = vrot.slane %v2115, 1
      %v2118 = vsel %vm2058, %v2113, %v2117
      %v2119 = vshrl.u32 %v2056, 16
      %v2121 = vor.u32 %v2119, %v2117
      %v2123 = vshll.u32 %v2057, 16
      %v2125 = vrot.slane %v2123, 1
      %v2126 = vsel %vm2058, %v2121, %v2125
      %v2128 = vsel %vm1735, %v2070, 0
      %v2131 = vsel %vm1735, %v2078, 0
      %v2134 = vsel %vm1735, %v2086, 0
      %v2137 = vsel %vm1735, %v2094, 0
      %v2140 = vsel %vm1735, %v2102, 0
      %v2143 = vsel %vm1735, %v2110, 0
      %v2146 = vsel %vm1735, %v2118, 0
      %v2149 = vsel %vm1735, %v2126, 0
      %v2152 = vsel %vm1760, %v2014, 0
      %2154 = vmatpush.bf16.msra.mxu0 0
      %2155 = vmatpush.bf16.msra.mxu0 0
      %2156 = vmatpush.bf16.msra.mxu0 0
      %2157 = vmatpush.bf16.msra.mxu0 0
      %2158 = vmatpush.bf16.msra.mxu0 0
      %2159 = vmatpush.bf16.msra.mxu0 0
      %2160 = vmatpush.bf16.msra.mxu0 0
      %2161 = vmatpush.bf16.msra.mxu0 %v2152
      %2162 = vmatmul.bf16.gmra.mxu0 %v2128
      %v2163 = vpop.f32.mrf.mxu0
      %v2164 = vadd.f32 0.0, %v2163
      %v2165 = vpop.f32.mrf.mxu0
      %v2166 = vadd.f32 0.0, %v2165
      %2167 = vmatmul.bf16.gmra.mxu0 %v2131
      %v2168 = vpop.f32.mrf.mxu0
      %v2169 = vadd.f32 0.0, %v2168
      %v2170 = vpop.f32.mrf.mxu0
      %v2171 = vadd.f32 0.0, %v2170
      %2172 = vmatmul.bf16.gmra.mxu0 %v2134
      %v2173 = vpop.f32.mrf.mxu0
      %v2174 = vadd.f32 0.0, %v2173
      %v2175 = vpop.f32.mrf.mxu0
      %v2176 = vadd.f32 0.0, %v2175
      %2177 = vmatmul.bf16.gmra.mxu0 %v2137
      %v2178 = vpop.f32.mrf.mxu0
      %v2179 = vadd.f32 0.0, %v2178
      %v2180 = vpop.f32.mrf.mxu0
      %v2181 = vadd.f32 0.0, %v2180
      %2182 = vmatmul.bf16.gmra.mxu0 %v2140
      %v2183 = vpop.f32.mrf.mxu0
      %v2184 = vadd.f32 0.0, %v2183
      %v2185 = vpop.f32.mrf.mxu0
      %v2186 = vadd.f32 0.0, %v2185
      %2187 = vmatmul.bf16.gmra.mxu0 %v2143
      %v2188 = vpop.f32.mrf.mxu0
      %v2189 = vadd.f32 0.0, %v2188
      %v2190 = vpop.f32.mrf.mxu0
      %v2191 = vadd.f32 0.0, %v2190
      %2192 = vmatmul.bf16.gmra.mxu0 %v2146
      %v2193 = vpop.f32.mrf.mxu0
      %v2194 = vadd.f32 0.0, %v2193
      %v2195 = vpop.f32.mrf.mxu0
      %v2196 = vadd.f32 0.0, %v2195
      %2197 = vmatmul.bf16.gmra.mxu0 %v2149
      %v2198 = vpop.f32.mrf.mxu0
      %v2199 = vadd.f32 0.0, %v2198
      %v2200 = vpop.f32.mrf.mxu0
      %v2201 = vadd.f32 0.0, %v2200
      %2202 = vdwg.mxu0
      %v2203 = vadd.f32 %v1974, %v2164
      %v2204 = vadd.f32 %v1976, %v2166
      %v2205 = vadd.f32 %v1979, %v2169
      %v2206 = vadd.f32 %v1981, %v2171
      %v2207 = vadd.f32 %v1984, %v2174
      %v2208 = vadd.f32 %v1986, %v2176
      %v2209 = vadd.f32 %v1989, %v2179
      %v2210 = vadd.f32 %v1991, %v2181
      %v2211 = vadd.f32 %v1994, %v2184
      %v2212 = vadd.f32 %v1996, %v2186
      %v2213 = vadd.f32 %v1999, %v2189
      %v2214 = vadd.f32 %v2001, %v2191
      %v2215 = vadd.f32 %v2004, %v2194
      %v2216 = vadd.f32 %v2006, %v2196
      %v2217 = vadd.f32 %v2009, %v2199
      %v2218 = vadd.f32 %v2011, %v2201
      %s2219 = scalar_lea.vmem %s3, 6
      %v2220 = vld [vmem:[%s2219] sm:$0x3]
      %v2223 = vunpack.c.l.b16 %v1257
      %v2224 = vunpack.c.l.b16 %v1258
      %v2225 = vpack.c.b16 %v2223, %v1846
      %v2226 = vpack.c.b16 %v2224, %v2224
      %v2228 = vshrl.u32 %v2225, 16
      %v2230 = vrot.slane %v2228, 3
      %v2231 = vshll.u32 %v2225, 16
      %v2233 = vrot.slane %v2231, 4
      %v2234 = vor.u32 %v2230, %v2233
      %v2235 = vsel %vm1856, %v1926, %v2234
      %v2237 = vshrl.u32 %v2226, 16
      %v2239 = vrot.slane %v2237, 3
      %v2240 = vshll.u32 %v2226, 16
      %v2242 = vrot.slane %v2240, 4
      %v2243 = vor.u32 %v2239, %v2242
      %v2244 = vsel %vm1856, %v2234, %v2243
      %v2246 = vsel %vm1735, %v2235, 0
      %v2249 = vsel %vm1735, %v2244, 0
      %v2252 = vsel %vm1760, %v2220, 0
      %2254 = vmatpush.bf16.msra.mxu0 0
      %2255 = vmatpush.bf16.msra.mxu0 0
      %2256 = vmatpush.bf16.msra.mxu0 0
      %2257 = vmatpush.bf16.msra.mxu0 0
      %2258 = vmatpush.bf16.msra.mxu0 0
      %2259 = vmatpush.bf16.msra.mxu0 0
      %2260 = vmatpush.bf16.msra.mxu0 0
      %2261 = vmatpush.bf16.msra.mxu0 %v2252
      %2262 = vmatmul.bf16.gmra.mxu0 %v1941
      %v2263 = vpop.f32.mrf.mxu0
      %v2264 = vadd.f32 0.0, %v2263
      %v2265 = vpop.f32.mrf.mxu0
      %v2266 = vadd.f32 0.0, %v2265
      %2267 = vmatmul.bf16.gmra.mxu0 %v1944
      %v2268 = vpop.f32.mrf.mxu0
      %v2269 = vadd.f32 0.0, %v2268
      %v2270 = vpop.f32.mrf.mxu0
      %v2271 = vadd.f32 0.0, %v2270
      %2272 = vmatmul.bf16.gmra.mxu0 %v1947
      %v2273 = vpop.f32.mrf.mxu0
      %v2274 = vadd.f32 0.0, %v2273
      %v2275 = vpop.f32.mrf.mxu0
      %v2276 = vadd.f32 0.0, %v2275
      %2277 = vmatmul.bf16.gmra.mxu0 %v1950
      %v2278 = vpop.f32.mrf.mxu0
      %v2279 = vadd.f32 0.0, %v2278
      %v2280 = vpop.f32.mrf.mxu0
      %v2281 = vadd.f32 0.0, %v2280
      %2282 = vmatmul.bf16.gmra.mxu0 %v1953
      %v2283 = vpop.f32.mrf.mxu0
      %v2284 = vadd.f32 0.0, %v2283
      %v2285 = vpop.f32.mrf.mxu0
      %v2286 = vadd.f32 0.0, %v2285
      %2287 = vmatmul.bf16.gmra.mxu0 %v1956
      %v2288 = vpop.f32.mrf.mxu0
      %v2289 = vadd.f32 0.0, %v2288
      %v2290 = vpop.f32.mrf.mxu0
      %v2291 = vadd.f32 0.0, %v2290
      %2292 = vmatmul.bf16.gmra.mxu0 %v2246
      %v2293 = vpop.f32.mrf.mxu0
      %v2294 = vadd.f32 0.0, %v2293
      %v2295 = vpop.f32.mrf.mxu0
      %v2296 = vadd.f32 0.0, %v2295
      %2297 = vmatmul.bf16.gmra.mxu0 %v2249
      %v2298 = vpop.f32.mrf.mxu0
      %v2299 = vadd.f32 0.0, %v2298
      %v2300 = vpop.f32.mrf.mxu0
      %v2301 = vadd.f32 0.0, %v2300
      %2302 = vdwg.mxu0
      %v2303 = vadd.f32 %v2203, %v2264
      %v2304 = vadd.f32 %v2204, %v2266
      %v2305 = vadd.f32 %v2205, %v2269
      %v2306 = vadd.f32 %v2206, %v2271
      %v2307 = vadd.f32 %v2207, %v2274
      %v2308 = vadd.f32 %v2208, %v2276
      %v2309 = vadd.f32 %v2209, %v2279
      %v2310 = vadd.f32 %v2210, %v2281
      %v2311 = vadd.f32 %v2211, %v2284
      %v2312 = vadd.f32 %v2212, %v2286
      %v2313 = vadd.f32 %v2213, %v2289
      %v2314 = vadd.f32 %v2214, %v2291
      %v2315 = vadd.f32 %v2215, %v2294
      %v2316 = vadd.f32 %v2216, %v2296
      %v2317 = vadd.f32 %v2217, %v2299
      %v2318 = vadd.f32 %v2218, %v2301
      %s2319 = scalar_lea.vmem %s3, 8
      %v2320 = vld [vmem:[%s2319] sm:$0x3]
      %v2323 = vunpack.c.l.b16 %v806
      %v2324 = vunpack.c.l.b16 %v807
      %v2325 = vpack.c.b16 %v2324, %v2323
      %v2327 = vsel %vm1735, %v2325, 0
      %v2330 = vsel %vm1760, %v2320, 0
      %2332 = vmatpush.bf16.msra.mxu0 0
      %2333 = vmatpush.bf16.msra.mxu0 0
      %2334 = vmatpush.bf16.msra.mxu0 0
      %2335 = vmatpush.bf16.msra.mxu0 0
      %2336 = vmatpush.bf16.msra.mxu0 0
      %2337 = vmatpush.bf16.msra.mxu0 0
      %2338 = vmatpush.bf16.msra.mxu0 0
      %2339 = vmatpush.bf16.msra.mxu0 %v2330
      %2340 = vmatmul.bf16.gmra.mxu0 %v1740
      %v2341 = vpop.f32.mrf.mxu0
      %v2342 = vadd.f32 0.0, %v2341
      %v2343 = vpop.f32.mrf.mxu0
      %v2344 = vadd.f32 0.0, %v2343
      %2345 = vmatmul.bf16.gmra.mxu0 %v1743
      %v2346 = vpop.f32.mrf.mxu0
      %v2347 = vadd.f32 0.0, %v2346
      %v2348 = vpop.f32.mrf.mxu0
      %v2349 = vadd.f32 0.0, %v2348
      %2350 = vmatmul.bf16.gmra.mxu0 %v1746
      %v2351 = vpop.f32.mrf.mxu0
      %v2352 = vadd.f32 0.0, %v2351
      %v2353 = vpop.f32.mrf.mxu0
      %v2354 = vadd.f32 0.0, %v2353
      %2355 = vmatmul.bf16.gmra.mxu0 %v1749
      %v2356 = vpop.f32.mrf.mxu0
      %v2357 = vadd.f32 0.0, %v2356
      %v2358 = vpop.f32.mrf.mxu0
      %v2359 = vadd.f32 0.0, %v2358
      %2360 = vmatmul.bf16.gmra.mxu0 %v1752
      %v2361 = vpop.f32.mrf.mxu0
      %v2362 = vadd.f32 0.0, %v2361
      %v2363 = vpop.f32.mrf.mxu0
      %v2364 = vadd.f32 0.0, %v2363
      %2365 = vmatmul.bf16.gmra.mxu0 %v1755
      %v2366 = vpop.f32.mrf.mxu0
      %v2367 = vadd.f32 0.0, %v2366
      %v2368 = vpop.f32.mrf.mxu0
      %v2369 = vadd.f32 0.0, %v2368
      %2370 = vmatmul.bf16.gmra.mxu0 %v1758
      %v2371 = vpop.f32.mrf.mxu0
      %v2372 = vadd.f32 0.0, %v2371
      %v2373 = vpop.f32.mrf.mxu0
      %v2374 = vadd.f32 0.0, %v2373
      %2375 = vmatmul.bf16.gmra.mxu0 %v2327
      %v2376 = vpop.f32.mrf.mxu0
      %v2377 = vadd.f32 0.0, %v2376
      %v2378 = vpop.f32.mrf.mxu0
      %v2379 = vadd.f32 0.0, %v2378
      %2380 = vdwg.mxu0
      %v2381 = vadd.f32 %v2303, %v2342
      %v2382 = vadd.f32 %v2304, %v2344
      %v2383 = vadd.f32 %v2305, %v2347
      %v2384 = vadd.f32 %v2306, %v2349
      %v2385 = vadd.f32 %v2307, %v2352
      %v2386 = vadd.f32 %v2308, %v2354
      %v2387 = vadd.f32 %v2309, %v2357
      %v2388 = vadd.f32 %v2310, %v2359
      %v2389 = vadd.f32 %v2311, %v2362
      %v2390 = vadd.f32 %v2312, %v2364
      %v2391 = vadd.f32 %v2313, %v2367
      %v2392 = vadd.f32 %v2314, %v2369
      %v2393 = vadd.f32 %v2315, %v2372
      %v2394 = vadd.f32 %v2316, %v2374
      %v2395 = vadd.f32 %v2317, %v2377
      %v2396 = vadd.f32 %v2318, %v2379
      %s2397 = scalar_lea.vmem %s3, 10
      %v2398 = vld [vmem:[%s2397] sm:$0x3]
      %v2401 = vunpack.c.l.b16 %v1688
      %v2402 = vunpack.c.l.b16 %v1689
      %v2403 = vpack.c.b16 %v2401, %v2048
      %v2404 = vpack.c.b16 %v2402, %v2402
      %v2406 = vshll.u32 %v2403, 16
      %v2408 = vrot.slane %v2406, 1
      %v2409 = vsel %vm2058, %v2121, %v2408
      %v2410 = vshrl.u32 %v2403, 16
      %v2412 = vor.u32 %v2410, %v2408
      %v2414 = vshll.u32 %v2404, 16
      %v2416 = vrot.slane %v2414, 1
      %v2417 = vsel %vm2058, %v2412, %v2416
      %v2419 = vsel %vm1735, %v2409, 0
      %v2422 = vsel %vm1735, %v2417, 0
      %v2425 = vsel %vm1760, %v2398, 0
      %2427 = vmatpush.bf16.msra.mxu0 0
      %2428 = vmatpush.bf16.msra.mxu0 0
      %2429 = vmatpush.bf16.msra.mxu0 0
      %2430 = vmatpush.bf16.msra.mxu0 0
      %2431 = vmatpush.bf16.msra.mxu0 0
      %2432 = vmatpush.bf16.msra.mxu0 0
      %2433 = vmatpush.bf16.msra.mxu0 0
      %2434 = vmatpush.bf16.msra.mxu0 %v2425
      %2435 = vmatmul.bf16.gmra.mxu0 %v2131
      %v2436 = vpop.f32.mrf.mxu0
      %v2437 = vadd.f32 0.0, %v2436
      %v2438 = vpop.f32.mrf.mxu0
      %v2439 = vadd.f32 0.0, %v2438
      %2440 = vmatmul.bf16.gmra.mxu0 %v2134
      %v2441 = vpop.f32.mrf.mxu0
      %v2442 = vadd.f32 0.0, %v2441
      %v2443 = vpop.f32.mrf.mxu0
      %v2444 = vadd.f32 0.0, %v2443
      %2445 = vmatmul.bf16.gmra.mxu0 %v2137
      %v2446 = vpop.f32.mrf.mxu0
      %v2447 = vadd.f32 0.0, %v2446
      %v2448 = vpop.f32.mrf.mxu0
      %v2449 = vadd.f32 0.0, %v2448
      %2450 = vmatmul.bf16.gmra.mxu0 %v2140
      %v2451 = vpop.f32.mrf.mxu0
      %v2452 = vadd.f32 0.0, %v2451
      %v2453 = vpop.f32.mrf.mxu0
      %v2454 = vadd.f32 0.0, %v2453
      %2455 = vmatmul.bf16.gmra.mxu0 %v2143
      %v2456 = vpop.f32.mrf.mxu0
      %v2457 = vadd.f32 0.0, %v2456
      %v2458 = vpop.f32.mrf.mxu0
      %v2459 = vadd.f32 0.0, %v2458
      %2460 = vmatmul.bf16.gmra.mxu0 %v2146
      %v2461 = vpop.f32.mrf.mxu0
      %v2462 = vadd.f32 0.0, %v2461
      %v2463 = vpop.f32.mrf.mxu0
      %v2464 = vadd.f32 0.0, %v2463
      %2465 = vmatmul.bf16.gmra.mxu0 %v2419
      %v2466 = vpop.f32.mrf.mxu0
      %v2467 = vadd.f32 0.0, %v2466
      %v2468 = vpop.f32.mrf.mxu0
      %v2469 = vadd.f32 0.0, %v2468
      %2470 = vmatmul.bf16.gmra.mxu0 %v2422
      %v2471 = vpop.f32.mrf.mxu0
      %v2472 = vadd.f32 0.0, %v2471
      %v2473 = vpop.f32.mrf.mxu0
      %v2474 = vadd.f32 0.0, %v2473
      %2475 = vdwg.mxu0
      %v2476 = vadd.f32 %v2381, %v2437
      %v2477 = vadd.f32 %v2382, %v2439
      %v2478 = vadd.f32 %v2383, %v2442
      %v2479 = vadd.f32 %v2384, %v2444
      %v2480 = vadd.f32 %v2385, %v2447
      %v2481 = vadd.f32 %v2386, %v2449
      %v2482 = vadd.f32 %v2387, %v2452
      %v2483 = vadd.f32 %v2388, %v2454
      %v2484 = vadd.f32 %v2389, %v2457
      %v2485 = vadd.f32 %v2390, %v2459
      %v2486 = vadd.f32 %v2391, %v2462
      %v2487 = vadd.f32 %v2392, %v2464
      %v2488 = vadd.f32 %v2393, %v2467
      %v2489 = vadd.f32 %v2394, %v2469
      %v2490 = vadd.f32 %v2395, %v2472
      %v2491 = vadd.f32 %v2396, %v2474
      %s2492 = scalar_lea.vmem %s3, 12
      %v2493 = vld [vmem:[%s2492] sm:$0x3]
      %v2496 = vunpack.c.l.b16 %v1259
      %v2497 = vunpack.c.l.b16 %v1260
      %v2498 = vpack.c.b16 %v2496, %v2224
      %v2499 = vpack.c.b16 %v2497, %v2497
      %v2501 = vshrl.u32 %v2498, 16
      %v2503 = vrot.slane %v2501, 3
      %v2504 = vshll.u32 %v2498, 16
      %v2506 = vrot.slane %v2504, 4
      %v2507 = vor.u32 %v2503, %v2506
      %v2508 = vsel %vm1856, %v2234, %v2507
      %v2510 = vshrl.u32 %v2499, 16
      %v2512 = vrot.slane %v2510, 3
      %v2513 = vshll.u32 %v2499, 16
      %v2515 = vrot.slane %v2513, 4
      %v2516 = vor.u32 %v2512, %v2515
      %v2517 = vsel %vm1856, %v2507, %v2516
      %v2519 = vsel %vm1735, %v2508, 0
      %v2522 = vsel %vm1735, %v2517, 0
      %v2525 = vsel %vm1760, %v2493, 0
      %2527 = vmatpush.bf16.msra.mxu0 0
      %2528 = vmatpush.bf16.msra.mxu0 0
      %2529 = vmatpush.bf16.msra.mxu0 0
      %2530 = vmatpush.bf16.msra.mxu0 0
      %2531 = vmatpush.bf16.msra.mxu0 0
      %2532 = vmatpush.bf16.msra.mxu0 0
      %2533 = vmatpush.bf16.msra.mxu0 0
      %2534 = vmatpush.bf16.msra.mxu0 %v2525
      %2535 = vmatmul.bf16.gmra.mxu0 %v1944
      %v2536 = vpop.f32.mrf.mxu0
      %v2537 = vadd.f32 0.0, %v2536
      %v2538 = vpop.f32.mrf.mxu0
      %v2539 = vadd.f32 0.0, %v2538
      %2540 = vmatmul.bf16.gmra.mxu0 %v1947
      %v2541 = vpop.f32.mrf.mxu0
      %v2542 = vadd.f32 0.0, %v2541
      %v2543 = vpop.f32.mrf.mxu0
      %v2544 = vadd.f32 0.0, %v2543
      %2545 = vmatmul.bf16.gmra.mxu0 %v1950
      %v2546 = vpop.f32.mrf.mxu0
      %v2547 = vadd.f32 0.0, %v2546
      %v2548 = vpop.f32.mrf.mxu0
      %v2549 = vadd.f32 0.0, %v2548
      %2550 = vmatmul.bf16.gmra.mxu0 %v1953
      %v2551 = vpop.f32.mrf.mxu0
      %v2552 = vadd.f32 0.0, %v2551
      %v2553 = vpop.f32.mrf.mxu0
      %v2554 = vadd.f32 0.0, %v2553
      %2555 = vmatmul.bf16.gmra.mxu0 %v1956
      %v2556 = vpop.f32.mrf.mxu0
      %v2557 = vadd.f32 0.0, %v2556
      %v2558 = vpop.f32.mrf.mxu0
      %v2559 = vadd.f32 0.0, %v2558
      %2560 = vmatmul.bf16.gmra.mxu0 %v2246
      %v2561 = vpop.f32.mrf.mxu0
      %v2562 = vadd.f32 0.0, %v2561
      %v2563 = vpop.f32.mrf.mxu0
      %v2564 = vadd.f32 0.0, %v2563
      %2565 = vmatmul.bf16.gmra.mxu0 %v2519
      %v2566 = vpop.f32.mrf.mxu0
      %v2567 = vadd.f32 0.0, %v2566
      %v2568 = vpop.f32.mrf.mxu0
      %v2569 = vadd.f32 0.0, %v2568
      %2570 = vmatmul.bf16.gmra.mxu0 %v2522
      %v2571 = vpop.f32.mrf.mxu0
      %v2572 = vadd.f32 0.0, %v2571
      %v2573 = vpop.f32.mrf.mxu0
      %v2574 = vadd.f32 0.0, %v2573
      %2575 = vdwg.mxu0
      %v2576 = vadd.f32 %v2476, %v2537
      %v2577 = vadd.f32 %v2477, %v2539
      %v2578 = vadd.f32 %v2478, %v2542
      %v2579 = vadd.f32 %v2479, %v2544
      %v2580 = vadd.f32 %v2480, %v2547
      %v2581 = vadd.f32 %v2481, %v2549
      %v2582 = vadd.f32 %v2482, %v2552
      %v2583 = vadd.f32 %v2483, %v2554
      %v2584 = vadd.f32 %v2484, %v2557
      %v2585 = vadd.f32 %v2485, %v2559
      %v2586 = vadd.f32 %v2486, %v2562
      %v2587 = vadd.f32 %v2487, %v2564
      %v2588 = vadd.f32 %v2488, %v2567
      %v2589 = vadd.f32 %v2489, %v2569
      %v2590 = vadd.f32 %v2490, %v2572
      %v2591 = vadd.f32 %v2491, %v2574
      %s2592 = scalar_lea.vmem %s3, 14
      %v2593 = vld [vmem:[%s2592] sm:$0x3]
      %v2596 = vunpack.c.l.b16 %v808
      %v2597 = vunpack.c.l.b16 %v809
      %v2598 = vpack.c.b16 %v2597, %v2596
      %v2600 = vsel %vm1735, %v2598, 0
      %v2603 = vsel %vm1760, %v2593, 0
      %2605 = vmatpush.bf16.msra.mxu0 0
      %2606 = vmatpush.bf16.msra.mxu0 0
      %2607 = vmatpush.bf16.msra.mxu0 0
      %2608 = vmatpush.bf16.msra.mxu0 0
      %2609 = vmatpush.bf16.msra.mxu0 0
      %2610 = vmatpush.bf16.msra.mxu0 0
      %2611 = vmatpush.bf16.msra.mxu0 0
      %2612 = vmatpush.bf16.msra.mxu0 %v2603
      %2613 = vmatmul.bf16.gmra.mxu0 %v1743
      %v2614 = vpop.f32.mrf.mxu0
      %v2615 = vadd.f32 0.0, %v2614
      %v2616 = vpop.f32.mrf.mxu0
      %v2617 = vadd.f32 0.0, %v2616
      %2618 = vmatmul.bf16.gmra.mxu0 %v1746
      %v2619 = vpop.f32.mrf.mxu0
      %v2620 = vadd.f32 0.0, %v2619
      %v2621 = vpop.f32.mrf.mxu0
      %v2622 = vadd.f32 0.0, %v2621
      %2623 = vmatmul.bf16.gmra.mxu0 %v1749
      %v2624 = vpop.f32.mrf.mxu0
      %v2625 = vadd.f32 0.0, %v2624
      %v2626 = vpop.f32.mrf.mxu0
      %v2627 = vadd.f32 0.0, %v2626
      %2628 = vmatmul.bf16.gmra.mxu0 %v1752
      %v2629 = vpop.f32.mrf.mxu0
      %v2630 = vadd.f32 0.0, %v2629
      %v2631 = vpop.f32.mrf.mxu0
      %v2632 = vadd.f32 0.0, %v2631
      %2633 = vmatmul.bf16.gmra.mxu0 %v1755
      %v2634 = vpop.f32.mrf.mxu0
      %v2635 = vadd.f32 0.0, %v2634
      %v2636 = vpop.f32.mrf.mxu0
      %v2637 = vadd.f32 0.0, %v2636
      %2638 = vmatmul.bf16.gmra.mxu0 %v1758
      %v2639 = vpop.f32.mrf.mxu0
      %v2640 = vadd.f32 0.0, %v2639
      %v2641 = vpop.f32.mrf.mxu0
      %v2642 = vadd.f32 0.0, %v2641
      %2643 = vmatmul.bf16.gmra.mxu0 %v2327
      %v2644 = vpop.f32.mrf.mxu0
      %v2645 = vadd.f32 0.0, %v2644
      %v2646 = vpop.f32.mrf.mxu0
      %v2647 = vadd.f32 0.0, %v2646
      %2648 = vmatmul.bf16.gmra.mxu0 %v2600
      %v2649 = vpop.f32.mrf.mxu0
      %v2650 = vadd.f32 0.0, %v2649
      %v2651 = vpop.f32.mrf.mxu0
      %v2652 = vadd.f32 0.0, %v2651
      %2653 = vdwg.mxu0
      %v2654 = vadd.f32 %v2576, %v2615
      %v2655 = vadd.f32 %v2577, %v2617
      %v2656 = vadd.f32 %v2578, %v2620
      %v2657 = vadd.f32 %v2579, %v2622
      %v2658 = vadd.f32 %v2580, %v2625
      %v2659 = vadd.f32 %v2581, %v2627
      %v2660 = vadd.f32 %v2582, %v2630
      %v2661 = vadd.f32 %v2583, %v2632
      %v2662 = vadd.f32 %v2584, %v2635
      %v2663 = vadd.f32 %v2585, %v2637
      %v2664 = vadd.f32 %v2586, %v2640
      %v2665 = vadd.f32 %v2587, %v2642
      %v2666 = vadd.f32 %v2588, %v2645
      %v2667 = vadd.f32 %v2589, %v2647
      %v2668 = vadd.f32 %v2590, %v2650
      %v2669 = vadd.f32 %v2591, %v2652
      %s2670 = scalar_lea.vmem %s3, 16
      %v2671 = vld [vmem:[%s2670] sm:$0x3]
      %v2674 = vunpack.c.l.b16 %v1690
      %v2675 = vunpack.c.l.b16 %v1691
      %v2676 = vpack.c.b16 %v2674, %v2402
      %v2677 = vpack.c.b16 %v2675, %v2675
      %v2679 = vshll.u32 %v2676, 16
      %v2681 = vrot.slane %v2679, 1
      %v2682 = vsel %vm2058, %v2412, %v2681
      %v2683 = vshrl.u32 %v2676, 16
      %v2685 = vor.u32 %v2683, %v2681
      %v2687 = vshll.u32 %v2677, 16
      %v2689 = vrot.slane %v2687, 1
      %v2690 = vsel %vm2058, %v2685, %v2689
      %v2692 = vsel %vm1735, %v2682, 0
      %v2695 = vsel %vm1735, %v2690, 0
      %v2698 = vsel %vm1760, %v2671, 0
      %2700 = vmatpush.bf16.msra.mxu0 0
      %2701 = vmatpush.bf16.msra.mxu0 0
      %2702 = vmatpush.bf16.msra.mxu0 0
      %2703 = vmatpush.bf16.msra.mxu0 0
      %2704 = vmatpush.bf16.msra.mxu0 0
      %2705 = vmatpush.bf16.msra.mxu0 0
      %2706 = vmatpush.bf16.msra.mxu0 0
      %2707 = vmatpush.bf16.msra.mxu0 %v2698
      %2708 = vmatmul.bf16.gmra.mxu0 %v2134
      %v2709 = vpop.f32.mrf.mxu0
      %v2710 = vadd.f32 0.0, %v2709
      %v2711 = vpop.f32.mrf.mxu0
      %v2712 = vadd.f32 0.0, %v2711
      %2713 = vmatmul.bf16.gmra.mxu0 %v2137
      %v2714 = vpop.f32.mrf.mxu0
      %v2715 = vadd.f32 0.0, %v2714
      %v2716 = vpop.f32.mrf.mxu0
      %v2717 = vadd.f32 0.0, %v2716
      %2718 = vmatmul.bf16.gmra.mxu0 %v2140
      %v2719 = vpop.f32.mrf.mxu0
      %v2720 = vadd.f32 0.0, %v2719
      %v2721 = vpop.f32.mrf.mxu0
      %v2722 = vadd.f32 0.0, %v2721
      %2723 = vmatmul.bf16.gmra.mxu0 %v2143
      %v2724 = vpop.f32.mrf.mxu0
      %v2725 = vadd.f32 0.0, %v2724
      %v2726 = vpop.f32.mrf.mxu0
      %v2727 = vadd.f32 0.0, %v2726
      %2728 = vmatmul.bf16.gmra.mxu0 %v2146
      %v2729 = vpop.f32.mrf.mxu0
      %v2730 = vadd.f32 0.0, %v2729
      %v2731 = vpop.f32.mrf.mxu0
      %v2732 = vadd.f32 0.0, %v2731
      %2733 = vmatmul.bf16.gmra.mxu0 %v2419
      %v2734 = vpop.f32.mrf.mxu0
      %v2735 = vadd.f32 0.0, %v2734
      %v2736 = vpop.f32.mrf.mxu0
      %v2737 = vadd.f32 0.0, %v2736
      %2738 = vmatmul.bf16.gmra.mxu0 %v2692
      %v2739 = vpop.f32.mrf.mxu0
      %v2740 = vadd.f32 0.0, %v2739
      %v2741 = vpop.f32.mrf.mxu0
      %v2742 = vadd.f32 0.0, %v2741
      %2743 = vmatmul.bf16.gmra.mxu0 %v2695
      %v2744 = vpop.f32.mrf.mxu0
      %v2745 = vadd.f32 0.0, %v2744
      %v2746 = vpop.f32.mrf.mxu0
      %v2747 = vadd.f32 0.0, %v2746
      %2748 = vdwg.mxu0
      %v2749 = vadd.f32 %v2654, %v2710
      %v2750 = vadd.f32 %v2655, %v2712
      %v2751 = vadd.f32 %v2656, %v2715
      %v2752 = vadd.f32 %v2657, %v2717
      %v2753 = vadd.f32 %v2658, %v2720
      %v2754 = vadd.f32 %v2659, %v2722
      %v2755 = vadd.f32 %v2660, %v2725
      %v2756 = vadd.f32 %v2661, %v2727
      %v2757 = vadd.f32 %v2662, %v2730
      %v2758 = vadd.f32 %v2663, %v2732
      %v2759 = vadd.f32 %v2664, %v2735
      %v2760 = vadd.f32 %v2665, %v2737
      %v2761 = vadd.f32 %v2666, %v2740
      %v2762 = vadd.f32 %v2667, %v2742
      %v2763 = vadd.f32 %v2668, %v2745
      %v2764 = vadd.f32 %v2669, %v2747
      %v2765 = vld [vmem:[%s4] sm:$0x1]
      %v2767 = vperm.slane %v2765, 0
      %v2769 = vadd.f32 %v2749, %v2767
      %v2770 = vadd.f32 %v2750, %v2767
      %v2771 = vadd.f32 %v2751, %v2767
      %v2772 = vadd.f32 %v2752, %v2767
      %v2773 = vadd.f32 %v2753, %v2767
      %v2774 = vadd.f32 %v2754, %v2767
      %v2775 = vadd.f32 %v2755, %v2767
      %v2776 = vadd.f32 %v2756, %v2767
      %v2777 = vadd.f32 %v2757, %v2767
      %v2778 = vadd.f32 %v2758, %v2767
      %v2779 = vadd.f32 %v2759, %v2767
      %v2780 = vadd.f32 %v2760, %v2767
      %v2781 = vadd.f32 %v2761, %v2767
      %v2782 = vadd.f32 %v2762, %v2767
      %v2783 = vadd.f32 %v2763, %v2767
      %v2784 = vadd.f32 %v2764, %v2767
      %v2785 = vmax.f32 %v2769, 0.0
      %v2786 = vmax.f32 %v2770, 0.0
      %v2787 = vmax.f32 %v2771, 0.0
      %v2788 = vmax.f32 %v2772, 0.0
      %v2789 = vmax.f32 %v2773, 0.0
      %v2790 = vmax.f32 %v2774, 0.0
      %v2791 = vmax.f32 %v2775, 0.0
      %v2792 = vmax.f32 %v2776, 0.0
      %v2793 = vmax.f32 %v2777, 0.0
      %v2794 = vmax.f32 %v2778, 0.0
      %v2795 = vmax.f32 %v2779, 0.0
      %v2796 = vmax.f32 %v2780, 0.0
      %v2797 = vmax.f32 %v2781, 0.0
      %v2798 = vmax.f32 %v2782, 0.0
      %v2799 = vmax.f32 %v2783, 0.0
      %v2800 = vmax.f32 %v2784, 0.0
      %2801 = vst.msk [vmem:[%s391] sm:$0xff] %vm1735, %v2785
      %2802 = vst.msk [vmem:[%s391 + $0x8] sm:$0xff] %vm1735, %v2786
      %2803 = vst.msk [vmem:[%s391 + $0x10] sm:$0xff] %vm1735, %v2787
      %2804 = vst.msk [vmem:[%s391 + $0x18] sm:$0xff] %vm1735, %v2788
      %2805 = vst.msk [vmem:[%s391 + $0x20] sm:$0xff] %vm1735, %v2789
      %2806 = vst.msk [vmem:[%s391 + $0x28] sm:$0xff] %vm1735, %v2790
      %2807 = vst.msk [vmem:[%s391 + $0x30] sm:$0xff] %vm1735, %v2791
      %2808 = vst.msk [vmem:[%s391 + $0x38] sm:$0xff] %vm1735, %v2792
      %2809 = vst.msk [vmem:[%s391 + $0x40] sm:$0xff] %vm1735, %v2793
      %2810 = vst.msk [vmem:[%s391 + $0x48] sm:$0xff] %vm1735, %v2794
      %2811 = vst.msk [vmem:[%s391 + $0x50] sm:$0xff] %vm1735, %v2795
      %2812 = vst.msk [vmem:[%s391 + $0x58] sm:$0xff] %vm1735, %v2796
      %2813 = vst.msk [vmem:[%s391 + $0x60] sm:$0xff] %vm1735, %v2797
      %2814 = vst.msk [vmem:[%s391 + $0x68] sm:$0xff] %vm1735, %v2798
      %2815 = vst.msk [vmem:[%s391 + $0x70] sm:$0xff] %vm1735, %v2799
      %2816 = vst.msk [vmem:[%s391 + $0x78] sm:$0xff] %vm1735, %v2800
      %s2817 = smul.u32 8, %s21
      %p2818 = scmp.lt.s32.totalorder %s20, 1
      %s2819 = scalar_select %p2818, %s20, 1
      %p2820 = scmp.lt.s32.totalorder %s2817, 15
      %s2821 = scalar_select %p2820, %s2817, 15
      %s2822 = smul.addr %s2821, 2
      %s2823 = smul.addr %s2819, 32
      %s2824 = sadd.s32 %s2822, %s2823
      %s2825 = smul.addr %s2824, 8
      %s2826 = scalar_lea.vmem %s5, %s2825
      // Predicated region
      $region41: #{up_conv_forward.5} parent=39 // pred_check
        %p2827 = pneg %p190
      $region42: #{up_conv_forward.5} parent=39 // pred_check_branch
        %2829 = sbr.rel (%p2827) target = $region44
      $region43: #{up_conv_forward.5} parent=39 // pred_region
        %s2830 = smul.u32 8, %s21
      $region44: #{up_conv_forward.5} parent=39 // pred_fallthru
        _
    $region40: #{up_conv_forward.5} parent=5 // pred_fallthru
      _
    %p2831 = scmp.le.s32.totalorder 2, %s11
    // Predicated region
    $region45: #{up_conv_forward.5} parent=5 // pred_check
      %p2832 = pneg %p2831
    $region46: #{up_conv_forward.5} parent=5 // pred_check_branch
      %2834 = sbr.rel (%p2832) target = $region48
    $region47: #{up_conv_forward.5} parent=5 // pred_region
      %s2835 = ssub.s32 %s11, 2
      // Predicated region
      $region49: #{up_conv_forward.5} parent=47 // pred_check
        %p2836 = pneg %p196
      $region50: #{up_conv_forward.5} parent=47 // pred_check_branch
        %2838 = sbr.rel (%p2836) target = $region52
      $region51: #{up_conv_forward.5} parent=47 // pred_region
        %s2839 = smul.u32 8, %s23
        %p2840 = scmp.lt.s32.totalorder %s22, 1
        %s2841 = scalar_select %p2840, %s22, 1
        %p2842 = scmp.lt.s32.totalorder %s2839, 15
        %s2843 = scalar_select %p2842, %s2839, 15
        %s2844 = smul.addr %s2843, 2
        %s2845 = smul.addr %s2841, 32
        %s2846 = sadd.s32 %s2844, %s2845
        %s2847 = smul.addr %s2846, 8
        %s2848 = scalar_lea.vmem %s5, %s2847
      $region52: #{up_conv_forward.5} parent=47 // pred_fallthru
        _
    $region48: #{up_conv_forward.5} parent=5 // pred_fallthru
      _
  $region6: #{up_conv_forward.5} parent=0 // loop_footer
    %s15 = sadd.s32 1, %s11
  $region7: #{up_conv_forward.5} parent=0 // loop_footer_branch
    %10 = sbr.rel target = $region3
  $region8: #{up_conv_forward.5} parent=0 // loop_exit
    _

// kernel: up_conv_forward.4
$region0: #{up_conv_forward.4}
  #allocation0 [shape = 'u32[]', space=smem, size = 0x4, offset = 0x4, fixed_abs, tag = 'smem constant byte address 0x4 - core index']
  #allocation1 [shape = 'u32[72,128]{1,0:T(1,128)}', space=vmem, size = 0x9000, scoped, tag = 'internal scratch']
  #allocation2 [shape = 'bf16[192,4]{1,0:T(8,128)(2,1)}', space=vmem, size = 0xc000, scoped, tag = 'scratch operand']
  #allocation3 [shape = 'bf16[192,4]{1,0:T(8,128)(2,1)}', space=vmem, size = 0xc000, scoped, tag = 'scratch operand']
  %s0 = inlined_call_operand.vmem [shape: bf16[2,16,16,4], index: 0, kind: input, shape index: {}, may-alias: {0,1,2}]
  %s1 = inlined_call_operand.vmem [shape: bf16[2,16,16,4], index: 1, kind: input, shape index: {}, may-alias: {0,1,2}]
  %s2 = inlined_call_operand.vmem [shape: bf16[2,16,16,4], index: 2, kind: input, shape index: {}, may-alias: {0,1,2}]
  %s3 = inlined_call_operand.vmem [shape: bf16[2,16,16,4], index: 3, kind: input, shape index: {}, may-alias: {3,4,5}]
  %s4 = inlined_call_operand.vmem [shape: bf16[2,16,16,4], index: 4, kind: input, shape index: {}, may-alias: {3,4,5}]
  %s5 = inlined_call_operand.vmem [shape: bf16[2,16,16,4], index: 5, kind: input, shape index: {}, may-alias: {3,4,5}]
  %s6 = inlined_call_operand.vmem [shape: bf16[3,3,4,4], index: 6, kind: input, shape index: {}]
  %s7 = inlined_call_operand.vmem [shape: bf16[3,3,4,4], index: 7, kind: input, shape index: {}]
  %s8 = inlined_call_operand.vmem [shape: f32[1,4], index: 8, kind: input, shape index: {}]
  %s9 = inlined_call_operand.vmem [shape: bf16[2,16,16,4], index: 9, kind: output, shape index: {}]
  %s10 = sld [smem:[#allocation0]]
  $region69: #{up_conv_forward.4} parent=0
    _
  %s12 = ssub.s32 1, %s10
  %s13 = scalar_select 0, %s12, %s10
  loop: start=0, step=1, limit=6
  $region2: #{up_conv_forward.4} parent=0 // loop_pre_header
    _
  $region3: #{up_conv_forward.4} parent=0 // loop_header
    %s15 = sphi 0, %s19
    %p16 = scmp.ge.s32.totalorder %s15, 6
    %s22 = sphi 0, %s34
    %s23 = sphi 0, %s30
    %s24 = sphi 0, %s22
    %s25 = sphi 0, %s23
    %s26 = sphi 0, %s24
    %s27 = sphi 0, %s25
    %s47 = sphi 0, %s49
    %s50 = sphi 0, %s47
    %s51 = sphi 0, %s50
    %s67 = sphi 0, %s51
    %s75 = sphi 0, %s77
    %s78 = sphi 0, %s75
    %s79 = sphi 0, %s78
    %s95 = sphi 0, %s79
    %s111 = sphi 0, %s113
    %s114 = sphi 0, %s111
    %s115 = sphi 0, %s114
    %s131 = sphi 0, %s115
    %s147 = sphi 0, %s149
    %s150 = sphi 0, %s147
    %s151 = sphi 0, %s150
    %s167 = sphi 0, %s151
    %s175 = sphi 0, %s177
    %s178 = sphi 0, %s175
    %s179 = sphi 0, %s178
    %s195 = sphi 0, %s179
    %s211 = sphi 0, %s213
    %s214 = sphi 0, %s211
    %s215 = sphi 0, %s214
    %s231 = sphi 0, %s215
    %s235 = sphi 0, %s235
    %s237 = sphi 0, %s235
    %s238 = sphi 0, %s237
    %s252 = sphi 0, %s238
    %s256 = sphi 0, %s256
    %s258 = sphi 0, %s256
    %s259 = sphi 0, %s258
    %s273 = sphi 0, %s259
    %s277 = sphi 0, %s277
    %s279 = sphi 0, %s277
    %s280 = sphi 0, %s279
    %s294 = sphi 0, %s280
    %s302 = sphi 0, %s304
    %s305 = sphi 0, %s302
    %s306 = sphi 0, %s305
    %s322 = sphi 0, %s306
  $region4: #{up_conv_forward.4} parent=0 // loop_header_branch
    %18 = sbr.rel (%p16) target = $region8
  $region5: #{up_conv_forward.4} parent=0 // loop_body
    %s20 = ssub.s32 %s15, 1
    %s21 = ssub.s32 %s15, 2
    %s28 = sadd.s32 1, %s23
    %p29 = scmp.ge.s32.totalorder %s28, 2
    %s30 = scalar_select %p29, 0, %s28
    %s31 = sadd.s32 1, %s22
    %s32 = scalar_select %p29, %s31, %s22
    %p33 = scmp.ge.s32.totalorder %s32, 2
    %s34 = scalar_select %p33, 0, %s32
    %s35 = smul.u32 %s23, 8
    %s36 = ssub.s32 %s35, 1
    %p37 = scmp.gt.s32.totalorder %s36, 0
    %s38 = scalar_select %p37, %s36, 0
    %s39 = smul.u32 %s30, 8
    %s40 = ssub.s32 %s39, 1
    %p41 = scmp.gt.s32.totalorder %s40, 0
    %s42 = scalar_select %p41, %s40, 0
    %s43 = ssub.s32 %s22, %s34
    %s44 = ssub.s32 %s38, %s42
    %s45 = sor.u32 %s43, %s44
    %p46 = scmp.eq.s32.totalorder %s45, 0
    %s48 = sadd.s32 %s47, 1
    %s49 = scalar_select %p46, %s47, %s48
    %p52 = pneg %p46
    %p53 = scmp.eq.s32.totalorder %s15, 3
    %p54 = por %p52, %p53
    %p55 = scmp.ne.s32.totalorder %s47, %s50
    %p56 = scmp.eq.s32.totalorder %s15, 0
    %p57 = por %p55, %p56
    %p58 = scmp.ne.s32.totalorder %s47, %s50
    %p59 = scmp.eq.s32.totalorder %s20, 3
    %p60 = por %p58, %p59
    %p61 = scmp.ne.s32.totalorder %s50, %s51
    %p62 = scmp.eq.s32.totalorder %s20, 0
    %p63 = por %p61, %p62
    %p64 = scmp.ne.s32.totalorder %s50, %s51
    %p65 = scmp.eq.s32.totalorder %s21, 3
    %p66 = por %p64, %p65
    %p68 = scmp.ne.s32.totalorder %s51, %s67
    %p69 = scmp.eq.s32.totalorder %s21, 0
    %p70 = por %p68, %p69
    %s71 = ssub.s32 %s22, %s34
    %s72 = ssub.s32 %s23, %s30
    %s73 = sor.u32 %s71, %s72
    %p74 = scmp.eq.s32.totalorder %s73, 0
    %s76 = sadd.s32 %s75, 1
    %s77 = scalar_select %p74, %s75, %s76
    %p80 = pneg %p74
    %p81 = scmp.eq.s32.totalorder %s15, 3
    %p82 = por %p80, %p81
    %p83 = scmp.ne.s32.totalorder %s75, %s78
    %p84 = scmp.eq.s32.totalorder %s15, 0
    %p85 = por %p83, %p84
    %p86 = scmp.ne.s32.totalorder %s75, %s78
    %p87 = scmp.eq.s32.totalorder %s20, 3
    %p88 = por %p86, %p87
    %p89 = scmp.ne.s32.totalorder %s78, %s79
    %p90 = scmp.eq.s32.totalorder %s20, 0
    %p91 = por %p89, %p90
    %p92 = scmp.ne.s32.totalorder %s78, %s79
    %p93 = scmp.eq.s32.totalorder %s21, 3
    %p94 = por %p92, %p93
    %p96 = scmp.ne.s32.totalorder %s79, %s95
    %p97 = scmp.eq.s32.totalorder %s21, 0
    %p98 = por %p96, %p97
    %s99 = smul.u32 %s23, 8
    %s100 = sadd.s32 %s99, 8
    %p101 = scmp.lt.s32.totalorder %s100, 15
    %s102 = scalar_select %p101, %s100, 15
    %s103 = smul.u32 %s30, 8
    %s104 = sadd.s32 %s103, 8
    %p105 = scmp.lt.s32.totalorder %s104, 15
    %s106 = scalar_select %p105, %s104, 15
    %s107 = ssub.s32 %s22, %s34
    %s108 = ssub.s32 %s102, %s106
    %s109 = sor.u32 %s107, %s108
    %p110 = scmp.eq.s32.totalorder %s109, 0
    %s112 = sadd.s32 %s111, 1
    %s113 = scalar_select %p110, %s111, %s112
    %p116 = pneg %p110
    %p117 = scmp.eq.s32.totalorder %s15, 3
    %p118 = por %p116, %p117
    %p119 = scmp.ne.s32.totalorder %s111, %s114
    %p120 = scmp.eq.s32.totalorder %s15, 0
    %p121 = por %p119, %p120
    %p122 = scmp.ne.s32.totalorder %s111, %s114
    %p123 = scmp.eq.s32.totalorder %s20, 3
    %p124 = por %p122, %p123
    %p125 = scmp.ne.s32.totalorder %s114, %s115
    %p126 = scmp.eq.s32.totalorder %s20, 0
    %p127 = por %p125, %p126
    %p128 = scmp.ne.s32.totalorder %s114, %s115
    %p129 = scmp.eq.s32.totalorder %s21, 3
    %p130 = por %p128, %p129
    %p132 = scmp.ne.s32.totalorder %s115, %s131
    %p133 = scmp.eq.s32.totalorder %s21, 0
    %p134 = por %p132, %p133
    %s135 = smul.u32 %s23, 8
    %s136 = ssub.s32 %s135, 1
    %p137 = scmp.gt.s32.totalorder %s136, 0
    %s138 = scalar_select %p137, %s136, 0
    %s139 = smul.u32 %s30, 8
    %s140 = ssub.s32 %s139, 1
    %p141 = scmp.gt.s32.totalorder %s140, 0
    %s142 = scalar_select %p141, %s140, 0
    %s143 = ssub.s32 %s22, %s34
    %s144 = ssub.s32 %s138, %s142
    %s145 = sor.u32 %s143, %s144
    %p146 = scmp.eq.s32.totalorder %s145, 0
    %s148 = sadd.s32 %s147, 1
    %s149 = scalar_select %p146, %s147, %s148
    %p152 = pneg %p146
    %p153 = scmp.eq.s32.totalorder %s15, 3
    %p154 = por %p152, %p153
    %p155 = scmp.ne.s32.totalorder %s147, %s150
    %p156 = scmp.eq.s32.totalorder %s15, 0
    %p157 = por %p155, %p156
    %p158 = scmp.ne.s32.totalorder %s147, %s150
    %p159 = scmp.eq.s32.totalorder %s20, 3
    %p160 = por %p158, %p159
    %p161 = scmp.ne.s32.totalorder %s150, %s151
    %p162 = scmp.eq.s32.totalorder %s20, 0
    %p163 = por %p161, %p162
    %p164 = scmp.ne.s32.totalorder %s150, %s151
    %p165 = scmp.eq.s32.totalorder %s21, 3
    %p166 = por %p164, %p165
    %p168 = scmp.ne.s32.totalorder %s151, %s167
    %p169 = scmp.eq.s32.totalorder %s21, 0
    %p170 = por %p168, %p169
    %s171 = ssub.s32 %s22, %s34
    %s172 = ssub.s32 %s23, %s30
    %s173 = sor.u32 %s171, %s172
    %p174 = scmp.eq.s32.totalorder %s173, 0
    %s176 = sadd.s32 %s175, 1
    %s177 = scalar_select %p174, %s175, %s176
    %p180 = pneg %p174
    %p181 = scmp.eq.s32.totalorder %s15, 3
    %p182 = por %p180, %p181
    %p183 = scmp.ne.s32.totalorder %s175, %s178
    %p184 = scmp.eq.s32.totalorder %s15, 0
    %p185 = por %p183, %p184
    %p186 = scmp.ne.s32.totalorder %s175, %s178
    %p187 = scmp.eq.s32.totalorder %s20, 3
    %p188 = por %p186, %p187
    %p189 = scmp.ne.s32.totalorder %s178, %s179
    %p190 = scmp.eq.s32.totalorder %s20, 0
    %p191 = por %p189, %p190
    %p192 = scmp.ne.s32.totalorder %s178, %s179
    %p193 = scmp.eq.s32.totalorder %s21, 3
    %p194 = por %p192, %p193
    %p196 = scmp.ne.s32.totalorder %s179, %s195
    %p197 = scmp.eq.s32.totalorder %s21, 0
    %p198 = por %p196, %p197
    %s199 = smul.u32 %s23, 8
    %s200 = sadd.s32 %s199, 8
    %p201 = scmp.lt.s32.totalorder %s200, 15
    %s202 = scalar_select %p201, %s200, 15
    %s203 = smul.u32 %s30, 8
    %s204 = sadd.s32 %s203, 8
    %p205 = scmp.lt.s32.totalorder %s204, 15
    %s206 = scalar_select %p205, %s204, 15
    %s207 = ssub.s32 %s22, %s34
    %s208 = ssub.s32 %s202, %s206
    %s209 = sor.u32 %s207, %s208
    %p210 = scmp.eq.s32.totalorder %s209, 0
    %s212 = sadd.s32 %s211, 1
    %s213 = scalar_select %p210, %s211, %s212
    %p216 = pneg %p210
    %p217 = scmp.eq.s32.totalorder %s15, 3
    %p218 = por %p216, %p217
    %p219 = scmp.ne.s32.totalorder %s211, %s214
    %p220 = scmp.eq.s32.totalorder %s15, 0
    %p221 = por %p219, %p220
    %p222 = scmp.ne.s32.totalorder %s211, %s214
    %p223 = scmp.eq.s32.totalorder %s20, 3
    %p224 = por %p222, %p223
    %p225 = scmp.ne.s32.totalorder %s214, %s215
    %p226 = scmp.eq.s32.totalorder %s20, 0
    %p227 = por %p225, %p226
    %p228 = scmp.ne.s32.totalorder %s214, %s215
    %p229 = scmp.eq.s32.totalorder %s21, 3
    %p230 = por %p228, %p229
    %p232 = scmp.ne.s32.totalorder %s215, %s231
    %p233 = scmp.eq.s32.totalorder %s21, 0
    %p234 = por %p232, %p233
    %s236 = sadd.s32 %s235, 1
    %p239 = scmp.eq.s32.totalorder %s15, 3
    %p240 = scmp.ne.s32.totalorder %s235, %s237
    %p241 = scmp.eq.s32.totalorder %s15, 0
    %p242 = por %p240, %p241
    %p243 = scmp.ne.s32.totalorder %s235, %s237
    %p244 = scmp.eq.s32.totalorder %s20, 3
    %p245 = por %p243, %p244
    %p246 = scmp.ne.s32.totalorder %s237, %s238
    %p247 = scmp.eq.s32.totalorder %s20, 0
    %p248 = por %p246, %p247
    %p249 = scmp.ne.s32.totalorder %s237, %s238
    %p250 = scmp.eq.s32.totalorder %s21, 3
    %p251 = por %p249, %p250
    %p253 = scmp.ne.s32.totalorder %s238, %s252
    %p254 = scmp.eq.s32.totalorder %s21, 0
    %p255 = por %p253, %p254
    %s257 = sadd.s32 %s256, 1
    %p260 = scmp.eq.s32.totalorder %s15, 3
    %p261 = scmp.ne.s32.totalorder %s256, %s258
    %p262 = scmp.eq.s32.totalorder %s15, 0
    %p263 = por %p261, %p262
    %p264 = scmp.ne.s32.totalorder %s256, %s258
    %p265 = scmp.eq.s32.totalorder %s20, 3
    %p266 = por %p264, %p265
    %p267 = scmp.ne.s32.totalorder %s258, %s259
    %p268 = scmp.eq.s32.totalorder %s20, 0
    %p269 = por %p267, %p268
    %p270 = scmp.ne.s32.totalorder %s258, %s259
    %p271 = scmp.eq.s32.totalorder %s21, 3
    %p272 = por %p270, %p271
    %p274 = scmp.ne.s32.totalorder %s259, %s273
    %p275 = scmp.eq.s32.totalorder %s21, 0
    %p276 = por %p274, %p275
    %s278 = sadd.s32 %s277, 1
    %p281 = scmp.eq.s32.totalorder %s15, 3
    %p282 = scmp.ne.s32.totalorder %s277, %s279
    %p283 = scmp.eq.s32.totalorder %s15, 0
    %p284 = por %p282, %p283
    %p285 = scmp.ne.s32.totalorder %s277, %s279
    %p286 = scmp.eq.s32.totalorder %s20, 3
    %p287 = por %p285, %p286
    %p288 = scmp.ne.s32.totalorder %s279, %s280
    %p289 = scmp.eq.s32.totalorder %s20, 0
    %p290 = por %p288, %p289
    %p291 = scmp.ne.s32.totalorder %s279, %s280
    %p292 = scmp.eq.s32.totalorder %s21, 3
    %p293 = por %p291, %p292
    %p295 = scmp.ne.s32.totalorder %s280, %s294
    %p296 = scmp.eq.s32.totalorder %s21, 0
    %p297 = por %p295, %p296
    %s298 = ssub.s32 %s22, %s34
    %s299 = ssub.s32 %s23, %s30
    %s300 = sor.u32 %s298, %s299
    %p301 = scmp.eq.s32.totalorder %s300, 0
    %s303 = sadd.s32 %s302, 1
    %s304 = scalar_select %p301, %s302, %s303
    %p307 = pneg %p301
    %p308 = scmp.eq.s32.totalorder %s15, 3
    %p309 = por %p307, %p308
    %p310 = scmp.ne.s32.totalorder %s302, %s305
    %p311 = scmp.eq.s32.totalorder %s15, 0
    %p312 = por %p310, %p311
    %p313 = scmp.ne.s32.totalorder %s302, %s305
    %p314 = scmp.eq.s32.totalorder %s20, 3
    %p315 = por %p313, %p314
    %p316 = scmp.ne.s32.totalorder %s305, %s306
    %p317 = scmp.eq.s32.totalorder %s20, 0
    %p318 = por %p316, %p317
    %p319 = scmp.ne.s32.totalorder %s305, %s306
    %p320 = scmp.eq.s32.totalorder %s21, 3
    %p321 = por %p319, %p320
    %p323 = scmp.ne.s32.totalorder %s306, %s322
    %p324 = scmp.eq.s32.totalorder %s21, 0
    %p325 = por %p323, %p324
    %p326 = scmp.le.s32.totalorder 1, %s15
    %p327 = scmp.lt.s32.totalorder %s15, 5
    %p328 = pnand %p326, %p327
    %p329 = pneg %p328
    // Predicated region
    $region9: #{up_conv_forward.4} parent=5 // pred_check
      _
    $region10: #{up_conv_forward.4} parent=5 // pred_check_branch
      %331 = sbr.rel (%p328) target = $region12
    $region11: #{up_conv_forward.4} parent=5 // pred_region
      %s332 = ssub.s32 %s15, 1
      // Predicated region
      $region13: #{up_conv_forward.4} parent=11 // pred_check
        %p333 = pneg %p248
      $region14: #{up_conv_forward.4} parent=11 // pred_check_branch
        %335 = sbr.rel (%p333) target = $region16
      $region15: #{up_conv_forward.4} parent=11 // pred_region
        _
      $region16: #{up_conv_forward.4} parent=11 // pred_fallthru
        _
      // Predicated region
      $region17: #{up_conv_forward.4} parent=11 // pred_check
        %p336 = pneg %p269
      $region18: #{up_conv_forward.4} parent=11 // pred_check_branch
        %338 = sbr.rel (%p336) target = $region20
      $region19: #{up_conv_forward.4} parent=11 // pred_region
        _
      $region20: #{up_conv_forward.4} parent=11 // pred_fallthru
        _
      // Predicated region
      $region21: #{up_conv_forward.4} parent=11 // pred_check
        %p339 = pneg %p290
      $region22: #{up_conv_forward.4} parent=11 // pred_check_branch
        %341 = sbr.rel (%p339) target = $region24
      $region23: #{up_conv_forward.4} parent=11 // pred_region
        _
      $region24: #{up_conv_forward.4} parent=11 // pred_fallthru
        _
    $region12: #{up_conv_forward.4} parent=5 // pred_fallthru
      _
    %p342 = scmp.lt.s32.totalorder %s15, 4
    // Predicated region
    $region25: #{up_conv_forward.4} parent=5 // pred_check
      %p343 = pneg %p342
    $region26: #{up_conv_forward.4} parent=5 // pred_check_branch
      %345 = sbr.rel (%p343) target = $region28
    $region27: #{up_conv_forward.4} parent=5 // pred_region
      // Predicated region
      $region29: #{up_conv_forward.4} parent=27 // pred_check
        %p346 = pneg %p57
      $region30: #{up_conv_forward.4} parent=27 // pred_check_branch
        %348 = sbr.rel (%p346) target = $region32
      $region31: #{up_conv_forward.4} parent=27 // pred_region
        %s349 = smul.u32 %s23, 8
        %s350 = ssub.s32 %s349, 1
        %p351 = scmp.gt.s32.totalorder %s350, 0
        %s352 = scalar_select %p351, %s350, 0
        %p353 = scmp.lt.s32.totalorder %s22, 1
        %s354 = scalar_select %p353, %s22, 1
        %p355 = scmp.lt.s32.totalorder %s352, 15
        %s356 = scalar_select %p355, %s352, 15
        %s357 = smul.addr %s356, 2
        %s358 = smul.addr %s354, 32
        %s359 = sadd.s32 %s357, %s358
        %s360 = smul.addr %s359, 4
        %s361 = scalar_lea.vmem %s0, %s360
        %s362 = smul.u32 %s23, 8
        %s363 = ssub.s32 %s362, 1
        %p364 = scmp.gt.s32.totalorder %s363, 0
        %s365 = scalar_select %p364, %s363, 0
      $region32: #{up_conv_forward.4} parent=27 // pred_fallthru
        _
      // Predicated region
      $region33: #{up_conv_forward.4} parent=27 // pred_check
        %p366 = pneg %p85
      $region34: #{up_conv_forward.4} parent=27 // pred_check_branch
        %368 = sbr.rel (%p366) target = $region36
      $region35: #{up_conv_forward.4} parent=27 // pred_region
        %s369 = smul.u32 8, %s23
        %p370 = scmp.lt.s32.totalorder %s22, 1
        %s371 = scalar_select %p370, %s22, 1
        %p372 = scmp.lt.s32.totalorder %s369, 15
        %s373 = scalar_select %p372, %s369, 15
        %s374 = smul.addr %s373, 2
        %s375 = smul.addr %s371, 32
        %s376 = sadd.s32 %s374, %s375
        %s377 = smul.addr %s376, 4
        %s378 = scalar_lea.vmem %s1, %s377
        %s379 = smul.u32 8, %s23
      $region36: #{up_conv_forward.4} parent=27 // pred_fallthru
        _
      // Predicated region
      $region37: #{up_conv_forward.4} parent=27 // pred_check
        %p380 = pneg %p121
      $region38: #{up_conv_forward.4} parent=27 // pred_check_branch
        %382 = sbr.rel (%p380) target = $region40
      $region39: #{up_conv_forward.4} parent=27 // pred_region
        %s383 = smul.u32 %s23, 8
        %s384 = sadd.s32 %s383, 8
        %p385 = scmp.lt.s32.totalorder %s384, 15
        %s386 = scalar_select %p385, %s384, 15
        %p387 = scmp.lt.s32.totalorder %s22, 1
        %s388 = scalar_select %p387, %s22, 1
        %p389 = scmp.lt.s32.totalorder %s386, 15
        %s390 = scalar_select %p389, %s386, 15
        %s391 = smul.addr %s390, 2
        %s392 = smul.addr %s388, 32
        %s393 = sadd.s32 %s391, %s392
        %s394 = smul.addr %s393, 4
        %s395 = scalar_lea.vmem %s2, %s394
        %s396 = smul.u32 %s23, 8
        %s397 = sadd.s32 %s396, 8
        %p398 = scmp.lt.s32.totalorder %s397, 15
        %s399 = scalar_select %p398, %s397, 15
      $region40: #{up_conv_forward.4} parent=27 // pred_fallthru
        _
      // Predicated region
      $region41: #{up_conv_forward.4} parent=27 // pred_check
        %p400 = pneg %p157
      $region42: #{up_conv_forward.4} parent=27 // pred_check_branch
        %402 = sbr.rel (%p400) target = $region44
      $region43: #{up_conv_forward.4} parent=27 // pred_region
        %s403 = smul.u32 %s23, 8
        %s404 = ssub.s32 %s403, 1
        %p405 = scmp.gt.s32.totalorder %s404, 0
        %s406 = scalar_select %p405, %s404, 0
        %p407 = scmp.lt.s32.totalorder %s22, 1
        %s408 = scalar_select %p407, %s22, 1
        %p409 = scmp.lt.s32.totalorder %s406, 15
        %s410 = scalar_select %p409, %s406, 15
        %s411 = smul.addr %s410, 2
        %s412 = smul.addr %s408, 32
        %s413 = sadd.s32 %s411, %s412
        %s414 = smul.addr %s413, 4
        %s415 = scalar_lea.vmem %s3, %s414
        %s416 = smul.u32 %s23, 8
        %s417 = ssub.s32 %s416, 1
        %p418 = scmp.gt.s32.totalorder %s417, 0
        %s419 = scalar_select %p418, %s417, 0
      $region44: #{up_conv_forward.4} parent=27 // pred_fallthru
        _
      // Predicated region
      $region45: #{up_conv_forward.4} parent=27 // pred_check
        %p420 = pneg %p185
      $region46: #{up_conv_forward.4} parent=27 // pred_check_branch
        %422 = sbr.rel (%p420) target = $region48
      $region47: #{up_conv_forward.4} parent=27 // pred_region
        %s423 = smul.u32 8, %s23
        %p424 = scmp.lt.s32.totalorder %s22, 1
        %s425 = scalar_select %p424, %s22, 1
        %p426 = scmp.lt.s32.totalorder %s423, 15
        %s427 = scalar_select %p426, %s423, 15
        %s428 = smul.addr %s427, 2
        %s429 = smul.addr %s425, 32
        %s430 = sadd.s32 %s428, %s429
        %s431 = smul.addr %s430, 4
        %s432 = scalar_lea.vmem %s4, %s431
        %s433 = smul.u32 8, %s23
      $region48: #{up_conv_forward.4} parent=27 // pred_fallthru
        _
      // Predicated region
      $region49: #{up_conv_forward.4} parent=27 // pred_check
        %p434 = pneg %p221
      $region50: #{up_conv_forward.4} parent=27 // pred_check_branch
        %436 = sbr.rel (%p434) target = $region52
      $region51: #{up_conv_forward.4} parent=27 // pred_region
        %s437 = smul.u32 %s23, 8
        %s438 = sadd.s32 %s437, 8
        %p439 = scmp.lt.s32.totalorder %s438, 15
        %s440 = scalar_select %p439, %s438, 15
        %p441 = scmp.lt.s32.totalorder %s22, 1
        %s442 = scalar_select %p441, %s22, 1
        %p443 = scmp.lt.s32.totalorder %s440, 15
        %s444 = scalar_select %p443, %s440, 15
        %s445 = smul.addr %s444, 2
        %s446 = smul.addr %s442, 32
        %s447 = sadd.s32 %s445, %s446
        %s448 = smul.addr %s447, 4
        %s449 = scalar_lea.vmem %s5, %s448
        %s450 = smul.u32 %s23, 8
        %s451 = sadd.s32 %s450, 8
        %p452 = scmp.lt.s32.totalorder %s451, 15
        %s453 = scalar_select %p452, %s451, 15
      $region52: #{up_conv_forward.4} parent=27 // pred_fallthru
        _
    $region28: #{up_conv_forward.4} parent=5 // pred_fallthru
      _
    %p454 = scmp.le.s32.totalorder 1, %s15
    %p455 = scmp.lt.s32.totalorder %s15, 5
    %p456 = pnand %p454, %p455
    %p457 = pneg %p456
    // Predicated region
    $region53: #{up_conv_forward.4} parent=5 // pred_check
      _
    $region54: #{up_conv_forward.4} parent=5 // pred_check_branch
      %459 = sbr.rel (%p456) target = $region56
    $region55: #{up_conv_forward.4} parent=5 // pred_region
      %s460 = ssub.s32 %s15, 1
      %s461 = smul.u32 %s25, 8
      %s462 = ssub.s32 %s461, 1
      %p463 = scmp.gt.s32.totalorder %s462, 0
      %s464 = scalar_select %p463, %s462, 0
      %p465 = scmp.lt.s32.totalorder %s24, 1
      %s466 = scalar_select %p465, %s24, 1
      %p467 = scmp.lt.s32.totalorder %s464, 15
      %s468 = scalar_select %p467, %s464, 15
      %s469 = smul.addr %s468, 2
      %s470 = smul.addr %s466, 32
      %s471 = sadd.s32 %s469, %s470
      %s472 = smul.addr %s471, 4
      %s473 = scalar_lea.vmem %s0, %s472
      %p474 = pneg %p63
      %p475 = pneg %p60
      %s476 = smul.u32 8, %s25
      %p477 = scmp.lt.s32.totalorder %s24, 1
      %s478 = scalar_select %p477, %s24, 1
      %p479 = scmp.lt.s32.totalorder %s476, 15
      %s480 = scalar_select %p479, %s476, 15
      %s481 = smul.addr %s480, 2
      %s482 = smul.addr %s478, 32
      %s483 = sadd.s32 %s481, %s482
      %s484 = smul.addr %s483, 4
      %s485 = scalar_lea.vmem %s1, %s484
      %p486 = pneg %p91
      %p487 = pneg %p88
      %s488 = smul.u32 %s25, 8
      %s489 = sadd.s32 %s488, 8
      %p490 = scmp.lt.s32.totalorder %s489, 15
      %s491 = scalar_select %p490, %s489, 15
      %p492 = scmp.lt.s32.totalorder %s24, 1
      %s493 = scalar_select %p492, %s24, 1
      %p494 = scmp.lt.s32.totalorder %s491, 15
      %s495 = scalar_select %p494, %s491, 15
      %s496 = smul.addr %s495, 2
      %s497 = smul.addr %s493, 32
      %s498 = sadd.s32 %s496, %s497
      %s499 = smul.addr %s498, 4
      %s500 = scalar_lea.vmem %s2, %s499
      %p501 = pneg %p127
      %p502 = pneg %p124
      %s503 = smul.u32 %s25, 8
      %s504 = ssub.s32 %s503, 1
      %p505 = scmp.gt.s32.totalorder %s504, 0
      %s506 = scalar_select %p505, %s504, 0
      %p507 = scmp.lt.s32.totalorder %s24, 1
      %s508 = scalar_select %p507, %s24, 1
      %p509 = scmp.lt.s32.totalorder %s506, 15
      %s510 = scalar_select %p509, %s506, 15
      %s511 = smul.addr %s510, 2
      %s512 = smul.addr %s508, 32
      %s513 = sadd.s32 %s511, %s512
      %s514 = smul.addr %s513, 4
      %s515 = scalar_lea.vmem %s3, %s514
      %p516 = pneg %p163
      %p517 = pneg %p160
      %s518 = smul.u32 8, %s25
      %p519 = scmp.lt.s32.totalorder %s24, 1
      %s520 = scalar_select %p519, %s24, 1
      %p521 = scmp.lt.s32.totalorder %s518, 15
      %s522 = scalar_select %p521, %s518, 15
      %s523 = smul.addr %s522, 2
      %s524 = smul.addr %s520, 32
      %s525 = sadd.s32 %s523, %s524
      %s526 = smul.addr %s525, 4
      %s527 = scalar_lea.vmem %s4, %s526
      %p528 = pneg %p191
      %p529 = pneg %p188
      %s530 = smul.u32 %s25, 8
      %s531 = sadd.s32 %s530, 8
      %p532 = scmp.lt.s32.totalorder %s531, 15
      %s533 = scalar_select %p532, %s531, 15
      %p534 = scmp.lt.s32.totalorder %s24, 1
      %s535 = scalar_select %p534, %s24, 1
      %p536 = scmp.lt.s32.totalorder %s533, 15
      %s537 = scalar_select %p536, %s533, 15
      %s538 = smul.addr %s537, 2
      %s539 = smul.addr %s535, 32
      %s540 = sadd.s32 %s538, %s539
      %s541 = smul.addr %s540, 4
      %s542 = scalar_lea.vmem %s5, %s541
      %p543 = pneg %p227
      %p544 = pneg %p224
      %p545 = pneg %p248
      %p546 = pneg %p245
      %p547 = pneg %p269
      %p548 = pneg %p266
      %p549 = pneg %p290
      %p550 = pneg %p287
      %p551 = pneg %p318
      %p552 = pneg %p315
      %s553 = smul.u32 8, %s25
      %p554 = scmp.lt.s32.totalorder %s24, 1
      %s555 = scalar_select %p554, %s24, 1
      %p556 = scmp.lt.s32.totalorder %s553, 15
      %s557 = scalar_select %p556, %s553, 15
      %s558 = smul.addr %s557, 2
      %s559 = smul.addr %s555, 32
      %s560 = sadd.s32 %s558, %s559
      %s561 = smul.addr %s560, 4
      %s562 = scalar_lea.vmem %s9, %s561
      %s563 = smul.u32 %s25, 8
      %s564 = ssub.s32 %s563, 1
      %p565 = scmp.gt.s32.totalorder %s564, 0
      %s566 = scalar_select %p565, %s564, 0
      %p567 = scmp.lt.s32.totalorder %s24, 1
      %s568 = scalar_select %p567, %s24, 1
      %p569 = scmp.lt.s32.totalorder %s566, 15
      %s570 = scalar_select %p569, %s566, 15
      %s571 = smul.addr %s570, 2
      %s572 = smul.addr %s568, 32
      %s573 = sadd.s32 %s571, %s572
      %s574 = smul.addr %s573, 4
      %s575 = scalar_lea.vmem %s0, %s574
      %s576 = smul.u32 %s25, 8
      %s577 = ssub.s32 %s576, 1
      %p578 = scmp.gt.s32.totalorder %s577, 0
      %s579 = scalar_select %p578, %s577, 0
      %s580 = smul.u32 8, %s25
      %p581 = scmp.lt.s32.totalorder %s24, 1
      %s582 = scalar_select %p581, %s24, 1
      %p583 = scmp.lt.s32.totalorder %s580, 15
      %s584 = scalar_select %p583, %s580, 15
      %s585 = smul.addr %s584, 2
      %s586 = smul.addr %s582, 32
      %s587 = sadd.s32 %s585, %s586
      %s588 = smul.addr %s587, 4
      %s589 = scalar_lea.vmem %s1, %s588
      %s590 = smul.u32 8, %s25
      %s591 = smul.u32 %s25, 8
      %s592 = sadd.s32 %s591, 8
      %p593 = scmp.lt.s32.totalorder %s592, 15
      %s594 = scalar_select %p593, %s592, 15
      %p595 = scmp.lt.s32.totalorder %s24, 1
      %s596 = scalar_select %p595, %s24, 1
      %p597 = scmp.lt.s32.totalorder %s594, 15
      %s598 = scalar_select %p597, %s594, 15
      %s599 = smul.addr %s598, 2
      %s600 = smul.addr %s596, 32
      %s601 = sadd.s32 %s599, %s600
      %s602 = smul.addr %s601, 4
      %s603 = scalar_lea.vmem %s2, %s602
      %s604 = smul.u32 %s25, 8
      %s605 = sadd.s32 %s604, 8
      %p606 = scmp.lt.s32.totalorder %s605, 15
      %s607 = scalar_select %p606, %s605, 15
      %s608 = smul.u32 %s25, 8
      %s609 = ssub.s32 %s608, 1
      %p610 = scmp.gt.s32.totalorder %s609, 0
      %s611 = scalar_select %p610, %s609, 0
      %p612 = scmp.lt.s32.totalorder %s24, 1
      %s613 = scalar_select %p612, %s24, 1
      %p614 = scmp.lt.s32.totalorder %s611, 15
      %s615 = scalar_select %p614, %s611, 15
      %s616 = smul.addr %s615, 2
      %s617 = smul.addr %s613, 32
      %s618 = sadd.s32 %s616, %s617
      %s619 = smul.addr %s618, 4
      %s620 = scalar_lea.vmem %s3, %s619
      %s621 = smul.u32 %s25, 8
      %s622 = ssub.s32 %s621, 1
      %p623 = scmp.gt.s32.totalorder %s622, 0
      %s624 = scalar_select %p623, %s622, 0
      %s625 = smul.u32 8, %s25
      %p626 = scmp.lt.s32.totalorder %s24, 1
      %s627 = scalar_select %p626, %s24, 1
      %p628 = scmp.lt.s32.totalorder %s625, 15
      %s629 = scalar_select %p628, %s625, 15
      %s630 = smul.addr %s629, 2
      %s631 = smul.addr %s627, 32
      %s632 = sadd.s32 %s630, %s631
      %s633 = smul.addr %s632, 4
      %s634 = scalar_lea.vmem %s4, %s633
      %s635 = smul.u32 8, %s25
      %s636 = smul.u32 %s25, 8
      %s637 = sadd.s32 %s636, 8
      %p638 = scmp.lt.s32.totalorder %s637, 15
      %s639 = scalar_select %p638, %s637, 15
      %p640 = scmp.lt.s32.totalorder %s24, 1
      %s641 = scalar_select %p640, %s24, 1
      %p642 = scmp.lt.s32.totalorder %s639, 15
      %s643 = scalar_select %p642, %s639, 15
      %s644 = smul.addr %s643, 2
      %s645 = smul.addr %s641, 32
      %s646 = sadd.s32 %s644, %s645
      %s647 = smul.addr %s646, 4
      %s648 = scalar_lea.vmem %s5, %s647
      %s649 = smul.u32 %s25, 8
      %s650 = sadd.s32 %s649, 8
      %p651 = scmp.lt.s32.totalorder %s650, 15
      %s652 = scalar_select %p651, %s650, 15
      %s653 = smul.u32 8, %s25
      %p654 = scmp.lt.s32.totalorder %s24, 1
      %s655 = scalar_select %p654, %s24, 1
      %p656 = scmp.lt.s32.totalorder %s653, 15
      %s657 = scalar_select %p656, %s653, 15
      %s658 = smul.addr %s657, 2
      %s659 = smul.addr %s655, 32
      %s660 = sadd.s32 %s658, %s659
      %s661 = smul.addr %s660, 4
      %s662 = scalar_lea.vmem %s9, %s661
      %s663 = smul.u32 8, %s25
      %v667 = vlaneseq
      %v668 = vshrl.u32 %v667, 7
      %v669 = vadd.s32 %v668, 8
      %v670 = vadd.s32 %v668, 16
      %v671 = vadd.s32 %v668, 24
      %v672 = vadd.s32 %v668, 32
      %v673 = vadd.s32 %v668, 40
      %v674 = vadd.s32 %v668, 48
      %v675 = vadd.s32 %v668, 56
      %v676 = vadd.s32 %v668, 64
      %v677 = vadd.s32 %v668, 72
      %v678 = vadd.s32 %v668, 80
      %v679 = vadd.s32 %v668, 88
      %v680 = vadd.s32 %v668, 96
      %v681 = vadd.s32 %v668, 104
      %v682 = vadd.s32 %v668, 112
      %v683 = vadd.s32 %v668, 120
      %v684 = vadd.s32 %v668, 128
      %v685 = vadd.s32 %v668, 136
      %v686 = vadd.s32 %v668, 144
      %v687 = vadd.s32 %v668, 152
      %vm688 = vcmp.lt.s32.totalorder %v668, 0
      %v689 = vsub.s32 0, %v668
      %v690 = vsel %vm688, %v689, %v668
      %v691 = vshrl.u32 %v690, 4
      %v692 = vand.u32 %v690, 15
      %v693 = vsub.s32 0, %v692
      %v694 = vsel %vm688, %v693, %v692
      %vm695 = vcmp.lt.s32.totalorder %v669, 0
      %v696 = vsub.s32 0, %v669
      %v697 = vsel %vm695, %v696, %v669
      %v698 = vshrl.u32 %v697, 4
      %v699 = vand.u32 %v697, 15
      %v700 = vsub.s32 0, %v699
      %v701 = vsel %vm695, %v700, %v699
      %vm702 = vcmp.lt.s32.totalorder %v670, 0
      %v703 = vsub.s32 0, %v670
      %v704 = vsel %vm702, %v703, %v670
      %v705 = vshrl.u32 %v704, 4
      %v706 = vand.u32 %v704, 15
      %v707 = vsub.s32 0, %v706
      %v708 = vsel %vm702, %v707, %v706
      %vm709 = vcmp.lt.s32.totalorder %v671, 0
      %v710 = vsub.s32 0, %v671
      %v711 = vsel %vm709, %v710, %v671
      %v712 = vshrl.u32 %v711, 4
      %v713 = vand.u32 %v711, 15
      %v714 = vsub.s32 0, %v713
      %v715 = vsel %vm709, %v714, %v713
      %vm716 = vcmp.lt.s32.totalorder %v672, 0
      %v717 = vsub.s32 0, %v672
      %v718 = vsel %vm716, %v717, %v672
      %v719 = vshrl.u32 %v718, 4
      %v720 = vand.u32 %v718, 15
      %v721 = vsub.s32 0, %v720
      %v722 = vsel %vm716, %v721, %v720
      %vm723 = vcmp.lt.s32.totalorder %v673, 0
      %v724 = vsub.s32 0, %v673
      %v725 = vsel %vm723, %v724, %v673
      %v726 = vshrl.u32 %v725, 4
      %v727 = vand.u32 %v725, 15
      %v728 = vsub.s32 0, %v727
      %v729 = vsel %vm723, %v728, %v727
      %vm730 = vcmp.lt.s32.totalorder %v674, 0
      %v731 = vsub.s32 0, %v674
      %v732 = vsel %vm730, %v731, %v674
      %v733 = vshrl.u32 %v732, 4
      %v734 = vand.u32 %v732, 15
      %v735 = vsub.s32 0, %v734
      %v736 = vsel %vm730, %v735, %v734
      %vm737 = vcmp.lt.s32.totalorder %v675, 0
      %v738 = vsub.s32 0, %v675
      %v739 = vsel %vm737, %v738, %v675
      %v740 = vshrl.u32 %v739, 4
      %v741 = vand.u32 %v739, 15
      %v742 = vsub.s32 0, %v741
      %v743 = vsel %vm737, %v742, %v741
      %vm744 = vcmp.lt.s32.totalorder %v676, 0
      %v745 = vsub.s32 0, %v676
      %v746 = vsel %vm744, %v745, %v676
      %v747 = vshrl.u32 %v746, 4
      %v748 = vand.u32 %v746, 15
      %v749 = vsub.s32 0, %v748
      %v750 = vsel %vm744, %v749, %v748
      %vm751 = vcmp.lt.s32.totalorder %v677, 0
      %v752 = vsub.s32 0, %v677
      %v753 = vsel %vm751, %v752, %v677
      %v754 = vshrl.u32 %v753, 4
      %v755 = vand.u32 %v753, 15
      %v756 = vsub.s32 0, %v755
      %v757 = vsel %vm751, %v756, %v755
      %vm758 = vcmp.lt.s32.totalorder %v678, 0
      %v759 = vsub.s32 0, %v678
      %v760 = vsel %vm758, %v759, %v678
      %v761 = vshrl.u32 %v760, 4
      %v762 = vand.u32 %v760, 15
      %v763 = vsub.s32 0, %v762
      %v764 = vsel %vm758, %v763, %v762
      %vm765 = vcmp.lt.s32.totalorder %v679, 0
      %v766 = vsub.s32 0, %v679
      %v767 = vsel %vm765, %v766, %v679
      %v768 = vshrl.u32 %v767, 4
      %v769 = vand.u32 %v767, 15
      %v770 = vsub.s32 0, %v769
      %v771 = vsel %vm765, %v770, %v769
      %vm772 = vcmp.lt.s32.totalorder %v680, 0
      %v773 = vsub.s32 0, %v680
      %v774 = vsel %vm772, %v773, %v680
      %v775 = vshrl.u32 %v774, 4
      %v776 = vand.u32 %v774, 15
      %v777 = vsub.s32 0, %v776
      %v778 = vsel %vm772, %v777, %v776
      %vm779 = vcmp.lt.s32.totalorder %v681, 0
      %v780 = vsub.s32 0, %v681
      %v781 = vsel %vm779, %v780, %v681
      %v782 = vshrl.u32 %v781, 4
      %v783 = vand.u32 %v781, 15
      %v784 = vsub.s32 0, %v783
      %v785 = vsel %vm779, %v784, %v783
      %vm786 = vcmp.lt.s32.totalorder %v682, 0
      %v787 = vsub.s32 0, %v682
      %v788 = vsel %vm786, %v787, %v682
      %v789 = vshrl.u32 %v788, 4
      %v790 = vand.u32 %v788, 15
      %v791 = vsub.s32 0, %v790
      %v792 = vsel %vm786, %v791, %v790
      %vm793 = vcmp.lt.s32.totalorder %v683, 0
      %v794 = vsub.s32 0, %v683
      %v795 = vsel %vm793, %v794, %v683
      %v796 = vshrl.u32 %v795, 4
      %v797 = vand.u32 %v795, 15
      %v798 = vsub.s32 0, %v797
      %v799 = vsel %vm793, %v798, %v797
      %vm800 = vcmp.lt.s32.totalorder %v684, 0
      %v801 = vsub.s32 0, %v684
      %v802 = vsel %vm800, %v801, %v684
      %v803 = vshrl.u32 %v802, 4
      %v804 = vand.u32 %v802, 15
      %v805 = vsub.s32 0, %v804
      %v806 = vsel %vm800, %v805, %v804
      %vm807 = vcmp.lt.s32.totalorder %v685, 0
      %v808 = vsub.s32 0, %v685
      %v809 = vsel %vm807, %v808, %v685
      %v810 = vshrl.u32 %v809, 4
      %v811 = vand.u32 %v809, 15
      %v812 = vsub.s32 0, %v811
      %v813 = vsel %vm807, %v812, %v811
      %vm814 = vcmp.lt.s32.totalorder %v686, 0
      %v815 = vsub.s32 0, %v686
      %v816 = vsel %vm814, %v815, %v686
      %v817 = vshrl.u32 %v816, 4
      %v818 = vand.u32 %v816, 15
      %v819 = vsub.s32 0, %v818
      %v820 = vsel %vm814, %v819, %v818
      %vm821 = vcmp.lt.s32.totalorder %v687, 0
      %v822 = vsub.s32 0, %v687
      %v823 = vsel %vm821, %v822, %v687
      %v824 = vshrl.u32 %v823, 4
      %v825 = vand.u32 %v823, 15
      %v826 = vsub.s32 0, %v825
      %v827 = vsel %vm821, %v826, %v825
      %vm828 = vcmp.ne.s32.totalorder %v694, 0
      %vm829 = vcmp.ne.s32.totalorder %v701, 0
      %vm830 = vcmp.ne.s32.totalorder %v708, 0
      %vm831 = vcmp.ne.s32.totalorder %v715, 0
      %vm832 = vcmp.ne.s32.totalorder %v722, 0
      %vm833 = vcmp.ne.s32.totalorder %v729, 0
      %vm834 = vcmp.ne.s32.totalorder %v736, 0
      %vm835 = vcmp.ne.s32.totalorder %v743, 0
      %vm836 = vcmp.ne.s32.totalorder %v750, 0
      %vm837 = vcmp.ne.s32.totalorder %v757, 0
      %vm838 = vcmp.ne.s32.totalorder %v764, 0
      %vm839 = vcmp.ne.s32.totalorder %v771, 0
      %vm840 = vcmp.ne.s32.totalorder %v778, 0
      %vm841 = vcmp.ne.s32.totalorder %v785, 0
      %vm842 = vcmp.ne.s32.totalorder %v792, 0
      %vm843 = vcmp.ne.s32.totalorder %v799, 0
      %vm844 = vcmp.ne.s32.totalorder %v806, 0
      %vm845 = vcmp.ne.s32.totalorder %v813, 0
      %vm846 = vcmp.ne.s32.totalorder %v820, 0
      %vm847 = vcmp.ne.s32.totalorder %v827, 0
      %vm848 = vcmp.lt.s32.totalorder %v694, 0
      %vm849 = vcmp.lt.s32.totalorder %v701, 0
      %vm850 = vcmp.lt.s32.totalorder %v708, 0
      %vm851 = vcmp.lt.s32.totalorder %v715, 0
      %vm852 = vcmp.lt.s32.totalorder %v722, 0
      %vm853 = vcmp.lt.s32.totalorder %v729, 0
      %vm854 = vcmp.lt.s32.totalorder %v736, 0
      %vm855 = vcmp.lt.s32.totalorder %v743, 0
      %vm856 = vcmp.lt.s32.totalorder %v750, 0
      %vm857 = vcmp.lt.s32.totalorder %v757, 0
      %vm858 = vcmp.lt.s32.totalorder %v764, 0
      %vm859 = vcmp.lt.s32.totalorder %v771, 0
      %vm860 = vcmp.lt.s32.totalorder %v778, 0
      %vm861 = vcmp.lt.s32.totalorder %v785, 0
      %vm862 = vcmp.lt.s32.totalorder %v792, 0
      %vm863 = vcmp.lt.s32.totalorder %v799, 0
      %vm864 = vcmp.lt.s32.totalorder %v806, 0
      %vm865 = vcmp.lt.s32.totalorder %v813, 0
      %vm866 = vcmp.lt.s32.totalorder %v820, 0
      %vm867 = vcmp.lt.s32.totalorder %v827, 0
      %vm868 = vmand %vm848, %vm828
      %vm869 = vmand %vm849, %vm829
      %vm870 = vmand %vm850, %vm830
      %vm871 = vmand %vm851, %vm831
      %vm872 = vmand %vm852, %vm832
      %vm873 = vmand %vm853, %vm833
      %vm874 = vmand %vm854, %vm834
      %vm875 = vmand %vm855, %vm835
      %vm876 = vmand %vm856, %vm836
      %vm877 = vmand %vm857, %vm837
      %vm878 = vmand %vm858, %vm838
      %vm879 = vmand %vm859, %vm839
      %vm880 = vmand %vm860, %vm840
      %vm881 = vmand %vm861, %vm841
      %vm882 = vmand %vm862, %vm842
      %vm883 = vmand %vm863, %vm843
      %vm884 = vmand %vm864, %vm844
      %vm885 = vmand %vm865, %vm845
      %vm886 = vmand %vm866, %vm846
      %vm887 = vmand %vm867, %vm847
      %v888 = vadd.s32 %v694, 16
      %v889 = vadd.s32 %v701, 16
      %v890 = vadd.s32 %v708, 16
      %v891 = vadd.s32 %v715, 16
      %v892 = vadd.s32 %v722, 16
      %v893 = vadd.s32 %v729, 16
      %v894 = vadd.s32 %v736, 16
      %v895 = vadd.s32 %v743, 16
      %v896 = vadd.s32 %v750, 16
      %v897 = vadd.s32 %v757, 16
      %v898 = vadd.s32 %v764, 16
      %v899 = vadd.s32 %v771, 16
      %v900 = vadd.s32 %v778, 16
      %v901 = vadd.s32 %v785, 16
      %v902 = vadd.s32 %v792, 16
      %v903 = vadd.s32 %v799, 16
      %v904 = vadd.s32 %v806, 16
      %v905 = vadd.s32 %v813, 16
      %v906 = vadd.s32 %v820, 16
      %v907 = vadd.s32 %v827, 16
      %v908 = vsel %vm868, %v888, %v694
      %v909 = vsel %vm869, %v889, %v701
      %v910 = vsel %vm870, %v890, %v708
      %v911 = vsel %vm871, %v891, %v715
      %v912 = vsel %vm872, %v892, %v722
      %v913 = vsel %vm873, %v893, %v729
      %v914 = vsel %vm874, %v894, %v736
      %v915 = vsel %vm875, %v895, %v743
      %v916 = vsel %vm876, %v896, %v750
      %v917 = vsel %vm877, %v897, %v757
      %v918 = vsel %vm878, %v898, %v764
      %v919 = vsel %vm879, %v899, %v771
      %v920 = vsel %vm880, %v900, %v778
      %v921 = vsel %vm881, %v901, %v785
      %v922 = vsel %vm882, %v902, %v792
      %v923 = vsel %vm883, %v903, %v799
      %v924 = vsel %vm884, %v904, %v806
      %v925 = vsel %vm885, %v905, %v813
      %v926 = vsel %vm886, %v906, %v820
      %v927 = vsel %vm887, %v907, %v827
      %vm928 = vcmp.ne.s32.totalorder %v908, 0
      %vm929 = vcmp.ne.s32.totalorder %v909, 0
      %vm930 = vcmp.ne.s32.totalorder %v910, 0
      %vm931 = vcmp.ne.s32.totalorder %v911, 0
      %vm932 = vcmp.ne.s32.totalorder %v912, 0
      %vm933 = vcmp.ne.s32.totalorder %v913, 0
      %vm934 = vcmp.ne.s32.totalorder %v914, 0
      %vm935 = vcmp.ne.s32.totalorder %v915, 0
      %vm936 = vcmp.ne.s32.totalorder %v916, 0
      %vm937 = vcmp.ne.s32.totalorder %v917, 0
      %vm938 = vcmp.ne.s32.totalorder %v918, 0
      %vm939 = vcmp.ne.s32.totalorder %v919, 0
      %vm940 = vcmp.ne.s32.totalorder %v920, 0
      %vm941 = vcmp.ne.s32.totalorder %v921, 0
      %vm942 = vcmp.ne.s32.totalorder %v922, 0
      %vm943 = vcmp.ne.s32.totalorder %v923, 0
      %vm944 = vcmp.ne.s32.totalorder %v924, 0
      %vm945 = vcmp.ne.s32.totalorder %v925, 0
      %vm946 = vcmp.ne.s32.totalorder %v926, 0
      %vm947 = vcmp.ne.s32.totalorder %v927, 0
      %vm948 = vcmp.ne.s32.totalorder %v908, 15
      %vm949 = vcmp.ne.s32.totalorder %v909, 15
      %vm950 = vcmp.ne.s32.totalorder %v910, 15
      %vm951 = vcmp.ne.s32.totalorder %v911, 15
      %vm952 = vcmp.ne.s32.totalorder %v912, 15
      %vm953 = vcmp.ne.s32.totalorder %v913, 15
      %vm954 = vcmp.ne.s32.totalorder %v914, 15
      %vm955 = vcmp.ne.s32.totalorder %v915, 15
      %vm956 = vcmp.ne.s32.totalorder %v916, 15
      %vm957 = vcmp.ne.s32.totalorder %v917, 15
      %vm958 = vcmp.ne.s32.totalorder %v918, 15
      %vm959 = vcmp.ne.s32.totalorder %v919, 15
      %vm960 = vcmp.ne.s32.totalorder %v920, 15
      %vm961 = vcmp.ne.s32.totalorder %v921, 15
      %vm962 = vcmp.ne.s32.totalorder %v922, 15
      %vm963 = vcmp.ne.s32.totalorder %v923, 15
      %vm964 = vcmp.ne.s32.totalorder %v924, 15
      %vm965 = vcmp.ne.s32.totalorder %v925, 15
      %vm966 = vcmp.ne.s32.totalorder %v926, 15
      %vm967 = vcmp.ne.s32.totalorder %v927, 15
      %p968 = scmp.gt.s32.totalorder %s25, 0
      %s969 = scalar_select %p968, 1, 0
      %s970 = scvt.s32.f32 %s969
      %p972 = scmp.ne.f32.partialorder %s970, %s970
      %s973 = sshrl.u32 %s970, 16
      %s974 = sand.u32 %s973, 1
      %s975 = sadd.s32 32767, %s974
      %s976 = sadd.s32 %s970, %s975
      %s977 = sand.u32 %s976, 4294901760
      %s978 = scalar_select %p972, 2143289344, %s977
      %s980 = sshrl.u32 %s978, 16
      %p981 = scmp.lt.s32.totalorder %s25, 1
      %s982 = scalar_select %p981, 1, 0
      %s983 = scvt.s32.f32 %s982
      %p985 = scmp.ne.f32.partialorder %s983, %s983
      %s986 = sshrl.u32 %s983, 16
      %s987 = sand.u32 %s986, 1
      %s988 = sadd.s32 32767, %s987
      %s989 = sadd.s32 %s983, %s988
      %s990 = sand.u32 %s989, 4294901760
      %s991 = scalar_select %p985, 2143289344, %s990
      %s993 = sshrl.u32 %s991, 16
      %vm994 = vcmask 27648
      %995 = vst.msk [vmem:[#allocation2] sm:$0xf] %vm994, 0
      %996 = vst.msk [vmem:[#allocation2 + $0x4] sm:$0xf] %vm994, 0
      %997 = vst.msk [vmem:[#allocation2 + $0x58] sm:$0xf] %vm994, 0
      %998 = vst.msk [vmem:[#allocation2 + $0x5c] sm:$0xf] %vm994, 0
      %v999 = vld [vmem:[%s575] sm:$0xf]
      %v1000 = vld [vmem:[%s575 + $0x4] sm:$0xf]
      %s1001 = sshll.u32 %s980, 16
      %s1002 = sor.u32 %s980, %s1001
      %v1003 = vstv %s1002
      %v1005 = vunpack.c.l.bf16 %v999
      %v1006 = vunpack.c.l.bf16 %v1000
      %v1007 = vunpack.c.l.bf16 %v1003
      %v1008 = vmul.f32 %v1005, %v1007
      %v1009 = vmul.f32 %v1006, %v1007
      %v1010 = vpack.c.bf16 %v1008, %v1008
      %v1011 = vpack.c.bf16 %v1009, %v1009
      %1012 = vst.msk [vmem:[#allocation2 + $0x8] sm:$0xf] %vm994, %v1010
      %1013 = vst.msk [vmem:[#allocation2 + $0xc] sm:$0xf] %vm994, %v1011
      %v1014 = vld [vmem:[%s589] sm:$0xf]
      %v1015 = vld [vmem:[%s589 + $0x4] sm:$0xf]
      %v1016 = vld [vmem:[%s589 + $0x8] sm:$0xf]
      %v1017 = vld [vmem:[%s589 + $0xc] sm:$0xf]
      %v1018 = vld [vmem:[%s589 + $0x10] sm:$0xf]
      %v1019 = vld [vmem:[%s589 + $0x14] sm:$0xf]
      %v1020 = vld [vmem:[%s589 + $0x18] sm:$0xf]
      %v1021 = vld [vmem:[%s589 + $0x1c] sm:$0xf]
      %v1022 = vld [vmem:[%s589 + $0x20] sm:$0xf]
      %v1023 = vld [vmem:[%s589 + $0x24] sm:$0xf]
      %v1024 = vld [vmem:[%s589 + $0x28] sm:$0xf]
      %v1025 = vld [vmem:[%s589 + $0x2c] sm:$0xf]
      %v1026 = vld [vmem:[%s589 + $0x30] sm:$0xf]
      %v1027 = vld [vmem:[%s589 + $0x34] sm:$0xf]
      %v1028 = vld [vmem:[%s589 + $0x38] sm:$0xf]
      %v1029 = vld [vmem:[%s589 + $0x3c] sm:$0xf]
      %1030 = vst.msk [vmem:[#allocation2 + $0x10] sm:$0xf] %vm994, %v1014
      %1031 = vst.msk [vmem:[#allocation2 + $0x14] sm:$0xf] %vm994, %v1015
      %1032 = vst.msk [vmem:[#allocation2 + $0x18] sm:$0xf] %vm994, %v1016
      %1033 = vst.msk [vmem:[#allocation2 + $0x1c] sm:$0xf] %vm994, %v1017
      %1034 = vst.msk [vmem:[#allocation2 + $0x20] sm:$0xf] %vm994, %v1018
      %1035 = vst.msk [vmem:[#allocation2 + $0x24] sm:$0xf] %vm994, %v1019
      %1036 = vst.msk [vmem:[#allocation2 + $0x28] sm:$0xf] %vm994, %v1020
      %1037 = vst.msk [vmem:[#allocation2 + $0x2c] sm:$0xf] %vm994, %v1021
      %1038 = vst.msk [vmem:[#allocation2 + $0x30] sm:$0xf] %vm994, %v1022
      %1039 = vst.msk [vmem:[#allocation2 + $0x34] sm:$0xf] %vm994, %v1023
      %1040 = vst.msk [vmem:[#allocation2 + $0x38] sm:$0xf] %vm994, %v1024
      %1041 = vst.msk [vmem:[#allocation2 + $0x3c] sm:$0xf] %vm994, %v1025
      %1042 = vst.msk [vmem:[#allocation2 + $0x40] sm:$0xf] %vm994, %v1026
      %1043 = vst.msk [vmem:[#allocation2 + $0x44] sm:$0xf] %vm994, %v1027
      %1044 = vst.msk [vmem:[#allocation2 + $0x48] sm:$0xf] %vm994, %v1028
      %1045 = vst.msk [vmem:[#allocation2 + $0x4c] sm:$0xf] %vm994, %v1029
      %v1046 = vld [vmem:[%s603] sm:$0xf]
      %v1047 = vld [vmem:[%s603 + $0x4] sm:$0xf]
      %s1048 = sshll.u32 %s993, 16
      %s1049 = sor.u32 %s993, %s1048
      %v1050 = vstv %s1049
      %v1052 = vunpack.c.l.bf16 %v1046
      %v1053 = vunpack.c.l.bf16 %v1047
      %v1054 = vunpack.c.l.bf16 %v1050
      %v1055 = vmul.f32 %v1052, %v1054
      %v1056 = vmul.f32 %v1053, %v1054
      %v1057 = vpack.c.bf16 %v1055, %v1055
      %v1058 = vpack.c.bf16 %v1056, %v1056
      %1059 = vst.msk [vmem:[#allocation2 + $0x50] sm:$0xf] %vm994, %v1057
      %1060 = vst.msk [vmem:[#allocation2 + $0x54] sm:$0xf] %vm994, %v1058
      %v1061 = vld [vmem:[#allocation2 + $0x8] sm:$0xf]
      %v1062 = vld [vmem:[#allocation2 + $0xc] sm:$0xf]
      %v1063 = vld [vmem:[#allocation2 + $0x10] sm:$0xf]
      %v1064 = vld [vmem:[#allocation2 + $0x14] sm:$0xf]
      %v1065 = vld [vmem:[#allocation2 + $0x18] sm:$0xf]
      %v1066 = vld [vmem:[#allocation2 + $0x1c] sm:$0xf]
      %v1067 = vld [vmem:[#allocation2 + $0x20] sm:$0xf]
      %v1068 = vld [vmem:[#allocation2 + $0x24] sm:$0xf]
      %v1069 = vld [vmem:[#allocation2 + $0x28] sm:$0xf]
      %v1070 = vld [vmem:[#allocation2 + $0x2c] sm:$0xf]
      %v1071 = vld [vmem:[#allocation2 + $0x30] sm:$0xf]
      %v1072 = vld [vmem:[#allocation2 + $0x34] sm:$0xf]
      %v1073 = vld [vmem:[#allocation2 + $0x38] sm:$0xf]
      %v1074 = vld [vmem:[#allocation2 + $0x3c] sm:$0xf]
      %v1075 = vld [vmem:[#allocation2 + $0x40] sm:$0xf]
      %v1076 = vld [vmem:[#allocation2 + $0x44] sm:$0xf]
      %v1077 = vld [vmem:[#allocation2 + $0x48] sm:$0xf]
      %v1078 = vld [vmem:[#allocation2 + $0x4c] sm:$0xf]
      %v1079 = vld [vmem:[#allocation2 + $0x50] sm:$0xf]
      %v1080 = vld [vmem:[#allocation2 + $0x54] sm:$0xf]
      %v1081 = vld [vmem:[#allocation2 + $0x4] sm:$0x8]
      %v1082 = vsel %vm928, 1, 0
      %v1083 = vsel %vm929, 1, 0
      %v1084 = vsel %vm930, 1, 0
      %v1085 = vsel %vm931, 1, 0
      %v1086 = vsel %vm932, 1, 0
      %v1087 = vsel %vm933, 1, 0
      %v1088 = vsel %vm934, 1, 0
      %v1089 = vsel %vm935, 1, 0
      %v1090 = vsel %vm936, 1, 0
      %v1091 = vsel %vm937, 1, 0
      %v1092 = vsel %vm938, 1, 0
      %v1093 = vsel %vm939, 1, 0
      %v1094 = vsel %vm940, 1, 0
      %v1095 = vsel %vm941, 1, 0
      %v1096 = vsel %vm942, 1, 0
      %v1097 = vsel %vm943, 1, 0
      %v1098 = vsel %vm944, 1, 0
      %v1099 = vsel %vm945, 1, 0
      %v1100 = vsel %vm946, 1, 0
      %v1101 = vsel %vm947, 1, 0
      %vm1102 = vcmp.eq.s32.totalorder %v1082, 1
      %vm1103 = vcmp.eq.s32.totalorder %v1083, 1
      %vm1104 = vcmp.eq.s32.totalorder %v1084, 1
      %vm1105 = vcmp.eq.s32.totalorder %v1085, 1
      %vm1106 = vcmp.eq.s32.totalorder %v1086, 1
      %vm1107 = vcmp.eq.s32.totalorder %v1087, 1
      %vm1108 = vcmp.eq.s32.totalorder %v1088, 1
      %vm1109 = vcmp.eq.s32.totalorder %v1089, 1
      %vm1110 = vcmp.eq.s32.totalorder %v1090, 1
      %vm1111 = vcmp.eq.s32.totalorder %v1091, 1
      %vm1112 = vcmp.eq.s32.totalorder %v1092, 1
      %vm1113 = vcmp.eq.s32.totalorder %v1093, 1
      %vm1114 = vcmp.eq.s32.totalorder %v1094, 1
      %vm1115 = vcmp.eq.s32.totalorder %v1095, 1
      %vm1116 = vcmp.eq.s32.totalorder %v1096, 1
      %vm1117 = vcmp.eq.s32.totalorder %v1097, 1
      %vm1118 = vcmp.eq.s32.totalorder %v1098, 1
      %vm1119 = vcmp.eq.s32.totalorder %v1099, 1
      %vm1120 = vcmp.eq.s32.totalorder %v1100, 1
      %vm1121 = vcmp.eq.s32.totalorder %v1101, 1
      %vm1122 = vmpackc.low %vm1102, %vm1102
      %vm1123 = vmpackc.low %vm1103, %vm1103
      %vm1124 = vmpackc.low %vm1104, %vm1104
      %vm1125 = vmpackc.low %vm1105, %vm1105
      %vm1126 = vmpackc.low %vm1106, %vm1106
      %vm1127 = vmpackc.low %vm1107, %vm1107
      %vm1128 = vmpackc.low %vm1108, %vm1108
      %vm1129 = vmpackc.low %vm1109, %vm1109
      %vm1130 = vmpackc.low %vm1110, %vm1110
      %vm1131 = vmpackc.low %vm1111, %vm1111
      %vm1132 = vmpackc.low %vm1112, %vm1112
      %vm1133 = vmpackc.low %vm1113, %vm1113
      %vm1134 = vmpackc.low %vm1114, %vm1114
      %vm1135 = vmpackc.low %vm1115, %vm1115
      %vm1136 = vmpackc.low %vm1116, %vm1116
      %vm1137 = vmpackc.low %vm1117, %vm1117
      %vm1138 = vmpackc.low %vm1118, %vm1118
      %vm1139 = vmpackc.low %vm1119, %vm1119
      %vm1140 = vmpackc.low %vm1120, %vm1120
      %vm1141 = vmpackc.low %vm1121, %vm1121
      %v1142 = vsel %vm1122, 65537, 0
      %v1143 = vsel %vm1123, 65537, 0
      %v1144 = vsel %vm1124, 65537, 0
      %v1145 = vsel %vm1125, 65537, 0
      %v1146 = vsel %vm1126, 65537, 0
      %v1147 = vsel %vm1127, 65537, 0
      %v1148 = vsel %vm1128, 65537, 0
      %v1149 = vsel %vm1129, 65537, 0
      %v1150 = vsel %vm1130, 65537, 0
      %v1151 = vsel %vm1131, 65537, 0
      %v1152 = vsel %vm1132, 65537, 0
      %v1153 = vsel %vm1133, 65537, 0
      %v1154 = vsel %vm1134, 65537, 0
      %v1155 = vsel %vm1135, 65537, 0
      %v1156 = vsel %vm1136, 65537, 0
      %v1157 = vsel %vm1137, 65537, 0
      %v1158 = vsel %vm1138, 65537, 0
      %v1159 = vsel %vm1139, 65537, 0
      %v1160 = vsel %vm1140, 65537, 0
      %v1161 = vsel %vm1141, 65537, 0
      %vm1162 = vsmask.f32 3328
      %vm1163 = vsmask.f32 7440
      %vm1164 = vmor %vm1162, %vm1163
      %v1166 = vshll.u32 %v1142, 16
      %v1168 = vrot.slane %v1166, 5
      %v1169 = vshrl.u32 %v1142, 16
      %v1171 = vrot.slane %v1169, 4
      %v1172 = vor.u32 %v1171, %v1168
      %v1173 = vrot.slane %v1172, 4
      %v1175 = vshll.u32 %v1143, 16
      %v1177 = vrot.slane %v1175, 5
      %v1178 = vsel %vm1164, %v1173, %v1177
      %v1179 = vshrl.u32 %v1143, 16
      %v1181 = vrot.slane %v1179, 4
      %v1182 = vor.u32 %v1181, %v1177
      %v1183 = vrot.slane %v1182, 4
      %v1185 = vshll.u32 %v1144, 16
      %v1187 = vrot.slane %v1185, 5
      %v1188 = vsel %vm1164, %v1183, %v1187
      %v1189 = vshrl.u32 %v1144, 16
      %v1191 = vrot.slane %v1189, 4
      %v1192 = vor.u32 %v1191, %v1187
      %v1193 = vrot.slane %v1192, 4
      %v1195 = vshll.u32 %v1145, 16
      %v1197 = vrot.slane %v1195, 5
      %v1198 = vsel %vm1164, %v1193, %v1197
      %v1199 = vshrl.u32 %v1145, 16
      %v1201 = vrot.slane %v1199, 4
      %v1202 = vor.u32 %v1201, %v1197
      %v1203 = vrot.slane %v1202, 4
      %v1205 = vshll.u32 %v1146, 16
      %v1207 = vrot.slane %v1205, 5
      %v1208 = vsel %vm1164, %v1203, %v1207
      %v1209 = vshrl.u32 %v1146, 16
      %v1211 = vrot.slane %v1209, 4
      %v1212 = vor.u32 %v1211, %v1207
      %v1213 = vrot.slane %v1212, 4
      %v1215 = vshll.u32 %v1147, 16
      %v1217 = vrot.slane %v1215, 5
      %v1218 = vsel %vm1164, %v1213, %v1217
      %v1219 = vshrl.u32 %v1147, 16
      %v1221 = vrot.slane %v1219, 4
      %v1222 = vor.u32 %v1221, %v1217
      %v1223 = vrot.slane %v1222, 4
      %v1225 = vshll.u32 %v1148, 16
      %v1227 = vrot.slane %v1225, 5
      %v1228 = vsel %vm1164, %v1223, %v1227
      %v1229 = vshrl.u32 %v1148, 16
      %v1231 = vrot.slane %v1229, 4
      %v1232 = vor.u32 %v1231, %v1227
      %v1233 = vrot.slane %v1232, 4
      %v1235 = vshll.u32 %v1149, 16
      %v1237 = vrot.slane %v1235, 5
      %v1238 = vsel %vm1164, %v1233, %v1237
      %v1239 = vshrl.u32 %v1149, 16
      %v1241 = vrot.slane %v1239, 4
      %v1242 = vor.u32 %v1241, %v1237
      %v1243 = vrot.slane %v1242, 4
      %v1245 = vshll.u32 %v1150, 16
      %v1247 = vrot.slane %v1245, 5
      %v1248 = vsel %vm1164, %v1243, %v1247
      %v1249 = vshrl.u32 %v1150, 16
      %v1251 = vrot.slane %v1249, 4
      %v1252 = vor.u32 %v1251, %v1247
      %v1253 = vrot.slane %v1252, 4
      %v1255 = vshll.u32 %v1151, 16
      %v1257 = vrot.slane %v1255, 5
      %v1258 = vsel %vm1164, %v1253, %v1257
      %v1259 = vshrl.u32 %v1151, 16
      %v1261 = vrot.slane %v1259, 4
      %v1262 = vor.u32 %v1261, %v1257
      %v1263 = vrot.slane %v1262, 4
      %v1265 = vshll.u32 %v1152, 16
      %v1267 = vrot.slane %v1265, 5
      %v1268 = vsel %vm1164, %v1263, %v1267
      %v1269 = vshrl.u32 %v1152, 16
      %v1271 = vrot.slane %v1269, 4
      %v1272 = vor.u32 %v1271, %v1267
      %v1273 = vrot.slane %v1272, 4
      %v1275 = vshll.u32 %v1153, 16
      %v1277 = vrot.slane %v1275, 5
      %v1278 = vsel %vm1164, %v1273, %v1277
      %v1279 = vshrl.u32 %v1153, 16
      %v1281 = vrot.slane %v1279, 4
      %v1282 = vor.u32 %v1281, %v1277
      %v1283 = vrot.slane %v1282, 4
      %v1285 = vshll.u32 %v1154, 16
      %v1287 = vrot.slane %v1285, 5
      %v1288 = vsel %vm1164, %v1283, %v1287
      %v1289 = vshrl.u32 %v1154, 16
      %v1291 = vrot.slane %v1289, 4
      %v1292 = vor.u32 %v1291, %v1287
      %v1293 = vrot.slane %v1292, 4
      %v1295 = vshll.u32 %v1155, 16
      %v1297 = vrot.slane %v1295, 5
      %v1298 = vsel %vm1164, %v1293, %v1297
      %v1299 = vshrl.u32 %v1155, 16
      %v1301 = vrot.slane %v1299, 4
      %v1302 = vor.u32 %v1301, %v1297
      %v1303 = vrot.slane %v1302, 4
      %v1305 = vshll.u32 %v1156, 16
      %v1307 = vrot.slane %v1305, 5
      %v1308 = vsel %vm1164, %v1303, %v1307
      %v1309 = vshrl.u32 %v1156, 16
      %v1311 = vrot.slane %v1309, 4
      %v1312 = vor.u32 %v1311, %v1307
      %v1313 = vrot.slane %v1312, 4
      %v1315 = vshll.u32 %v1157, 16
      %v1317 = vrot.slane %v1315, 5
      %v1318 = vsel %vm1164, %v1313, %v1317
      %v1319 = vshrl.u32 %v1157, 16
      %v1321 = vrot.slane %v1319, 4
      %v1322 = vor.u32 %v1321, %v1317
      %v1323 = vrot.slane %v1322, 4
      %v1325 = vshll.u32 %v1158, 16
      %v1327 = vrot.slane %v1325, 5
      %v1328 = vsel %vm1164, %v1323, %v1327
      %v1329 = vshrl.u32 %v1158, 16
      %v1331 = vrot.slane %v1329, 4
      %v1332 = vor.u32 %v1331, %v1327
      %v1333 = vrot.slane %v1332, 4
      %v1335 = vshll.u32 %v1159, 16
      %v1337 = vrot.slane %v1335, 5
      %v1338 = vsel %vm1164, %v1333, %v1337
      %v1339 = vshrl.u32 %v1159, 16
      %v1341 = vrot.slane %v1339, 4
      %v1342 = vor.u32 %v1341, %v1337
      %v1343 = vrot.slane %v1342, 4
      %v1345 = vshll.u32 %v1160, 16
      %v1347 = vrot.slane %v1345, 5
      %v1348 = vsel %vm1164, %v1343, %v1347
      %v1349 = vshrl.u32 %v1160, 16
      %v1351 = vrot.slane %v1349, 4
      %v1352 = vor.u32 %v1351, %v1347
      %v1353 = vrot.slane %v1352, 4
      %v1355 = vshll.u32 %v1161, 16
      %v1357 = vrot.slane %v1355, 5
      %v1358 = vsel %vm1164, %v1353, %v1357
      %v1359 = vshrl.u32 %v1161, 16
      %v1361 = vrot.slane %v1359, 4
      %v1362 = vor.u32 %v1361, %v1357
      %v1363 = vrot.slane %v1362, 4
      %v1364 = vunpack.c.l.b16 %v1168
      %v1365 = vunpack.c.h.b16 %v1168
      %v1366 = vunpack.c.l.b16 0
      %v1367 = vunpack.c.h.b16 0
      %vm1368 = vcmp.ne.s32.totalorder %v1364, %v1366
      %vm1369 = vcmp.ne.s32.totalorder %v1365, %v1367
      %vm1370 = vmpackc.low %vm1369, %vm1368
      %v1371 = vunpack.c.l.b16 %v1178
      %v1372 = vunpack.c.h.b16 %v1178
      %v1373 = vunpack.c.l.b16 0
      %v1374 = vunpack.c.h.b16 0
      %vm1375 = vcmp.ne.s32.totalorder %v1371, %v1373
      %vm1376 = vcmp.ne.s32.totalorder %v1372, %v1374
      %vm1377 = vmpackc.low %vm1376, %vm1375
      %v1378 = vunpack.c.l.b16 %v1188
      %v1379 = vunpack.c.h.b16 %v1188
      %v1380 = vunpack.c.l.b16 0
      %v1381 = vunpack.c.h.b16 0
      %vm1382 = vcmp.ne.s32.totalorder %v1378, %v1380
      %vm1383 = vcmp.ne.s32.totalorder %v1379, %v1381
      %vm1384 = vmpackc.low %vm1383, %vm1382
      %v1385 = vunpack.c.l.b16 %v1198
      %v1386 = vunpack.c.h.b16 %v1198
      %v1387 = vunpack.c.l.b16 0
      %v1388 = vunpack.c.h.b16 0
      %vm1389 = vcmp.ne.s32.totalorder %v1385, %v1387
      %vm1390 = vcmp.ne.s32.totalorder %v1386, %v1388
      %vm1391 = vmpackc.low %vm1390, %vm1389
      %v1392 = vunpack.c.l.b16 %v1208
      %v1393 = vunpack.c.h.b16 %v1208
      %v1394 = vunpack.c.l.b16 0
      %v1395 = vunpack.c.h.b16 0
      %vm1396 = vcmp.ne.s32.totalorder %v1392, %v1394
      %vm1397 = vcmp.ne.s32.totalorder %v1393, %v1395
      %vm1398 = vmpackc.low %vm1397, %vm1396
      %v1399 = vunpack.c.l.b16 %v1218
      %v1400 = vunpack.c.h.b16 %v1218
      %v1401 = vunpack.c.l.b16 0
      %v1402 = vunpack.c.h.b16 0
      %vm1403 = vcmp.ne.s32.totalorder %v1399, %v1401
      %vm1404 = vcmp.ne.s32.totalorder %v1400, %v1402
      %vm1405 = vmpackc.low %vm1404, %vm1403
      %v1406 = vunpack.c.l.b16 %v1228
      %v1407 = vunpack.c.h.b16 %v1228
      %v1408 = vunpack.c.l.b16 0
      %v1409 = vunpack.c.h.b16 0
      %vm1410 = vcmp.ne.s32.totalorder %v1406, %v1408
      %vm1411 = vcmp.ne.s32.totalorder %v1407, %v1409
      %vm1412 = vmpackc.low %vm1411, %vm1410
      %v1413 = vunpack.c.l.b16 %v1238
      %v1414 = vunpack.c.h.b16 %v1238
      %v1415 = vunpack.c.l.b16 0
      %v1416 = vunpack.c.h.b16 0
      %vm1417 = vcmp.ne.s32.totalorder %v1413, %v1415
      %vm1418 = vcmp.ne.s32.totalorder %v1414, %v1416
      %vm1419 = vmpackc.low %vm1418, %vm1417
      %v1420 = vunpack.c.l.b16 %v1248
      %v1421 = vunpack.c.h.b16 %v1248
      %v1422 = vunpack.c.l.b16 0
      %v1423 = vunpack.c.h.b16 0
      %vm1424 = vcmp.ne.s32.totalorder %v1420, %v1422
      %vm1425 = vcmp.ne.s32.totalorder %v1421, %v1423
      %vm1426 = vmpackc.low %vm1425, %vm1424
      %v1427 = vunpack.c.l.b16 %v1258
      %v1428 = vunpack.c.h.b16 %v1258
      %v1429 = vunpack.c.l.b16 0
      %v1430 = vunpack.c.h.b16 0
      %vm1431 = vcmp.ne.s32.totalorder %v1427, %v1429
      %vm1432 = vcmp.ne.s32.totalorder %v1428, %v1430
      %vm1433 = vmpackc.low %vm1432, %vm1431
      %v1434 = vunpack.c.l.b16 %v1268
      %v1435 = vunpack.c.h.b16 %v1268
      %v1436 = vunpack.c.l.b16 0
      %v1437 = vunpack.c.h.b16 0
      %vm1438 = vcmp.ne.s32.totalorder %v1434, %v1436
      %vm1439 = vcmp.ne.s32.totalorder %v1435, %v1437
      %vm1440 = vmpackc.low %vm1439, %vm1438
      %v1441 = vunpack.c.l.b16 %v1278
      %v1442 = vunpack.c.h.b16 %v1278
      %v1443 = vunpack.c.l.b16 0
      %v1444 = vunpack.c.h.b16 0
      %vm1445 = vcmp.ne.s32.totalorder %v1441, %v1443
      %vm1446 = vcmp.ne.s32.totalorder %v1442, %v1444
      %vm1447 = vmpackc.low %vm1446, %vm1445
      %v1448 = vunpack.c.l.b16 %v1288
      %v1449 = vunpack.c.h.b16 %v1288
      %v1450 = vunpack.c.l.b16 0
      %v1451 = vunpack.c.h.b16 0
      %vm1452 = vcmp.ne.s32.totalorder %v1448, %v1450
      %vm1453 = vcmp.ne.s32.totalorder %v1449, %v1451
      %vm1454 = vmpackc.low %vm1453, %vm1452
      %v1455 = vunpack.c.l.b16 %v1298
      %v1456 = vunpack.c.h.b16 %v1298
      %v1457 = vunpack.c.l.b16 0
      %v1458 = vunpack.c.h.b16 0
      %vm1459 = vcmp.ne.s32.totalorder %v1455, %v1457
      %vm1460 = vcmp.ne.s32.totalorder %v1456, %v1458
      %vm1461 = vmpackc.low %vm1460, %vm1459
      %v1462 = vunpack.c.l.b16 %v1308
      %v1463 = vunpack.c.h.b16 %v1308
      %v1464 = vunpack.c.l.b16 0
      %v1465 = vunpack.c.h.b16 0
      %vm1466 = vcmp.ne.s32.totalorder %v1462, %v1464
      %vm1467 = vcmp.ne.s32.totalorder %v1463, %v1465
      %vm1468 = vmpackc.low %vm1467, %vm1466
      %v1469 = vunpack.c.l.b16 %v1318
      %v1470 = vunpack.c.h.b16 %v1318
      %v1471 = vunpack.c.l.b16 0
      %v1472 = vunpack.c.h.b16 0
      %vm1473 = vcmp.ne.s32.totalorder %v1469, %v1471
      %vm1474 = vcmp.ne.s32.totalorder %v1470, %v1472
      %vm1475 = vmpackc.low %vm1474, %vm1473
      %v1476 = vunpack.c.l.b16 %v1328
      %v1477 = vunpack.c.h.b16 %v1328
      %v1478 = vunpack.c.l.b16 0
      %v1479 = vunpack.c.h.b16 0
      %vm1480 = vcmp.ne.s32.totalorder %v1476, %v1478
      %vm1481 = vcmp.ne.s32.totalorder %v1477, %v1479
      %vm1482 = vmpackc.low %vm1481, %vm1480
      %v1483 = vunpack.c.l.b16 %v1338
      %v1484 = vunpack.c.h.b16 %v1338
      %v1485 = vunpack.c.l.b16 0
      %v1486 = vunpack.c.h.b16 0
      %vm1487 = vcmp.ne.s32.totalorder %v1483, %v1485
      %vm1488 = vcmp.ne.s32.totalorder %v1484, %v1486
      %vm1489 = vmpackc.low %vm1488, %vm1487
      %v1490 = vunpack.c.l.b16 %v1348
      %v1491 = vunpack.c.h.b16 %v1348
      %v1492 = vunpack.c.l.b16 0
      %v1493 = vunpack.c.h.b16 0
      %vm1494 = vcmp.ne.s32.totalorder %v1490, %v1492
      %vm1495 = vcmp.ne.s32.totalorder %v1491, %v1493
      %vm1496 = vmpackc.low %vm1495, %vm1494
      %v1497 = vunpack.c.l.b16 %v1358
      %v1498 = vunpack.c.h.b16 %v1358
      %v1499 = vunpack.c.l.b16 0
      %v1500 = vunpack.c.h.b16 0
      %vm1501 = vcmp.ne.s32.totalorder %v1497, %v1499
      %vm1502 = vcmp.ne.s32.totalorder %v1498, %v1500
      %vm1503 = vmpackc.low %vm1502, %vm1501
      %v1504 = vunpack.c.l.b16 %v1363
      %v1505 = vunpack.c.h.b16 %v1363
      %v1506 = vunpack.c.l.b16 0
      %v1507 = vunpack.c.h.b16 0
      %vm1508 = vcmp.ne.s32.totalorder %v1504, %v1506
      %vm1509 = vcmp.ne.s32.totalorder %v1505, %v1507
      %vm1510 = vmpackc.low %vm1509, %vm1508
      %v1511 = vsel %vm1370, %v1081, 0
      %v1512 = vsel %vm1377, %v1061, 0
      %v1513 = vsel %vm1384, %v1062, 0
      %v1514 = vsel %vm1391, %v1063, 0
      %v1515 = vsel %vm1398, %v1064, 0
      %v1516 = vsel %vm1405, %v1065, 0
      %v1517 = vsel %vm1412, %v1066, 0
      %v1518 = vsel %vm1419, %v1067, 0
      %v1519 = vsel %vm1426, %v1068, 0
      %v1520 = vsel %vm1433, %v1069, 0
      %v1521 = vsel %vm1440, %v1070, 0
      %v1522 = vsel %vm1447, %v1071, 0
      %v1523 = vsel %vm1454, %v1072, 0
      %v1524 = vsel %vm1461, %v1073, 0
      %v1525 = vsel %vm1468, %v1074, 0
      %v1526 = vsel %vm1475, %v1075, 0
      %v1527 = vsel %vm1482, %v1076, 0
      %v1528 = vsel %vm1489, %v1077, 0
      %v1529 = vsel %vm1496, %v1078, 0
      %v1530 = vsel %vm1503, %v1079, 0
      %v1531 = vsel %vm1510, %v1080, 0
      %v1532 = vld [vmem:[#allocation2 + $0x58] sm:$0x1]
      %v1533 = vsel %vm948, 1, 0
      %v1534 = vsel %vm949, 1, 0
      %v1535 = vsel %vm950, 1, 0
      %v1536 = vsel %vm951, 1, 0
      %v1537 = vsel %vm952, 1, 0
      %v1538 = vsel %vm953, 1, 0
      %v1539 = vsel %vm954, 1, 0
      %v1540 = vsel %vm955, 1, 0
      %v1541 = vsel %vm956, 1, 0
      %v1542 = vsel %vm957, 1, 0
      %v1543 = vsel %vm958, 1, 0
      %v1544 = vsel %vm959, 1, 0
      %v1545 = vsel %vm960, 1, 0
      %v1546 = vsel %vm961, 1, 0
      %v1547 = vsel %vm962, 1, 0
      %v1548 = vsel %vm963, 1, 0
      %v1549 = vsel %vm964, 1, 0
      %v1550 = vsel %vm965, 1, 0
      %v1551 = vsel %vm966, 1, 0
      %v1552 = vsel %vm967, 1, 0
      %vm1553 = vcmp.eq.s32.totalorder %v1533, 1
      %vm1554 = vcmp.eq.s32.totalorder %v1534, 1
      %vm1555 = vcmp.eq.s32.totalorder %v1535, 1
      %vm1556 = vcmp.eq.s32.totalorder %v1536, 1
      %vm1557 = vcmp.eq.s32.totalorder %v1537, 1
      %vm1558 = vcmp.eq.s32.totalorder %v1538, 1
      %vm1559 = vcmp.eq.s32.totalorder %v1539, 1
      %vm1560 = vcmp.eq.s32.totalorder %v1540, 1
      %vm1561 = vcmp.eq.s32.totalorder %v1541, 1
      %vm1562 = vcmp.eq.s32.totalorder %v1542, 1
      %vm1563 = vcmp.eq.s32.totalorder %v1543, 1
      %vm1564 = vcmp.eq.s32.totalorder %v1544, 1
      %vm1565 = vcmp.eq.s32.totalorder %v1545, 1
      %vm1566 = vcmp.eq.s32.totalorder %v1546, 1
      %vm1567 = vcmp.eq.s32.totalorder %v1547, 1
      %vm1568 = vcmp.eq.s32.totalorder %v1548, 1
      %vm1569 = vcmp.eq.s32.totalorder %v1549, 1
      %vm1570 = vcmp.eq.s32.totalorder %v1550, 1
      %vm1571 = vcmp.eq.s32.totalorder %v1551, 1
      %vm1572 = vcmp.eq.s32.totalorder %v1552, 1
      %vm1573 = vmpackc.low %vm1553, %vm1553
      %vm1574 = vmpackc.low %vm1554, %vm1554
      %vm1575 = vmpackc.low %vm1555, %vm1555
      %vm1576 = vmpackc.low %vm1556, %vm1556
      %vm1577 = vmpackc.low %vm1557, %vm1557
      %vm1578 = vmpackc.low %vm1558, %vm1558
      %vm1579 = vmpackc.low %vm1559, %vm1559
      %vm1580 = vmpackc.low %vm1560, %vm1560
      %vm1581 = vmpackc.low %vm1561, %vm1561
      %vm1582 = vmpackc.low %vm1562, %vm1562
      %vm1583 = vmpackc.low %vm1563, %vm1563
      %vm1584 = vmpackc.low %vm1564, %vm1564
      %vm1585 = vmpackc.low %vm1565, %vm1565
      %vm1586 = vmpackc.low %vm1566, %vm1566
      %vm1587 = vmpackc.low %vm1567, %vm1567
      %vm1588 = vmpackc.low %vm1568, %vm1568
      %vm1589 = vmpackc.low %vm1569, %vm1569
      %vm1590 = vmpackc.low %vm1570, %vm1570
      %vm1591 = vmpackc.low %vm1571, %vm1571
      %vm1592 = vmpackc.low %vm1572, %vm1572
      %v1593 = vsel %vm1573, 65537, 0
      %v1594 = vsel %vm1574, 65537, 0
      %v1595 = vsel %vm1575, 65537, 0
      %v1596 = vsel %vm1576, 65537, 0
      %v1597 = vsel %vm1577, 65537, 0
      %v1598 = vsel %vm1578, 65537, 0
      %v1599 = vsel %vm1579, 65537, 0
      %v1600 = vsel %vm1580, 65537, 0
      %v1601 = vsel %vm1581, 65537, 0
      %v1602 = vsel %vm1582, 65537, 0
      %v1603 = vsel %vm1583, 65537, 0
      %v1604 = vsel %vm1584, 65537, 0
      %v1605 = vsel %vm1585, 65537, 0
      %v1606 = vsel %vm1586, 65537, 0
      %v1607 = vsel %vm1587, 65537, 0
      %v1608 = vsel %vm1588, 65537, 0
      %v1609 = vsel %vm1589, 65537, 0
      %v1610 = vsel %vm1590, 65537, 0
      %v1611 = vsel %vm1591, 65537, 0
      %v1612 = vsel %vm1592, 65537, 0
      %vm1613 = vsmask.f32 256
      %vm1614 = vsmask.f32 4368
      %vm1615 = vmor %vm1613, %vm1614
      %v1617 = vshrl.u32 %v1593, 16
      %v1619 = vrot.slane %v1617, 7
      %v1620 = vshll.u32 %v1593, 16
      %v1622 = vor.u32 %v1619, %v1620
      %v1623 = vrot.slane %v1619, 4
      %v1625 = vshrl.u32 %v1594, 16
      %v1627 = vrot.slane %v1625, 7
      %v1628 = vshll.u32 %v1594, 16
      %v1630 = vor.u32 %v1627, %v1628
      %v1631 = vsel %vm1615, %v1623, %v1630
      %v1632 = vrot.slane %v1627, 4
      %v1634 = vshrl.u32 %v1595, 16
      %v1636 = vrot.slane %v1634, 7
      %v1637 = vshll.u32 %v1595, 16
      %v1639 = vor.u32 %v1636, %v1637
      %v1640 = vsel %vm1615, %v1632, %v1639
      %v1641 = vrot.slane %v1636, 4
      %v1643 = vshrl.u32 %v1596, 16
      %v1645 = vrot.slane %v1643, 7
      %v1646 = vshll.u32 %v1596, 16
      %v1648 = vor.u32 %v1645, %v1646
      %v1649 = vsel %vm1615, %v1641, %v1648
      %v1650 = vrot.slane %v1645, 4
      %v1652 = vshrl.u32 %v1597, 16
      %v1654 = vrot.slane %v1652, 7
      %v1655 = vshll.u32 %v1597, 16
      %v1657 = vor.u32 %v1654, %v1655
      %v1658 = vsel %vm1615, %v1650, %v1657
      %v1659 = vrot.slane %v1654, 4
      %v1661 = vshrl.u32 %v1598, 16
      %v1663 = vrot.slane %v1661, 7
      %v1664 = vshll.u32 %v1598, 16
      %v1666 = vor.u32 %v1663, %v1664
      %v1667 = vsel %vm1615, %v1659, %v1666
      %v1668 = vrot.slane %v1663, 4
      %v1670 = vshrl.u32 %v1599, 16
      %v1672 = vrot.slane %v1670, 7
      %v1673 = vshll.u32 %v1599, 16
      %v1675 = vor.u32 %v1672, %v1673
      %v1676 = vsel %vm1615, %v1668, %v1675
      %v1677 = vrot.slane %v1672, 4
      %v1679 = vshrl.u32 %v1600, 16
      %v1681 = vrot.slane %v1679, 7
      %v1682 = vshll.u32 %v1600, 16
      %v1684 = vor.u32 %v1681, %v1682
      %v1685 = vsel %vm1615, %v1677, %v1684
      %v1686 = vrot.slane %v1681, 4
      %v1688 = vshrl.u32 %v1601, 16
      %v1690 = vrot.slane %v1688, 7
      %v1691 = vshll.u32 %v1601, 16
      %v1693 = vor.u32 %v1690, %v1691
      %v1694 = vsel %vm1615, %v1686, %v1693
      %v1695 = vrot.slane %v1690, 4
      %v1697 = vshrl.u32 %v1602, 16
      %v1699 = vrot.slane %v1697, 7
      %v1700 = vshll.u32 %v1602, 16
      %v1702 = vor.u32 %v1699, %v1700
      %v1703 = vsel %vm1615, %v1695, %v1702
      %v1704 = vrot.slane %v1699, 4
      %v1706 = vshrl.u32 %v1603, 16
      %v1708 = vrot.slane %v1706, 7
      %v1709 = vshll.u32 %v1603, 16
      %v1711 = vor.u32 %v1708, %v1709
      %v1712 = vsel %vm1615, %v1704, %v1711
      %v1713 = vrot.slane %v1708, 4
      %v1715 = vshrl.u32 %v1604, 16
      %v1717 = vrot.slane %v1715, 7
      %v1718 = vshll.u32 %v1604, 16
      %v1720 = vor.u32 %v1717, %v1718
      %v1721 = vsel %vm1615, %v1713, %v1720
      %v1722 = vrot.slane %v1717, 4
      %v1724 = vshrl.u32 %v1605, 16
      %v1726 = vrot.slane %v1724, 7
      %v1727 = vshll.u32 %v1605, 16
      %v1729 = vor.u32 %v1726, %v1727
      %v1730 = vsel %vm1615, %v1722, %v1729
      %v1731 = vrot.slane %v1726, 4
      %v1733 = vshrl.u32 %v1606, 16
      %v1735 = vrot.slane %v1733, 7
      %v1736 = vshll.u32 %v1606, 16
      %v1738 = vor.u32 %v1735, %v1736
      %v1739 = vsel %vm1615, %v1731, %v1738
      %v1740 = vrot.slane %v1735, 4
      %v1742 = vshrl.u32 %v1607, 16
      %v1744 = vrot.slane %v1742, 7
      %v1745 = vshll.u32 %v1607, 16
      %v1747 = vor.u32 %v1744, %v1745
      %v1748 = vsel %vm1615, %v1740, %v1747
      %v1749 = vrot.slane %v1744, 4
      %v1751 = vshrl.u32 %v1608, 16
      %v1753 = vrot.slane %v1751, 7
      %v1754 = vshll.u32 %v1608, 16
      %v1756 = vor.u32 %v1753, %v1754
      %v1757 = vsel %vm1615, %v1749, %v1756
      %v1758 = vrot.slane %v1753, 4
      %v1760 = vshrl.u32 %v1609, 16
      %v1762 = vrot.slane %v1760, 7
      %v1763 = vshll.u32 %v1609, 16
      %v1765 = vor.u32 %v1762, %v1763
      %v1766 = vsel %vm1615, %v1758, %v1765
      %v1767 = vrot.slane %v1762, 4
      %v1769 = vshrl.u32 %v1610, 16
      %v1771 = vrot.slane %v1769, 7
      %v1772 = vshll.u32 %v1610, 16
      %v1774 = vor.u32 %v1771, %v1772
      %v1775 = vsel %vm1615, %v1767, %v1774
      %v1776 = vrot.slane %v1771, 4
      %v1778 = vshrl.u32 %v1611, 16
      %v1780 = vrot.slane %v1778, 7
      %v1781 = vshll.u32 %v1611, 16
      %v1783 = vor.u32 %v1780, %v1781
      %v1784 = vsel %vm1615, %v1776, %v1783
      %v1785 = vrot.slane %v1780, 4
      %v1787 = vshrl.u32 %v1612, 16
      %v1789 = vrot.slane %v1787, 7
      %v1790 = vshll.u32 %v1612, 16
      %v1792 = vor.u32 %v1789, %v1790
      %v1793 = vsel %vm1615, %v1785, %v1792
      %v1794 = vrot.slane %v1789, 4
      %v1795 = vunpack.c.l.b16 %v1622
      %v1796 = vunpack.c.h.b16 %v1622
      %v1797 = vunpack.c.l.b16 0
      %v1798 = vunpack.c.h.b16 0
      %vm1799 = vcmp.ne.s32.totalorder %v1795, %v1797
      %vm1800 = vcmp.ne.s32.totalorder %v1796, %v1798
      %vm1801 = vmpackc.low %vm1800, %vm1799
      %v1802 = vunpack.c.l.b16 %v1631
      %v1803 = vunpack.c.h.b16 %v1631
      %v1804 = vunpack.c.l.b16 0
      %v1805 = vunpack.c.h.b16 0
      %vm1806 = vcmp.ne.s32.totalorder %v1802, %v1804
      %vm1807 = vcmp.ne.s32.totalorder %v1803, %v1805
      %vm1808 = vmpackc.low %vm1807, %vm1806
      %v1809 = vunpack.c.l.b16 %v1640
      %v1810 = vunpack.c.h.b16 %v1640
      %v1811 = vunpack.c.l.b16 0
      %v1812 = vunpack.c.h.b16 0
      %vm1813 = vcmp.ne.s32.totalorder %v1809, %v1811
      %vm1814 = vcmp.ne.s32.totalorder %v1810, %v1812
      %vm1815 = vmpackc.low %vm1814, %vm1813
      %v1816 = vunpack.c.l.b16 %v1649
      %v1817 = vunpack.c.h.b16 %v1649
      %v1818 = vunpack.c.l.b16 0
      %v1819 = vunpack.c.h.b16 0
      %vm1820 = vcmp.ne.s32.totalorder %v1816, %v1818
      %vm1821 = vcmp.ne.s32.totalorder %v1817, %v1819
      %vm1822 = vmpackc.low %vm1821, %vm1820
      %v1823 = vunpack.c.l.b16 %v1658
      %v1824 = vunpack.c.h.b16 %v1658
      %v1825 = vunpack.c.l.b16 0
      %v1826 = vunpack.c.h.b16 0
      %vm1827 = vcmp.ne.s32.totalorder %v1823, %v1825
      %vm1828 = vcmp.ne.s32.totalorder %v1824, %v1826
      %vm1829 = vmpackc.low %vm1828, %vm1827
      %v1830 = vunpack.c.l.b16 %v1667
      %v1831 = vunpack.c.h.b16 %v1667
      %v1832 = vunpack.c.l.b16 0
      %v1833 = vunpack.c.h.b16 0
      %vm1834 = vcmp.ne.s32.totalorder %v1830, %v1832
      %vm1835 = vcmp.ne.s32.totalorder %v1831, %v1833
      %vm1836 = vmpackc.low %vm1835, %vm1834
      %v1837 = vunpack.c.l.b16 %v1676
      %v1838 = vunpack.c.h.b16 %v1676
      %v1839 = vunpack.c.l.b16 0
      %v1840 = vunpack.c.h.b16 0
      %vm1841 = vcmp.ne.s32.totalorder %v1837, %v1839
      %vm1842 = vcmp.ne.s32.totalorder %v1838, %v1840
      %vm1843 = vmpackc.low %vm1842, %vm1841
      %v1844 = vunpack.c.l.b16 %v1685
      %v1845 = vunpack.c.h.b16 %v1685
      %v1846 = vunpack.c.l.b16 0
      %v1847 = vunpack.c.h.b16 0
      %vm1848 = vcmp.ne.s32.totalorder %v1844, %v1846
      %vm1849 = vcmp.ne.s32.totalorder %v1845, %v1847
      %vm1850 = vmpackc.low %vm1849, %vm1848
      %v1851 = vunpack.c.l.b16 %v1694
      %v1852 = vunpack.c.h.b16 %v1694
      %v1853 = vunpack.c.l.b16 0
      %v1854 = vunpack.c.h.b16 0
      %vm1855 = vcmp.ne.s32.totalorder %v1851, %v1853
      %vm1856 = vcmp.ne.s32.totalorder %v1852, %v1854
      %vm1857 = vmpackc.low %vm1856, %vm1855
      %v1858 = vunpack.c.l.b16 %v1703
      %v1859 = vunpack.c.h.b16 %v1703
      %v1860 = vunpack.c.l.b16 0
      %v1861 = vunpack.c.h.b16 0
      %vm1862 = vcmp.ne.s32.totalorder %v1858, %v1860
      %vm1863 = vcmp.ne.s32.totalorder %v1859, %v1861
      %vm1864 = vmpackc.low %vm1863, %vm1862
      %v1865 = vunpack.c.l.b16 %v1712
      %v1866 = vunpack.c.h.b16 %v1712
      %v1867 = vunpack.c.l.b16 0
      %v1868 = vunpack.c.h.b16 0
      %vm1869 = vcmp.ne.s32.totalorder %v1865, %v1867
      %vm1870 = vcmp.ne.s32.totalorder %v1866, %v1868
      %vm1871 = vmpackc.low %vm1870, %vm1869
      %v1872 = vunpack.c.l.b16 %v1721
      %v1873 = vunpack.c.h.b16 %v1721
      %v1874 = vunpack.c.l.b16 0
      %v1875 = vunpack.c.h.b16 0
      %vm1876 = vcmp.ne.s32.totalorder %v1872, %v1874
      %vm1877 = vcmp.ne.s32.totalorder %v1873, %v1875
      %vm1878 = vmpackc.low %vm1877, %vm1876
      %v1879 = vunpack.c.l.b16 %v1730
      %v1880 = vunpack.c.h.b16 %v1730
      %v1881 = vunpack.c.l.b16 0
      %v1882 = vunpack.c.h.b16 0
      %vm1883 = vcmp.ne.s32.totalorder %v1879, %v1881
      %vm1884 = vcmp.ne.s32.totalorder %v1880, %v1882
      %vm1885 = vmpackc.low %vm1884, %vm1883
      %v1886 = vunpack.c.l.b16 %v1739
      %v1887 = vunpack.c.h.b16 %v1739
      %v1888 = vunpack.c.l.b16 0
      %v1889 = vunpack.c.h.b16 0
      %vm1890 = vcmp.ne.s32.totalorder %v1886, %v1888
      %vm1891 = vcmp.ne.s32.totalorder %v1887, %v1889
      %vm1892 = vmpackc.low %vm1891, %vm1890
      %v1893 = vunpack.c.l.b16 %v1748
      %v1894 = vunpack.c.h.b16 %v1748
      %v1895 = vunpack.c.l.b16 0
      %v1896 = vunpack.c.h.b16 0
      %vm1897 = vcmp.ne.s32.totalorder %v1893, %v1895
      %vm1898 = vcmp.ne.s32.totalorder %v1894, %v1896
      %vm1899 = vmpackc.low %vm1898, %vm1897
      %v1900 = vunpack.c.l.b16 %v1757
      %v1901 = vunpack.c.h.b16 %v1757
      %v1902 = vunpack.c.l.b16 0
      %v1903 = vunpack.c.h.b16 0
      %vm1904 = vcmp.ne.s32.totalorder %v1900, %v1902
      %vm1905 = vcmp.ne.s32.totalorder %v1901, %v1903
      %vm1906 = vmpackc.low %vm1905, %vm1904
      %v1907 = vunpack.c.l.b16 %v1766
      %v1908 = vunpack.c.h.b16 %v1766
      %v1909 = vunpack.c.l.b16 0
      %v1910 = vunpack.c.h.b16 0
      %vm1911 = vcmp.ne.s32.totalorder %v1907, %v1909
      %vm1912 = vcmp.ne.s32.totalorder %v1908, %v1910
      %vm1913 = vmpackc.low %vm1912, %vm1911
      %v1914 = vunpack.c.l.b16 %v1775
      %v1915 = vunpack.c.h.b16 %v1775
      %v1916 = vunpack.c.l.b16 0
      %v1917 = vunpack.c.h.b16 0
      %vm1918 = vcmp.ne.s32.totalorder %v1914, %v1916
      %vm1919 = vcmp.ne.s32.totalorder %v1915, %v1917
      %vm1920 = vmpackc.low %vm1919, %vm1918
      %v1921 = vunpack.c.l.b16 %v1784
      %v1922 = vunpack.c.h.b16 %v1784
      %v1923 = vunpack.c.l.b16 0
      %v1924 = vunpack.c.h.b16 0
      %vm1925 = vcmp.ne.s32.totalorder %v1921, %v1923
      %vm1926 = vcmp.ne.s32.totalorder %v1922, %v1924
      %vm1927 = vmpackc.low %vm1926, %vm1925
      %v1928 = vunpack.c.l.b16 %v1793
      %v1929 = vunpack.c.h.b16 %v1793
      %v1930 = vunpack.c.l.b16 0
      %v1931 = vunpack.c.h.b16 0
      %vm1932 = vcmp.ne.s32.totalorder %v1928, %v1930
      %vm1933 = vcmp.ne.s32.totalorder %v1929, %v1931
      %vm1934 = vmpackc.low %vm1933, %vm1932
      %v1935 = vunpack.c.l.b16 %v1794
      %v1936 = vunpack.c.h.b16 %v1794
      %v1937 = vunpack.c.l.b16 0
      %v1938 = vunpack.c.h.b16 0
      %vm1939 = vcmp.ne.s32.totalorder %v1935, %v1937
      %vm1940 = vcmp.ne.s32.totalorder %v1936, %v1938
      %vm1941 = vmpackc.low %vm1940, %vm1939
      %v1942 = vsel %vm1801, %v1061, 0
      %v1943 = vsel %vm1808, %v1062, 0
      %v1944 = vsel %vm1815, %v1063, 0
      %v1945 = vsel %vm1822, %v1064, 0
      %v1946 = vsel %vm1829, %v1065, 0
      %v1947 = vsel %vm1836, %v1066, 0
      %v1948 = vsel %vm1843, %v1067, 0
      %v1949 = vsel %vm1850, %v1068, 0
      %v1950 = vsel %vm1857, %v1069, 0
      %v1951 = vsel %vm1864, %v1070, 0
      %v1952 = vsel %vm1871, %v1071, 0
      %v1953 = vsel %vm1878, %v1072, 0
      %v1954 = vsel %vm1885, %v1073, 0
      %v1955 = vsel %vm1892, %v1074, 0
      %v1956 = vsel %vm1899, %v1075, 0
      %v1957 = vsel %vm1906, %v1076, 0
      %v1958 = vsel %vm1913, %v1077, 0
      %v1959 = vsel %vm1920, %v1078, 0
      %v1960 = vsel %vm1927, %v1079, 0
      %v1961 = vsel %vm1934, %v1080, 0
      %v1962 = vsel %vm1941, %v1532, 0
      %v1963 = vld [vmem:[%s6] sm:$0x3]
      %s1964 = scalar_lea.vmem %s6, 2
      %v1965 = vld [vmem:[%s1964] sm:$0x3]
      %v1982 = vunpack.c.l.b16 %v1061
      %v1983 = vunpack.c.l.b16 %v1062
      %v1984 = vunpack.c.l.b16 %v1063
      %v1985 = vunpack.c.l.b16 %v1064
      %v1986 = vunpack.c.l.b16 %v1065
      %v1987 = vunpack.c.l.b16 %v1066
      %v1988 = vunpack.c.l.b16 %v1067
      %v1989 = vunpack.c.l.b16 %v1068
      %v1990 = vunpack.c.l.b16 %v1069
      %v1991 = vunpack.c.l.b16 %v1070
      %v1992 = vunpack.c.l.b16 %v1071
      %v1993 = vunpack.c.l.b16 %v1072
      %v1994 = vunpack.c.l.b16 %v1073
      %v1995 = vunpack.c.l.b16 %v1074
      %v1996 = vunpack.c.l.b16 %v1075
      %v1997 = vunpack.c.l.b16 %v1076
      %v1998 = vpack.c.b16 %v1983, %v1982
      %v1999 = vpack.c.b16 %v1985, %v1984
      %v2000 = vpack.c.b16 %v1987, %v1986
      %v2001 = vpack.c.b16 %v1989, %v1988
      %v2002 = vpack.c.b16 %v1991, %v1990
      %v2003 = vpack.c.b16 %v1993, %v1992
      %v2004 = vpack.c.b16 %v1995, %v1994
      %v2005 = vpack.c.b16 %v1997, %v1996
      %vm2006 = vcmask 31744
      %v2008 = vsel %vm2006, %v1998, 0
      %v2011 = vsel %vm2006, %v1999, 0
      %v2014 = vsel %vm2006, %v2000, 0
      %v2017 = vsel %vm2006, %v2001, 0
      %v2020 = vsel %vm2006, %v2002, 0
      %v2023 = vsel %vm2006, %v2003, 0
      %v2026 = vsel %vm2006, %v2004, 0
      %v2029 = vsel %vm2006, %v2005, 0
      %vm2031 = vcmask 1041408
      %v2033 = vsel %vm2031, %v1965, 0
      %2035 = vmatpush.bf16.msra.mxu0 0
      %2036 = vmatpush.bf16.msra.mxu0 0
      %2037 = vmatpush.bf16.msra.mxu0 0
      %2038 = vmatpush.bf16.msra.mxu0 0
      %2039 = vmatpush.bf16.msra.mxu0 0
      %2040 = vmatpush.bf16.msra.mxu0 0
      %2041 = vmatpush.bf16.msra.mxu0 0
      %2042 = vmatpush.bf16.msra.mxu0 %v2033
      %2043 = vmatmul.bf16.gmra.mxu0 %v2008
      %v2044 = vpop.f32.mrf.mxu0
      %v2045 = vadd.f32 0.0, %v2044
      %v2046 = vpop.f32.mrf.mxu0
      %v2047 = vadd.f32 0.0, %v2046
      %2048 = vmatmul.bf16.gmra.mxu0 %v2011
      %v2049 = vpop.f32.mrf.mxu0
      %v2050 = vadd.f32 0.0, %v2049
      %v2051 = vpop.f32.mrf.mxu0
      %v2052 = vadd.f32 0.0, %v2051
      %2053 = vmatmul.bf16.gmra.mxu0 %v2014
      %v2054 = vpop.f32.mrf.mxu0
      %v2055 = vadd.f32 0.0, %v2054
      %v2056 = vpop.f32.mrf.mxu0
      %v2057 = vadd.f32 0.0, %v2056
      %2058 = vmatmul.bf16.gmra.mxu0 %v2017
      %v2059 = vpop.f32.mrf.mxu0
      %v2060 = vadd.f32 0.0, %v2059
      %v2061 = vpop.f32.mrf.mxu0
      %v2062 = vadd.f32 0.0, %v2061
      %2063 = vmatmul.bf16.gmra.mxu0 %v2020
      %v2064 = vpop.f32.mrf.mxu0
      %v2065 = vadd.f32 0.0, %v2064
      %v2066 = vpop.f32.mrf.mxu0
      %v2067 = vadd.f32 0.0, %v2066
      %2068 = vmatmul.bf16.gmra.mxu0 %v2023
      %v2069 = vpop.f32.mrf.mxu0
      %v2070 = vadd.f32 0.0, %v2069
      %v2071 = vpop.f32.mrf.mxu0
      %v2072 = vadd.f32 0.0, %v2071
      %2073 = vmatmul.bf16.gmra.mxu0 %v2026
      %v2074 = vpop.f32.mrf.mxu0
      %v2075 = vadd.f32 0.0, %v2074
      %v2076 = vpop.f32.mrf.mxu0
      %v2077 = vadd.f32 0.0, %v2076
      %2078 = vmatmul.bf16.gmra.mxu0 %v2029
      %v2079 = vpop.f32.mrf.mxu0
      %v2080 = vadd.f32 0.0, %v2079
      %v2081 = vpop.f32.mrf.mxu0
      %v2082 = vadd.f32 0.0, %v2081
      %2083 = vdwg.mxu0
      %v2101 = vunpack.c.l.b16 %v1511
      %v2102 = vunpack.c.l.b16 %v1512
      %v2103 = vunpack.c.l.b16 %v1513
      %v2104 = vunpack.c.l.b16 %v1514
      %v2105 = vunpack.c.l.b16 %v1515
      %v2106 = vunpack.c.l.b16 %v1516
      %v2107 = vunpack.c.l.b16 %v1517
      %v2108 = vunpack.c.l.b16 %v1518
      %v2109 = vunpack.c.l.b16 %v1519
      %v2110 = vunpack.c.l.b16 %v1520
      %v2111 = vunpack.c.l.b16 %v1521
      %v2112 = vunpack.c.l.b16 %v1522
      %v2113 = vunpack.c.l.b16 %v1523
      %v2114 = vunpack.c.l.b16 %v1524
      %v2115 = vunpack.c.l.b16 %v1525
      %v2116 = vunpack.c.l.b16 %v1526
      %v2117 = vunpack.c.l.b16 %v1527
      %v2118 = vpack.c.b16 %v2102, %v2101
      %v2119 = vpack.c.b16 %v2104, %v2103
      %v2120 = vpack.c.b16 %v2106, %v2105
      %v2121 = vpack.c.b16 %v2108, %v2107
      %v2122 = vpack.c.b16 %v2110, %v2109
      %v2123 = vpack.c.b16 %v2112, %v2111
      %v2124 = vpack.c.b16 %v2114, %v2113
      %v2125 = vpack.c.b16 %v2116, %v2115
      %v2126 = vpack.c.b16 %v2117, %v2117
      %vm2127 = vsmask.f32 4352
      %v2129 = vshrl.u32 %v2118, 16
      %v2131 = vrot.slane %v2129, 3
      %v2132 = vshll.u32 %v2118, 16
      %v2134 = vrot.slane %v2132, 4
      %v2135 = vor.u32 %v2131, %v2134
      %v2137 = vshrl.u32 %v2119, 16
      %v2139 = vrot.slane %v2137, 3
      %v2140 = vshll.u32 %v2119, 16
      %v2142 = vrot.slane %v2140, 4
      %v2143 = vor.u32 %v2139, %v2142
      %v2144 = vsel %vm2127, %v2135, %v2143
      %v2146 = vshrl.u32 %v2120, 16
      %v2148 = vrot.slane %v2146, 3
      %v2149 = vshll.u32 %v2120, 16
      %v2151 = vrot.slane %v2149, 4
      %v2152 = vor.u32 %v2148, %v2151
      %v2153 = vsel %vm2127, %v2143, %v2152
      %v2155 = vshrl.u32 %v2121, 16
      %v2157 = vrot.slane %v2155, 3
      %v2158 = vshll.u32 %v2121, 16
      %v2160 = vrot.slane %v2158, 4
      %v2161 = vor.u32 %v2157, %v2160
      %v2162 = vsel %vm2127, %v2152, %v2161
      %v2164 = vshrl.u32 %v2122, 16
      %v2166 = vrot.slane %v2164, 3
      %v2167 = vshll.u32 %v2122, 16
      %v2169 = vrot.slane %v2167, 4
      %v2170 = vor.u32 %v2166, %v2169
      %v2171 = vsel %vm2127, %v2161, %v2170
      %v2173 = vshrl.u32 %v2123, 16
      %v2175 = vrot.slane %v2173, 3
      %v2176 = vshll.u32 %v2123, 16
      %v2178 = vrot.slane %v2176, 4
      %v2179 = vor.u32 %v2175, %v2178
      %v2180 = vsel %vm2127, %v2170, %v2179
      %v2182 = vshrl.u32 %v2124, 16
      %v2184 = vrot.slane %v2182, 3
      %v2185 = vshll.u32 %v2124, 16
      %v2187 = vrot.slane %v2185, 4
      %v2188 = vor.u32 %v2184, %v2187
      %v2189 = vsel %vm2127, %v2179, %v2188
      %v2191 = vshrl.u32 %v2125, 16
      %v2193 = vrot.slane %v2191, 3
      %v2194 = vshll.u32 %v2125, 16
      %v2196 = vrot.slane %v2194, 4
      %v2197 = vor.u32 %v2193, %v2196
      %v2198 = vsel %vm2127, %v2188, %v2197
      %v2200 = vshrl.u32 %v2126, 16
      %v2202 = vrot.slane %v2200, 3
      %v2203 = vshll.u32 %v2126, 16
      %v2205 = vrot.slane %v2203, 4
      %v2206 = vor.u32 %v2202, %v2205
      %v2207 = vsel %vm2127, %v2197, %v2206
      %v2209 = vsel %vm2006, %v2144, 0
      %v2212 = vsel %vm2006, %v2153, 0
      %v2215 = vsel %vm2006, %v2162, 0
      %v2218 = vsel %vm2006, %v2171, 0
      %v2221 = vsel %vm2006, %v2180, 0
      %v2224 = vsel %vm2006, %v2189, 0
      %v2227 = vsel %vm2006, %v2198, 0
      %v2230 = vsel %vm2006, %v2207, 0
      %v2233 = vsel %vm2031, %v1963, 0
      %2235 = vmatpush.bf16.msra.mxu0 0
      %2236 = vmatpush.bf16.msra.mxu0 0
      %2237 = vmatpush.bf16.msra.mxu0 0
      %2238 = vmatpush.bf16.msra.mxu0 0
      %2239 = vmatpush.bf16.msra.mxu0 0
      %2240 = vmatpush.bf16.msra.mxu0 0
      %2241 = vmatpush.bf16.msra.mxu0 0
      %2242 = vmatpush.bf16.msra.mxu0 %v2233
      %2243 = vmatmul.bf16.gmra.mxu0 %v2209
      %v2244 = vpop.f32.mrf.mxu0
      %v2245 = vadd.f32 %v2045, %v2244
      %v2246 = vpop.f32.mrf.mxu0
      %v2247 = vadd.f32 %v2047, %v2246
      %2248 = vmatmul.bf16.gmra.mxu0 %v2212
      %v2249 = vpop.f32.mrf.mxu0
      %v2250 = vadd.f32 %v2050, %v2249
      %v2251 = vpop.f32.mrf.mxu0
      %v2252 = vadd.f32 %v2052, %v2251
      %2253 = vmatmul.bf16.gmra.mxu0 %v2215
      %v2254 = vpop.f32.mrf.mxu0
      %v2255 = vadd.f32 %v2055, %v2254
      %v2256 = vpop.f32.mrf.mxu0
      %v2257 = vadd.f32 %v2057, %v2256
      %2258 = vmatmul.bf16.gmra.mxu0 %v2218
      %v2259 = vpop.f32.mrf.mxu0
      %v2260 = vadd.f32 %v2060, %v2259
      %v2261 = vpop.f32.mrf.mxu0
      %v2262 = vadd.f32 %v2062, %v2261
      %2263 = vmatmul.bf16.gmra.mxu0 %v2221
      %v2264 = vpop.f32.mrf.mxu0
      %v2265 = vadd.f32 %v2065, %v2264
      %v2266 = vpop.f32.mrf.mxu0
      %v2267 = vadd.f32 %v2067, %v2266
      %2268 = vmatmul.bf16.gmra.mxu0 %v2224
      %v2269 = vpop.f32.mrf.mxu0
      %v2270 = vadd.f32 %v2070, %v2269
      %v2271 = vpop.f32.mrf.mxu0
      %v2272 = vadd.f32 %v2072, %v2271
      %2273 = vmatmul.bf16.gmra.mxu0 %v2227
      %v2274 = vpop.f32.mrf.mxu0
      %v2275 = vadd.f32 %v2075, %v2274
      %v2276 = vpop.f32.mrf.mxu0
      %v2277 = vadd.f32 %v2077, %v2276
      %2278 = vmatmul.bf16.gmra.mxu0 %v2230
      %v2279 = vpop.f32.mrf.mxu0
      %v2280 = vadd.f32 %v2080, %v2279
      %v2281 = vpop.f32.mrf.mxu0
      %v2282 = vadd.f32 %v2082, %v2281
      %2283 = vdwg.mxu0
      %s2284 = scalar_lea.vmem %s6, 4
      %v2285 = vld [vmem:[%s2284] sm:$0x3]
      %v2303 = vunpack.c.l.b16 %v1942
      %v2304 = vunpack.c.l.b16 %v1943
      %v2305 = vunpack.c.l.b16 %v1944
      %v2306 = vunpack.c.l.b16 %v1945
      %v2307 = vunpack.c.l.b16 %v1946
      %v2308 = vunpack.c.l.b16 %v1947
      %v2309 = vunpack.c.l.b16 %v1948
      %v2310 = vunpack.c.l.b16 %v1949
      %v2311 = vunpack.c.l.b16 %v1950
      %v2312 = vunpack.c.l.b16 %v1951
      %v2313 = vunpack.c.l.b16 %v1952
      %v2314 = vunpack.c.l.b16 %v1953
      %v2315 = vunpack.c.l.b16 %v1954
      %v2316 = vunpack.c.l.b16 %v1955
      %v2317 = vunpack.c.l.b16 %v1956
      %v2318 = vunpack.c.l.b16 %v1957
      %v2319 = vunpack.c.l.b16 %v1958
      %v2320 = vpack.c.b16 %v2304, %v2303
      %v2321 = vpack.c.b16 %v2306, %v2305
      %v2322 = vpack.c.b16 %v2308, %v2307
      %v2323 = vpack.c.b16 %v2310, %v2309
      %v2324 = vpack.c.b16 %v2312, %v2311
      %v2325 = vpack.c.b16 %v2314, %v2313
      %v2326 = vpack.c.b16 %v2316, %v2315
      %v2327 = vpack.c.b16 %v2318, %v2317
      %v2328 = vpack.c.b16 %v2319, %v2319
      %vm2329 = vsmask.f32 7424
      %v2331 = vshrl.u32 %v2320, 16
      %v2333 = vshll.u32 %v2320, 16
      %v2335 = vrot.slane %v2333, 1
      %v2336 = vor.u32 %v2331, %v2335
      %v2338 = vshll.u32 %v2321, 16
      %v2340 = vrot.slane %v2338, 1
      %v2341 = vsel %vm2329, %v2336, %v2340
      %v2342 = vshrl.u32 %v2321, 16
      %v2344 = vor.u32 %v2342, %v2340
      %v2346 = vshll.u32 %v2322, 16
      %v2348 = vrot.slane %v2346, 1
      %v2349 = vsel %vm2329, %v2344, %v2348
      %v2350 = vshrl.u32 %v2322, 16
      %v2352 = vor.u32 %v2350, %v2348
      %v2354 = vshll.u32 %v2323, 16
      %v2356 = vrot.slane %v2354, 1
      %v2357 = vsel %vm2329, %v2352, %v2356
      %v2358 = vshrl.u32 %v2323, 16
      %v2360 = vor.u32 %v2358, %v2356
      %v2362 = vshll.u32 %v2324, 16
      %v2364 = vrot.slane %v2362, 1
      %v2365 = vsel %vm2329, %v2360, %v2364
      %v2366 = vshrl.u32 %v2324, 16
      %v2368 = vor.u32 %v2366, %v2364
      %v2370 = vshll.u32 %v2325, 16
      %v2372 = vrot.slane %v2370, 1
      %v2373 = vsel %vm2329, %v2368, %v2372
      %v2374 = vshrl.u32 %v2325, 16
      %v2376 = vor.u32 %v2374, %v2372
      %v2378 = vshll.u32 %v2326, 16
      %v2380 = vrot.slane %v2378, 1
      %v2381 = vsel %vm2329, %v2376, %v2380
      %v2382 = vshrl.u32 %v2326, 16
      %v2384 = vor.u32 %v2382, %v2380
      %v2386 = vshll.u32 %v2327, 16
      %v2388 = vrot.slane %v2386, 1
      %v2389 = vsel %vm2329, %v2384, %v2388
      %v2390 = vshrl.u32 %v2327, 16
      %v2392 = vor.u32 %v2390, %v2388
      %v2394 = vshll.u32 %v2328, 16
      %v2396 = vrot.slane %v2394, 1
      %v2397 = vsel %vm2329, %v2392, %v2396
      %v2399 = vsel %vm2006, %v2341, 0
      %v2402 = vsel %vm2006, %v2349, 0
      %v2405 = vsel %vm2006, %v2357, 0
      %v2408 = vsel %vm2006, %v2365, 0
      %v2411 = vsel %vm2006, %v2373, 0
      %v2414 = vsel %vm2006, %v2381, 0
      %v2417 = vsel %vm2006, %v2389, 0
      %v2420 = vsel %vm2006, %v2397, 0
      %v2423 = vsel %vm2031, %v2285, 0
      %2425 = vmatpush.bf16.msra.mxu0 0
      %2426 = vmatpush.bf16.msra.mxu0 0
      %2427 = vmatpush.bf16.msra.mxu0 0
      %2428 = vmatpush.bf16.msra.mxu0 0
      %2429 = vmatpush.bf16.msra.mxu0 0
      %2430 = vmatpush.bf16.msra.mxu0 0
      %2431 = vmatpush.bf16.msra.mxu0 0
      %2432 = vmatpush.bf16.msra.mxu0 %v2423
      %2433 = vmatmul.bf16.gmra.mxu0 %v2399
      %v2434 = vpop.f32.mrf.mxu0
      %v2435 = vadd.f32 0.0, %v2434
      %v2436 = vpop.f32.mrf.mxu0
      %v2437 = vadd.f32 0.0, %v2436
      %2438 = vmatmul.bf16.gmra.mxu0 %v2402
      %v2439 = vpop.f32.mrf.mxu0
      %v2440 = vadd.f32 0.0, %v2439
      %v2441 = vpop.f32.mrf.mxu0
      %v2442 = vadd.f32 0.0, %v2441
      %2443 = vmatmul.bf16.gmra.mxu0 %v2405
      %v2444 = vpop.f32.mrf.mxu0
      %v2445 = vadd.f32 0.0, %v2444
      %v2446 = vpop.f32.mrf.mxu0
      %v2447 = vadd.f32 0.0, %v2446
      %2448 = vmatmul.bf16.gmra.mxu0 %v2408
      %v2449 = vpop.f32.mrf.mxu0
      %v2450 = vadd.f32 0.0, %v2449
      %v2451 = vpop.f32.mrf.mxu0
      %v2452 = vadd.f32 0.0, %v2451
      %2453 = vmatmul.bf16.gmra.mxu0 %v2411
      %v2454 = vpop.f32.mrf.mxu0
      %v2455 = vadd.f32 0.0, %v2454
      %v2456 = vpop.f32.mrf.mxu0
      %v2457 = vadd.f32 0.0, %v2456
      %2458 = vmatmul.bf16.gmra.mxu0 %v2414
      %v2459 = vpop.f32.mrf.mxu0
      %v2460 = vadd.f32 0.0, %v2459
      %v2461 = vpop.f32.mrf.mxu0
      %v2462 = vadd.f32 0.0, %v2461
      %2463 = vmatmul.bf16.gmra.mxu0 %v2417
      %v2464 = vpop.f32.mrf.mxu0
      %v2465 = vadd.f32 0.0, %v2464
      %v2466 = vpop.f32.mrf.mxu0
      %v2467 = vadd.f32 0.0, %v2466
      %2468 = vmatmul.bf16.gmra.mxu0 %v2420
      %v2469 = vpop.f32.mrf.mxu0
      %v2470 = vadd.f32 0.0, %v2469
      %v2471 = vpop.f32.mrf.mxu0
      %v2472 = vadd.f32 0.0, %v2471
      %2473 = vdwg.mxu0
      %v2474 = vadd.f32 %v2245, %v2435
      %v2475 = vadd.f32 %v2247, %v2437
      %v2476 = vadd.f32 %v2250, %v2440
      %v2477 = vadd.f32 %v2252, %v2442
      %v2478 = vadd.f32 %v2255, %v2445
      %v2479 = vadd.f32 %v2257, %v2447
      %v2480 = vadd.f32 %v2260, %v2450
      %v2481 = vadd.f32 %v2262, %v2452
      %v2482 = vadd.f32 %v2265, %v2455
      %v2483 = vadd.f32 %v2267, %v2457
      %v2484 = vadd.f32 %v2270, %v2460
      %v2485 = vadd.f32 %v2272, %v2462
      %v2486 = vadd.f32 %v2275, %v2465
      %v2487 = vadd.f32 %v2277, %v2467
      %v2488 = vadd.f32 %v2280, %v2470
      %v2489 = vadd.f32 %v2282, %v2472
      %s2490 = scalar_lea.vmem %s6, 6
      %v2491 = vld [vmem:[%s2490] sm:$0x3]
      %v2494 = vunpack.c.l.b16 %v1528
      %v2495 = vunpack.c.l.b16 %v1529
      %v2496 = vpack.c.b16 %v2494, %v2117
      %v2497 = vpack.c.b16 %v2495, %v2495
      %v2499 = vshrl.u32 %v2496, 16
      %v2501 = vrot.slane %v2499, 3
      %v2502 = vshll.u32 %v2496, 16
      %v2504 = vrot.slane %v2502, 4
      %v2505 = vor.u32 %v2501, %v2504
      %v2506 = vsel %vm2127, %v2197, %v2505
      %v2508 = vshrl.u32 %v2497, 16
      %v2510 = vrot.slane %v2508, 3
      %v2511 = vshll.u32 %v2497, 16
      %v2513 = vrot.slane %v2511, 4
      %v2514 = vor.u32 %v2510, %v2513
      %v2515 = vsel %vm2127, %v2505, %v2514
      %v2517 = vsel %vm2006, %v2506, 0
      %v2520 = vsel %vm2006, %v2515, 0
      %v2523 = vsel %vm2031, %v2491, 0
      %2525 = vmatpush.bf16.msra.mxu0 0
      %2526 = vmatpush.bf16.msra.mxu0 0
      %2527 = vmatpush.bf16.msra.mxu0 0
      %2528 = vmatpush.bf16.msra.mxu0 0
      %2529 = vmatpush.bf16.msra.mxu0 0
      %2530 = vmatpush.bf16.msra.mxu0 0
      %2531 = vmatpush.bf16.msra.mxu0 0
      %2532 = vmatpush.bf16.msra.mxu0 %v2523
      %2533 = vmatmul.bf16.gmra.mxu0 %v2212
      %v2534 = vpop.f32.mrf.mxu0
      %v2535 = vadd.f32 0.0, %v2534
      %v2536 = vpop.f32.mrf.mxu0
      %v2537 = vadd.f32 0.0, %v2536
      %2538 = vmatmul.bf16.gmra.mxu0 %v2215
      %v2539 = vpop.f32.mrf.mxu0
      %v2540 = vadd.f32 0.0, %v2539
      %v2541 = vpop.f32.mrf.mxu0
      %v2542 = vadd.f32 0.0, %v2541
      %2543 = vmatmul.bf16.gmra.mxu0 %v2218
      %v2544 = vpop.f32.mrf.mxu0
      %v2545 = vadd.f32 0.0, %v2544
      %v2546 = vpop.f32.mrf.mxu0
      %v2547 = vadd.f32 0.0, %v2546
      %2548 = vmatmul.bf16.gmra.mxu0 %v2221
      %v2549 = vpop.f32.mrf.mxu0
      %v2550 = vadd.f32 0.0, %v2549
      %v2551 = vpop.f32.mrf.mxu0
      %v2552 = vadd.f32 0.0, %v2551
      %2553 = vmatmul.bf16.gmra.mxu0 %v2224
      %v2554 = vpop.f32.mrf.mxu0
      %v2555 = vadd.f32 0.0, %v2554
      %v2556 = vpop.f32.mrf.mxu0
      %v2557 = vadd.f32 0.0, %v2556
      %2558 = vmatmul.bf16.gmra.mxu0 %v2227
      %v2559 = vpop.f32.mrf.mxu0
      %v2560 = vadd.f32 0.0, %v2559
      %v2561 = vpop.f32.mrf.mxu0
      %v2562 = vadd.f32 0.0, %v2561
      %2563 = vmatmul.bf16.gmra.mxu0 %v2517
      %v2564 = vpop.f32.mrf.mxu0
      %v2565 = vadd.f32 0.0, %v2564
      %v2566 = vpop.f32.mrf.mxu0
      %v2567 = vadd.f32 0.0, %v2566
      %2568 = vmatmul.bf16.gmra.mxu0 %v2520
      %v2569 = vpop.f32.mrf.mxu0
      %v2570 = vadd.f32 0.0, %v2569
      %v2571 = vpop.f32.mrf.mxu0
      %v2572 = vadd.f32 0.0, %v2571
      %2573 = vdwg.mxu0
      %v2574 = vadd.f32 %v2474, %v2535
      %v2575 = vadd.f32 %v2475, %v2537
      %v2576 = vadd.f32 %v2476, %v2540
      %v2577 = vadd.f32 %v2477, %v2542
      %v2578 = vadd.f32 %v2478, %v2545
      %v2579 = vadd.f32 %v2479, %v2547
      %v2580 = vadd.f32 %v2480, %v2550
      %v2581 = vadd.f32 %v2481, %v2552
      %v2582 = vadd.f32 %v2482, %v2555
      %v2583 = vadd.f32 %v2483, %v2557
      %v2584 = vadd.f32 %v2484, %v2560
      %v2585 = vadd.f32 %v2485, %v2562
      %v2586 = vadd.f32 %v2486, %v2565
      %v2587 = vadd.f32 %v2487, %v2567
      %v2588 = vadd.f32 %v2488, %v2570
      %v2589 = vadd.f32 %v2489, %v2572
      %s2590 = scalar_lea.vmem %s6, 8
      %v2591 = vld [vmem:[%s2590] sm:$0x3]
      %v2594 = vunpack.c.l.b16 %v1077
      %v2595 = vunpack.c.l.b16 %v1078
      %v2596 = vpack.c.b16 %v2595, %v2594
      %v2598 = vsel %vm2006, %v2596, 0
      %v2601 = vsel %vm2031, %v2591, 0
      %2603 = vmatpush.bf16.msra.mxu0 0
      %2604 = vmatpush.bf16.msra.mxu0 0
      %2605 = vmatpush.bf16.msra.mxu0 0
      %2606 = vmatpush.bf16.msra.mxu0 0
      %2607 = vmatpush.bf16.msra.mxu0 0
      %2608 = vmatpush.bf16.msra.mxu0 0
      %2609 = vmatpush.bf16.msra.mxu0 0
      %2610 = vmatpush.bf16.msra.mxu0 %v2601
      %2611 = vmatmul.bf16.gmra.mxu0 %v2011
      %v2612 = vpop.f32.mrf.mxu0
      %v2613 = vadd.f32 0.0, %v2612
      %v2614 = vpop.f32.mrf.mxu0
      %v2615 = vadd.f32 0.0, %v2614
      %2616 = vmatmul.bf16.gmra.mxu0 %v2014
      %v2617 = vpop.f32.mrf.mxu0
      %v2618 = vadd.f32 0.0, %v2617
      %v2619 = vpop.f32.mrf.mxu0
      %v2620 = vadd.f32 0.0, %v2619
      %2621 = vmatmul.bf16.gmra.mxu0 %v2017
      %v2622 = vpop.f32.mrf.mxu0
      %v2623 = vadd.f32 0.0, %v2622
      %v2624 = vpop.f32.mrf.mxu0
      %v2625 = vadd.f32 0.0, %v2624
      %2626 = vmatmul.bf16.gmra.mxu0 %v2020
      %v2627 = vpop.f32.mrf.mxu0
      %v2628 = vadd.f32 0.0, %v2627
      %v2629 = vpop.f32.mrf.mxu0
      %v2630 = vadd.f32 0.0, %v2629
      %2631 = vmatmul.bf16.gmra.mxu0 %v2023
      %v2632 = vpop.f32.mrf.mxu0
      %v2633 = vadd.f32 0.0, %v2632
      %v2634 = vpop.f32.mrf.mxu0
      %v2635 = vadd.f32 0.0, %v2634
      %2636 = vmatmul.bf16.gmra.mxu0 %v2026
      %v2637 = vpop.f32.mrf.mxu0
      %v2638 = vadd.f32 0.0, %v2637
      %v2639 = vpop.f32.mrf.mxu0
      %v2640 = vadd.f32 0.0, %v2639
      %2641 = vmatmul.bf16.gmra.mxu0 %v2029
      %v2642 = vpop.f32.mrf.mxu0
      %v2643 = vadd.f32 0.0, %v2642
      %v2644 = vpop.f32.mrf.mxu0
      %v2645 = vadd.f32 0.0, %v2644
      %2646 = vmatmul.bf16.gmra.mxu0 %v2598
      %v2647 = vpop.f32.mrf.mxu0
      %v2648 = vadd.f32 0.0, %v2647
      %v2649 = vpop.f32.mrf.mxu0
      %v2650 = vadd.f32 0.0, %v2649
      %2651 = vdwg.mxu0
      %v2652 = vadd.f32 %v2574, %v2613
      %v2653 = vadd.f32 %v2575, %v2615
      %v2654 = vadd.f32 %v2576, %v2618
      %v2655 = vadd.f32 %v2577, %v2620
      %v2656 = vadd.f32 %v2578, %v2623
      %v2657 = vadd.f32 %v2579, %v2625
      %v2658 = vadd.f32 %v2580, %v2628
      %v2659 = vadd.f32 %v2581, %v2630
      %v2660 = vadd.f32 %v2582, %v2633
      %v2661 = vadd.f32 %v2583, %v2635
      %v2662 = vadd.f32 %v2584, %v2638
      %v2663 = vadd.f32 %v2585, %v2640
      %v2664 = vadd.f32 %v2586, %v2643
      %v2665 = vadd.f32 %v2587, %v2645
      %v2666 = vadd.f32 %v2588, %v2648
      %v2667 = vadd.f32 %v2589, %v2650
      %s2668 = scalar_lea.vmem %s6, 10
      %v2669 = vld [vmem:[%s2668] sm:$0x3]
      %v2672 = vunpack.c.l.b16 %v1959
      %v2673 = vunpack.c.l.b16 %v1960
      %v2674 = vpack.c.b16 %v2672, %v2319
      %v2675 = vpack.c.b16 %v2673, %v2673
      %v2677 = vshll.u32 %v2674, 16
      %v2679 = vrot.slane %v2677, 1
      %v2680 = vsel %vm2329, %v2392, %v2679
      %v2681 = vshrl.u32 %v2674, 16
      %v2683 = vor.u32 %v2681, %v2679
      %v2685 = vshll.u32 %v2675, 16
      %v2687 = vrot.slane %v2685, 1
      %v2688 = vsel %vm2329, %v2683, %v2687
      %v2690 = vsel %vm2006, %v2680, 0
      %v2693 = vsel %vm2006, %v2688, 0
      %v2696 = vsel %vm2031, %v2669, 0
      %2698 = vmatpush.bf16.msra.mxu0 0
      %2699 = vmatpush.bf16.msra.mxu0 0
      %2700 = vmatpush.bf16.msra.mxu0 0
      %2701 = vmatpush.bf16.msra.mxu0 0
      %2702 = vmatpush.bf16.msra.mxu0 0
      %2703 = vmatpush.bf16.msra.mxu0 0
      %2704 = vmatpush.bf16.msra.mxu0 0
      %2705 = vmatpush.bf16.msra.mxu0 %v2696
      %2706 = vmatmul.bf16.gmra.mxu0 %v2402
      %v2707 = vpop.f32.mrf.mxu0
      %v2708 = vadd.f32 0.0, %v2707
      %v2709 = vpop.f32.mrf.mxu0
      %v2710 = vadd.f32 0.0, %v2709
      %2711 = vmatmul.bf16.gmra.mxu0 %v2405
      %v2712 = vpop.f32.mrf.mxu0
      %v2713 = vadd.f32 0.0, %v2712
      %v2714 = vpop.f32.mrf.mxu0
      %v2715 = vadd.f32 0.0, %v2714
      %2716 = vmatmul.bf16.gmra.mxu0 %v2408
      %v2717 = vpop.f32.mrf.mxu0
      %v2718 = vadd.f32 0.0, %v2717
      %v2719 = vpop.f32.mrf.mxu0
      %v2720 = vadd.f32 0.0, %v2719
      %2721 = vmatmul.bf16.gmra.mxu0 %v2411
      %v2722 = vpop.f32.mrf.mxu0
      %v2723 = vadd.f32 0.0, %v2722
      %v2724 = vpop.f32.mrf.mxu0
      %v2725 = vadd.f32 0.0, %v2724
      %2726 = vmatmul.bf16.gmra.mxu0 %v2414
      %v2727 = vpop.f32.mrf.mxu0
      %v2728 = vadd.f32 0.0, %v2727
      %v2729 = vpop.f32.mrf.mxu0
      %v2730 = vadd.f32 0.0, %v2729
      %2731 = vmatmul.bf16.gmra.mxu0 %v2417
      %v2732 = vpop.f32.mrf.mxu0
      %v2733 = vadd.f32 0.0, %v2732
      %v2734 = vpop.f32.mrf.mxu0
      %v2735 = vadd.f32 0.0, %v2734
      %2736 = vmatmul.bf16.gmra.mxu0 %v2690
      %v2737 = vpop.f32.mrf.mxu0
      %v2738 = vadd.f32 0.0, %v2737
      %v2739 = vpop.f32.mrf.mxu0
      %v2740 = vadd.f32 0.0, %v2739
      %2741 = vmatmul.bf16.gmra.mxu0 %v2693
      %v2742 = vpop.f32.mrf.mxu0
      %v2743 = vadd.f32 0.0, %v2742
      %v2744 = vpop.f32.mrf.mxu0
      %v2745 = vadd.f32 0.0, %v2744
      %2746 = vdwg.mxu0
      %v2747 = vadd.f32 %v2652, %v2708
      %v2748 = vadd.f32 %v2653, %v2710
      %v2749 = vadd.f32 %v2654, %v2713
      %v2750 = vadd.f32 %v2655, %v2715
      %v2751 = vadd.f32 %v2656, %v2718
      %v2752 = vadd.f32 %v2657, %v2720
      %v2753 = vadd.f32 %v2658, %v2723
      %v2754 = vadd.f32 %v2659, %v2725
      %v2755 = vadd.f32 %v2660, %v2728
      %v2756 = vadd.f32 %v2661, %v2730
      %v2757 = vadd.f32 %v2662, %v2733
      %v2758 = vadd.f32 %v2663, %v2735
      %v2759 = vadd.f32 %v2664, %v2738
      %v2760 = vadd.f32 %v2665, %v2740
      %v2761 = vadd.f32 %v2666, %v2743
      %v2762 = vadd.f32 %v2667, %v2745
      %s2763 = scalar_lea.vmem %s6, 12
      %v2764 = vld [vmem:[%s2763] sm:$0x3]
      %v2767 = vunpack.c.l.b16 %v1530
      %v2768 = vunpack.c.l.b16 %v1531
      %v2769 = vpack.c.b16 %v2767, %v2495
      %v2770 = vpack.c.b16 %v2768, %v2768
      %v2772 = vshrl.u32 %v2769, 16
      %v2774 = vrot.slane %v2772, 3
      %v2775 = vshll.u32 %v2769, 16
      %v2777 = vrot.slane %v2775, 4
      %v2778 = vor.u32 %v2774, %v2777
      %v2779 = vsel %vm2127, %v2505, %v2778
      %v2781 = vshrl.u32 %v2770, 16
      %v2783 = vrot.slane %v2781, 3
      %v2784 = vshll.u32 %v2770, 16
      %v2786 = vrot.slane %v2784, 4
      %v2787 = vor.u32 %v2783, %v2786
      %v2788 = vsel %vm2127, %v2778, %v2787
      %v2790 = vsel %vm2006, %v2779, 0
      %v2793 = vsel %vm2006, %v2788, 0
      %v2796 = vsel %vm2031, %v2764, 0
      %2798 = vmatpush.bf16.msra.mxu0 0
      %2799 = vmatpush.bf16.msra.mxu0 0
      %2800 = vmatpush.bf16.msra.mxu0 0
      %2801 = vmatpush.bf16.msra.mxu0 0
      %2802 = vmatpush.bf16.msra.mxu0 0
      %2803 = vmatpush.bf16.msra.mxu0 0
      %2804 = vmatpush.bf16.msra.mxu0 0
      %2805 = vmatpush.bf16.msra.mxu0 %v2796
      %2806 = vmatmul.bf16.gmra.mxu0 %v2215
      %v2807 = vpop.f32.mrf.mxu0
      %v2808 = vadd.f32 0.0, %v2807
      %v2809 = vpop.f32.mrf.mxu0
      %v2810 = vadd.f32 0.0, %v2809
      %2811 = vmatmul.bf16.gmra.mxu0 %v2218
      %v2812 = vpop.f32.mrf.mxu0
      %v2813 = vadd.f32 0.0, %v2812
      %v2814 = vpop.f32.mrf.mxu0
      %v2815 = vadd.f32 0.0, %v2814
      %2816 = vmatmul.bf16.gmra.mxu0 %v2221
      %v2817 = vpop.f32.mrf.mxu0
      %v2818 = vadd.f32 0.0, %v2817
      %v2819 = vpop.f32.mrf.mxu0
      %v2820 = vadd.f32 0.0, %v2819
      %2821 = vmatmul.bf16.gmra.mxu0 %v2224
      %v2822 = vpop.f32.mrf.mxu0
      %v2823 = vadd.f32 0.0, %v2822
      %v2824 = vpop.f32.mrf.mxu0
      %v2825 = vadd.f32 0.0, %v2824
      %2826 = vmatmul.bf16.gmra.mxu0 %v2227
      %v2827 = vpop.f32.mrf.mxu0
      %v2828 = vadd.f32 0.0, %v2827
      %v2829 = vpop.f32.mrf.mxu0
      %v2830 = vadd.f32 0.0, %v2829
      %2831 = vmatmul.bf16.gmra.mxu0 %v2517
      %v2832 = vpop.f32.mrf.mxu0
      %v2833 = vadd.f32 0.0, %v2832
      %v2834 = vpop.f32.mrf.mxu0
      %v2835 = vadd.f32 0.0, %v2834
      %2836 = vmatmul.bf16.gmra.mxu0 %v2790
      %v2837 = vpop.f32.mrf.mxu0
      %v2838 = vadd.f32 0.0, %v2837
      %v2839 = vpop.f32.mrf.mxu0
      %v2840 = vadd.f32 0.0, %v2839
      %2841 = vmatmul.bf16.gmra.mxu0 %v2793
      %v2842 = vpop.f32.mrf.mxu0
      %v2843 = vadd.f32 0.0, %v2842
      %v2844 = vpop.f32.mrf.mxu0
      %v2845 = vadd.f32 0.0, %v2844
      %2846 = vdwg.mxu0
      %v2847 = vadd.f32 %v2747, %v2808
      %v2848 = vadd.f32 %v2748, %v2810
      %v2849 = vadd.f32 %v2749, %v2813
      %v2850 = vadd.f32 %v2750, %v2815
      %v2851 = vadd.f32 %v2751, %v2818
      %v2852 = vadd.f32 %v2752, %v2820
      %v2853 = vadd.f32 %v2753, %v2823
      %v2854 = vadd.f32 %v2754, %v2825
      %v2855 = vadd.f32 %v2755, %v2828
      %v2856 = vadd.f32 %v2756, %v2830
      %v2857 = vadd.f32 %v2757, %v2833
      %v2858 = vadd.f32 %v2758, %v2835
      %v2859 = vadd.f32 %v2759, %v2838
      %v2860 = vadd.f32 %v2760, %v2840
      %v2861 = vadd.f32 %v2761, %v2843
      %v2862 = vadd.f32 %v2762, %v2845
      %s2863 = scalar_lea.vmem %s6, 14
      %v2864 = vld [vmem:[%s2863] sm:$0x3]
      %v2867 = vunpack.c.l.b16 %v1079
      %v2868 = vunpack.c.l.b16 %v1080
      %v2869 = vpack.c.b16 %v2868, %v2867
      %v2871 = vsel %vm2006, %v2869, 0
      %v2874 = vsel %vm2031, %v2864, 0
      %2876 = vmatpush.bf16.msra.mxu0 0
      %2877 = vmatpush.bf16.msra.mxu0 0
      %2878 = vmatpush.bf16.msra.mxu0 0
      %2879 = vmatpush.bf16.msra.mxu0 0
      %2880 = vmatpush.bf16.msra.mxu0 0
      %2881 = vmatpush.bf16.msra.mxu0 0
      %2882 = vmatpush.bf16.msra.mxu0 0
      %2883 = vmatpush.bf16.msra.mxu0 %v2874
      %2884 = vmatmul.bf16.gmra.mxu0 %v2014
      %v2885 = vpop.f32.mrf.mxu0
      %v2886 = vadd.f32 0.0, %v2885
      %v2887 = vpop.f32.mrf.mxu0
      %v2888 = vadd.f32 0.0, %v2887
      %2889 = vmatmul.bf16.gmra.mxu0 %v2017
      %v2890 = vpop.f32.mrf.mxu0
      %v2891 = vadd.f32 0.0, %v2890
      %v2892 = vpop.f32.mrf.mxu0
      %v2893 = vadd.f32 0.0, %v2892
      %2894 = vmatmul.bf16.gmra.mxu0 %v2020
      %v2895 = vpop.f32.mrf.mxu0
      %v2896 = vadd.f32 0.0, %v2895
      %v2897 = vpop.f32.mrf.mxu0
      %v2898 = vadd.f32 0.0, %v2897
      %2899 = vmatmul.bf16.gmra.mxu0 %v2023
      %v2900 = vpop.f32.mrf.mxu0
      %v2901 = vadd.f32 0.0, %v2900
      %v2902 = vpop.f32.mrf.mxu0
      %v2903 = vadd.f32 0.0, %v2902
      %2904 = vmatmul.bf16.gmra.mxu0 %v2026
      %v2905 = vpop.f32.mrf.mxu0
      %v2906 = vadd.f32 0.0, %v2905
      %v2907 = vpop.f32.mrf.mxu0
      %v2908 = vadd.f32 0.0, %v2907
      %2909 = vmatmul.bf16.gmra.mxu0 %v2029
      %v2910 = vpop.f32.mrf.mxu0
      %v2911 = vadd.f32 0.0, %v2910
      %v2912 = vpop.f32.mrf.mxu0
      %v2913 = vadd.f32 0.0, %v2912
      %2914 = vmatmul.bf16.gmra.mxu0 %v2598
      %v2915 = vpop.f32.mrf.mxu0
      %v2916 = vadd.f32 0.0, %v2915
      %v2917 = vpop.f32.mrf.mxu0
      %v2918 = vadd.f32 0.0, %v2917
      %2919 = vmatmul.bf16.gmra.mxu0 %v2871
      %v2920 = vpop.f32.mrf.mxu0
      %v2921 = vadd.f32 0.0, %v2920
      %v2922 = vpop.f32.mrf.mxu0
      %v2923 = vadd.f32 0.0, %v2922
      %2924 = vdwg.mxu0
      %v2925 = vadd.f32 %v2847, %v2886
      %v2926 = vadd.f32 %v2848, %v2888
      %v2927 = vadd.f32 %v2849, %v2891
      %v2928 = vadd.f32 %v2850, %v2893
      %v2929 = vadd.f32 %v2851, %v2896
      %v2930 = vadd.f32 %v2852, %v2898
      %v2931 = vadd.f32 %v2853, %v2901
      %v2932 = vadd.f32 %v2854, %v2903
      %v2933 = vadd.f32 %v2855, %v2906
      %v2934 = vadd.f32 %v2856, %v2908
      %v2935 = vadd.f32 %v2857, %v2911
      %v2936 = vadd.f32 %v2858, %v2913
      %v2937 = vadd.f32 %v2859, %v2916
      %v2938 = vadd.f32 %v2860, %v2918
      %v2939 = vadd.f32 %v2861, %v2921
      %v2940 = vadd.f32 %v2862, %v2923
      %s2941 = scalar_lea.vmem %s6, 16
      %v2942 = vld [vmem:[%s2941] sm:$0x3]
      %v2945 = vunpack.c.l.b16 %v1961
      %v2946 = vunpack.c.l.b16 %v1962
      %v2947 = vpack.c.b16 %v2945, %v2673
      %v2948 = vpack.c.b16 %v2946, %v2946
      %v2950 = vshll.u32 %v2947, 16
      %v2952 = vrot.slane %v2950, 1
      %v2953 = vsel %vm2329, %v2683, %v2952
      %v2954 = vshrl.u32 %v2947, 16
      %v2956 = vor.u32 %v2954, %v2952
      %v2958 = vshll.u32 %v2948, 16
      %v2960 = vrot.slane %v2958, 1
      %v2961 = vsel %vm2329, %v2956, %v2960
      %v2963 = vsel %vm2006, %v2953, 0
      %v2966 = vsel %vm2006, %v2961, 0
      %v2969 = vsel %vm2031, %v2942, 0
      %2971 = vmatpush.bf16.msra.mxu0 0
      %2972 = vmatpush.bf16.msra.mxu0 0
      %2973 = vmatpush.bf16.msra.mxu0 0
      %2974 = vmatpush.bf16.msra.mxu0 0
      %2975 = vmatpush.bf16.msra.mxu0 0
      %2976 = vmatpush.bf16.msra.mxu0 0
      %2977 = vmatpush.bf16.msra.mxu0 0
      %2978 = vmatpush.bf16.msra.mxu0 %v2969
      %2979 = vmatmul.bf16.gmra.mxu0 %v2405
      %v2980 = vpop.f32.mrf.mxu0
      %v2981 = vadd.f32 0.0, %v2980
      %v2982 = vpop.f32.mrf.mxu0
      %v2983 = vadd.f32 0.0, %v2982
      %2984 = vmatmul.bf16.gmra.mxu0 %v2408
      %v2985 = vpop.f32.mrf.mxu0
      %v2986 = vadd.f32 0.0, %v2985
      %v2987 = vpop.f32.mrf.mxu0
      %v2988 = vadd.f32 0.0, %v2987
      %2989 = vmatmul.bf16.gmra.mxu0 %v2411
      %v2990 = vpop.f32.mrf.mxu0
      %v2991 = vadd.f32 0.0, %v2990
      %v2992 = vpop.f32.mrf.mxu0
      %v2993 = vadd.f32 0.0, %v2992
      %2994 = vmatmul.bf16.gmra.mxu0 %v2414
      %v2995 = vpop.f32.mrf.mxu0
      %v2996 = vadd.f32 0.0, %v2995
      %v2997 = vpop.f32.mrf.mxu0
      %v2998 = vadd.f32 0.0, %v2997
      %2999 = vmatmul.bf16.gmra.mxu0 %v2417
      %v3000 = vpop.f32.mrf.mxu0
      %v3001 = vadd.f32 0.0, %v3000
      %v3002 = vpop.f32.mrf.mxu0
      %v3003 = vadd.f32 0.0, %v3002
      %3004 = vmatmul.bf16.gmra.mxu0 %v2690
      %v3005 = vpop.f32.mrf.mxu0
      %v3006 = vadd.f32 0.0, %v3005
      %v3007 = vpop.f32.mrf.mxu0
      %v3008 = vadd.f32 0.0, %v3007
      %3009 = vmatmul.bf16.gmra.mxu0 %v2963
      %v3010 = vpop.f32.mrf.mxu0
      %v3011 = vadd.f32 0.0, %v3010
      %v3012 = vpop.f32.mrf.mxu0
      %v3013 = vadd.f32 0.0, %v3012
      %3014 = vmatmul.bf16.gmra.mxu0 %v2966
      %v3015 = vpop.f32.mrf.mxu0
      %v3016 = vadd.f32 0.0, %v3015
      %v3017 = vpop.f32.mrf.mxu0
      %v3018 = vadd.f32 0.0, %v3017
      %3019 = vdwg.mxu0
      %v3020 = vadd.f32 %v2925, %v2981
      %v3021 = vadd.f32 %v2926, %v2983
      %v3022 = vadd.f32 %v2927, %v2986
      %v3023 = vadd.f32 %v2928, %v2988
      %v3024 = vadd.f32 %v2929, %v2991
      %v3025 = vadd.f32 %v2930, %v2993
      %v3026 = vadd.f32 %v2931, %v2996
      %v3027 = vadd.f32 %v2932, %v2998
      %v3028 = vadd.f32 %v2933, %v3001
      %v3029 = vadd.f32 %v2934, %v3003
      %v3030 = vadd.f32 %v2935, %v3006
      %v3031 = vadd.f32 %v2936, %v3008
      %v3032 = vadd.f32 %v2937, %v3011
      %v3033 = vadd.f32 %v2938, %v3013
      %v3034 = vadd.f32 %v2939, %v3016
      %v3035 = vadd.f32 %v2940, %v3018
      %3036 = vst.msk [vmem:[#allocation3] sm:$0xf] %vm994, 0
      %3037 = vst.msk [vmem:[#allocation3 + $0x4] sm:$0xf] %vm994, 0
      %3038 = vst.msk [vmem:[#allocation3 + $0x58] sm:$0xf] %vm994, 0
      %3039 = vst.msk [vmem:[#allocation3 + $0x5c] sm:$0xf] %vm994, 0
      %v3040 = vld [vmem:[%s620] sm:$0xf]
      %v3041 = vld [vmem:[%s620 + $0x4] sm:$0xf]
      %v3042 = vunpack.c.l.bf16 %v3040
      %v3043 = vunpack.c.l.bf16 %v3041
      %v3044 = vmul.f32 %v3042, %v1007
      %v3045 = vmul.f32 %v3043, %v1007
      %v3046 = vpack.c.bf16 %v3044, %v3044
      %v3047 = vpack.c.bf16 %v3045, %v3045
      %3048 = vst.msk [vmem:[#allocation3 + $0x8] sm:$0xf] %vm994, %v3046
      %3049 = vst.msk [vmem:[#allocation3 + $0xc] sm:$0xf] %vm994, %v3047
      %v3050 = vld [vmem:[%s634] sm:$0xf]
      %v3051 = vld [vmem:[%s634 + $0x4] sm:$0xf]
      %v3052 = vld [vmem:[%s634 + $0x8] sm:$0xf]
      %v3053 = vld [vmem:[%s634 + $0xc] sm:$0xf]
      %v3054 = vld [vmem:[%s634 + $0x10] sm:$0xf]
      %v3055 = vld [vmem:[%s634 + $0x14] sm:$0xf]
      %v3056 = vld [vmem:[%s634 + $0x18] sm:$0xf]
      %v3057 = vld [vmem:[%s634 + $0x1c] sm:$0xf]
      %v3058 = vld [vmem:[%s634 + $0x20] sm:$0xf]
      %v3059 = vld [vmem:[%s634 + $0x24] sm:$0xf]
      %v3060 = vld [vmem:[%s634 + $0x28] sm:$0xf]
      %v3061 = vld [vmem:[%s634 + $0x2c] sm:$0xf]
      %v3062 = vld [vmem:[%s634 + $0x30] sm:$0xf]
      %v3063 = vld [vmem:[%s634 + $0x34] sm:$0xf]
      %v3064 = vld [vmem:[%s634 + $0x38] sm:$0xf]
      %v3065 = vld [vmem:[%s634 + $0x3c] sm:$0xf]
      %3066 = vst.msk [vmem:[#allocation3 + $0x10] sm:$0xf] %vm994, %v3050
      %3067 = vst.msk [vmem:[#allocation3 + $0x14] sm:$0xf] %vm994, %v3051
      %3068 = vst.msk [vmem:[#allocation3 + $0x18] sm:$0xf] %vm994, %v3052
      %3069 = vst.msk [vmem:[#allocation3 + $0x1c] sm:$0xf] %vm994, %v3053
      %3070 = vst.msk [vmem:[#allocation3 + $0x20] sm:$0xf] %vm994, %v3054
      %3071 = vst.msk [vmem:[#allocation3 + $0x24] sm:$0xf] %vm994, %v3055
      %3072 = vst.msk [vmem:[#allocation3 + $0x28] sm:$0xf] %vm994, %v3056
      %3073 = vst.msk [vmem:[#allocation3 + $0x2c] sm:$0xf] %vm994, %v3057
      %3074 = vst.msk [vmem:[#allocation3 + $0x30] sm:$0xf] %vm994, %v3058
      %3075 = vst.msk [vmem:[#allocation3 + $0x34] sm:$0xf] %vm994, %v3059
      %3076 = vst.msk [vmem:[#allocation3 + $0x38] sm:$0xf] %vm994, %v3060
      %3077 = vst.msk [vmem:[#allocation3 + $0x3c] sm:$0xf] %vm994, %v3061
      %3078 = vst.msk [vmem:[#allocation3 + $0x40] sm:$0xf] %vm994, %v3062
      %3079 = vst.msk [vmem:[#allocation3 + $0x44] sm:$0xf] %vm994, %v3063
      %3080 = vst.msk [vmem:[#allocation3 + $0x48] sm:$0xf] %vm994, %v3064
      %3081 = vst.msk [vmem:[#allocation3 + $0x4c] sm:$0xf] %vm994, %v3065
      %v3082 = vld [vmem:[%s648] sm:$0xf]
      %v3083 = vld [vmem:[%s648 + $0x4] sm:$0xf]
      %v3084 = vunpack.c.l.bf16 %v3082
      %v3085 = vunpack.c.l.bf16 %v3083
      %v3086 = vmul.f32 %v3084, %v1054
      %v3087 = vmul.f32 %v3085, %v1054
      %v3088 = vpack.c.bf16 %v3086, %v3086
      %v3089 = vpack.c.bf16 %v3087, %v3087
      %3090 = vst.msk [vmem:[#allocation3 + $0x50] sm:$0xf] %vm994, %v3088
      %3091 = vst.msk [vmem:[#allocation3 + $0x54] sm:$0xf] %vm994, %v3089
      %v3092 = vld [vmem:[#allocation3 + $0x8] sm:$0xf]
      %v3093 = vld [vmem:[#allocation3 + $0xc] sm:$0xf]
      %v3094 = vld [vmem:[#allocation3 + $0x10] sm:$0xf]
      %v3095 = vld [vmem:[#allocation3 + $0x14] sm:$0xf]
      %v3096 = vld [vmem:[#allocation3 + $0x18] sm:$0xf]
      %v3097 = vld [vmem:[#allocation3 + $0x1c] sm:$0xf]
      %v3098 = vld [vmem:[#allocation3 + $0x20] sm:$0xf]
      %v3099 = vld [vmem:[#allocation3 + $0x24] sm:$0xf]
      %v3100 = vld [vmem:[#allocation3 + $0x28] sm:$0xf]
      %v3101 = vld [vmem:[#allocation3 + $0x2c] sm:$0xf]
      %v3102 = vld [vmem:[#allocation3 + $0x30] sm:$0xf]
      %v3103 = vld [vmem:[#allocation3 + $0x34] sm:$0xf]
      %v3104 = vld [vmem:[#allocation3 + $0x38] sm:$0xf]
      %v3105 = vld [vmem:[#allocation3 + $0x3c] sm:$0xf]
      %v3106 = vld [vmem:[#allocation3 + $0x40] sm:$0xf]
      %v3107 = vld [vmem:[#allocation3 + $0x44] sm:$0xf]
      %v3108 = vld [vmem:[#allocation3 + $0x48] sm:$0xf]
      %v3109 = vld [vmem:[#allocation3 + $0x4c] sm:$0xf]
      %v3110 = vld [vmem:[#allocation3 + $0x50] sm:$0xf]
      %v3111 = vld [vmem:[#allocation3 + $0x54] sm:$0xf]
      %v3112 = vld [vmem:[#allocation3 + $0x4] sm:$0x8]
      %v3113 = vsel %vm1370, %v3112, 0
      %v3114 = vsel %vm1377, %v3092, 0
      %v3115 = vsel %vm1384, %v3093, 0
      %v3116 = vsel %vm1391, %v3094, 0
      %v3117 = vsel %vm1398, %v3095, 0
      %v3118 = vsel %vm1405, %v3096, 0
      %v3119 = vsel %vm1412, %v3097, 0
      %v3120 = vsel %vm1419, %v3098, 0
      %v3121 = vsel %vm1426, %v3099, 0
      %v3122 = vsel %vm1433, %v3100, 0
      %v3123 = vsel %vm1440, %v3101, 0
      %v3124 = vsel %vm1447, %v3102, 0
      %v3125 = vsel %vm1454, %v3103, 0
      %v3126 = vsel %vm1461, %v3104, 0
      %v3127 = vsel %vm1468, %v3105, 0
      %v3128 = vsel %vm1475, %v3106, 0
      %v3129 = vsel %vm1482, %v3107, 0
      %v3130 = vsel %vm1489, %v3108, 0
      %v3131 = vsel %vm1496, %v3109, 0
      %v3132 = vsel %vm1503, %v3110, 0
      %v3133 = vsel %vm1510, %v3111, 0
      %v3134 = vld [vmem:[#allocation3 + $0x58] sm:$0x1]
      %v3135 = vsel %vm1801, %v3092, 0
      %v3136 = vsel %vm1808, %v3093, 0
      %v3137 = vsel %vm1815, %v3094, 0
      %v3138 = vsel %vm1822, %v3095, 0
      %v3139 = vsel %vm1829, %v3096, 0
      %v3140 = vsel %vm1836, %v3097, 0
      %v3141 = vsel %vm1843, %v3098, 0
      %v3142 = vsel %vm1850, %v3099, 0
      %v3143 = vsel %vm1857, %v3100, 0
      %v3144 = vsel %vm1864, %v3101, 0
      %v3145 = vsel %vm1871, %v3102, 0
      %v3146 = vsel %vm1878, %v3103, 0
      %v3147 = vsel %vm1885, %v3104, 0
      %v3148 = vsel %vm1892, %v3105, 0
      %v3149 = vsel %vm1899, %v3106, 0
      %v3150 = vsel %vm1906, %v3107, 0
      %v3151 = vsel %vm1913, %v3108, 0
      %v3152 = vsel %vm1920, %v3109, 0
      %v3153 = vsel %vm1927, %v3110, 0
      %v3154 = vsel %vm1934, %v3111, 0
      %v3155 = vsel %vm1941, %v3134, 0
      %v3156 = vld [vmem:[%s7] sm:$0x3]
      %v3174 = vunpack.c.l.b16 %v3113
      %v3175 = vunpack.c.l.b16 %v3114
      %v3176 = vunpack.c.l.b16 %v3115
      %v3177 = vunpack.c.l.b16 %v3116
      %v3178 = vunpack.c.l.b16 %v3117
      %v3179 = vunpack.c.l.b16 %v3118
      %v3180 = vunpack.c.l.b16 %v3119
      %v3181 = vunpack.c.l.b16 %v3120
      %v3182 = vunpack.c.l.b16 %v3121
      %v3183 = vunpack.c.l.b16 %v3122
      %v3184 = vunpack.c.l.b16 %v3123
      %v3185 = vunpack.c.l.b16 %v3124
      %v3186 = vunpack.c.l.b16 %v3125
      %v3187 = vunpack.c.l.b16 %v3126
      %v3188 = vunpack.c.l.b16 %v3127
      %v3189 = vunpack.c.l.b16 %v3128
      %v3190 = vunpack.c.l.b16 %v3129
      %v3191 = vpack.c.b16 %v3175, %v3174
      %v3192 = vpack.c.b16 %v3177, %v3176
      %v3193 = vpack.c.b16 %v3179, %v3178
      %v3194 = vpack.c.b16 %v3181, %v3180
      %v3195 = vpack.c.b16 %v3183, %v3182
      %v3196 = vpack.c.b16 %v3185, %v3184
      %v3197 = vpack.c.b16 %v3187, %v3186
      %v3198 = vpack.c.b16 %v3189, %v3188
      %v3199 = vpack.c.b16 %v3190, %v3190
      %v3201 = vshrl.u32 %v3191, 16
      %v3203 = vrot.slane %v3201, 3
      %v3204 = vshll.u32 %v3191, 16
      %v3206 = vrot.slane %v3204, 4
      %v3207 = vor.u32 %v3203, %v3206
      %v3209 = vshrl.u32 %v3192, 16
      %v3211 = vrot.slane %v3209, 3
      %v3212 = vshll.u32 %v3192, 16
      %v3214 = vrot.slane %v3212, 4
      %v3215 = vor.u32 %v3211, %v3214
      %v3216 = vsel %vm2127, %v3207, %v3215
      %v3218 = vshrl.u32 %v3193, 16
      %v3220 = vrot.slane %v3218, 3
      %v3221 = vshll.u32 %v3193, 16
      %v3223 = vrot.slane %v3221, 4
      %v3224 = vor.u32 %v3220, %v3223
      %v3225 = vsel %vm2127, %v3215, %v3224
      %v3227 = vshrl.u32 %v3194, 16
      %v3229 = vrot.slane %v3227, 3
      %v3230 = vshll.u32 %v3194, 16
      %v3232 = vrot.slane %v3230, 4
      %v3233 = vor.u32 %v3229, %v3232
      %v3234 = vsel %vm2127, %v3224, %v3233
      %v3236 = vshrl.u32 %v3195, 16
      %v3238 = vrot.slane %v3236, 3
      %v3239 = vshll.u32 %v3195, 16
      %v3241 = vrot.slane %v3239, 4
      %v3242 = vor.u32 %v3238, %v3241
      %v3243 = vsel %vm2127, %v3233, %v3242
      %v3245 = vshrl.u32 %v3196, 16
      %v3247 = vrot.slane %v3245, 3
      %v3248 = vshll.u32 %v3196, 16
      %v3250 = vrot.slane %v3248, 4
      %v3251 = vor.u32 %v3247, %v3250
      %v3252 = vsel %vm2127, %v3242, %v3251
      %v3254 = vshrl.u32 %v3197, 16
      %v3256 = vrot.slane %v3254, 3
      %v3257 = vshll.u32 %v3197, 16
      %v3259 = vrot.slane %v3257, 4
      %v3260 = vor.u32 %v3256, %v3259
      %v3261 = vsel %vm2127, %v3251, %v3260
      %v3263 = vshrl.u32 %v3198, 16
      %v3265 = vrot.slane %v3263, 3
      %v3266 = vshll.u32 %v3198, 16
      %v3268 = vrot.slane %v3266, 4
      %v3269 = vor.u32 %v3265, %v3268
      %v3270 = vsel %vm2127, %v3260, %v3269
      %v3272 = vshrl.u32 %v3199, 16
      %v3274 = vrot.slane %v3272, 3
      %v3275 = vshll.u32 %v3199, 16
      %v3277 = vrot.slane %v3275, 4
      %v3278 = vor.u32 %v3274, %v3277
      %v3279 = vsel %vm2127, %v3269, %v3278
      %v3281 = vsel %vm2006, %v3216, 0
      %v3284 = vsel %vm2006, %v3225, 0
      %v3287 = vsel %vm2006, %v3234, 0
      %v3290 = vsel %vm2006, %v3243, 0
      %v3293 = vsel %vm2006, %v3252, 0
      %v3296 = vsel %vm2006, %v3261, 0
      %v3299 = vsel %vm2006, %v3270, 0
      %v3302 = vsel %vm2006, %v3279, 0
      %v3305 = vsel %vm2031, %v3156, 0
      %3307 = vmatpush.bf16.msra.mxu0 0
      %3308 = vmatpush.bf16.msra.mxu0 0
      %3309 = vmatpush.bf16.msra.mxu0 0
      %3310 = vmatpush.bf16.msra.mxu0 0
      %3311 = vmatpush.bf16.msra.mxu0 0
      %3312 = vmatpush.bf16.msra.mxu0 0
      %3313 = vmatpush.bf16.msra.mxu0 0
      %3314 = vmatpush.bf16.msra.mxu0 %v3305
      %3315 = vmatmul.bf16.gmra.mxu0 %v3281
      %v3316 = vpop.f32.mrf.mxu0
      %v3317 = vadd.f32 0.0, %v3316
      %v3318 = vpop.f32.mrf.mxu0
      %v3319 = vadd.f32 0.0, %v3318
      %3320 = vmatmul.bf16.gmra.mxu0 %v3284
      %v3321 = vpop.f32.mrf.mxu0
      %v3322 = vadd.f32 0.0, %v3321
      %v3323 = vpop.f32.mrf.mxu0
      %v3324 = vadd.f32 0.0, %v3323
      %3325 = vmatmul.bf16.gmra.mxu0 %v3287
      %v3326 = vpop.f32.mrf.mxu0
      %v3327 = vadd.f32 0.0, %v3326
      %v3328 = vpop.f32.mrf.mxu0
      %v3329 = vadd.f32 0.0, %v3328
      %3330 = vmatmul.bf16.gmra.mxu0 %v3290
      %v3331 = vpop.f32.mrf.mxu0
      %v3332 = vadd.f32 0.0, %v3331
      %v3333 = vpop.f32.mrf.mxu0
      %v3334 = vadd.f32 0.0, %v3333
      %3335 = vmatmul.bf16.gmra.mxu0 %v3293
      %v3336 = vpop.f32.mrf.mxu0
      %v3337 = vadd.f32 0.0, %v3336
      %v3338 = vpop.f32.mrf.mxu0
      %v3339 = vadd.f32 0.0, %v3338
      %3340 = vmatmul.bf16.gmra.mxu0 %v3296
      %v3341 = vpop.f32.mrf.mxu0
      %v3342 = vadd.f32 0.0, %v3341
      %v3343 = vpop.f32.mrf.mxu0
      %v3344 = vadd.f32 0.0, %v3343
      %3345 = vmatmul.bf16.gmra.mxu0 %v3299
      %v3346 = vpop.f32.mrf.mxu0
      %v3347 = vadd.f32 0.0, %v3346
      %v3348 = vpop.f32.mrf.mxu0
      %v3349 = vadd.f32 0.0, %v3348
      %3350 = vmatmul.bf16.gmra.mxu0 %v3302
      %v3351 = vpop.f32.mrf.mxu0
      %v3352 = vadd.f32 0.0, %v3351
      %v3353 = vpop.f32.mrf.mxu0
      %v3354 = vadd.f32 0.0, %v3353
      %3355 = vdwg.mxu0
      %v3356 = vadd.f32 %v3020, %v3317
      %v3357 = vadd.f32 %v3021, %v3319
      %v3358 = vadd.f32 %v3022, %v3322
      %v3359 = vadd.f32 %v3023, %v3324
      %v3360 = vadd.f32 %v3024, %v3327
      %v3361 = vadd.f32 %v3025, %v3329
      %v3362 = vadd.f32 %v3026, %v3332
      %v3363 = vadd.f32 %v3027, %v3334
      %v3364 = vadd.f32 %v3028, %v3337
      %v3365 = vadd.f32 %v3029, %v3339
      %v3366 = vadd.f32 %v3030, %v3342
      %v3367 = vadd.f32 %v3031, %v3344
      %v3368 = vadd.f32 %v3032, %v3347
      %v3369 = vadd.f32 %v3033, %v3349
      %v3370 = vadd.f32 %v3034, %v3352
      %v3371 = vadd.f32 %v3035, %v3354
      %s3372 = scalar_lea.vmem %s7, 2
      %v3373 = vld [vmem:[%s3372] sm:$0x3]
      %v3390 = vunpack.c.l.b16 %v3092
      %v3391 = vunpack.c.l.b16 %v3093
      %v3392 = vunpack.c.l.b16 %v3094
      %v3393 = vunpack.c.l.b16 %v3095
      %v3394 = vunpack.c.l.b16 %v3096
      %v3395 = vunpack.c.l.b16 %v3097
      %v3396 = vunpack.c.l.b16 %v3098
      %v3397 = vunpack.c.l.b16 %v3099
      %v3398 = vunpack.c.l.b16 %v3100
      %v3399 = vunpack.c.l.b16 %v3101
      %v3400 = vunpack.c.l.b16 %v3102
      %v3401 = vunpack.c.l.b16 %v3103
      %v3402 = vunpack.c.l.b16 %v3104
      %v3403 = vunpack.c.l.b16 %v3105
      %v3404 = vunpack.c.l.b16 %v3106
      %v3405 = vunpack.c.l.b16 %v3107
      %v3406 = vpack.c.b16 %v3391, %v3390
      %v3407 = vpack.c.b16 %v3393, %v3392
      %v3408 = vpack.c.b16 %v3395, %v3394
      %v3409 = vpack.c.b16 %v3397, %v3396
      %v3410 = vpack.c.b16 %v3399, %v3398
      %v3411 = vpack.c.b16 %v3401, %v3400
      %v3412 = vpack.c.b16 %v3403, %v3402
      %v3413 = vpack.c.b16 %v3405, %v3404
      %v3415 = vsel %vm2006, %v3406, 0
      %v3418 = vsel %vm2006, %v3407, 0
      %v3421 = vsel %vm2006, %v3408, 0
      %v3424 = vsel %vm2006, %v3409, 0
      %v3427 = vsel %vm2006, %v3410, 0
      %v3430 = vsel %vm2006, %v3411, 0
      %v3433 = vsel %vm2006, %v3412, 0
      %v3436 = vsel %vm2006, %v3413, 0
      %v3439 = vsel %vm2031, %v3373, 0
      %3441 = vmatpush.bf16.msra.mxu0 0
      %3442 = vmatpush.bf16.msra.mxu0 0
      %3443 = vmatpush.bf16.msra.mxu0 0
      %3444 = vmatpush.bf16.msra.mxu0 0
      %3445 = vmatpush.bf16.msra.mxu0 0
      %3446 = vmatpush.bf16.msra.mxu0 0
      %3447 = vmatpush.bf16.msra.mxu0 0
      %3448 = vmatpush.bf16.msra.mxu0 %v3439
      %3449 = vmatmul.bf16.gmra.mxu0 %v3415
      %v3450 = vpop.f32.mrf.mxu0
      %v3451 = vadd.f32 0.0, %v3450
      %v3452 = vpop.f32.mrf.mxu0
      %v3453 = vadd.f32 0.0, %v3452
      %3454 = vmatmul.bf16.gmra.mxu0 %v3418
      %v3455 = vpop.f32.mrf.mxu0
      %v3456 = vadd.f32 0.0, %v3455
      %v3457 = vpop.f32.mrf.mxu0
      %v3458 = vadd.f32 0.0, %v3457
      %3459 = vmatmul.bf16.gmra.mxu0 %v3421
      %v3460 = vpop.f32.mrf.mxu0
      %v3461 = vadd.f32 0.0, %v3460
      %v3462 = vpop.f32.mrf.mxu0
      %v3463 = vadd.f32 0.0, %v3462
      %3464 = vmatmul.bf16.gmra.mxu0 %v3424
      %v3465 = vpop.f32.mrf.mxu0
      %v3466 = vadd.f32 0.0, %v3465
      %v3467 = vpop.f32.mrf.mxu0
      %v3468 = vadd.f32 0.0, %v3467
      %3469 = vmatmul.bf16.gmra.mxu0 %v3427
      %v3470 = vpop.f32.mrf.mxu0
      %v3471 = vadd.f32 0.0, %v3470
      %v3472 = vpop.f32.mrf.mxu0
      %v3473 = vadd.f32 0.0, %v3472
      %3474 = vmatmul.bf16.gmra.mxu0 %v3430
      %v3475 = vpop.f32.mrf.mxu0
      %v3476 = vadd.f32 0.0, %v3475
      %v3477 = vpop.f32.mrf.mxu0
      %v3478 = vadd.f32 0.0, %v3477
      %3479 = vmatmul.bf16.gmra.mxu0 %v3433
      %v3480 = vpop.f32.mrf.mxu0
      %v3481 = vadd.f32 0.0, %v3480
      %v3482 = vpop.f32.mrf.mxu0
      %v3483 = vadd.f32 0.0, %v3482
      %3484 = vmatmul.bf16.gmra.mxu0 %v3436
      %v3485 = vpop.f32.mrf.mxu0
      %v3486 = vadd.f32 0.0, %v3485
      %v3487 = vpop.f32.mrf.mxu0
      %v3488 = vadd.f32 0.0, %v3487
      %3489 = vdwg.mxu0
      %v3490 = vadd.f32 %v3356, %v3451
      %v3491 = vadd.f32 %v3357, %v3453
      %v3492 = vadd.f32 %v3358, %v3456
      %v3493 = vadd.f32 %v3359, %v3458
      %v3494 = vadd.f32 %v3360, %v3461
      %v3495 = vadd.f32 %v3361, %v3463
      %v3496 = vadd.f32 %v3362, %v3466
      %v3497 = vadd.f32 %v3363, %v3468
      %v3498 = vadd.f32 %v3364, %v3471
      %v3499 = vadd.f32 %v3365, %v3473
      %v3500 = vadd.f32 %v3366, %v3476
      %v3501 = vadd.f32 %v3367, %v3478
      %v3502 = vadd.f32 %v3368, %v3481
      %v3503 = vadd.f32 %v3369, %v3483
      %v3504 = vadd.f32 %v3370, %v3486
      %v3505 = vadd.f32 %v3371, %v3488
      %s3506 = scalar_lea.vmem %s7, 4
      %v3507 = vld [vmem:[%s3506] sm:$0x3]
      %v3525 = vunpack.c.l.b16 %v3135
      %v3526 = vunpack.c.l.b16 %v3136
      %v3527 = vunpack.c.l.b16 %v3137
      %v3528 = vunpack.c.l.b16 %v3138
      %v3529 = vunpack.c.l.b16 %v3139
      %v3530 = vunpack.c.l.b16 %v3140
      %v3531 = vunpack.c.l.b16 %v3141
      %v3532 = vunpack.c.l.b16 %v3142
      %v3533 = vunpack.c.l.b16 %v3143
      %v3534 = vunpack.c.l.b16 %v3144
      %v3535 = vunpack.c.l.b16 %v3145
      %v3536 = vunpack.c.l.b16 %v3146
      %v3537 = vunpack.c.l.b16 %v3147
      %v3538 = vunpack.c.l.b16 %v3148
      %v3539 = vunpack.c.l.b16 %v3149
      %v3540 = vunpack.c.l.b16 %v3150
      %v3541 = vunpack.c.l.b16 %v3151
      %v3542 = vpack.c.b16 %v3526, %v3525
      %v3543 = vpack.c.b16 %v3528, %v3527
      %v3544 = vpack.c.b16 %v3530, %v3529
      %v3545 = vpack.c.b16 %v3532, %v3531
      %v3546 = vpack.c.b16 %v3534, %v3533
      %v3547 = vpack.c.b16 %v3536, %v3535
      %v3548 = vpack.c.b16 %v3538, %v3537
      %v3549 = vpack.c.b16 %v3540, %v3539
      %v3550 = vpack.c.b16 %v3541, %v3541
      %v3552 = vshrl.u32 %v3542, 16
      %v3554 = vshll.u32 %v3542, 16
      %v3556 = vrot.slane %v3554, 1
      %v3557 = vor.u32 %v3552, %v3556
      %v3559 = vshll.u32 %v3543, 16
      %v3561 = vrot.slane %v3559, 1
      %v3562 = vsel %vm2329, %v3557, %v3561
      %v3563 = vshrl.u32 %v3543, 16
      %v3565 = vor.u32 %v3563, %v3561
      %v3567 = vshll.u32 %v3544, 16
      %v3569 = vrot.slane %v3567, 1
      %v3570 = vsel %vm2329, %v3565, %v3569
      %v3571 = vshrl.u32 %v3544, 16
      %v3573 = vor.u32 %v3571, %v3569
      %v3575 = vshll.u32 %v3545, 16
      %v3577 = vrot.slane %v3575, 1
      %v3578 = vsel %vm2329, %v3573, %v3577
      %v3579 = vshrl.u32 %v3545, 16
      %v3581 = vor.u32 %v3579, %v3577
      %v3583 = vshll.u32 %v3546, 16
      %v3585 = vrot.slane %v3583, 1
      %v3586 = vsel %vm2329, %v3581, %v3585
      %v3587 = vshrl.u32 %v3546, 16
      %v3589 = vor.u32 %v3587, %v3585
      %v3591 = vshll.u32 %v3547, 16
      %v3593 = vrot.slane %v3591, 1
      %v3594 = vsel %vm2329, %v3589, %v3593
      %v3595 = vshrl.u32 %v3547, 16
      %v3597 = vor.u32 %v3595, %v3593
      %v3599 = vshll.u32 %v3548, 16
      %v3601 = vrot.slane %v3599, 1
      %v3602 = vsel %vm2329, %v3597, %v3601
      %v3603 = vshrl.u32 %v3548, 16
      %v3605 = vor.u32 %v3603, %v3601
      %v3607 = vshll.u32 %v3549, 16
      %v3609 = vrot.slane %v3607, 1
      %v3610 = vsel %vm2329, %v3605, %v3609
      %v3611 = vshrl.u32 %v3549, 16
      %v3613 = vor.u32 %v3611, %v3609
      %v3615 = vshll.u32 %v3550, 16
      %v3617 = vrot.slane %v3615, 1
      %v3618 = vsel %vm2329, %v3613, %v3617
      %v3620 = vsel %vm2006, %v3562, 0
      %v3623 = vsel %vm2006, %v3570, 0
      %v3626 = vsel %vm2006, %v3578, 0
      %v3629 = vsel %vm2006, %v3586, 0
      %v3632 = vsel %vm2006, %v3594, 0
      %v3635 = vsel %vm2006, %v3602, 0
      %v3638 = vsel %vm2006, %v3610, 0
      %v3641 = vsel %vm2006, %v3618, 0
      %v3644 = vsel %vm2031, %v3507, 0
      %3646 = vmatpush.bf16.msra.mxu0 0
      %3647 = vmatpush.bf16.msra.mxu0 0
      %3648 = vmatpush.bf16.msra.mxu0 0
      %3649 = vmatpush.bf16.msra.mxu0 0
      %3650 = vmatpush.bf16.msra.mxu0 0
      %3651 = vmatpush.bf16.msra.mxu0 0
      %3652 = vmatpush.bf16.msra.mxu0 0
      %3653 = vmatpush.bf16.msra.mxu0 %v3644
      %3654 = vmatmul.bf16.gmra.mxu0 %v3620
      %v3655 = vpop.f32.mrf.mxu0
      %v3656 = vadd.f32 0.0, %v3655
      %v3657 = vpop.f32.mrf.mxu0
      %v3658 = vadd.f32 0.0, %v3657
      %3659 = vmatmul.bf16.gmra.mxu0 %v3623
      %v3660 = vpop.f32.mrf.mxu0
      %v3661 = vadd.f32 0.0, %v3660
      %v3662 = vpop.f32.mrf.mxu0
      %v3663 = vadd.f32 0.0, %v3662
      %3664 = vmatmul.bf16.gmra.mxu0 %v3626
      %v3665 = vpop.f32.mrf.mxu0
      %v3666 = vadd.f32 0.0, %v3665
      %v3667 = vpop.f32.mrf.mxu0
      %v3668 = vadd.f32 0.0, %v3667
      %3669 = vmatmul.bf16.gmra.mxu0 %v3629
      %v3670 = vpop.f32.mrf.mxu0
      %v3671 = vadd.f32 0.0, %v3670
      %v3672 = vpop.f32.mrf.mxu0
      %v3673 = vadd.f32 0.0, %v3672
      %3674 = vmatmul.bf16.gmra.mxu0 %v3632
      %v3675 = vpop.f32.mrf.mxu0
      %v3676 = vadd.f32 0.0, %v3675
      %v3677 = vpop.f32.mrf.mxu0
      %v3678 = vadd.f32 0.0, %v3677
      %3679 = vmatmul.bf16.gmra.mxu0 %v3635
      %v3680 = vpop.f32.mrf.mxu0
      %v3681 = vadd.f32 0.0, %v3680
      %v3682 = vpop.f32.mrf.mxu0
      %v3683 = vadd.f32 0.0, %v3682
      %3684 = vmatmul.bf16.gmra.mxu0 %v3638
      %v3685 = vpop.f32.mrf.mxu0
      %v3686 = vadd.f32 0.0, %v3685
      %v3687 = vpop.f32.mrf.mxu0
      %v3688 = vadd.f32 0.0, %v3687
      %3689 = vmatmul.bf16.gmra.mxu0 %v3641
      %v3690 = vpop.f32.mrf.mxu0
      %v3691 = vadd.f32 0.0, %v3690
      %v3692 = vpop.f32.mrf.mxu0
      %v3693 = vadd.f32 0.0, %v3692
      %3694 = vdwg.mxu0
      %v3695 = vadd.f32 %v3490, %v3656
      %v3696 = vadd.f32 %v3491, %v3658
      %v3697 = vadd.f32 %v3492, %v3661
      %v3698 = vadd.f32 %v3493, %v3663
      %v3699 = vadd.f32 %v3494, %v3666
      %v3700 = vadd.f32 %v3495, %v3668
      %v3701 = vadd.f32 %v3496, %v3671
      %v3702 = vadd.f32 %v3497, %v3673
      %v3703 = vadd.f32 %v3498, %v3676
      %v3704 = vadd.f32 %v3499, %v3678
      %v3705 = vadd.f32 %v3500, %v3681
      %v3706 = vadd.f32 %v3501, %v3683
      %v3707 = vadd.f32 %v3502, %v3686
      %v3708 = vadd.f32 %v3503, %v3688
      %v3709 = vadd.f32 %v3504, %v3691
      %v3710 = vadd.f32 %v3505, %v3693
      %s3711 = scalar_lea.vmem %s7, 6
      %v3712 = vld [vmem:[%s3711] sm:$0x3]
      %v3715 = vunpack.c.l.b16 %v3130
      %v3716 = vunpack.c.l.b16 %v3131
      %v3717 = vpack.c.b16 %v3715, %v3190
      %v3718 = vpack.c.b16 %v3716, %v3716
      %v3720 = vshrl.u32 %v3717, 16
      %v3722 = vrot.slane %v3720, 3
      %v3723 = vshll.u32 %v3717, 16
      %v3725 = vrot.slane %v3723, 4
      %v3726 = vor.u32 %v3722, %v3725
      %v3727 = vsel %vm2127, %v3269, %v3726
      %v3729 = vshrl.u32 %v3718, 16
      %v3731 = vrot.slane %v3729, 3
      %v3732 = vshll.u32 %v3718, 16
      %v3734 = vrot.slane %v3732, 4
      %v3735 = vor.u32 %v3731, %v3734
      %v3736 = vsel %vm2127, %v3726, %v3735
      %v3738 = vsel %vm2006, %v3727, 0
      %v3741 = vsel %vm2006, %v3736, 0
      %v3744 = vsel %vm2031, %v3712, 0
      %3746 = vmatpush.bf16.msra.mxu0 0
      %3747 = vmatpush.bf16.msra.mxu0 0
      %3748 = vmatpush.bf16.msra.mxu0 0
      %3749 = vmatpush.bf16.msra.mxu0 0
      %3750 = vmatpush.bf16.msra.mxu0 0
      %3751 = vmatpush.bf16.msra.mxu0 0
      %3752 = vmatpush.bf16.msra.mxu0 0
      %3753 = vmatpush.bf16.msra.mxu0 %v3744
      %3754 = vmatmul.bf16.gmra.mxu0 %v3284
      %v3755 = vpop.f32.mrf.mxu0
      %v3756 = vadd.f32 0.0, %v3755
      %v3757 = vpop.f32.mrf.mxu0
      %v3758 = vadd.f32 0.0, %v3757
      %3759 = vmatmul.bf16.gmra.mxu0 %v3287
      %v3760 = vpop.f32.mrf.mxu0
      %v3761 = vadd.f32 0.0, %v3760
      %v3762 = vpop.f32.mrf.mxu0
      %v3763 = vadd.f32 0.0, %v3762
      %3764 = vmatmul.bf16.gmra.mxu0 %v3290
      %v3765 = vpop.f32.mrf.mxu0
      %v3766 = vadd.f32 0.0, %v3765
      %v3767 = vpop.f32.mrf.mxu0
      %v3768 = vadd.f32 0.0, %v3767
      %3769 = vmatmul.bf16.gmra.mxu0 %v3293
      %v3770 = vpop.f32.mrf.mxu0
      %v3771 = vadd.f32 0.0, %v3770
      %v3772 = vpop.f32.mrf.mxu0
      %v3773 = vadd.f32 0.0, %v3772
      %3774 = vmatmul.bf16.gmra.mxu0 %v3296
      %v3775 = vpop.f32.mrf.mxu0
      %v3776 = vadd.f32 0.0, %v3775
      %v3777 = vpop.f32.mrf.mxu0
      %v3778 = vadd.f32 0.0, %v3777
      %3779 = vmatmul.bf16.gmra.mxu0 %v3299
      %v3780 = vpop.f32.mrf.mxu0
      %v3781 = vadd.f32 0.0, %v3780
      %v3782 = vpop.f32.mrf.mxu0
      %v3783 = vadd.f32 0.0, %v3782
      %3784 = vmatmul.bf16.gmra.mxu0 %v3738
      %v3785 = vpop.f32.mrf.mxu0
      %v3786 = vadd.f32 0.0, %v3785
      %v3787 = vpop.f32.mrf.mxu0
      %v3788 = vadd.f32 0.0, %v3787
      %3789 = vmatmul.bf16.gmra.mxu0 %v3741
      %v3790 = vpop.f32.mrf.mxu0
      %v3791 = vadd.f32 0.0, %v3790
      %v3792 = vpop.f32.mrf.mxu0
      %v3793 = vadd.f32 0.0, %v3792
      %3794 = vdwg.mxu0
      %v3795 = vadd.f32 %v3695, %v3756
      %v3796 = vadd.f32 %v3696, %v3758
      %v3797 = vadd.f32 %v3697, %v3761
      %v3798 = vadd.f32 %v3698, %v3763
      %v3799 = vadd.f32 %v3699, %v3766
      %v3800 = vadd.f32 %v3700, %v3768
      %v3801 = vadd.f32 %v3701, %v3771
      %v3802 = vadd.f32 %v3702, %v3773
      %v3803 = vadd.f32 %v3703, %v3776
      %v3804 = vadd.f32 %v3704, %v3778
      %v3805 = vadd.f32 %v3705, %v3781
      %v3806 = vadd.f32 %v3706, %v3783
      %v3807 = vadd.f32 %v3707, %v3786
      %v3808 = vadd.f32 %v3708, %v3788
      %v3809 = vadd.f32 %v3709, %v3791
      %v3810 = vadd.f32 %v3710, %v3793
      %s3811 = scalar_lea.vmem %s7, 8
      %v3812 = vld [vmem:[%s3811] sm:$0x3]
      %v3815 = vunpack.c.l.b16 %v3108
      %v3816 = vunpack.c.l.b16 %v3109
      %v3817 = vpack.c.b16 %v3816, %v3815
      %v3819 = vsel %vm2006, %v3817, 0
      %v3822 = vsel %vm2031, %v3812, 0
      %3824 = vmatpush.bf16.msra.mxu0 0
      %3825 = vmatpush.bf16.msra.mxu0 0
      %3826 = vmatpush.bf16.msra.mxu0 0
      %3827 = vmatpush.bf16.msra.mxu0 0
      %3828 = vmatpush.bf16.msra.mxu0 0
      %3829 = vmatpush.bf16.msra.mxu0 0
      %3830 = vmatpush.bf16.msra.mxu0 0
      %3831 = vmatpush.bf16.msra.mxu0 %v3822
      %3832 = vmatmul.bf16.gmra.mxu0 %v3418
      %v3833 = vpop.f32.mrf.mxu0
      %v3834 = vadd.f32 0.0, %v3833
      %v3835 = vpop.f32.mrf.mxu0
      %v3836 = vadd.f32 0.0, %v3835
      %3837 = vmatmul.bf16.gmra.mxu0 %v3421
      %v3838 = vpop.f32.mrf.mxu0
      %v3839 = vadd.f32 0.0, %v3838
      %v3840 = vpop.f32.mrf.mxu0
      %v3841 = vadd.f32 0.0, %v3840
      %3842 = vmatmul.bf16.gmra.mxu0 %v3424
      %v3843 = vpop.f32.mrf.mxu0
      %v3844 = vadd.f32 0.0, %v3843
      %v3845 = vpop.f32.mrf.mxu0
      %v3846 = vadd.f32 0.0, %v3845
      %3847 = vmatmul.bf16.gmra.mxu0 %v3427
      %v3848 = vpop.f32.mrf.mxu0
      %v3849 = vadd.f32 0.0, %v3848
      %v3850 = vpop.f32.mrf.mxu0
      %v3851 = vadd.f32 0.0, %v3850
      %3852 = vmatmul.bf16.gmra.mxu0 %v3430
      %v3853 = vpop.f32.mrf.mxu0
      %v3854 = vadd.f32 0.0, %v3853
      %v3855 = vpop.f32.mrf.mxu0
      %v3856 = vadd.f32 0.0, %v3855
      %3857 = vmatmul.bf16.gmra.mxu0 %v3433
      %v3858 = vpop.f32.mrf.mxu0
      %v3859 = vadd.f32 0.0, %v3858
      %v3860 = vpop.f32.mrf.mxu0
      %v3861 = vadd.f32 0.0, %v3860
      %3862 = vmatmul.bf16.gmra.mxu0 %v3436
      %v3863 = vpop.f32.mrf.mxu0
      %v3864 = vadd.f32 0.0, %v3863
      %v3865 = vpop.f32.mrf.mxu0
      %v3866 = vadd.f32 0.0, %v3865
      %3867 = vmatmul.bf16.gmra.mxu0 %v3819
      %v3868 = vpop.f32.mrf.mxu0
      %v3869 = vadd.f32 0.0, %v3868
      %v3870 = vpop.f32.mrf.mxu0
      %v3871 = vadd.f32 0.0, %v3870
      %3872 = vdwg.mxu0
      %v3873 = vadd.f32 %v3795, %v3834
      %v3874 = vadd.f32 %v3796, %v3836
      %v3875 = vadd.f32 %v3797, %v3839
      %v3876 = vadd.f32 %v3798, %v3841
      %v3877 = vadd.f32 %v3799, %v3844
      %v3878 = vadd.f32 %v3800, %v3846
      %v3879 = vadd.f32 %v3801, %v3849
      %v3880 = vadd.f32 %v3802, %v3851
      %v3881 = vadd.f32 %v3803, %v3854
      %v3882 = vadd.f32 %v3804, %v3856
      %v3883 = vadd.f32 %v3805, %v3859
      %v3884 = vadd.f32 %v3806, %v3861
      %v3885 = vadd.f32 %v3807, %v3864
      %v3886 = vadd.f32 %v3808, %v3866
      %v3887 = vadd.f32 %v3809, %v3869
      %v3888 = vadd.f32 %v3810, %v3871
      %s3889 = scalar_lea.vmem %s7, 10
      %v3890 = vld [vmem:[%s3889] sm:$0x3]
      %v3893 = vunpack.c.l.b16 %v3152
      %v3894 = vunpack.c.l.b16 %v3153
      %v3895 = vpack.c.b16 %v3893, %v3541
      %v3896 = vpack.c.b16 %v3894, %v3894
      %v3898 = vshll.u32 %v3895, 16
      %v3900 = vrot.slane %v3898, 1
      %v3901 = vsel %vm2329, %v3613, %v3900
      %v3902 = vshrl.u32 %v3895, 16
      %v3904 = vor.u32 %v3902, %v3900
      %v3906 = vshll.u32 %v3896, 16
      %v3908 = vrot.slane %v3906, 1
      %v3909 = vsel %vm2329, %v3904, %v3908
      %v3911 = vsel %vm2006, %v3901, 0
      %v3914 = vsel %vm2006, %v3909, 0
      %v3917 = vsel %vm2031, %v3890, 0
      %3919 = vmatpush.bf16.msra.mxu0 0
      %3920 = vmatpush.bf16.msra.mxu0 0
      %3921 = vmatpush.bf16.msra.mxu0 0
      %3922 = vmatpush.bf16.msra.mxu0 0
      %3923 = vmatpush.bf16.msra.mxu0 0
      %3924 = vmatpush.bf16.msra.mxu0 0
      %3925 = vmatpush.bf16.msra.mxu0 0
      %3926 = vmatpush.bf16.msra.mxu0 %v3917
      %3927 = vmatmul.bf16.gmra.mxu0 %v3623
      %v3928 = vpop.f32.mrf.mxu0
      %v3929 = vadd.f32 0.0, %v3928
      %v3930 = vpop.f32.mrf.mxu0
      %v3931 = vadd.f32 0.0, %v3930
      %3932 = vmatmul.bf16.gmra.mxu0 %v3626
      %v3933 = vpop.f32.mrf.mxu0
      %v3934 = vadd.f32 0.0, %v3933
      %v3935 = vpop.f32.mrf.mxu0
      %v3936 = vadd.f32 0.0, %v3935
      %3937 = vmatmul.bf16.gmra.mxu0 %v3629
      %v3938 = vpop.f32.mrf.mxu0
      %v3939 = vadd.f32 0.0, %v3938
      %v3940 = vpop.f32.mrf.mxu0
      %v3941 = vadd.f32 0.0, %v3940
      %3942 = vmatmul.bf16.gmra.mxu0 %v3632
      %v3943 = vpop.f32.mrf.mxu0
      %v3944 = vadd.f32 0.0, %v3943
      %v3945 = vpop.f32.mrf.mxu0
      %v3946 = vadd.f32 0.0, %v3945
      %3947 = vmatmul.bf16.gmra.mxu0 %v3635
      %v3948 = vpop.f32.mrf.mxu0
      %v3949 = vadd.f32 0.0, %v3948
      %v3950 = vpop.f32.mrf.mxu0
      %v3951 = vadd.f32 0.0, %v3950
      %3952 = vmatmul.bf16.gmra.mxu0 %v3638
      %v3953 = vpop.f32.mrf.mxu0
      %v3954 = vadd.f32 0.0, %v3953
      %v3955 = vpop.f32.mrf.mxu0
      %v3956 = vadd.f32 0.0, %v3955
      %3957 = vmatmul.bf16.gmra.mxu0 %v3911
      %v3958 = vpop.f32.mrf.mxu0
      %v3959 = vadd.f32 0.0, %v3958
      %v3960 = vpop.f32.mrf.mxu0
      %v3961 = vadd.f32 0.0, %v3960
      %3962 = vmatmul.bf16.gmra.mxu0 %v3914
      %v3963 = vpop.f32.mrf.mxu0
      %v3964 = vadd.f32 0.0, %v3963
      %v3965 = vpop.f32.mrf.mxu0
      %v3966 = vadd.f32 0.0, %v3965
      %3967 = vdwg.mxu0
      %v3968 = vadd.f32 %v3873, %v3929
      %v3969 = vadd.f32 %v3874, %v3931
      %v3970 = vadd.f32 %v3875, %v3934
      %v3971 = vadd.f32 %v3876, %v3936
      %v3972 = vadd.f32 %v3877, %v3939
      %v3973 = vadd.f32 %v3878, %v3941
      %v3974 = vadd.f32 %v3879, %v3944
      %v3975 = vadd.f32 %v3880, %v3946
      %v3976 = vadd.f32 %v3881, %v3949
      %v3977 = vadd.f32 %v3882, %v3951
      %v3978 = vadd.f32 %v3883, %v3954
      %v3979 = vadd.f32 %v3884, %v3956
      %v3980 = vadd.f32 %v3885, %v3959
      %v3981 = vadd.f32 %v3886, %v3961
      %v3982 = vadd.f32 %v3887, %v3964
      %v3983 = vadd.f32 %v3888, %v3966
      %s3984 = scalar_lea.vmem %s7, 12
      %v3985 = vld [vmem:[%s3984] sm:$0x3]
      %v3988 = vunpack.c.l.b16 %v3132
      %v3989 = vunpack.c.l.b16 %v3133
      %v3990 = vpack.c.b16 %v3988, %v3716
      %v3991 = vpack.c.b16 %v3989, %v3989
      %v3993 = vshrl.u32 %v3990, 16
      %v3995 = vrot.slane %v3993, 3
      %v3996 = vshll.u32 %v3990, 16
      %v3998 = vrot.slane %v3996, 4
      %v3999 = vor.u32 %v3995, %v3998
      %v4000 = vsel %vm2127, %v3726, %v3999
      %v4002 = vshrl.u32 %v3991, 16
      %v4004 = vrot.slane %v4002, 3
      %v4005 = vshll.u32 %v3991, 16
      %v4007 = vrot.slane %v4005, 4
      %v4008 = vor.u32 %v4004, %v4007
      %v4009 = vsel %vm2127, %v3999, %v4008
      %v4011 = vsel %vm2006, %v4000, 0
      %v4014 = vsel %vm2006, %v4009, 0
      %v4017 = vsel %vm2031, %v3985, 0
      %4019 = vmatpush.bf16.msra.mxu0 0
      %4020 = vmatpush.bf16.msra.mxu0 0
      %4021 = vmatpush.bf16.msra.mxu0 0
      %4022 = vmatpush.bf16.msra.mxu0 0
      %4023 = vmatpush.bf16.msra.mxu0 0
      %4024 = vmatpush.bf16.msra.mxu0 0
      %4025 = vmatpush.bf16.msra.mxu0 0
      %4026 = vmatpush.bf16.msra.mxu0 %v4017
      %4027 = vmatmul.bf16.gmra.mxu0 %v3287
      %v4028 = vpop.f32.mrf.mxu0
      %v4029 = vadd.f32 0.0, %v4028
      %v4030 = vpop.f32.mrf.mxu0
      %v4031 = vadd.f32 0.0, %v4030
      %4032 = vmatmul.bf16.gmra.mxu0 %v3290
      %v4033 = vpop.f32.mrf.mxu0
      %v4034 = vadd.f32 0.0, %v4033
      %v4035 = vpop.f32.mrf.mxu0
      %v4036 = vadd.f32 0.0, %v4035
      %4037 = vmatmul.bf16.gmra.mxu0 %v3293
      %v4038 = vpop.f32.mrf.mxu0
      %v4039 = vadd.f32 0.0, %v4038
      %v4040 = vpop.f32.mrf.mxu0
      %v4041 = vadd.f32 0.0, %v4040
      %4042 = vmatmul.bf16.gmra.mxu0 %v3296
      %v4043 = vpop.f32.mrf.mxu0
      %v4044 = vadd.f32 0.0, %v4043
      %v4045 = vpop.f32.mrf.mxu0
      %v4046 = vadd.f32 0.0, %v4045
      %4047 = vmatmul.bf16.gmra.mxu0 %v3299
      %v4048 = vpop.f32.mrf.mxu0
      %v4049 = vadd.f32 0.0, %v4048
      %v4050 = vpop.f32.mrf.mxu0
      %v4051 = vadd.f32 0.0, %v4050
      %4052 = vmatmul.bf16.gmra.mxu0 %v3738
      %v4053 = vpop.f32.mrf.mxu0
      %v4054 = vadd.f32 0.0, %v4053
      %v4055 = vpop.f32.mrf.mxu0
      %v4056 = vadd.f32 0.0, %v4055
      %4057 = vmatmul.bf16.gmra.mxu0 %v4011
      %v4058 = vpop.f32.mrf.mxu0
      %v4059 = vadd.f32 0.0, %v4058
      %v4060 = vpop.f32.mrf.mxu0
      %v4061 = vadd.f32 0.0, %v4060
      %4062 = vmatmul.bf16.gmra.mxu0 %v4014
      %v4063 = vpop.f32.mrf.mxu0
      %v4064 = vadd.f32 0.0, %v4063
      %v4065 = vpop.f32.mrf.mxu0
      %v4066 = vadd.f32 0.0, %v4065
      %4067 = vdwg.mxu0
      %v4068 = vadd.f32 %v3968, %v4029
      %v4069 = vadd.f32 %v3969, %v4031
      %v4070 = vadd.f32 %v3970, %v4034
      %v4071 = vadd.f32 %v3971, %v4036
      %v4072 = vadd.f32 %v3972, %v4039
      %v4073 = vadd.f32 %v3973, %v4041
      %v4074 = vadd.f32 %v3974, %v4044
      %v4075 = vadd.f32 %v3975, %v4046
      %v4076 = vadd.f32 %v3976, %v4049
      %v4077 = vadd.f32 %v3977, %v4051
      %v4078 = vadd.f32 %v3978, %v4054
      %v4079 = vadd.f32 %v3979, %v4056
      %v4080 = vadd.f32 %v3980, %v4059
      %v4081 = vadd.f32 %v3981, %v4061
      %v4082 = vadd.f32 %v3982, %v4064
      %v4083 = vadd.f32 %v3983, %v4066
      %s4084 = scalar_lea.vmem %s7, 14
      %v4085 = vld [vmem:[%s4084] sm:$0x3]
      %v4088 = vunpack.c.l.b16 %v3110
      %v4089 = vunpack.c.l.b16 %v3111
      %v4090 = vpack.c.b16 %v4089, %v4088
      %v4092 = vsel %vm2006, %v4090, 0
      %v4095 = vsel %vm2031, %v4085, 0
      %4097 = vmatpush.bf16.msra.mxu0 0
      %4098 = vmatpush.bf16.msra.mxu0 0
      %4099 = vmatpush.bf16.msra.mxu0 0
      %4100 = vmatpush.bf16.msra.mxu0 0
      %4101 = vmatpush.bf16.msra.mxu0 0
      %4102 = vmatpush.bf16.msra.mxu0 0
      %4103 = vmatpush.bf16.msra.mxu0 0
      %4104 = vmatpush.bf16.msra.mxu0 %v4095
      %4105 = vmatmul.bf16.gmra.mxu0 %v3421
      %v4106 = vpop.f32.mrf.mxu0
      %v4107 = vadd.f32 0.0, %v4106
      %v4108 = vpop.f32.mrf.mxu0
      %v4109 = vadd.f32 0.0, %v4108
      %4110 = vmatmul.bf16.gmra.mxu0 %v3424
      %v4111 = vpop.f32.mrf.mxu0
      %v4112 = vadd.f32 0.0, %v4111
      %v4113 = vpop.f32.mrf.mxu0
      %v4114 = vadd.f32 0.0, %v4113
      %4115 = vmatmul.bf16.gmra.mxu0 %v3427
      %v4116 = vpop.f32.mrf.mxu0
      %v4117 = vadd.f32 0.0, %v4116
      %v4118 = vpop.f32.mrf.mxu0
      %v4119 = vadd.f32 0.0, %v4118
      %4120 = vmatmul.bf16.gmra.mxu0 %v3430
      %v4121 = vpop.f32.mrf.mxu0
      %v4122 = vadd.f32 0.0, %v4121
      %v4123 = vpop.f32.mrf.mxu0
      %v4124 = vadd.f32 0.0, %v4123
      %4125 = vmatmul.bf16.gmra.mxu0 %v3433
      %v4126 = vpop.f32.mrf.mxu0
      %v4127 = vadd.f32 0.0, %v4126
      %v4128 = vpop.f32.mrf.mxu0
      %v4129 = vadd.f32 0.0, %v4128
      %4130 = vmatmul.bf16.gmra.mxu0 %v3436
      %v4131 = vpop.f32.mrf.mxu0
      %v4132 = vadd.f32 0.0, %v4131
      %v4133 = vpop.f32.mrf.mxu0
      %v4134 = vadd.f32 0.0, %v4133
      %4135 = vmatmul.bf16.gmra.mxu0 %v3819
      %v4136 = vpop.f32.mrf.mxu0
      %v4137 = vadd.f32 0.0, %v4136
      %v4138 = vpop.f32.mrf.mxu0
      %v4139 = vadd.f32 0.0, %v4138
      %4140 = vmatmul.bf16.gmra.mxu0 %v4092
      %v4141 = vpop.f32.mrf.mxu0
      %v4142 = vadd.f32 0.0, %v4141
      %v4143 = vpop.f32.mrf.mxu0
      %v4144 = vadd.f32 0.0, %v4143
      %4145 = vdwg.mxu0
      %v4146 = vadd.f32 %v4068, %v4107
      %v4147 = vadd.f32 %v4069, %v4109
      %v4148 = vadd.f32 %v4070, %v4112
      %v4149 = vadd.f32 %v4071, %v4114
      %v4150 = vadd.f32 %v4072, %v4117
      %v4151 = vadd.f32 %v4073, %v4119
      %v4152 = vadd.f32 %v4074, %v4122
      %v4153 = vadd.f32 %v4075, %v4124
      %v4154 = vadd.f32 %v4076, %v4127
      %v4155 = vadd.f32 %v4077, %v4129
      %v4156 = vadd.f32 %v4078, %v4132
      %v4157 = vadd.f32 %v4079, %v4134
      %v4158 = vadd.f32 %v4080, %v4137
      %v4159 = vadd.f32 %v4081, %v4139
      %v4160 = vadd.f32 %v4082, %v4142
      %v4161 = vadd.f32 %v4083, %v4144
      %s4162 = scalar_lea.vmem %s7, 16
      %v4163 = vld [vmem:[%s4162] sm:$0x3]
      %v4166 = vunpack.c.l.b16 %v3154
      %v4167 = vunpack.c.l.b16 %v3155
      %v4168 = vpack.c.b16 %v4166, %v3894
      %v4169 = vpack.c.b16 %v4167, %v4167
      %v4171 = vshll.u32 %v4168, 16
      %v4173 = vrot.slane %v4171, 1
      %v4174 = vsel %vm2329, %v3904, %v4173
      %v4175 = vshrl.u32 %v4168, 16
      %v4177 = vor.u32 %v4175, %v4173
      %v4179 = vshll.u32 %v4169, 16
      %v4181 = vrot.slane %v4179, 1
      %v4182 = vsel %vm2329, %v4177, %v4181
      %v4184 = vsel %vm2006, %v4174, 0
      %v4187 = vsel %vm2006, %v4182, 0
      %v4190 = vsel %vm2031, %v4163, 0
      %4192 = vmatpush.bf16.msra.mxu0 0
      %4193 = vmatpush.bf16.msra.mxu0 0
      %4194 = vmatpush.bf16.msra.mxu0 0
      %4195 = vmatpush.bf16.msra.mxu0 0
      %4196 = vmatpush.bf16.msra.mxu0 0
      %4197 = vmatpush.bf16.msra.mxu0 0
      %4198 = vmatpush.bf16.msra.mxu0 0
      %4199 = vmatpush.bf16.msra.mxu0 %v4190
      %4200 = vmatmul.bf16.gmra.mxu0 %v3626
      %v4201 = vpop.f32.mrf.mxu0
      %v4202 = vadd.f32 0.0, %v4201
      %v4203 = vpop.f32.mrf.mxu0
      %v4204 = vadd.f32 0.0, %v4203
      %4205 = vmatmul.bf16.gmra.mxu0 %v3629
      %v4206 = vpop.f32.mrf.mxu0
      %v4207 = vadd.f32 0.0, %v4206
      %v4208 = vpop.f32.mrf.mxu0
      %v4209 = vadd.f32 0.0, %v4208
      %4210 = vmatmul.bf16.gmra.mxu0 %v3632
      %v4211 = vpop.f32.mrf.mxu0
      %v4212 = vadd.f32 0.0, %v4211
      %v4213 = vpop.f32.mrf.mxu0
      %v4214 = vadd.f32 0.0, %v4213
      %4215 = vmatmul.bf16.gmra.mxu0 %v3635
      %v4216 = vpop.f32.mrf.mxu0
      %v4217 = vadd.f32 0.0, %v4216
      %v4218 = vpop.f32.mrf.mxu0
      %v4219 = vadd.f32 0.0, %v4218
      %4220 = vmatmul.bf16.gmra.mxu0 %v3638
      %v4221 = vpop.f32.mrf.mxu0
      %v4222 = vadd.f32 0.0, %v4221
      %v4223 = vpop.f32.mrf.mxu0
      %v4224 = vadd.f32 0.0, %v4223
      %4225 = vmatmul.bf16.gmra.mxu0 %v3911
      %v4226 = vpop.f32.mrf.mxu0
      %v4227 = vadd.f32 0.0, %v4226
      %v4228 = vpop.f32.mrf.mxu0
      %v4229 = vadd.f32 0.0, %v4228
      %4230 = vmatmul.bf16.gmra.mxu0 %v4184
      %v4231 = vpop.f32.mrf.mxu0
      %v4232 = vadd.f32 0.0, %v4231
      %v4233 = vpop.f32.mrf.mxu0
      %v4234 = vadd.f32 0.0, %v4233
      %4235 = vmatmul.bf16.gmra.mxu0 %v4187
      %v4236 = vpop.f32.mrf.mxu0
      %v4237 = vadd.f32 0.0, %v4236
      %v4238 = vpop.f32.mrf.mxu0
      %v4239 = vadd.f32 0.0, %v4238
      %4240 = vdwg.mxu0
      %v4241 = vadd.f32 %v4146, %v4202
      %v4242 = vadd.f32 %v4147, %v4204
      %v4243 = vadd.f32 %v4148, %v4207
      %v4244 = vadd.f32 %v4149, %v4209
      %v4245 = vadd.f32 %v4150, %v4212
      %v4246 = vadd.f32 %v4151, %v4214
      %v4247 = vadd.f32 %v4152, %v4217
      %v4248 = vadd.f32 %v4153, %v4219
      %v4249 = vadd.f32 %v4154, %v4222
      %v4250 = vadd.f32 %v4155, %v4224
      %v4251 = vadd.f32 %v4156, %v4227
      %v4252 = vadd.f32 %v4157, %v4229
      %v4253 = vadd.f32 %v4158, %v4232
      %v4254 = vadd.f32 %v4159, %v4234
      %v4255 = vadd.f32 %v4160, %v4237
      %v4256 = vadd.f32 %v4161, %v4239
      %v4257 = vld [vmem:[%s8] sm:$0x1]
      %v4259 = vperm.slane %v4257, 0
      %v4261 = vadd.f32 %v4241, %v4259
      %v4262 = vadd.f32 %v4242, %v4259
      %v4263 = vadd.f32 %v4243, %v4259
      %v4264 = vadd.f32 %v4244, %v4259
      %v4265 = vadd.f32 %v4245, %v4259
      %v4266 = vadd.f32 %v4246, %v4259
      %v4267 = vadd.f32 %v4247, %v4259
      %v4268 = vadd.f32 %v4248, %v4259
      %v4269 = vadd.f32 %v4249, %v4259
      %v4270 = vadd.f32 %v4250, %v4259
      %v4271 = vadd.f32 %v4251, %v4259
      %v4272 = vadd.f32 %v4252, %v4259
      %v4273 = vadd.f32 %v4253, %v4259
      %v4274 = vadd.f32 %v4254, %v4259
      %v4275 = vadd.f32 %v4255, %v4259
      %v4276 = vadd.f32 %v4256, %v4259
      %v4277 = vmax.f32 %v4261, 0.0
      %v4278 = vmax.f32 %v4262, 0.0
      %v4279 = vmax.f32 %v4263, 0.0
      %v4280 = vmax.f32 %v4264, 0.0
      %v4281 = vmax.f32 %v4265, 0.0
      %v4282 = vmax.f32 %v4266, 0.0
      %v4283 = vmax.f32 %v4267, 0.0
      %v4284 = vmax.f32 %v4268, 0.0
      %v4285 = vmax.f32 %v4269, 0.0
      %v4286 = vmax.f32 %v4270, 0.0
      %v4287 = vmax.f32 %v4271, 0.0
      %v4288 = vmax.f32 %v4272, 0.0
      %v4289 = vmax.f32 %v4273, 0.0
      %v4290 = vmax.f32 %v4274, 0.0
      %v4291 = vmax.f32 %v4275, 0.0
      %v4292 = vmax.f32 %v4276, 0.0
      %v4293 = vpack.c.bf16 %v4277, %v4277
      %v4294 = vpack.c.bf16 %v4278, %v4278
      %v4295 = vpack.c.bf16 %v4279, %v4279
      %v4296 = vpack.c.bf16 %v4280, %v4280
      %v4297 = vpack.c.bf16 %v4281, %v4281
      %v4298 = vpack.c.bf16 %v4282, %v4282
      %v4299 = vpack.c.bf16 %v4283, %v4283
      %v4300 = vpack.c.bf16 %v4284, %v4284
      %v4301 = vpack.c.bf16 %v4285, %v4285
      %v4302 = vpack.c.bf16 %v4286, %v4286
      %v4303 = vpack.c.bf16 %v4287, %v4287
      %v4304 = vpack.c.bf16 %v4288, %v4288
      %v4305 = vpack.c.bf16 %v4289, %v4289
      %v4306 = vpack.c.bf16 %v4290, %v4290
      %v4307 = vpack.c.bf16 %v4291, %v4291
      %v4308 = vpack.c.bf16 %v4292, %v4292
      %4309 = vst.msk [vmem:[%s662] sm:$0xf] %vm994, %v4293
      %4310 = vst.msk [vmem:[%s662 + $0x4] sm:$0xf] %vm994, %v4294
      %4311 = vst.msk [vmem:[%s662 + $0x8] sm:$0xf] %vm994, %v4295
      %4312 = vst.msk [vmem:[%s662 + $0xc] sm:$0xf] %vm994, %v4296
      %4313 = vst.msk [vmem:[%s662 + $0x10] sm:$0xf] %vm994, %v4297
      %4314 = vst.msk [vmem:[%s662 + $0x14] sm:$0xf] %vm994, %v4298
      %4315 = vst.msk [vmem:[%s662 + $0x18] sm:$0xf] %vm994, %v4299
      %4316 = vst.msk [vmem:[%s662 + $0x1c] sm:$0xf] %vm994, %v4300
      %4317 = vst.msk [vmem:[%s662 + $0x20] sm:$0xf] %vm994, %v4301
      %4318 = vst.msk [vmem:[%s662 + $0x24] sm:$0xf] %vm994, %v4302
      %4319 = vst.msk [vmem:[%s662 + $0x28] sm:$0xf] %vm994, %v4303
      %4320 = vst.msk [vmem:[%s662 + $0x2c] sm:$0xf] %vm994, %v4304
      %4321 = vst.msk [vmem:[%s662 + $0x30] sm:$0xf] %vm994, %v4305
      %4322 = vst.msk [vmem:[%s662 + $0x34] sm:$0xf] %vm994, %v4306
      %4323 = vst.msk [vmem:[%s662 + $0x38] sm:$0xf] %vm994, %v4307
      %4324 = vst.msk [vmem:[%s662 + $0x3c] sm:$0xf] %vm994, %v4308
      %s4325 = smul.u32 8, %s25
      %p4326 = scmp.lt.s32.totalorder %s24, 1
      %s4327 = scalar_select %p4326, %s24, 1
      %p4328 = scmp.lt.s32.totalorder %s4325, 15
      %s4329 = scalar_select %p4328, %s4325, 15
      %s4330 = smul.addr %s4329, 2
      %s4331 = smul.addr %s4327, 32
      %s4332 = sadd.s32 %s4330, %s4331
      %s4333 = smul.addr %s4332, 4
      %s4334 = scalar_lea.vmem %s9, %s4333
      // Predicated region
      $region57: #{up_conv_forward.4} parent=55 // pred_check
        %p4335 = pneg %p315
      $region58: #{up_conv_forward.4} parent=55 // pred_check_branch
        %4337 = sbr.rel (%p4335) target = $region60
      $region59: #{up_conv_forward.4} parent=55 // pred_region
        %s4338 = smul.u32 8, %s25
      $region60: #{up_conv_forward.4} parent=55 // pred_fallthru
        _
    $region56: #{up_conv_forward.4} parent=5 // pred_fallthru
      _
    %p4339 = scmp.le.s32.totalorder 2, %s15
    // Predicated region
    $region61: #{up_conv_forward.4} parent=5 // pred_check
      %p4340 = pneg %p4339
    $region62: #{up_conv_forward.4} parent=5 // pred_check_branch
      %4342 = sbr.rel (%p4340) target = $region64
    $region63: #{up_conv_forward.4} parent=5 // pred_region
      %s4343 = ssub.s32 %s15, 2
      // Predicated region
      $region65: #{up_conv_forward.4} parent=63 // pred_check
        %p4344 = pneg %p321
      $region66: #{up_conv_forward.4} parent=63 // pred_check_branch
        %4346 = sbr.rel (%p4344) target = $region68
      $region67: #{up_conv_forward.4} parent=63 // pred_region
        %s4347 = smul.u32 8, %s27
        %p4348 = scmp.lt.s32.totalorder %s26, 1
        %s4349 = scalar_select %p4348, %s26, 1
        %p4350 = scmp.lt.s32.totalorder %s4347, 15
        %s4351 = scalar_select %p4350, %s4347, 15
        %s4352 = smul.addr %s4351, 2
        %s4353 = smul.addr %s4349, 32
        %s4354 = sadd.s32 %s4352, %s4353
        %s4355 = smul.addr %s4354, 4
        %s4356 = scalar_lea.vmem %s9, %s4355
      $region68: #{up_conv_forward.4} parent=63 // pred_fallthru
        _
    $region64: #{up_conv_forward.4} parent=5 // pred_fallthru
      _
  $region6: #{up_conv_forward.4} parent=0 // loop_footer
    %s19 = sadd.s32 1, %s15
  $region7: #{up_conv_forward.4} parent=0 // loop_footer_branch
    %14 = sbr.rel target = $region3
  $region8: #{up_conv_forward.4} parent=0 // loop_exit
    _

</llo_original>
